<compile_context>
chip_gen: v7x
topology: tpu7x:2x2x1
jax: 0.10.0
libtpu: 0.0.40
codegen_flags: <defaults>
</compile_context>

<pallas_src>
import functools

import jax
import jax.numpy as jnp
from jax.experimental import pallas as pl
from jax.experimental.pallas import tpu as pltpu

LANE = 128  # lane width: pad feature dims to a multiple of this for unmasked stores


def _round_up(v, m):
    return ((v + m - 1) // m) * m


# ----------------------------- fused Pallas kernel -----------------------------

def gain_fused_kernel(adj_gin_ref, adj_sl_ref, x_ref,
                      gw1_ref, gb1_ref, gw2_ref, gb2_ref,
                      aw_ref, ac_ref, asrc_ref, adst_ref, abias_ref,
                      out_ref, *, depth):
    """One graph-block of the GAIN forward: GIN stack -> ReLU -> (BN folded) -> GAT stack -> ReLU."""
    f32, bf16 = jnp.float32, jnp.bfloat16

    adj_gin = adj_gin_ref[...]          # (BN, BN) bf16: A + I  (GIN '+ h' folded, eps=0)
    h = x_ref[...]                      # (BN, P)  bf16 node features (lane-padded)

    # ---- GIN stack: h <- MLP((A + I) @ h), ReLU between layers ----
    for d in range(depth):
        agg = jnp.dot(adj_gin, h, preferred_element_type=f32).astype(bf16)
        t = jnp.dot(agg, gw1_ref[d], preferred_element_type=f32) + gb1_ref[d]
        t = jnp.maximum(t, 0.0).astype(bf16)                 # ReLU inside the GIN MLP
        hf = jnp.dot(t, gw2_ref[d], preferred_element_type=f32) + gb2_ref[d]
        # between-layer ReLU (d < depth-1) merges with GAIN's F.relu (d == depth-1);
        # the eval-mode BatchNorm1d that follows is folded into GAT layer-0 weights.
        h = jnp.maximum(hf, 0.0).astype(bf16)

    # ---- GAT stack (heads=1, concat, self-loops already in adj_sl) ----
    adj_sl = adj_sl_ref[...]            # (BN, BN) bf16 multiplicities, diag >= 1

    for d in range(depth):
        # xs = x @ W (+ folded BN shift term for layer 0) -- f32 accumulation
        xs = jnp.dot(h, aw_ref[d], preferred_element_type=f32) + ac_ref[d]      # (BN, P)
        # attention logits (all f32)
        a_dst = jnp.sum(xs * adst_ref[d], axis=-1, keepdims=True)               # (BN, 1)
        a_src = jnp.dot(asrc_ref[d], xs.T, preferred_element_type=f32)          # (1, BN)
        e = a_dst + a_src                              # e[i, j] = a_dst[i] + a_src[j]
        e = jnp.where(e > 0.0, e, 0.2 * e)             # LeakyReLU(negative_slope=0.2)
        e = jnp.where(adj_sl > 0.0, e, jnp.float32(-1e30))   # mask non-edges in place
        e_max = jnp.max(e, axis=-1, keepdims=True)     # finite: every row has a self-loop
        p = adj_sl.astype(f32) * jnp.exp(e - e_max)    # multiplicity-weighted softmax numer.
        inv = pl.reciprocal(jnp.sum(p, axis=-1, keepdims=True), approx=True)
        # deferred normalization: dot(p, xs) * inv == dot(softmax(e), xs)
        num = jnp.dot(p.astype(bf16), xs.astype(bf16), preferred_element_type=f32)
        hf = num * inv + abias_ref[d]
        # between-layer ReLU (d < depth-1) coincides with the final GAIN F.relu (d == depth-1)
        hf = jnp.maximum(hf, 0.0)
        h = hf.astype(bf16)

    out_ref[...] = hf                                  # single lane-dense (BN, P) f32 store


# ----------------------------- pallas_call wrapper -----------------------------

def gain_fused(adj_gin, adj_sl, x_p, prep, *, depth, block_n):
    num_blocks = adj_gin.shape[0]
    n_total, p = x_p.shape

    # Per-grid-block node tiles (auto double-buffered by BlockSpec pipelining).
    adj_spec = pl.BlockSpec((None, block_n, block_n), lambda b: (b, 0, 0))
    node_spec = pl.BlockSpec((block_n, p), lambda b: (b, 0))
    # Weight stacks: full-array VMEM blocks, constant index_map -> fetched once, reused.
    w_spec = lambda: pl.BlockSpec((depth, p, p), lambda b: (0, 0, 0))
    r_spec = lambda: pl.BlockSpec((depth, 1, p), lambda b: (0, 0, 0))

    weights = (prep["gin_w1"], prep["gin_b1"], prep["gin_w2"], prep["gin_b2"],
               prep["gat_w"], prep["gat_c"], prep["gat_att_src"],
               prep["gat_att_dst"], prep["gat_bias"])
    weight_specs = [w_spec(), r_spec(), w_spec(), r_spec(),
                    w_spec(), r_spec(), r_spec(), r_spec(), r_spec()]

    return pl.pallas_call(
        functools.partial(gain_fused_kernel, depth=depth),
        grid=(num_blocks,),
        out_shape=jax.ShapeDtypeStruct((n_total, p), jnp.float32),
        in_specs=[adj_spec, adj_spec, node_spec] + weight_specs,
        out_specs=pl.BlockSpec((block_n, p), lambda b: (b, 0)),
        compiler_params=pltpu.CompilerParams(
            dimension_semantics=("parallel",)),   # graph blocks are independent (2nd TC on v7x)
    )(adj_gin, adj_sl, x_p, *weights)


# ----------------------------- parameters (deterministic, synthetic) -----------------------------

def init_gain_params(key, atom_fdim, hidden, depth):
    params = {"gin": [], "gat": []}
    d_in = atom_fdim
    for _ in range(depth):
        key, k1, k2 = jax.random.split(key, 3)
        params["gin"].append({
            "w1": 0.2 * jax.random.normal(k1, (d_in, hidden), jnp.float32),
            "b1": jnp.zeros((1, hidden), jnp.float32),
            "w2": 0.2 * jax.random.normal(k2, (hidden, hidden), jnp.float32),
            "b2": jnp.zeros((1, hidden), jnp.float32),
        })
        d_in = hidden
    # GAIN.bn1 (BatchNorm1d, eval mode) as per-channel scale / shift.
    key, kg, kb, km, kv = jax.random.split(key, 5)
    gamma = 1.0 + 0.1 * jax.random.normal(kg, (1, hidden), jnp.float32)
    beta = 0.05 * jax.random.normal(kb, (1, hidden), jnp.float32)
    rmean = 0.1 * jax.random.normal(km, (1, hidden), jnp.float32)
    rvar = 1.0 + 0.1 * jax.random.uniform(kv, (1, hidden), jnp.float32)
    inv = gamma / jnp.sqrt(rvar + 1e-5)
    params["bn1_scale"] = inv
    params["bn1_shift"] = beta - rmean * inv
    for _ in range(depth):
        key, k1, k2, k3 = jax.random.split(key, 4)
        params["gat"].append({
            "w": 0.2 * jax.random.normal(k1, (hidden, hidden), jnp.float32),
            "att_src": 0.2 * jax.random.normal(k2, (1, hidden), jnp.float32),
            "att_dst": 0.2 * jax.random.normal(k3, (1, hidden), jnp.float32),
            "bias": jnp.zeros((1, hidden), jnp.float32),
        })
    return params


def prepare_params(params, depth, p):
    """Zero-pad to lane width `p`, stack per layer, fold eval-mode BN into GAT layer 0,
    and cast MXU operands (weight matrices) to bf16.  Run ONCE at model setup."""
    f32, bf16 = jnp.float32, jnp.bfloat16

    def pad_mat(w):
        return jnp.pad(w, ((0, p - w.shape[0]), (0, p - w.shape[1])))

    def pad_row(v):  # (1, h) -> (1, p)
        return jnp.pad(v, ((0, 0), (0, p - v.shape[1])))

    gin_w1 = jnp.stack([pad_mat(l["w1"]) for l in params["gin"]]).astype(bf16)
    gin_b1 = jnp.stack([pad_row(l["b1"]) for l in params["gin"]]).astype(f32)
    gin_w2 = jnp.stack([pad_mat(l["w2"]) for l in params["gin"]]).astype(bf16)
    gin_b2 = jnp.stack([pad_row(l["b2"]) for l in params["gin"]]).astype(f32)

    # Fold eval-mode BN:  bn(relu(h)) @ W0 == relu(h) @ (diag(scale) @ W0) + (shift @ W0)
    scale = params["bn1_scale"]          # (1, hidden)
    shift = params["bn1_shift"]          # (1, hidden)
    gat_w, gat_c = [], []
    for d in range(depth):
        w = params["gat"][d]["w"]
        if d == 0:
            gat_w.append(pad_mat(scale.T * w))           # row-scale == diag(scale) @ W0
            gat_c.append(pad_row(shift @ w))             # per-layer xs bias (nonzero only here)
        else:
            gat_w.append(pad_mat(w))
            gat_c.append(jnp.zeros((1, p), f32))
    # NOTE: padded weight/att/bias entries are exactly zero -> padded lanes never leak
    # into attention logits or the softmax; this invariant must be preserved.
    return {
        "gin_w1": gin_w1, "gin_b1": gin_b1, "gin_w2": gin_w2, "gin_b2": gin_b2,
        "gat_w": jnp.stack(gat_w).astype(bf16),
        "gat_c": jnp.stack(gat_c).astype(f32),
        "gat_att_src": jnp.stack([pad_row(l["att_src"]) for l in params["gat"]]).astype(f32),
        "gat_att_dst": jnp.stack([pad_row(l["att_dst"]) for l in params["gat"]]).astype(f32),
        "gat_bias": jnp.stack([pad_row(l["bias"]) for l in params["gat"]]).astype(f32),
    }


# ----------------------------- graph-block construction -----------------------------

def build_graph_blocks(x, edge_index, *, num_blocks, block_n, p):
    """Block-diagonal adjacency per grid block (graphs never span blocks) + padded features.
    Cacheable across forwards if edge_index is reused."""
    n, f = x.shape
    n_total = num_blocks * block_n
    src, dst = edge_index[0], edge_index[1]
    blk = dst // block_n                 # src // block_n == dst // block_n by construction
    adj = jnp.zeros((num_blocks, block_n, block_n), jnp.float32)
    adj = adj.at[blk, dst % block_n, src % block_n].add(1.0)   # A[dst, src] = multiplicity
    eye = jnp.eye(block_n, dtype=jnp.float32)[None]
    adj_gin = adj + eye                  # GIN eps=0: (A + I) @ h == A @ h + h
    # GATConv: remove existing self-loops, add exactly one per node.  Padded (isolated)
    # rows also get a self-loop so their softmax stays finite; real rows never see them.
    adj_sl = adj * (1.0 - eye) + eye
    x_p = jnp.zeros((n_total, p), jnp.float32).at[:n, :f].set(x)
    # Small-integer multiplicities are exact in bf16; halves the HBM->VMEM payload.
    return adj_gin.astype(jnp.bfloat16), adj_sl.astype(jnp.bfloat16), x_p.astype(jnp.bfloat16)


# ----------------------------- GAIN forward -----------------------------

def gain_forward(prep, x, edge_index, edge_attr, edge_weight, batch, *,
                 depth, hidden, block_n, num_blocks, p):
    # edge_attr / edge_weight / batch accepted for signature parity but unused:
    # GINConv ignores edge_weight; GATConv(edge_dim=None) ignores edge_attr; norm=None
    # inside the BasicGNNs makes `batch` irrelevant (disjoint-union == per-graph).
    del edge_attr, edge_weight, batch
    adj_gin, adj_sl, x_p = build_graph_blocks(
        x, edge_index, num_blocks=num_blocks, block_n=block_n, p=p)
    out = gain_fused(adj_gin, adj_sl, x_p, prep, depth=depth, block_n=block_n)
    return out[:x.shape[0], :hidden]


# ----------------------------- main -----------------------------

if __name__ == "__main__":
    # 32 molecules x 16 atoms, stacked into 2 grid blocks of 256 nodes each
    # (256 rows fill the 256-wide MXU on v6e/v7x; the parallel grid uses both TCs on v7x).
    N_PER_GRAPH, GRAPHS_PER_BLOCK, NUM_BLOCKS = 16, 16, 2
    BLOCK_N = N_PER_GRAPH * GRAPHS_PER_BLOCK          # 256 nodes per block
    N_GRAPHS = GRAPHS_PER_BLOCK * NUM_BLOCKS          # 32 molecules
    ATOM_FDIM, BOND_FDIM, HIDDEN, DEPTH = 16, 8, 32, 3
    E_PER_GRAPH = 48
    N = N_PER_GRAPH * N_GRAPHS                        # 512 nodes
    E = E_PER_GRAPH * N_GRAPHS
    P = _round_up(max(ATOM_FDIM, HIDDEN), LANE)       # 128 lane-dense feature width

    key = jax.random.PRNGKey(0)
    key, kx, ks, kd, ka, kw = jax.random.split(key, 6)
    x = jax.random.normal(kx, (N, ATOM_FDIM), jnp.float32)
    src = jax.random.randint(ks, (N_GRAPHS, E_PER_GRAPH), 0, N_PER_GRAPH)
    dst = jax.random.randint(kd, (N_GRAPHS, E_PER_GRAPH), 0, N_PER_GRAPH)
    offs = (jnp.arange(N_GRAPHS) * N_PER_GRAPH)[:, None]
    edge_index = jnp.stack([(src + offs).reshape(-1), (dst + offs).reshape(-1)])  # (2, E)
    edge_attr = jax.random.normal(ka, (E, BOND_FDIM), jnp.float32)   # unused by GIN/GAT here
    edge_weight = jax.random.uniform(kw, (E,), jnp.float32)          # unused by GIN/GAT here
    batch = jnp.repeat(jnp.arange(N_GRAPHS, dtype=jnp.int32), N_PER_GRAPH)

    params = init_gain_params(jax.random.PRNGKey(42), ATOM_FDIM, HIDDEN, DEPTH)
    # Hoisted out of the hot path: pad / stack / BN-fold / bf16-cast once at model setup.
    prep = prepare_params(params, DEPTH, P)

    fwd = jax.jit(functools.partial(
        gain_forward, depth=DEPTH, hidden=HIDDEN,
        block_n=BLOCK_N, num_blocks=NUM_BLOCKS, p=P))
    out = fwd(prep, x, edge_index, edge_attr, edge_weight, batch)
    jax.block_until_ready(out)

    assert out.shape == (N, HIDDEN)
    assert bool(jnp.all(jnp.isfinite(out)))
    assert bool(jnp.all(out >= 0.0))  # final ReLU
    print("KERNEL_OK")
</pallas_src>

<mosaic_0001>
module attributes {stable_mosaic.version = 11 : i64} {
  func.func private @main(%arg0: i32) attributes {dimension_semantics = [#tpu.dimension_semantics<core_parallel>], iteration_bounds = array<i64: 2>, tpu.core_type = #tpu.core_type<sc_scalar_subcore>, window_params = []} {
    return
  }
}

module attributes {stable_mosaic.version = 11 : i64} {
  func.func private @main(%arg0: i32) attributes {dimension_semantics = [#tpu.dimension_semantics<core_parallel>], iteration_bounds = array<i64: 2>, tpu.core_type = #tpu.core_type<sc_scalar_subcore>, window_params = []} {
    return
  }
}

module attributes {stable_mosaic.version = 11 : i64} {
  func.func @gain_fused_kernel(%arg0: i32, %arg1: memref<1x256x256xbf16, #tpu.memory_space<vmem>>, %arg2: memref<1x256x256xbf16, #tpu.memory_space<vmem>>, %arg3: memref<256x128xbf16, #tpu.memory_space<vmem>>, %arg4: memref<3x128x128xbf16, #tpu.memory_space<vmem>>, %arg5: memref<3x1x128xf32, #tpu.memory_space<vmem>>, %arg6: memref<3x128x128xbf16, #tpu.memory_space<vmem>>, %arg7: memref<3x1x128xf32, #tpu.memory_space<vmem>>, %arg8: memref<3x128x128xbf16, #tpu.memory_space<vmem>>, %arg9: memref<3x1x128xf32, #tpu.memory_space<vmem>>, %arg10: memref<3x1x128xf32, #tpu.memory_space<vmem>>, %arg11: memref<3x1x128xf32, #tpu.memory_space<vmem>>, %arg12: memref<3x1x128xf32, #tpu.memory_space<vmem>>, %arg13: memref<256x128xf32, #tpu.memory_space<vmem>>) attributes {dimension_semantics = [#tpu.dimension_semantics<parallel>], iteration_bounds = array<i64: 2>, scalar_prefetch = 0 : i64, scratch_operands = 0 : i64, tpu.core_type = #tpu.core_type<tc>, window_params = [{transform_indices = @transform_0, window_bounds = array<i64: 1, 256, 256>}, {transform_indices = @transform_1, window_bounds = array<i64: 1, 256, 256>}, {transform_indices = @transform_2, window_bounds = array<i64: 256, 128>}, {pipeline_mode = #tpu.pipeline_mode<synchronous>, transform_indices = @transform_3, window_bounds = array<i64: 3, 128, 128>}, {pipeline_mode = #tpu.pipeline_mode<synchronous>, transform_indices = @transform_4, window_bounds = array<i64: 3, 1, 128>}, {pipeline_mode = #tpu.pipeline_mode<synchronous>, transform_indices = @transform_5, window_bounds = array<i64: 3, 128, 128>}, {pipeline_mode = #tpu.pipeline_mode<synchronous>, transform_indices = @transform_6, window_bounds = array<i64: 3, 1, 128>}, {pipeline_mode = #tpu.pipeline_mode<synchronous>, transform_indices = @transform_7, window_bounds = array<i64: 3, 128, 128>}, {pipeline_mode = #tpu.pipeline_mode<synchronous>, transform_indices = @transform_8, window_bounds = array<i64: 3, 1, 128>}, {pipeline_mode = #tpu.pipeline_mode<synchronous>, transform_indices = @transform_9, window_bounds = array<i64: 3, 1, 128>}, {pipeline_mode = #tpu.pipeline_mode<synchronous>, transform_indices = @transform_10, window_bounds = array<i64: 3, 1, 128>}, {pipeline_mode = #tpu.pipeline_mode<synchronous>, transform_indices = @transform_11, window_bounds = array<i64: 3, 1, 128>}, {transform_indices = @transform_12, window_bounds = array<i64: 256, 128>}]} {
    %c0 = arith.constant 0 : index
    %c0_0 = arith.constant 0 : index
    %c0_1 = arith.constant 0 : index
    %0 = vector.load %arg1[%c0, %c0_0, %c0_1] : memref<1x256x256xbf16, #tpu.memory_space<vmem>>, vector<1x256x256xbf16>
    %1 = vector.shape_cast %0 : vector<1x256x256xbf16> to vector<256x256xbf16>
    %c0_2 = arith.constant 0 : index
    %c0_3 = arith.constant 0 : index
    %2 = vector.load %arg3[%c0_2, %c0_3] : memref<256x128xbf16, #tpu.memory_space<vmem>>, vector<256x128xbf16>
    %cst = arith.constant dense<0.000000e+00> : vector<256x128xf32>
    %3 = tpu.matmul %1, %2, %cst {dimension_numbers = #tpu.dot_dimension_numbers<[1], [0], [0], [1], [0, 0, 1, 1], [], []>} : vector<256x256xbf16>, vector<256x128xbf16>, vector<256x128xf32> -> vector<256x128xf32>
    %4 = arith.truncf %3 : vector<256x128xf32> to vector<256x128xbf16>
    %c0_4 = arith.constant 0 : index
    %c0_5 = arith.constant 0 : index
    %c0_6 = arith.constant 0 : index
    %5 = vector.load %arg4[%c0_4, %c0_5, %c0_6] : memref<3x128x128xbf16, #tpu.memory_space<vmem>>, vector<1x128x128xbf16>
    %6 = vector.shape_cast %5 : vector<1x128x128xbf16> to vector<128x128xbf16>
    %cst_7 = arith.constant dense<0.000000e+00> : vector<256x128xf32>
    %7 = tpu.matmul %4, %6, %cst_7 {dimension_numbers = #tpu.dot_dimension_numbers<[1], [0], [0], [1], [0, 0, 1, 1], [], []>} : vector<256x128xbf16>, vector<128x128xbf16>, vector<256x128xf32> -> vector<256x128xf32>
    %c0_8 = arith.constant 0 : index
    %c0_9 = arith.constant 0 : index
    %c0_10 = arith.constant 0 : index
    %8 = vector.load %arg5[%c0_8, %c0_9, %c0_10] : memref<3x1x128xf32, #tpu.memory_space<vmem>>, vector<1x1x128xf32>
    %9 = vector.shape_cast %8 : vector<1x1x128xf32> to vector<1x128xf32>
    %10 = vector.broadcast %9 : vector<1x128xf32> to vector<256x128xf32>
    %11 = arith.addf %7, %10 : vector<256x128xf32>
    %cst_11 = arith.constant 0.000000e+00 : f32
    %12 = vector.broadcast %cst_11 : f32 to vector<256x128xf32>
    %13 = arith.maximumf %11, %12 : vector<256x128xf32>
    %14 = arith.truncf %13 : vector<256x128xf32> to vector<256x128xbf16>
    %c0_12 = arith.constant 0 : index
    %c0_13 = arith.constant 0 : index
    %c0_14 = arith.constant 0 : index
    %15 = vector.load %arg6[%c0_12, %c0_13, %c0_14] : memref<3x128x128xbf16, #tpu.memory_space<vmem>>, vector<1x128x128xbf16>
    %16 = vector.shape_cast %15 : vector<1x128x128xbf16> to vector<128x128xbf16>
    %cst_15 = arith.constant dense<0.000000e+00> : vector<256x128xf32>
    %17 = tpu.matmul %14, %16, %cst_15 {dimension_numbers = #tpu.dot_dimension_numbers<[1], [0], [0], [1], [0, 0, 1, 1], [], []>} : vector<256x128xbf16>, vector<128x128xbf16>, vector<256x128xf32> -> vector<256x128xf32>
    %c0_16 = arith.constant 0 : index
    %c0_17 = arith.constant 0 : index
    %c0_18 = arith.constant 0 : index
    %18 = vector.load %arg7[%c0_16, %c0_17, %c0_18] : memref<3x1x128xf32, #tpu.memory_space<vmem>>, vector<1x1x128xf32>
    %19 = vector.shape_cast %18 : vector<1x1x128xf32> to vector<1x128xf32>
    %20 = vector.broadcast %19 : vector<1x128xf32> to vector<256x128xf32>
    %21 = arith.addf %17, %20 : vector<256x128xf32>
    %cst_19 = arith.constant 0.000000e+00 : f32
    %22 = vector.broadcast %cst_19 : f32 to vector<256x128xf32>
    %23 = arith.maximumf %21, %22 : vector<256x128xf32>
    %24 = arith.truncf %23 : vector<256x128xf32> to vector<256x128xbf16>
    %cst_20 = arith.constant dense<0.000000e+00> : vector<256x128xf32>
    %25 = tpu.matmul %1, %24, %cst_20 {dimension_numbers = #tpu.dot_dimension_numbers<[1], [0], [0], [1], [0, 0, 1, 1], [], []>} : vector<256x256xbf16>, vector<256x128xbf16>, vector<256x128xf32> -> vector<256x128xf32>
    %26 = arith.truncf %25 : vector<256x128xf32> to vector<256x128xbf16>
    %c1 = arith.constant 1 : index
    %c0_21 = arith.constant 0 : index
    %c0_22 = arith.constant 0 : index
    %27 = vector.load %arg4[%c1, %c0_21, %c0_22] : memref<3x128x128xbf16, #tpu.memory_space<vmem>>, vector<1x128x128xbf16>
    %28 = vector.shape_cast %27 : vector<1x128x128xbf16> to vector<128x128xbf16>
    %cst_23 = arith.constant dense<0.000000e+00> : vector<256x128xf32>
    %29 = tpu.matmul %26, %28, %cst_23 {dimension_numbers = #tpu.dot_dimension_numbers<[1], [0], [0], [1], [0, 0, 1, 1], [], []>} : vector<256x128xbf16>, vector<128x128xbf16>, vector<256x128xf32> -> vector<256x128xf32>
    %c1_24 = arith.constant 1 : index
    %c0_25 = arith.constant 0 : index
    %c0_26 = arith.constant 0 : index
    %30 = vector.load %arg5[%c1_24, %c0_25, %c0_26] : memref<3x1x128xf32, #tpu.memory_space<vmem>>, vector<1x1x128xf32>
    %31 = vector.shape_cast %30 : vector<1x1x128xf32> to vector<1x128xf32>
    %32 = vector.broadcast %31 : vector<1x128xf32> to vector<256x128xf32>
    %33 = arith.addf %29, %32 : vector<256x128xf32>
    %cst_27 = arith.constant 0.000000e+00 : f32
    %34 = vector.broadcast %cst_27 : f32 to vector<256x128xf32>
    %35 = arith.maximumf %33, %34 : vector<256x128xf32>
    %36 = arith.truncf %35 : vector<256x128xf32> to vector<256x128xbf16>
    %c1_28 = arith.constant 1 : index
    %c0_29 = arith.constant 0 : index
    %c0_30 = arith.constant 0 : index
    %37 = vector.load %arg6[%c1_28, %c0_29, %c0_30] : memref<3x128x128xbf16, #tpu.memory_space<vmem>>, vector<1x128x128xbf16>
    %38 = vector.shape_cast %37 : vector<1x128x128xbf16> to vector<128x128xbf16>
    %cst_31 = arith.constant dense<0.000000e+00> : vector<256x128xf32>
    %39 = tpu.matmul %36, %38, %cst_31 {dimension_numbers = #tpu.dot_dimension_numbers<[1], [0], [0], [1], [0, 0, 1, 1], [], []>} : vector<256x128xbf16>, vector<128x128xbf16>, vector<256x128xf32> -> vector<256x128xf32>
    %c1_32 = arith.constant 1 : index
    %c0_33 = arith.constant 0 : index
    %c0_34 = arith.constant 0 : index
    %40 = vector.load %arg7[%c1_32, %c0_33, %c0_34] : memref<3x1x128xf32, #tpu.memory_space<vmem>>, vector<1x1x128xf32>
    %41 = vector.shape_cast %40 : vector<1x1x128xf32> to vector<1x128xf32>
    %42 = vector.broadcast %41 : vector<1x128xf32> to vector<256x128xf32>
    %43 = arith.addf %39, %42 : vector<256x128xf32>
    %cst_35 = arith.constant 0.000000e+00 : f32
    %44 = vector.broadcast %cst_35 : f32 to vector<256x128xf32>
    %45 = arith.maximumf %43, %44 : vector<256x128xf32>
    %46 = arith.truncf %45 : vector<256x128xf32> to vector<256x128xbf16>
    %cst_36 = arith.constant dense<0.000000e+00> : vector<256x128xf32>
    %47 = tpu.matmul %1, %46, %cst_36 {dimension_numbers = #tpu.dot_dimension_numbers<[1], [0], [0], [1], [0, 0, 1, 1], [], []>} : vector<256x256xbf16>, vector<256x128xbf16>, vector<256x128xf32> -> vector<256x128xf32>
    %48 = arith.truncf %47 : vector<256x128xf32> to vector<256x128xbf16>
    %c2 = arith.constant 2 : index
    %c0_37 = arith.constant 0 : index
    %c0_38 = arith.constant 0 : index
    %49 = vector.load %arg4[%c2, %c0_37, %c0_38] : memref<3x128x128xbf16, #tpu.memory_space<vmem>>, vector<1x128x128xbf16>
    %50 = vector.shape_cast %49 : vector<1x128x128xbf16> to vector<128x128xbf16>
    %cst_39 = arith.constant dense<0.000000e+00> : vector<256x128xf32>
    %51 = tpu.matmul %48, %50, %cst_39 {dimension_numbers = #tpu.dot_dimension_numbers<[1], [0], [0], [1], [0, 0, 1, 1], [], []>} : vector<256x128xbf16>, vector<128x128xbf16>, vector<256x128xf32> -> vector<256x128xf32>
    %c2_40 = arith.constant 2 : index
    %c0_41 = arith.constant 0 : index
    %c0_42 = arith.constant 0 : index
    %52 = vector.load %arg5[%c2_40, %c0_41, %c0_42] : memref<3x1x128xf32, #tpu.memory_space<vmem>>, vector<1x1x128xf32>
    %53 = vector.shape_cast %52 : vector<1x1x128xf32> to vector<1x128xf32>
    %54 = vector.broadcast %53 : vector<1x128xf32> to vector<256x128xf32>
    %55 = arith.addf %51, %54 : vector<256x128xf32>
    %cst_43 = arith.constant 0.000000e+00 : f32
    %56 = vector.broadcast %cst_43 : f32 to vector<256x128xf32>
    %57 = arith.maximumf %55, %56 : vector<256x128xf32>
    %58 = arith.truncf %57 : vector<256x128xf32> to vector<256x128xbf16>
    %c2_44 = arith.constant 2 : index
    %c0_45 = arith.constant 0 : index
    %c0_46 = arith.constant 0 : index
    %59 = vector.load %arg6[%c2_44, %c0_45, %c0_46] : memref<3x128x128xbf16, #tpu.memory_space<vmem>>, vector<1x128x128xbf16>
    %60 = vector.shape_cast %59 : vector<1x128x128xbf16> to vector<128x128xbf16>
    %cst_47 = arith.constant dense<0.000000e+00> : vector<256x128xf32>
    %61 = tpu.matmul %58, %60, %cst_47 {dimension_numbers = #tpu.dot_dimension_numbers<[1], [0], [0], [1], [0, 0, 1, 1], [], []>} : vector<256x128xbf16>, vector<128x128xbf16>, vector<256x128xf32> -> vector<256x128xf32>
    %c2_48 = arith.constant 2 : index
    %c0_49 = arith.constant 0 : index
    %c0_50 = arith.constant 0 : index
    %62 = vector.load %arg7[%c2_48, %c0_49, %c0_50] : memref<3x1x128xf32, #tpu.memory_space<vmem>>, vector<1x1x128xf32>
    %63 = vector.shape_cast %62 : vector<1x1x128xf32> to vector<1x128xf32>
    %64 = vector.broadcast %63 : vector<1x128xf32> to vector<256x128xf32>
    %65 = arith.addf %61, %64 : vector<256x128xf32>
    %cst_51 = arith.constant 0.000000e+00 : f32
    %66 = vector.broadcast %cst_51 : f32 to vector<256x128xf32>
    %67 = arith.maximumf %65, %66 : vector<256x128xf32>
    %68 = arith.truncf %67 : vector<256x128xf32> to vector<256x128xbf16>
    %c0_52 = arith.constant 0 : index
    %c0_53 = arith.constant 0 : index
    %c0_54 = arith.constant 0 : index
    %69 = vector.load %arg2[%c0_52, %c0_53, %c0_54] : memref<1x256x256xbf16, #tpu.memory_space<vmem>>, vector<1x256x256xbf16>
    %70 = vector.shape_cast %69 : vector<1x256x256xbf16> to vector<256x256xbf16>
    %c0_55 = arith.constant 0 : index
    %c0_56 = arith.constant 0 : index
    %c0_57 = arith.constant 0 : index
    %71 = vector.load %arg8[%c0_55, %c0_56, %c0_57] : memref<3x128x128xbf16, #tpu.memory_space<vmem>>, vector<1x128x128xbf16>
    %72 = vector.shape_cast %71 : vector<1x128x128xbf16> to vector<128x128xbf16>
    %cst_58 = arith.constant dense<0.000000e+00> : vector<256x128xf32>
    %73 = tpu.matmul %68, %72, %cst_58 {dimension_numbers = #tpu.dot_dimension_numbers<[1], [0], [0], [1], [0, 0, 1, 1], [], []>} : vector<256x128xbf16>, vector<128x128xbf16>, vector<256x128xf32> -> vector<256x128xf32>
    %c0_59 = arith.constant 0 : index
    %c0_60 = arith.constant 0 : index
    %c0_61 = arith.constant 0 : index
    %74 = vector.load %arg9[%c0_59, %c0_60, %c0_61] : memref<3x1x128xf32, #tpu.memory_space<vmem>>, vector<1x1x128xf32>
    %75 = vector.shape_cast %74 : vector<1x1x128xf32> to vector<1x128xf32>
    %76 = vector.broadcast %75 : vector<1x128xf32> to vector<256x128xf32>
    %77 = arith.addf %73, %76 : vector<256x128xf32>
    %c0_62 = arith.constant 0 : index
    %c0_63 = arith.constant 0 : index
    %c0_64 = arith.constant 0 : index
    %78 = vector.load %arg11[%c0_62, %c0_63, %c0_64] : memref<3x1x128xf32, #tpu.memory_space<vmem>>, vector<1x1x128xf32>
    %79 = vector.shape_cast %78 : vector<1x1x128xf32> to vector<1x128xf32>
    %80 = vector.broadcast %79 : vector<1x128xf32> to vector<256x128xf32>
    %81 = arith.mulf %77, %80 : vector<256x128xf32>
    %cst_65 = arith.constant dense<0.000000e+00> : vector<256xf32>
    %82 = vector.multi_reduction <add>, %81, %cst_65 [1] : vector<256x128xf32> to vector<256xf32>
    %83 = vector.shape_cast %82 : vector<256xf32> to vector<256x1xf32>
    %c0_66 = arith.constant 0 : index
    %c0_67 = arith.constant 0 : index
    %c0_68 = arith.constant 0 : index
    %84 = vector.load %arg10[%c0_66, %c0_67, %c0_68] : memref<3x1x128xf32, #tpu.memory_space<vmem>>, vector<1x1x128xf32>
    %85 = vector.shape_cast %84 : vector<1x1x128xf32> to vector<1x128xf32>
    %86 = tpu.transpose %77, [1, 0] : vector<256x128xf32> -> vector<128x256xf32>
    %cst_69 = arith.constant dense<0.000000e+00> : vector<1x256xf32>
    %87 = tpu.matmul %85, %86, %cst_69 {dimension_numbers = #tpu.dot_dimension_numbers<[1], [0], [0], [1], [0, 0, 1, 1], [], []>} : vector<1x128xf32>, vector<128x256xf32>, vector<1x256xf32> -> vector<1x256xf32>
    %88 = vector.broadcast %83 : vector<256x1xf32> to vector<256x256xf32>
    %89 = vector.broadcast %87 : vector<1x256xf32> to vector<256x256xf32>
    %90 = arith.addf %88, %89 : vector<256x256xf32>
    %cst_70 = arith.constant 0.000000e+00 : f32
    %91 = vector.broadcast %cst_70 : f32 to vector<256x256xf32>
    %92 = arith.cmpf ogt, %90, %91 : vector<256x256xf32>
    %cst_71 = arith.constant 2.000000e-01 : f32
    %93 = vector.broadcast %cst_71 : f32 to vector<256x256xf32>
    %94 = arith.mulf %93, %90 : vector<256x256xf32>
    %95 = arith.select %92, %90, %94 : vector<256x256xi1>, vector<256x256xf32>
    %cst_72 = arith.constant 0.000000e+00 : bf16
    %96 = vector.broadcast %cst_72 : bf16 to vector<256x256xbf16>
    %97 = arith.cmpf ogt, %70, %96 : vector<256x256xbf16>
    %cst_73 = arith.constant -1.000000e+30 : f32
    %98 = vector.broadcast %cst_73 : f32 to vector<256x256xf32>
    %99 = arith.select %97, %95, %98 : vector<256x256xi1>, vector<256x256xf32>
    %cst_74 = arith.constant dense<0xFF800000> : vector<256xf32>
    %100 = vector.multi_reduction <maximumf>, %99, %cst_74 [1] : vector<256x256xf32> to vector<256xf32>
    %101 = vector.shape_cast %100 : vector<256xf32> to vector<256x1xf32>
    %102 = arith.extf %70 : vector<256x256xbf16> to vector<256x256xf32>
    %103 = vector.broadcast %101 : vector<256x1xf32> to vector<256x256xf32>
    %104 = arith.subf %99, %103 : vector<256x256xf32>
    %105 = math.exp %104 : vector<256x256xf32>
    %106 = arith.mulf %102, %105 : vector<256x256xf32>
    %cst_75 = arith.constant dense<0.000000e+00> : vector<256xf32>
    %107 = vector.multi_reduction <add>, %106, %cst_75 [1] : vector<256x256xf32> to vector<256xf32>
    %108 = vector.shape_cast %107 : vector<256xf32> to vector<256x1xf32>
    %109 = tpu.reciprocal %108 {approx = true} : vector<256x1xf32> -> vector<256x1xf32>
    %110 = arith.truncf %106 : vector<256x256xf32> to vector<256x256xbf16>
    %111 = arith.truncf %77 : vector<256x128xf32> to vector<256x128xbf16>
    %cst_76 = arith.constant dense<0.000000e+00> : vector<256x128xf32>
    %112 = tpu.matmul %110, %111, %cst_76 {dimension_numbers = #tpu.dot_dimension_numbers<[1], [0], [0], [1], [0, 0, 1, 1], [], []>} : vector<256x256xbf16>, vector<256x128xbf16>, vector<256x128xf32> -> vector<256x128xf32>
    %113 = vector.broadcast %109 : vector<256x1xf32> to vector<256x128xf32>
    %114 = arith.mulf %112, %113 : vector<256x128xf32>
    %c0_77 = arith.constant 0 : index
    %c0_78 = arith.constant 0 : index
    %c0_79 = arith.constant 0 : index
    %115 = vector.load %arg12[%c0_77, %c0_78, %c0_79] : memref<3x1x128xf32, #tpu.memory_space<vmem>>, vector<1x1x128xf32>
    %116 = vector.shape_cast %115 : vector<1x1x128xf32> to vector<1x128xf32>
    %117 = vector.broadcast %116 : vector<1x128xf32> to vector<256x128xf32>
    %118 = arith.addf %114, %117 : vector<256x128xf32>
    %cst_80 = arith.constant 0.000000e+00 : f32
    %119 = vector.broadcast %cst_80 : f32 to vector<256x128xf32>
    %120 = arith.maximumf %118, %119 : vector<256x128xf32>
    %121 = arith.truncf %120 : vector<256x128xf32> to vector<256x128xbf16>
    %c1_81 = arith.constant 1 : index
    %c0_82 = arith.constant 0 : index
    %c0_83 = arith.constant 0 : index
    %122 = vector.load %arg8[%c1_81, %c0_82, %c0_83] : memref<3x128x128xbf16, #tpu.memory_space<vmem>>, vector<1x128x128xbf16>
    %123 = vector.shape_cast %122 : vector<1x128x128xbf16> to vector<128x128xbf16>
    %cst_84 = arith.constant dense<0.000000e+00> : vector<256x128xf32>
    %124 = tpu.matmul %121, %123, %cst_84 {dimension_numbers = #tpu.dot_dimension_numbers<[1], [0], [0], [1], [0, 0, 1, 1], [], []>} : vector<256x128xbf16>, vector<128x128xbf16>, vector<256x128xf32> -> vector<256x128xf32>
    %c1_85 = arith.constant 1 : index
    %c0_86 = arith.constant 0 : index
    %c0_87 = arith.constant 0 : index
    %125 = vector.load %arg9[%c1_85, %c0_86, %c0_87] : memref<3x1x128xf32, #tpu.memory_space<vmem>>, vector<1x1x128xf32>
    %126 = vector.shape_cast %125 : vector<1x1x128xf32> to vector<1x128xf32>
    %127 = vector.broadcast %126 : vector<1x128xf32> to vector<256x128xf32>
    %128 = arith.addf %124, %127 : vector<256x128xf32>
    %c1_88 = arith.constant 1 : index
    %c0_89 = arith.constant 0 : index
    %c0_90 = arith.constant 0 : index
    %129 = vector.load %arg11[%c1_88, %c0_89, %c0_90] : memref<3x1x128xf32, #tpu.memory_space<vmem>>, vector<1x1x128xf32>
    %130 = vector.shape_cast %129 : vector<1x1x128xf32> to vector<1x128xf32>
    %131 = vector.broadcast %130 : vector<1x128xf32> to vector<256x128xf32>
    %132 = arith.mulf %128, %131 : vector<256x128xf32>
    %cst_91 = arith.constant dense<0.000000e+00> : vector<256xf32>
    %133 = vector.multi_reduction <add>, %132, %cst_91 [1] : vector<256x128xf32> to vector<256xf32>
    %134 = vector.shape_cast %133 : vector<256xf32> to vector<256x1xf32>
    %c1_92 = arith.constant 1 : index
    %c0_93 = arith.constant 0 : index
    %c0_94 = arith.constant 0 : index
    %135 = vector.load %arg10[%c1_92, %c0_93, %c0_94] : memref<3x1x128xf32, #tpu.memory_space<vmem>>, vector<1x1x128xf32>
    %136 = vector.shape_cast %135 : vector<1x1x128xf32> to vector<1x128xf32>
    %137 = tpu.transpose %128, [1, 0] : vector<256x128xf32> -> vector<128x256xf32>
    %cst_95 = arith.constant dense<0.000000e+00> : vector<1x256xf32>
    %138 = tpu.matmul %136, %137, %cst_95 {dimension_numbers = #tpu.dot_dimension_numbers<[1], [0], [0], [1], [0, 0, 1, 1], [], []>} : vector<1x128xf32>, vector<128x256xf32>, vector<1x256xf32> -> vector<1x256xf32>
    %139 = vector.broadcast %134 : vector<256x1xf32> to vector<256x256xf32>
    %140 = vector.broadcast %138 : vector<1x256xf32> to vector<256x256xf32>
    %141 = arith.addf %139, %140 : vector<256x256xf32>
    %cst_96 = arith.constant 0.000000e+00 : f32
    %142 = vector.broadcast %cst_96 : f32 to vector<256x256xf32>
    %143 = arith.cmpf ogt, %141, %142 : vector<256x256xf32>
    %cst_97 = arith.constant 2.000000e-01 : f32
    %144 = vector.broadcast %cst_97 : f32 to vector<256x256xf32>
    %145 = arith.mulf %144, %141 : vector<256x256xf32>
    %146 = arith.select %143, %141, %145 : vector<256x256xi1>, vector<256x256xf32>
    %cst_98 = arith.constant 0.000000e+00 : bf16
    %147 = vector.broadcast %cst_98 : bf16 to vector<256x256xbf16>
    %148 = arith.cmpf ogt, %70, %147 : vector<256x256xbf16>
    %cst_99 = arith.constant -1.000000e+30 : f32
    %149 = vector.broadcast %cst_99 : f32 to vector<256x256xf32>
    %150 = arith.select %148, %146, %149 : vector<256x256xi1>, vector<256x256xf32>
    %cst_100 = arith.constant dense<0xFF800000> : vector<256xf32>
    %151 = vector.multi_reduction <maximumf>, %150, %cst_100 [1] : vector<256x256xf32> to vector<256xf32>
    %152 = vector.shape_cast %151 : vector<256xf32> to vector<256x1xf32>
    %153 = arith.extf %70 : vector<256x256xbf16> to vector<256x256xf32>
    %154 = vector.broadcast %152 : vector<256x1xf32> to vector<256x256xf32>
    %155 = arith.subf %150, %154 : vector<256x256xf32>
    %156 = math.exp %155 : vector<256x256xf32>
    %157 = arith.mulf %153, %156 : vector<256x256xf32>
    %cst_101 = arith.constant dense<0.000000e+00> : vector<256xf32>
    %158 = vector.multi_reduction <add>, %157, %cst_101 [1] : vector<256x256xf32> to vector<256xf32>
    %159 = vector.shape_cast %158 : vector<256xf32> to vector<256x1xf32>
    %160 = tpu.reciprocal %159 {approx = true} : vector<256x1xf32> -> vector<256x1xf32>
    %161 = arith.truncf %157 : vector<256x256xf32> to vector<256x256xbf16>
    %162 = arith.truncf %128 : vector<256x128xf32> to vector<256x128xbf16>
    %cst_102 = arith.constant dense<0.000000e+00> : vector<256x128xf32>
    %163 = tpu.matmul %161, %162, %cst_102 {dimension_numbers = #tpu.dot_dimension_numbers<[1], [0], [0], [1], [0, 0, 1, 1], [], []>} : vector<256x256xbf16>, vector<256x128xbf16>, vector<256x128xf32> -> vector<256x128xf32>
    %164 = vector.broadcast %160 : vector<256x1xf32> to vector<256x128xf32>
    %165 = arith.mulf %163, %164 : vector<256x128xf32>
    %c1_103 = arith.constant 1 : index
    %c0_104 = arith.constant 0 : index
    %c0_105 = arith.constant 0 : index
    %166 = vector.load %arg12[%c1_103, %c0_104, %c0_105] : memref<3x1x128xf32, #tpu.memory_space<vmem>>, vector<1x1x128xf32>
    %167 = vector.shape_cast %166 : vector<1x1x128xf32> to vector<1x128xf32>
    %168 = vector.broadcast %167 : vector<1x128xf32> to vector<256x128xf32>
    %169 = arith.addf %165, %168 : vector<256x128xf32>
    %cst_106 = arith.constant 0.000000e+00 : f32
    %170 = vector.broadcast %cst_106 : f32 to vector<256x128xf32>
    %171 = arith.maximumf %169, %170 : vector<256x128xf32>
    %172 = arith.truncf %171 : vector<256x128xf32> to vector<256x128xbf16>
    %c2_107 = arith.constant 2 : index
    %c0_108 = arith.constant 0 : index
    %c0_109 = arith.constant 0 : index
    %173 = vector.load %arg8[%c2_107, %c0_108, %c0_109] : memref<3x128x128xbf16, #tpu.memory_space<vmem>>, vector<1x128x128xbf16>
    %174 = vector.shape_cast %173 : vector<1x128x128xbf16> to vector<128x128xbf16>
    %cst_110 = arith.constant dense<0.000000e+00> : vector<256x128xf32>
    %175 = tpu.matmul %172, %174, %cst_110 {dimension_numbers = #tpu.dot_dimension_numbers<[1], [0], [0], [1], [0, 0, 1, 1], [], []>} : vector<256x128xbf16>, vector<128x128xbf16>, vector<256x128xf32> -> vector<256x128xf32>
    %c2_111 = arith.constant 2 : index
    %c0_112 = arith.constant 0 : index
    %c0_113 = arith.constant 0 : index
    %176 = vector.load %arg9[%c2_111, %c0_112, %c0_113] : memref<3x1x128xf32, #tpu.memory_space<vmem>>, vector<1x1x128xf32>
    %177 = vector.shape_cast %176 : vector<1x1x128xf32> to vector<1x128xf32>
    %178 = vector.broadcast %177 : vector<1x128xf32> to vector<256x128xf32>
    %179 = arith.addf %175, %178 : vector<256x128xf32>
    %c2_114 = arith.constant 2 : index
    %c0_115 = arith.constant 0 : index
    %c0_116 = arith.constant 0 : index
    %180 = vector.load %arg11[%c2_114, %c0_115, %c0_116] : memref<3x1x128xf32, #tpu.memory_space<vmem>>, vector<1x1x128xf32>
    %181 = vector.shape_cast %180 : vector<1x1x128xf32> to vector<1x128xf32>
    %182 = vector.broadcast %181 : vector<1x128xf32> to vector<256x128xf32>
    %183 = arith.mulf %179, %182 : vector<256x128xf32>
    %cst_117 = arith.constant dense<0.000000e+00> : vector<256xf32>
    %184 = vector.multi_reduction <add>, %183, %cst_117 [1] : vector<256x128xf32> to vector<256xf32>
    %185 = vector.shape_cast %184 : vector<256xf32> to vector<256x1xf32>
    %c2_118 = arith.constant 2 : index
    %c0_119 = arith.constant 0 : index
    %c0_120 = arith.constant 0 : index
    %186 = vector.load %arg10[%c2_118, %c0_119, %c0_120] : memref<3x1x128xf32, #tpu.memory_space<vmem>>, vector<1x1x128xf32>
    %187 = vector.shape_cast %186 : vector<1x1x128xf32> to vector<1x128xf32>
    %188 = tpu.transpose %179, [1, 0] : vector<256x128xf32> -> vector<128x256xf32>
    %cst_121 = arith.constant dense<0.000000e+00> : vector<1x256xf32>
    %189 = tpu.matmul %187, %188, %cst_121 {dimension_numbers = #tpu.dot_dimension_numbers<[1], [0], [0], [1], [0, 0, 1, 1], [], []>} : vector<1x128xf32>, vector<128x256xf32>, vector<1x256xf32> -> vector<1x256xf32>
    %190 = vector.broadcast %185 : vector<256x1xf32> to vector<256x256xf32>
    %191 = vector.broadcast %189 : vector<1x256xf32> to vector<256x256xf32>
    %192 = arith.addf %190, %191 : vector<256x256xf32>
    %cst_122 = arith.constant 0.000000e+00 : f32
    %193 = vector.broadcast %cst_122 : f32 to vector<256x256xf32>
    %194 = arith.cmpf ogt, %192, %193 : vector<256x256xf32>
    %cst_123 = arith.constant 2.000000e-01 : f32
    %195 = vector.broadcast %cst_123 : f32 to vector<256x256xf32>
    %196 = arith.mulf %195, %192 : vector<256x256xf32>
    %197 = arith.select %194, %192, %196 : vector<256x256xi1>, vector<256x256xf32>
    %cst_124 = arith.constant 0.000000e+00 : bf16
    %198 = vector.broadcast %cst_124 : bf16 to vector<256x256xbf16>
    %199 = arith.cmpf ogt, %70, %198 : vector<256x256xbf16>
    %cst_125 = arith.constant -1.000000e+30 : f32
    %200 = vector.broadcast %cst_125 : f32 to vector<256x256xf32>
    %201 = arith.select %199, %197, %200 : vector<256x256xi1>, vector<256x256xf32>
    %cst_126 = arith.constant dense<0xFF800000> : vector<256xf32>
    %202 = vector.multi_reduction <maximumf>, %201, %cst_126 [1] : vector<256x256xf32> to vector<256xf32>
    %203 = vector.shape_cast %202 : vector<256xf32> to vector<256x1xf32>
    %204 = arith.extf %70 : vector<256x256xbf16> to vector<256x256xf32>
    %205 = vector.broadcast %203 : vector<256x1xf32> to vector<256x256xf32>
    %206 = arith.subf %201, %205 : vector<256x256xf32>
    %207 = math.exp %206 : vector<256x256xf32>
    %208 = arith.mulf %204, %207 : vector<256x256xf32>
    %cst_127 = arith.constant dense<0.000000e+00> : vector<256xf32>
    %209 = vector.multi_reduction <add>, %208, %cst_127 [1] : vector<256x256xf32> to vector<256xf32>
    %210 = vector.shape_cast %209 : vector<256xf32> to vector<256x1xf32>
    %211 = tpu.reciprocal %210 {approx = true} : vector<256x1xf32> -> vector<256x1xf32>
    %212 = arith.truncf %208 : vector<256x256xf32> to vector<256x256xbf16>
    %213 = arith.truncf %179 : vector<256x128xf32> to vector<256x128xbf16>
    %cst_128 = arith.constant dense<0.000000e+00> : vector<256x128xf32>
    %214 = tpu.matmul %212, %213, %cst_128 {dimension_numbers = #tpu.dot_dimension_numbers<[1], [0], [0], [1], [0, 0, 1, 1], [], []>} : vector<256x256xbf16>, vector<256x128xbf16>, vector<256x128xf32> -> vector<256x128xf32>
    %215 = vector.broadcast %211 : vector<256x1xf32> to vector<256x128xf32>
    %216 = arith.mulf %214, %215 : vector<256x128xf32>
    %c2_129 = arith.constant 2 : index
    %c0_130 = arith.constant 0 : index
    %c0_131 = arith.constant 0 : index
    %217 = vector.load %arg12[%c2_129, %c0_130, %c0_131] : memref<3x1x128xf32, #tpu.memory_space<vmem>>, vector<1x1x128xf32>
    %218 = vector.shape_cast %217 : vector<1x1x128xf32> to vector<1x128xf32>
    %219 = vector.broadcast %218 : vector<1x128xf32> to vector<256x128xf32>
    %220 = arith.addf %216, %219 : vector<256x128xf32>
    %cst_132 = arith.constant 0.000000e+00 : f32
    %221 = vector.broadcast %cst_132 : f32 to vector<256x128xf32>
    %222 = arith.maximumf %220, %221 : vector<256x128xf32>
    %c0_133 = arith.constant 0 : index
    %c0_134 = arith.constant 0 : index
    %223 = vector.load %arg13[%c0_133, %c0_134] : memref<256x128xf32, #tpu.memory_space<vmem>>, vector<256x128xf32>
    tpu.vector_store %arg13[%c0_133, %c0_134], %222 {strides = array<i32>} : memref<256x128xf32, #tpu.memory_space<vmem>>, vector<256x128xf32>,
    return
  }
  func.func @transform_0(%arg0: i32) -> (i32, i32, i32) {
    %c0_i32 = arith.constant 0 : i32
    %c0_i32_0 = arith.constant 0 : i32
    %c0_i32_1 = arith.constant 0 : i32
    return %arg0, %c0_i32, %c0_i32_0 : i32, i32, i32
  }
  func.func @transform_1(%arg0: i32) -> (i32, i32, i32) {
    %c0_i32 = arith.constant 0 : i32
    %c0_i32_0 = arith.constant 0 : i32
    %c0_i32_1 = arith.constant 0 : i32
    return %arg0, %c0_i32, %c0_i32_0 : i32, i32, i32
  }
  func.func @transform_2(%arg0: i32) -> (i32, i32) {
    %c0_i32 = arith.constant 0 : i32
    %c0_i32_0 = arith.constant 0 : i32
    return %arg0, %c0_i32 : i32, i32
  }
  func.func @transform_3(%arg0: i32) -> (i32, i32, i32) {
    %c0_i32 = arith.constant 0 : i32
    %c0_i32_0 = arith.constant 0 : i32
    %c0_i32_1 = arith.constant 0 : i32
    %c0_i32_2 = arith.constant 0 : i32
    return %c0_i32, %c0_i32_0, %c0_i32_1 : i32, i32, i32
  }
  func.func @transform_4(%arg0: i32) -> (i32, i32, i32) {
    %c0_i32 = arith.constant 0 : i32
    %c0_i32_0 = arith.constant 0 : i32
    %c0_i32_1 = arith.constant 0 : i32
    %c0_i32_2 = arith.constant 0 : i32
    return %c0_i32, %c0_i32_0, %c0_i32_1 : i32, i32, i32
  }
  func.func @transform_5(%arg0: i32) -> (i32, i32, i32) {
    %c0_i32 = arith.constant 0 : i32
    %c0_i32_0 = arith.constant 0 : i32
    %c0_i32_1 = arith.constant 0 : i32
    %c0_i32_2 = arith.constant 0 : i32
    return %c0_i32, %c0_i32_0, %c0_i32_1 : i32, i32, i32
  }
  func.func @transform_6(%arg0: i32) -> (i32, i32, i32) {
    %c0_i32 = arith.constant 0 : i32
    %c0_i32_0 = arith.constant 0 : i32
    %c0_i32_1 = arith.constant 0 : i32
    %c0_i32_2 = arith.constant 0 : i32
    return %c0_i32, %c0_i32_0, %c0_i32_1 : i32, i32, i32
  }
  func.func @transform_7(%arg0: i32) -> (i32, i32, i32) {
    %c0_i32 = arith.constant 0 : i32
    %c0_i32_0 = arith.constant 0 : i32
    %c0_i32_1 = arith.constant 0 : i32
    %c0_i32_2 = arith.constant 0 : i32
    return %c0_i32, %c0_i32_0, %c0_i32_1 : i32, i32, i32
  }
  func.func @transform_8(%arg0: i32) -> (i32, i32, i32) {
    %c0_i32 = arith.constant 0 : i32
    %c0_i32_0 = arith.constant 0 : i32
    %c0_i32_1 = arith.constant 0 : i32
    %c0_i32_2 = arith.constant 0 : i32
    return %c0_i32, %c0_i32_0, %c0_i32_1 : i32, i32, i32
  }
  func.func @transform_9(%arg0: i32) -> (i32, i32, i32) {
    %c0_i32 = arith.constant 0 : i32
    %c0_i32_0 = arith.constant 0 : i32
    %c0_i32_1 = arith.constant 0 : i32
    %c0_i32_2 = arith.constant 0 : i32
    return %c0_i32, %c0_i32_0, %c0_i32_1 : i32, i32, i32
  }
  func.func @transform_10(%arg0: i32) -> (i32, i32, i32) {
    %c0_i32 = arith.constant 0 : i32
    %c0_i32_0 = arith.constant 0 : i32
    %c0_i32_1 = arith.constant 0 : i32
    %c0_i32_2 = arith.constant 0 : i32
    return %c0_i32, %c0_i32_0, %c0_i32_1 : i32, i32, i32
  }
  func.func @transform_11(%arg0: i32) -> (i32, i32, i32) {
    %c0_i32 = arith.constant 0 : i32
    %c0_i32_0 = arith.constant 0 : i32
    %c0_i32_1 = arith.constant 0 : i32
    %c0_i32_2 = arith.constant 0 : i32
    return %c0_i32, %c0_i32_0, %c0_i32_1 : i32, i32, i32
  }
  func.func @transform_12(%arg0: i32) -> (i32, i32) {
    %c0_i32 = arith.constant 0 : i32
    %c0_i32_0 = arith.constant 0 : i32
    return %arg0, %c0_i32 : i32, i32
  }
}

</mosaic_0001>

<llo_original>
// kernel: gain_forward.1
$region0: #{gain_forward.1}
  #allocation0 [shape = 'u32[]', space=smem, size = 0x4, offset = 0x4, fixed_abs, tag = 'smem constant byte address 0x4 - core index']
  #allocation1 [shape = 'u32[144,128]{1,0:T(1,128)}', space=vmem, size = 0x12000, scoped, tag = 'internal scratch']
  %s0 = inlined_call_operand.vmem [shape: bf16[2,256,256], index: 0, kind: input, shape index: {}]
  %s1 = inlined_call_operand.vmem [shape: bf16[2,256,256], index: 1, kind: input, shape index: {}]
  %s2 = inlined_call_operand.vmem [shape: bf16[512,128], index: 2, kind: input, shape index: {}]
  %s3 = inlined_call_operand.vmem [shape: bf16[3,128,128], index: 3, kind: input, shape index: {}]
  %s4 = inlined_call_operand.vmem [shape: f32[3,1,128], index: 4, kind: input, shape index: {}]
  %s5 = inlined_call_operand.vmem [shape: bf16[3,128,128], index: 5, kind: input, shape index: {}]
  %s6 = inlined_call_operand.vmem [shape: f32[3,1,128], index: 6, kind: input, shape index: {}]
  %s7 = inlined_call_operand.vmem [shape: bf16[3,128,128], index: 7, kind: input, shape index: {}]
  %s8 = inlined_call_operand.vmem [shape: f32[3,1,128], index: 8, kind: input, shape index: {}]
  %s9 = inlined_call_operand.vmem [shape: f32[3,1,128], index: 9, kind: input, shape index: {}]
  %s10 = inlined_call_operand.vmem [shape: f32[3,1,128], index: 10, kind: input, shape index: {}]
  %s11 = inlined_call_operand.vmem [shape: f32[3,1,128], index: 11, kind: input, shape index: {}]
  %s12 = inlined_call_operand.vmem [shape: f32[512,128], index: 12, kind: output, shape index: {}]
  %s13 = sld [smem:[#allocation0]]
  $region81: #{gain_forward.1} parent=0
    _
  %s15 = ssub.s32 1, %s13
  %s16 = scalar_select 0, %s15, %s13
  loop: start=0, step=1, limit=4
  $region2: #{gain_forward.1} parent=0 // loop_pre_header
    _
  $region3: #{gain_forward.1} parent=0 // loop_header
    %s18 = sphi 0, %s22
    %p19 = scmp.ge.s32.totalorder %s18, 4
    %s28 = sphi 0, %s30
    %s31 = sphi 0, %s28
    %s32 = sphi 0, %s31
    %s48 = sphi 0, %s32
    %s54 = sphi 0, %s56
    %s57 = sphi 0, %s54
    %s58 = sphi 0, %s57
    %s74 = sphi 0, %s58
    %s80 = sphi 0, %s82
    %s83 = sphi 0, %s80
    %s84 = sphi 0, %s83
    %s100 = sphi 0, %s84
    %s104 = sphi 0, %s104
    %s106 = sphi 0, %s104
    %s107 = sphi 0, %s106
    %s121 = sphi 0, %s107
    %s125 = sphi 0, %s125
    %s127 = sphi 0, %s125
    %s128 = sphi 0, %s127
    %s142 = sphi 0, %s128
    %s146 = sphi 0, %s146
    %s148 = sphi 0, %s146
    %s149 = sphi 0, %s148
    %s163 = sphi 0, %s149
    %s167 = sphi 0, %s167
    %s169 = sphi 0, %s167
    %s170 = sphi 0, %s169
    %s184 = sphi 0, %s170
    %s188 = sphi 0, %s188
    %s190 = sphi 0, %s188
    %s191 = sphi 0, %s190
    %s205 = sphi 0, %s191
    %s209 = sphi 0, %s209
    %s211 = sphi 0, %s209
    %s212 = sphi 0, %s211
    %s226 = sphi 0, %s212
    %s230 = sphi 0, %s230
    %s232 = sphi 0, %s230
    %s233 = sphi 0, %s232
    %s247 = sphi 0, %s233
    %s251 = sphi 0, %s251
    %s253 = sphi 0, %s251
    %s254 = sphi 0, %s253
    %s268 = sphi 0, %s254
    %s272 = sphi 0, %s272
    %s274 = sphi 0, %s272
    %s275 = sphi 0, %s274
    %s289 = sphi 0, %s275
    %s295 = sphi 0, %s297
    %s298 = sphi 0, %s295
    %s299 = sphi 0, %s298
    %s315 = sphi 0, %s299
  $region4: #{gain_forward.1} parent=0 // loop_header_branch
    %21 = sbr.rel (%p19) target = $region8
  $region5: #{gain_forward.1} parent=0 // loop_body
    %s23 = ssub.s32 %s18, 1
    %s24 = ssub.s32 %s18, 2
    %s25 = sadd.s32 %s18, 1
    %s26 = ssub.s32 %s18, %s25
    %p27 = scmp.eq.s32.totalorder %s26, 0
    %s29 = sadd.s32 %s28, 1
    %s30 = scalar_select %p27, %s28, %s29
    %p33 = pneg %p27
    %p34 = scmp.eq.s32.totalorder %s18, 1
    %p35 = por %p33, %p34
    %p36 = scmp.ne.s32.totalorder %s28, %s31
    %p37 = scmp.eq.s32.totalorder %s18, 0
    %p38 = por %p36, %p37
    %p39 = scmp.ne.s32.totalorder %s28, %s31
    %p40 = scmp.eq.s32.totalorder %s23, 1
    %p41 = por %p39, %p40
    %p42 = scmp.ne.s32.totalorder %s31, %s32
    %p43 = scmp.eq.s32.totalorder %s23, 0
    %p44 = por %p42, %p43
    %p45 = scmp.ne.s32.totalorder %s31, %s32
    %p46 = scmp.eq.s32.totalorder %s24, 1
    %p47 = por %p45, %p46
    %p49 = scmp.ne.s32.totalorder %s32, %s48
    %p50 = scmp.eq.s32.totalorder %s24, 0
    %p51 = por %p49, %p50
    %s52 = ssub.s32 %s18, %s25
    %p53 = scmp.eq.s32.totalorder %s52, 0
    %s55 = sadd.s32 %s54, 1
    %s56 = scalar_select %p53, %s54, %s55
    %p59 = pneg %p53
    %p60 = scmp.eq.s32.totalorder %s18, 1
    %p61 = por %p59, %p60
    %p62 = scmp.ne.s32.totalorder %s54, %s57
    %p63 = scmp.eq.s32.totalorder %s18, 0
    %p64 = por %p62, %p63
    %p65 = scmp.ne.s32.totalorder %s54, %s57
    %p66 = scmp.eq.s32.totalorder %s23, 1
    %p67 = por %p65, %p66
    %p68 = scmp.ne.s32.totalorder %s57, %s58
    %p69 = scmp.eq.s32.totalorder %s23, 0
    %p70 = por %p68, %p69
    %p71 = scmp.ne.s32.totalorder %s57, %s58
    %p72 = scmp.eq.s32.totalorder %s24, 1
    %p73 = por %p71, %p72
    %p75 = scmp.ne.s32.totalorder %s58, %s74
    %p76 = scmp.eq.s32.totalorder %s24, 0
    %p77 = por %p75, %p76
    %s78 = ssub.s32 %s18, %s25
    %p79 = scmp.eq.s32.totalorder %s78, 0
    %s81 = sadd.s32 %s80, 1
    %s82 = scalar_select %p79, %s80, %s81
    %p85 = pneg %p79
    %p86 = scmp.eq.s32.totalorder %s18, 1
    %p87 = por %p85, %p86
    %p88 = scmp.ne.s32.totalorder %s80, %s83
    %p89 = scmp.eq.s32.totalorder %s18, 0
    %p90 = por %p88, %p89
    %p91 = scmp.ne.s32.totalorder %s80, %s83
    %p92 = scmp.eq.s32.totalorder %s23, 1
    %p93 = por %p91, %p92
    %p94 = scmp.ne.s32.totalorder %s83, %s84
    %p95 = scmp.eq.s32.totalorder %s23, 0
    %p96 = por %p94, %p95
    %p97 = scmp.ne.s32.totalorder %s83, %s84
    %p98 = scmp.eq.s32.totalorder %s24, 1
    %p99 = por %p97, %p98
    %p101 = scmp.ne.s32.totalorder %s84, %s100
    %p102 = scmp.eq.s32.totalorder %s24, 0
    %p103 = por %p101, %p102
    %s105 = sadd.s32 %s104, 1
    %p108 = scmp.eq.s32.totalorder %s18, 1
    %p109 = scmp.ne.s32.totalorder %s104, %s106
    %p110 = scmp.eq.s32.totalorder %s18, 0
    %p111 = por %p109, %p110
    %p112 = scmp.ne.s32.totalorder %s104, %s106
    %p113 = scmp.eq.s32.totalorder %s23, 1
    %p114 = por %p112, %p113
    %p115 = scmp.ne.s32.totalorder %s106, %s107
    %p116 = scmp.eq.s32.totalorder %s23, 0
    %p117 = por %p115, %p116
    %p118 = scmp.ne.s32.totalorder %s106, %s107
    %p119 = scmp.eq.s32.totalorder %s24, 1
    %p120 = por %p118, %p119
    %p122 = scmp.ne.s32.totalorder %s107, %s121
    %p123 = scmp.eq.s32.totalorder %s24, 0
    %p124 = por %p122, %p123
    %s126 = sadd.s32 %s125, 1
    %p129 = scmp.eq.s32.totalorder %s18, 1
    %p130 = scmp.ne.s32.totalorder %s125, %s127
    %p131 = scmp.eq.s32.totalorder %s18, 0
    %p132 = por %p130, %p131
    %p133 = scmp.ne.s32.totalorder %s125, %s127
    %p134 = scmp.eq.s32.totalorder %s23, 1
    %p135 = por %p133, %p134
    %p136 = scmp.ne.s32.totalorder %s127, %s128
    %p137 = scmp.eq.s32.totalorder %s23, 0
    %p138 = por %p136, %p137
    %p139 = scmp.ne.s32.totalorder %s127, %s128
    %p140 = scmp.eq.s32.totalorder %s24, 1
    %p141 = por %p139, %p140
    %p143 = scmp.ne.s32.totalorder %s128, %s142
    %p144 = scmp.eq.s32.totalorder %s24, 0
    %p145 = por %p143, %p144
    %s147 = sadd.s32 %s146, 1
    %p150 = scmp.eq.s32.totalorder %s18, 1
    %p151 = scmp.ne.s32.totalorder %s146, %s148
    %p152 = scmp.eq.s32.totalorder %s18, 0
    %p153 = por %p151, %p152
    %p154 = scmp.ne.s32.totalorder %s146, %s148
    %p155 = scmp.eq.s32.totalorder %s23, 1
    %p156 = por %p154, %p155
    %p157 = scmp.ne.s32.totalorder %s148, %s149
    %p158 = scmp.eq.s32.totalorder %s23, 0
    %p159 = por %p157, %p158
    %p160 = scmp.ne.s32.totalorder %s148, %s149
    %p161 = scmp.eq.s32.totalorder %s24, 1
    %p162 = por %p160, %p161
    %p164 = scmp.ne.s32.totalorder %s149, %s163
    %p165 = scmp.eq.s32.totalorder %s24, 0
    %p166 = por %p164, %p165
    %s168 = sadd.s32 %s167, 1
    %p171 = scmp.eq.s32.totalorder %s18, 1
    %p172 = scmp.ne.s32.totalorder %s167, %s169
    %p173 = scmp.eq.s32.totalorder %s18, 0
    %p174 = por %p172, %p173
    %p175 = scmp.ne.s32.totalorder %s167, %s169
    %p176 = scmp.eq.s32.totalorder %s23, 1
    %p177 = por %p175, %p176
    %p178 = scmp.ne.s32.totalorder %s169, %s170
    %p179 = scmp.eq.s32.totalorder %s23, 0
    %p180 = por %p178, %p179
    %p181 = scmp.ne.s32.totalorder %s169, %s170
    %p182 = scmp.eq.s32.totalorder %s24, 1
    %p183 = por %p181, %p182
    %p185 = scmp.ne.s32.totalorder %s170, %s184
    %p186 = scmp.eq.s32.totalorder %s24, 0
    %p187 = por %p185, %p186
    %s189 = sadd.s32 %s188, 1
    %p192 = scmp.eq.s32.totalorder %s18, 1
    %p193 = scmp.ne.s32.totalorder %s188, %s190
    %p194 = scmp.eq.s32.totalorder %s18, 0
    %p195 = por %p193, %p194
    %p196 = scmp.ne.s32.totalorder %s188, %s190
    %p197 = scmp.eq.s32.totalorder %s23, 1
    %p198 = por %p196, %p197
    %p199 = scmp.ne.s32.totalorder %s190, %s191
    %p200 = scmp.eq.s32.totalorder %s23, 0
    %p201 = por %p199, %p200
    %p202 = scmp.ne.s32.totalorder %s190, %s191
    %p203 = scmp.eq.s32.totalorder %s24, 1
    %p204 = por %p202, %p203
    %p206 = scmp.ne.s32.totalorder %s191, %s205
    %p207 = scmp.eq.s32.totalorder %s24, 0
    %p208 = por %p206, %p207
    %s210 = sadd.s32 %s209, 1
    %p213 = scmp.eq.s32.totalorder %s18, 1
    %p214 = scmp.ne.s32.totalorder %s209, %s211
    %p215 = scmp.eq.s32.totalorder %s18, 0
    %p216 = por %p214, %p215
    %p217 = scmp.ne.s32.totalorder %s209, %s211
    %p218 = scmp.eq.s32.totalorder %s23, 1
    %p219 = por %p217, %p218
    %p220 = scmp.ne.s32.totalorder %s211, %s212
    %p221 = scmp.eq.s32.totalorder %s23, 0
    %p222 = por %p220, %p221
    %p223 = scmp.ne.s32.totalorder %s211, %s212
    %p224 = scmp.eq.s32.totalorder %s24, 1
    %p225 = por %p223, %p224
    %p227 = scmp.ne.s32.totalorder %s212, %s226
    %p228 = scmp.eq.s32.totalorder %s24, 0
    %p229 = por %p227, %p228
    %s231 = sadd.s32 %s230, 1
    %p234 = scmp.eq.s32.totalorder %s18, 1
    %p235 = scmp.ne.s32.totalorder %s230, %s232
    %p236 = scmp.eq.s32.totalorder %s18, 0
    %p237 = por %p235, %p236
    %p238 = scmp.ne.s32.totalorder %s230, %s232
    %p239 = scmp.eq.s32.totalorder %s23, 1
    %p240 = por %p238, %p239
    %p241 = scmp.ne.s32.totalorder %s232, %s233
    %p242 = scmp.eq.s32.totalorder %s23, 0
    %p243 = por %p241, %p242
    %p244 = scmp.ne.s32.totalorder %s232, %s233
    %p245 = scmp.eq.s32.totalorder %s24, 1
    %p246 = por %p244, %p245
    %p248 = scmp.ne.s32.totalorder %s233, %s247
    %p249 = scmp.eq.s32.totalorder %s24, 0
    %p250 = por %p248, %p249
    %s252 = sadd.s32 %s251, 1
    %p255 = scmp.eq.s32.totalorder %s18, 1
    %p256 = scmp.ne.s32.totalorder %s251, %s253
    %p257 = scmp.eq.s32.totalorder %s18, 0
    %p258 = por %p256, %p257
    %p259 = scmp.ne.s32.totalorder %s251, %s253
    %p260 = scmp.eq.s32.totalorder %s23, 1
    %p261 = por %p259, %p260
    %p262 = scmp.ne.s32.totalorder %s253, %s254
    %p263 = scmp.eq.s32.totalorder %s23, 0
    %p264 = por %p262, %p263
    %p265 = scmp.ne.s32.totalorder %s253, %s254
    %p266 = scmp.eq.s32.totalorder %s24, 1
    %p267 = por %p265, %p266
    %p269 = scmp.ne.s32.totalorder %s254, %s268
    %p270 = scmp.eq.s32.totalorder %s24, 0
    %p271 = por %p269, %p270
    %s273 = sadd.s32 %s272, 1
    %p276 = scmp.eq.s32.totalorder %s18, 1
    %p277 = scmp.ne.s32.totalorder %s272, %s274
    %p278 = scmp.eq.s32.totalorder %s18, 0
    %p279 = por %p277, %p278
    %p280 = scmp.ne.s32.totalorder %s272, %s274
    %p281 = scmp.eq.s32.totalorder %s23, 1
    %p282 = por %p280, %p281
    %p283 = scmp.ne.s32.totalorder %s274, %s275
    %p284 = scmp.eq.s32.totalorder %s23, 0
    %p285 = por %p283, %p284
    %p286 = scmp.ne.s32.totalorder %s274, %s275
    %p287 = scmp.eq.s32.totalorder %s24, 1
    %p288 = por %p286, %p287
    %p290 = scmp.ne.s32.totalorder %s275, %s289
    %p291 = scmp.eq.s32.totalorder %s24, 0
    %p292 = por %p290, %p291
    %s293 = ssub.s32 %s18, %s25
    %p294 = scmp.eq.s32.totalorder %s293, 0
    %s296 = sadd.s32 %s295, 1
    %s297 = scalar_select %p294, %s295, %s296
    %p300 = pneg %p294
    %p301 = scmp.eq.s32.totalorder %s18, 1
    %p302 = por %p300, %p301
    %p303 = scmp.ne.s32.totalorder %s295, %s298
    %p304 = scmp.eq.s32.totalorder %s18, 0
    %p305 = por %p303, %p304
    %p306 = scmp.ne.s32.totalorder %s295, %s298
    %p307 = scmp.eq.s32.totalorder %s23, 1
    %p308 = por %p306, %p307
    %p309 = scmp.ne.s32.totalorder %s298, %s299
    %p310 = scmp.eq.s32.totalorder %s23, 0
    %p311 = por %p309, %p310
    %p312 = scmp.ne.s32.totalorder %s298, %s299
    %p313 = scmp.eq.s32.totalorder %s24, 1
    %p314 = por %p312, %p313
    %p316 = scmp.ne.s32.totalorder %s299, %s315
    %p317 = scmp.eq.s32.totalorder %s24, 0
    %p318 = por %p316, %p317
    %p319 = scmp.le.s32.totalorder 1, %s18
    %p320 = scmp.lt.s32.totalorder %s18, 3
    %p321 = pnand %p319, %p320
    %p322 = pneg %p321
    // Predicated region
    $region9: #{gain_forward.1} parent=5 // pred_check
      _
    $region10: #{gain_forward.1} parent=5 // pred_check_branch
      %324 = sbr.rel (%p321) target = $region12
    $region11: #{gain_forward.1} parent=5 // pred_region
      %s325 = ssub.s32 %s18, 1
      // Predicated region
      $region13: #{gain_forward.1} parent=11 // pred_check
        %p326 = pneg %p117
      $region14: #{gain_forward.1} parent=11 // pred_check_branch
        %328 = sbr.rel (%p326) target = $region16
      $region15: #{gain_forward.1} parent=11 // pred_region
        _
      $region16: #{gain_forward.1} parent=11 // pred_fallthru
        _
      // Predicated region
      $region17: #{gain_forward.1} parent=11 // pred_check
        %p329 = pneg %p138
      $region18: #{gain_forward.1} parent=11 // pred_check_branch
        %331 = sbr.rel (%p329) target = $region20
      $region19: #{gain_forward.1} parent=11 // pred_region
        _
      $region20: #{gain_forward.1} parent=11 // pred_fallthru
        _
      // Predicated region
      $region21: #{gain_forward.1} parent=11 // pred_check
        %p332 = pneg %p159
      $region22: #{gain_forward.1} parent=11 // pred_check_branch
        %334 = sbr.rel (%p332) target = $region24
      $region23: #{gain_forward.1} parent=11 // pred_region
        _
      $region24: #{gain_forward.1} parent=11 // pred_fallthru
        _
      // Predicated region
      $region25: #{gain_forward.1} parent=11 // pred_check
        %p335 = pneg %p180
      $region26: #{gain_forward.1} parent=11 // pred_check_branch
        %337 = sbr.rel (%p335) target = $region28
      $region27: #{gain_forward.1} parent=11 // pred_region
        _
      $region28: #{gain_forward.1} parent=11 // pred_fallthru
        _
      // Predicated region
      $region29: #{gain_forward.1} parent=11 // pred_check
        %p338 = pneg %p201
      $region30: #{gain_forward.1} parent=11 // pred_check_branch
        %340 = sbr.rel (%p338) target = $region32
      $region31: #{gain_forward.1} parent=11 // pred_region
        _
      $region32: #{gain_forward.1} parent=11 // pred_fallthru
        _
      // Predicated region
      $region33: #{gain_forward.1} parent=11 // pred_check
        %p341 = pneg %p222
      $region34: #{gain_forward.1} parent=11 // pred_check_branch
        %343 = sbr.rel (%p341) target = $region36
      $region35: #{gain_forward.1} parent=11 // pred_region
        _
      $region36: #{gain_forward.1} parent=11 // pred_fallthru
        _
      // Predicated region
      $region37: #{gain_forward.1} parent=11 // pred_check
        %p344 = pneg %p243
      $region38: #{gain_forward.1} parent=11 // pred_check_branch
        %346 = sbr.rel (%p344) target = $region40
      $region39: #{gain_forward.1} parent=11 // pred_region
        _
      $region40: #{gain_forward.1} parent=11 // pred_fallthru
        _
      // Predicated region
      $region41: #{gain_forward.1} parent=11 // pred_check
        %p347 = pneg %p264
      $region42: #{gain_forward.1} parent=11 // pred_check_branch
        %349 = sbr.rel (%p347) target = $region44
      $region43: #{gain_forward.1} parent=11 // pred_region
        _
      $region44: #{gain_forward.1} parent=11 // pred_fallthru
        _
      // Predicated region
      $region45: #{gain_forward.1} parent=11 // pred_check
        %p350 = pneg %p285
      $region46: #{gain_forward.1} parent=11 // pred_check_branch
        %352 = sbr.rel (%p350) target = $region48
      $region47: #{gain_forward.1} parent=11 // pred_region
        _
      $region48: #{gain_forward.1} parent=11 // pred_fallthru
        _
    $region12: #{gain_forward.1} parent=5 // pred_fallthru
      _
    %p353 = scmp.lt.s32.totalorder %s18, 2
    // Predicated region
    $region49: #{gain_forward.1} parent=5 // pred_check
      %p354 = pneg %p353
    $region50: #{gain_forward.1} parent=5 // pred_check_branch
      %356 = sbr.rel (%p354) target = $region52
    $region51: #{gain_forward.1} parent=5 // pred_region
      // Predicated region
      $region53: #{gain_forward.1} parent=51 // pred_check
        %p357 = pneg %p38
      $region54: #{gain_forward.1} parent=51 // pred_check_branch
        %359 = sbr.rel (%p357) target = $region56
      $region55: #{gain_forward.1} parent=51 // pred_region
        %p360 = scmp.lt.s32.totalorder %s18, 1
        %s361 = scalar_select %p360, %s18, 1
        %s362 = smul.addr %s361, 64
        %s363 = smul.addr %s362, 4
        %s364 = scalar_lea.vmem %s0, %s363
      $region56: #{gain_forward.1} parent=51 // pred_fallthru
        _
      // Predicated region
      $region57: #{gain_forward.1} parent=51 // pred_check
        %p365 = pneg %p64
      $region58: #{gain_forward.1} parent=51 // pred_check_branch
        %367 = sbr.rel (%p365) target = $region60
      $region59: #{gain_forward.1} parent=51 // pred_region
        %p368 = scmp.lt.s32.totalorder %s18, 1
        %s369 = scalar_select %p368, %s18, 1
        %s370 = smul.addr %s369, 64
        %s371 = smul.addr %s370, 4
        %s372 = scalar_lea.vmem %s1, %s371
      $region60: #{gain_forward.1} parent=51 // pred_fallthru
        _
      // Predicated region
      $region61: #{gain_forward.1} parent=51 // pred_check
        %p373 = pneg %p90
      $region62: #{gain_forward.1} parent=51 // pred_check_branch
        %375 = sbr.rel (%p373) target = $region64
      $region63: #{gain_forward.1} parent=51 // pred_region
        %s376 = smul.u32 32, %s18
        %p377 = scmp.lt.s32.totalorder %s376, 63
        %s378 = scalar_select %p377, %s376, 63
        %s379 = smul.addr %s378, 4
        %s380 = scalar_lea.vmem %s2, %s379
        %s381 = smul.u32 32, %s18
      $region64: #{gain_forward.1} parent=51 // pred_fallthru
        _
    $region52: #{gain_forward.1} parent=5 // pred_fallthru
      _
    %p382 = scmp.le.s32.totalorder 1, %s18
    %p383 = scmp.lt.s32.totalorder %s18, 3
    %p384 = pnand %p382, %p383
    %p385 = pneg %p384
    // Predicated region
    $region65: #{gain_forward.1} parent=5 // pred_check
      _
    $region66: #{gain_forward.1} parent=5 // pred_check_branch
      %387 = sbr.rel (%p384) target = $region68
    $region67: #{gain_forward.1} parent=5 // pred_region
      %s388 = ssub.s32 %s18, 1
      %p389 = scmp.lt.s32.totalorder %s23, 1
      %s390 = scalar_select %p389, %s23, 1
      %s391 = smul.addr %s390, 64
      %s392 = smul.addr %s391, 4
      %s393 = scalar_lea.vmem %s0, %s392
      %p394 = pneg %p44
      %p395 = pneg %p41
      %p396 = scmp.lt.s32.totalorder %s23, 1
      %s397 = scalar_select %p396, %s23, 1
      %s398 = smul.addr %s397, 64
      %s399 = smul.addr %s398, 4
      %s400 = scalar_lea.vmem %s1, %s399
      %p401 = pneg %p70
      %p402 = pneg %p67
      %s403 = smul.u32 32, %s23
      %p404 = scmp.lt.s32.totalorder %s403, 63
      %s405 = scalar_select %p404, %s403, 63
      %s406 = smul.addr %s405, 4
      %s407 = scalar_lea.vmem %s2, %s406
      %p408 = pneg %p96
      %p409 = pneg %p93
      %p410 = pneg %p117
      %p411 = pneg %p114
      %p412 = pneg %p138
      %p413 = pneg %p135
      %p414 = pneg %p159
      %p415 = pneg %p156
      %p416 = pneg %p180
      %p417 = pneg %p177
      %p418 = pneg %p201
      %p419 = pneg %p198
      %p420 = pneg %p222
      %p421 = pneg %p219
      %p422 = pneg %p243
      %p423 = pneg %p240
      %p424 = pneg %p264
      %p425 = pneg %p261
      %p426 = pneg %p285
      %p427 = pneg %p282
      %p428 = pneg %p311
      %p429 = pneg %p308
      %s430 = smul.u32 32, %s23
      %p431 = scmp.lt.s32.totalorder %s430, 63
      %s432 = scalar_select %p431, %s430, 63
      %s433 = smul.addr %s432, 8
      %s434 = scalar_lea.vmem %s12, %s433
      %p435 = scmp.lt.s32.totalorder %s23, 1
      %s436 = scalar_select %p435, %s23, 1
      %s437 = smul.addr %s436, 64
      %s438 = smul.addr %s437, 4
      %s439 = scalar_lea.vmem %s0, %s438
      %p440 = scmp.lt.s32.totalorder %s23, 1
      %s441 = scalar_select %p440, %s23, 1
      %s442 = smul.addr %s441, 64
      %s443 = smul.addr %s442, 4
      %s444 = scalar_lea.vmem %s1, %s443
      %s445 = smul.u32 32, %s23
      %p446 = scmp.lt.s32.totalorder %s445, 63
      %s447 = scalar_select %p446, %s445, 63
      %s448 = smul.addr %s447, 4
      %s449 = scalar_lea.vmem %s2, %s448
      %s450 = smul.u32 32, %s23
      %s451 = smul.u32 32, %s23
      %p452 = scmp.lt.s32.totalorder %s451, 63
      %s453 = scalar_select %p452, %s451, 63
      %s454 = smul.addr %s453, 8
      %s455 = scalar_lea.vmem %s12, %s454
      %s456 = smul.u32 32, %s23
      %v460 = vld [vmem:[%s439] sm:$0xff]
      %v461 = vld [vmem:[%s439 + $0x8] sm:$0xff]
      %v462 = vld [vmem:[%s439 + $0x10] sm:$0xff]
      %v463 = vld [vmem:[%s439 + $0x18] sm:$0xff]
      %v464 = vld [vmem:[%s439 + $0x20] sm:$0xff]
      %v465 = vld [vmem:[%s439 + $0x28] sm:$0xff]
      %v466 = vld [vmem:[%s439 + $0x30] sm:$0xff]
      %v467 = vld [vmem:[%s439 + $0x38] sm:$0xff]
      %v468 = vld [vmem:[%s439 + $0x40] sm:$0xff]
      %v469 = vld [vmem:[%s439 + $0x48] sm:$0xff]
      %v470 = vld [vmem:[%s439 + $0x50] sm:$0xff]
      %v471 = vld [vmem:[%s439 + $0x58] sm:$0xff]
      %v472 = vld [vmem:[%s439 + $0x60] sm:$0xff]
      %v473 = vld [vmem:[%s439 + $0x68] sm:$0xff]
      %v474 = vld [vmem:[%s439 + $0x70] sm:$0xff]
      %v475 = vld [vmem:[%s439 + $0x78] sm:$0xff]
      %v476 = vld [vmem:[%s439 + $0x80] sm:$0xff]
      %v477 = vld [vmem:[%s439 + $0x88] sm:$0xff]
      %v478 = vld [vmem:[%s439 + $0x90] sm:$0xff]
      %v479 = vld [vmem:[%s439 + $0x98] sm:$0xff]
      %v480 = vld [vmem:[%s439 + $0xa0] sm:$0xff]
      %v481 = vld [vmem:[%s439 + $0xa8] sm:$0xff]
      %v482 = vld [vmem:[%s439 + $0xb0] sm:$0xff]
      %v483 = vld [vmem:[%s439 + $0xb8] sm:$0xff]
      %v484 = vld [vmem:[%s439 + $0xc0] sm:$0xff]
      %v485 = vld [vmem:[%s439 + $0xc8] sm:$0xff]
      %v486 = vld [vmem:[%s439 + $0xd0] sm:$0xff]
      %v487 = vld [vmem:[%s439 + $0xd8] sm:$0xff]
      %v488 = vld [vmem:[%s439 + $0xe0] sm:$0xff]
      %v489 = vld [vmem:[%s439 + $0xe8] sm:$0xff]
      %v490 = vld [vmem:[%s439 + $0xf0] sm:$0xff]
      %v491 = vld [vmem:[%s439 + $0xf8] sm:$0xff]
      %v492 = vld [vmem:[%s449] sm:$0xf]
      %v493 = vld [vmem:[%s449 + $0x4] sm:$0xf]
      %v494 = vld [vmem:[%s449 + $0x8] sm:$0xf]
      %v495 = vld [vmem:[%s449 + $0xc] sm:$0xf]
      %v496 = vld [vmem:[%s449 + $0x10] sm:$0xf]
      %v497 = vld [vmem:[%s449 + $0x14] sm:$0xf]
      %v498 = vld [vmem:[%s449 + $0x18] sm:$0xf]
      %v499 = vld [vmem:[%s449 + $0x1c] sm:$0xf]
      %v500 = vld [vmem:[%s449 + $0x20] sm:$0xf]
      %v501 = vld [vmem:[%s449 + $0x24] sm:$0xf]
      %v502 = vld [vmem:[%s449 + $0x28] sm:$0xf]
      %v503 = vld [vmem:[%s449 + $0x2c] sm:$0xf]
      %v504 = vld [vmem:[%s449 + $0x30] sm:$0xf]
      %v505 = vld [vmem:[%s449 + $0x34] sm:$0xf]
      %v506 = vld [vmem:[%s449 + $0x38] sm:$0xf]
      %v507 = vld [vmem:[%s449 + $0x3c] sm:$0xf]
      %v508 = vld [vmem:[%s449 + $0x40] sm:$0xf]
      %v509 = vld [vmem:[%s449 + $0x44] sm:$0xf]
      %v510 = vld [vmem:[%s449 + $0x48] sm:$0xf]
      %v511 = vld [vmem:[%s449 + $0x4c] sm:$0xf]
      %v512 = vld [vmem:[%s449 + $0x50] sm:$0xf]
      %v513 = vld [vmem:[%s449 + $0x54] sm:$0xf]
      %v514 = vld [vmem:[%s449 + $0x58] sm:$0xf]
      %v515 = vld [vmem:[%s449 + $0x5c] sm:$0xf]
      %v516 = vld [vmem:[%s449 + $0x60] sm:$0xf]
      %v517 = vld [vmem:[%s449 + $0x64] sm:$0xf]
      %v518 = vld [vmem:[%s449 + $0x68] sm:$0xf]
      %v519 = vld [vmem:[%s449 + $0x6c] sm:$0xf]
      %v520 = vld [vmem:[%s449 + $0x70] sm:$0xf]
      %v521 = vld [vmem:[%s449 + $0x74] sm:$0xf]
      %v522 = vld [vmem:[%s449 + $0x78] sm:$0xf]
      %v523 = vld [vmem:[%s449 + $0x7c] sm:$0xf]
      %v556 = vunpack.c.l.b16 %v460
      %v557 = vunpack.c.h.b16 %v460
      %v558 = vunpack.c.l.b16 %v461
      %v559 = vunpack.c.h.b16 %v461
      %v560 = vunpack.c.l.b16 %v462
      %v561 = vunpack.c.h.b16 %v462
      %v562 = vunpack.c.l.b16 %v463
      %v563 = vunpack.c.h.b16 %v463
      %v564 = vunpack.c.l.b16 %v464
      %v565 = vunpack.c.h.b16 %v464
      %v566 = vunpack.c.l.b16 %v465
      %v567 = vunpack.c.h.b16 %v465
      %v568 = vunpack.c.l.b16 %v466
      %v569 = vunpack.c.h.b16 %v466
      %v570 = vunpack.c.l.b16 %v467
      %v571 = vunpack.c.h.b16 %v467
      %v572 = vunpack.c.l.b16 %v468
      %v573 = vunpack.c.h.b16 %v468
      %v574 = vunpack.c.l.b16 %v469
      %v575 = vunpack.c.h.b16 %v469
      %v576 = vunpack.c.l.b16 %v470
      %v577 = vunpack.c.h.b16 %v470
      %v578 = vunpack.c.l.b16 %v471
      %v579 = vunpack.c.h.b16 %v471
      %v580 = vunpack.c.l.b16 %v472
      %v581 = vunpack.c.h.b16 %v472
      %v582 = vunpack.c.l.b16 %v473
      %v583 = vunpack.c.h.b16 %v473
      %v584 = vunpack.c.l.b16 %v474
      %v585 = vunpack.c.h.b16 %v474
      %v586 = vunpack.c.l.b16 %v475
      %v587 = vunpack.c.h.b16 %v475
      %v588 = vunpack.c.l.b16 %v476
      %v589 = vunpack.c.h.b16 %v476
      %v590 = vunpack.c.l.b16 %v477
      %v591 = vunpack.c.h.b16 %v477
      %v592 = vunpack.c.l.b16 %v478
      %v593 = vunpack.c.h.b16 %v478
      %v594 = vunpack.c.l.b16 %v479
      %v595 = vunpack.c.h.b16 %v479
      %v596 = vunpack.c.l.b16 %v480
      %v597 = vunpack.c.h.b16 %v480
      %v598 = vunpack.c.l.b16 %v481
      %v599 = vunpack.c.h.b16 %v481
      %v600 = vunpack.c.l.b16 %v482
      %v601 = vunpack.c.h.b16 %v482
      %v602 = vunpack.c.l.b16 %v483
      %v603 = vunpack.c.h.b16 %v483
      %v604 = vunpack.c.l.b16 %v484
      %v605 = vunpack.c.h.b16 %v484
      %v606 = vunpack.c.l.b16 %v485
      %v607 = vunpack.c.h.b16 %v485
      %v608 = vunpack.c.l.b16 %v486
      %v609 = vunpack.c.h.b16 %v486
      %v610 = vunpack.c.l.b16 %v487
      %v611 = vunpack.c.h.b16 %v487
      %v612 = vunpack.c.l.b16 %v488
      %v613 = vunpack.c.h.b16 %v488
      %v614 = vunpack.c.l.b16 %v489
      %v615 = vunpack.c.h.b16 %v489
      %v616 = vunpack.c.l.b16 %v490
      %v617 = vunpack.c.h.b16 %v490
      %v618 = vunpack.c.l.b16 %v491
      %v619 = vunpack.c.h.b16 %v491
      %v620 = vpack.c.b16 %v558, %v556
      %v621 = vpack.c.b16 %v559, %v557
      %v622 = vpack.c.b16 %v562, %v560
      %v623 = vpack.c.b16 %v563, %v561
      %v624 = vpack.c.b16 %v566, %v564
      %v625 = vpack.c.b16 %v567, %v565
      %v626 = vpack.c.b16 %v570, %v568
      %v627 = vpack.c.b16 %v571, %v569
      %v628 = vpack.c.b16 %v574, %v572
      %v629 = vpack.c.b16 %v575, %v573
      %v630 = vpack.c.b16 %v578, %v576
      %v631 = vpack.c.b16 %v579, %v577
      %v632 = vpack.c.b16 %v582, %v580
      %v633 = vpack.c.b16 %v583, %v581
      %v634 = vpack.c.b16 %v586, %v584
      %v635 = vpack.c.b16 %v587, %v585
      %v636 = vpack.c.b16 %v590, %v588
      %v637 = vpack.c.b16 %v591, %v589
      %v638 = vpack.c.b16 %v594, %v592
      %v639 = vpack.c.b16 %v595, %v593
      %v640 = vpack.c.b16 %v598, %v596
      %v641 = vpack.c.b16 %v599, %v597
      %v642 = vpack.c.b16 %v602, %v600
      %v643 = vpack.c.b16 %v603, %v601
      %v644 = vpack.c.b16 %v606, %v604
      %v645 = vpack.c.b16 %v607, %v605
      %v646 = vpack.c.b16 %v610, %v608
      %v647 = vpack.c.b16 %v611, %v609
      %v648 = vpack.c.b16 %v614, %v612
      %v649 = vpack.c.b16 %v615, %v613
      %v650 = vpack.c.b16 %v618, %v616
      %v651 = vpack.c.b16 %v619, %v617
      %v716 = vunpack.c.l.b16 %v492
      %v717 = vunpack.c.l.b16 %v493
      %v718 = vunpack.c.l.b16 %v494
      %v719 = vunpack.c.l.b16 %v495
      %v720 = vunpack.c.l.b16 %v496
      %v721 = vunpack.c.l.b16 %v497
      %v722 = vunpack.c.l.b16 %v498
      %v723 = vunpack.c.l.b16 %v499
      %v724 = vunpack.c.l.b16 %v500
      %v725 = vunpack.c.l.b16 %v501
      %v726 = vunpack.c.l.b16 %v502
      %v727 = vunpack.c.l.b16 %v503
      %v728 = vunpack.c.l.b16 %v504
      %v729 = vunpack.c.l.b16 %v505
      %v730 = vunpack.c.l.b16 %v506
      %v731 = vunpack.c.l.b16 %v507
      %v732 = vunpack.c.l.b16 %v508
      %v733 = vunpack.c.l.b16 %v509
      %v734 = vunpack.c.l.b16 %v510
      %v735 = vunpack.c.l.b16 %v511
      %v736 = vunpack.c.l.b16 %v512
      %v737 = vunpack.c.l.b16 %v513
      %v738 = vunpack.c.l.b16 %v514
      %v739 = vunpack.c.l.b16 %v515
      %v740 = vunpack.c.l.b16 %v516
      %v741 = vunpack.c.l.b16 %v517
      %v742 = vunpack.c.l.b16 %v518
      %v743 = vunpack.c.l.b16 %v519
      %v744 = vunpack.c.l.b16 %v520
      %v745 = vunpack.c.l.b16 %v521
      %v746 = vunpack.c.l.b16 %v522
      %v747 = vunpack.c.l.b16 %v523
      %v748 = vpack.c.b16 %v717, %v716
      %v749 = vpack.c.b16 %v719, %v718
      %v750 = vpack.c.b16 %v721, %v720
      %v751 = vpack.c.b16 %v723, %v722
      %v752 = vpack.c.b16 %v725, %v724
      %v753 = vpack.c.b16 %v727, %v726
      %v754 = vpack.c.b16 %v729, %v728
      %v755 = vpack.c.b16 %v731, %v730
      %v756 = vpack.c.b16 %v733, %v732
      %v757 = vpack.c.b16 %v735, %v734
      %v758 = vpack.c.b16 %v737, %v736
      %v759 = vpack.c.b16 %v739, %v738
      %v760 = vpack.c.b16 %v741, %v740
      %v761 = vpack.c.b16 %v743, %v742
      %v762 = vpack.c.b16 %v745, %v744
      %v763 = vpack.c.b16 %v747, %v746
      %780 = vmatprep.subr.bf16.mxu0 0
      %781 = vmatpush1.bf16.msra.mxu0 %v748
      %782 = vmatprep.subr.bf16.mxu0 0
      %783 = vmatpush1.bf16.msra.mxu0 %v749
      %784 = vmatprep.subr.bf16.mxu0 0
      %785 = vmatpush1.bf16.msra.mxu0 %v750
      %786 = vmatprep.subr.bf16.mxu0 0
      %787 = vmatpush1.bf16.msra.mxu0 %v751
      %788 = vmatprep.subr.bf16.mxu0 0
      %789 = vmatpush1.bf16.msra.mxu0 %v752
      %790 = vmatprep.subr.bf16.mxu0 0
      %791 = vmatpush1.bf16.msra.mxu0 %v753
      %792 = vmatprep.subr.bf16.mxu0 0
      %793 = vmatpush1.bf16.msra.mxu0 %v754
      %794 = vmatprep.subr.bf16.mxu0 0
      %795 = vmatpush1.bf16.msra.mxu0 %v755
      %796 = vmatprep.subr.bf16.mxu0 0
      %797 = vmatpush1.bf16.msra.mxu0 %v756
      %798 = vmatprep.subr.bf16.mxu0 0
      %799 = vmatpush1.bf16.msra.mxu0 %v757
      %800 = vmatprep.subr.bf16.mxu0 0
      %801 = vmatpush1.bf16.msra.mxu0 %v758
      %802 = vmatprep.subr.bf16.mxu0 0
      %803 = vmatpush1.bf16.msra.mxu0 %v759
      %804 = vmatprep.subr.bf16.mxu0 0
      %805 = vmatpush1.bf16.msra.mxu0 %v760
      %806 = vmatprep.subr.bf16.mxu0 0
      %807 = vmatpush1.bf16.msra.mxu0 %v761
      %808 = vmatprep.subr.bf16.mxu0 0
      %809 = vmatpush1.bf16.msra.mxu0 %v762
      %810 = vmatprep.subr.bf16.mxu0 0
      %811 = vmatpush1.bf16.msra.mxu0 %v763
      %812 = vmatprep.mubr.bf16.mxu0 %v621
      %813 = vmatmul.mubr.bf16.gmra.mrb[0].mxu0 %v620
      %v814 = vpop.f32.mrb[0].mxu0
      %v815 = vadd.f32 0.0, %v814
      %v816 = vpop.f32.mrb[0].mxu0
      %v817 = vpop.f32.mrb[0].mxu0
      %v818 = vadd.f32 0.0, %v817
      %v819 = vpop.f32.mrb[0].mxu0
      %820 = vmatprep.mubr.bf16.mxu0 %v623
      %821 = vmatmul.mubr.bf16.gmra.mrb[0].mxu0 %v622
      %v822 = vpop.f32.mrb[0].mxu0
      %v823 = vadd.f32 0.0, %v822
      %v824 = vpop.f32.mrb[0].mxu0
      %v825 = vpop.f32.mrb[0].mxu0
      %v826 = vadd.f32 0.0, %v825
      %v827 = vpop.f32.mrb[0].mxu0
      %828 = vmatprep.mubr.bf16.mxu0 %v625
      %829 = vmatmul.mubr.bf16.gmra.mrb[0].mxu0 %v624
      %v830 = vpop.f32.mrb[0].mxu0
      %v831 = vadd.f32 0.0, %v830
      %v832 = vpop.f32.mrb[0].mxu0
      %v833 = vpop.f32.mrb[0].mxu0
      %v834 = vadd.f32 0.0, %v833
      %v835 = vpop.f32.mrb[0].mxu0
      %836 = vmatprep.mubr.bf16.mxu0 %v627
      %837 = vmatmul.mubr.bf16.gmra.mrb[0].mxu0 %v626
      %v838 = vpop.f32.mrb[0].mxu0
      %v839 = vadd.f32 0.0, %v838
      %v840 = vpop.f32.mrb[0].mxu0
      %v841 = vpop.f32.mrb[0].mxu0
      %v842 = vadd.f32 0.0, %v841
      %v843 = vpop.f32.mrb[0].mxu0
      %844 = vmatprep.mubr.bf16.mxu0 %v629
      %845 = vmatmul.mubr.bf16.gmra.mrb[0].mxu0 %v628
      %v846 = vpop.f32.mrb[0].mxu0
      %v847 = vadd.f32 0.0, %v846
      %v848 = vpop.f32.mrb[0].mxu0
      %v849 = vpop.f32.mrb[0].mxu0
      %v850 = vadd.f32 0.0, %v849
      %v851 = vpop.f32.mrb[0].mxu0
      %852 = vmatprep.mubr.bf16.mxu0 %v631
      %853 = vmatmul.mubr.bf16.gmra.mrb[0].mxu0 %v630
      %v854 = vpop.f32.mrb[0].mxu0
      %v855 = vadd.f32 0.0, %v854
      %v856 = vpop.f32.mrb[0].mxu0
      %v857 = vpop.f32.mrb[0].mxu0
      %v858 = vadd.f32 0.0, %v857
      %v859 = vpop.f32.mrb[0].mxu0
      %860 = vmatprep.mubr.bf16.mxu0 %v633
      %861 = vmatmul.mubr.bf16.gmra.mrb[0].mxu0 %v632
      %v862 = vpop.f32.mrb[0].mxu0
      %v863 = vadd.f32 0.0, %v862
      %v864 = vpop.f32.mrb[0].mxu0
      %v865 = vpop.f32.mrb[0].mxu0
      %v866 = vadd.f32 0.0, %v865
      %v867 = vpop.f32.mrb[0].mxu0
      %868 = vmatprep.mubr.bf16.mxu0 %v635
      %869 = vmatmul.mubr.bf16.gmra.mrb[0].mxu0 %v634
      %v870 = vpop.f32.mrb[0].mxu0
      %v871 = vadd.f32 0.0, %v870
      %v872 = vpop.f32.mrb[0].mxu0
      %v873 = vpop.f32.mrb[0].mxu0
      %v874 = vadd.f32 0.0, %v873
      %v875 = vpop.f32.mrb[0].mxu0
      %876 = vmatprep.mubr.bf16.mxu0 %v637
      %877 = vmatmul.mubr.bf16.gmra.mrb[0].mxu0 %v636
      %v878 = vpop.f32.mrb[0].mxu0
      %v879 = vadd.f32 0.0, %v878
      %v880 = vpop.f32.mrb[0].mxu0
      %v881 = vpop.f32.mrb[0].mxu0
      %v882 = vadd.f32 0.0, %v881
      %v883 = vpop.f32.mrb[0].mxu0
      %884 = vmatprep.mubr.bf16.mxu0 %v639
      %885 = vmatmul.mubr.bf16.gmra.mrb[0].mxu0 %v638
      %v886 = vpop.f32.mrb[0].mxu0
      %v887 = vadd.f32 0.0, %v886
      %v888 = vpop.f32.mrb[0].mxu0
      %v889 = vpop.f32.mrb[0].mxu0
      %v890 = vadd.f32 0.0, %v889
      %v891 = vpop.f32.mrb[0].mxu0
      %892 = vmatprep.mubr.bf16.mxu0 %v641
      %893 = vmatmul.mubr.bf16.gmra.mrb[0].mxu0 %v640
      %v894 = vpop.f32.mrb[0].mxu0
      %v895 = vadd.f32 0.0, %v894
      %v896 = vpop.f32.mrb[0].mxu0
      %v897 = vpop.f32.mrb[0].mxu0
      %v898 = vadd.f32 0.0, %v897
      %v899 = vpop.f32.mrb[0].mxu0
      %900 = vmatprep.mubr.bf16.mxu0 %v643
      %901 = vmatmul.mubr.bf16.gmra.mrb[0].mxu0 %v642
      %v902 = vpop.f32.mrb[0].mxu0
      %v903 = vadd.f32 0.0, %v902
      %v904 = vpop.f32.mrb[0].mxu0
      %v905 = vpop.f32.mrb[0].mxu0
      %v906 = vadd.f32 0.0, %v905
      %v907 = vpop.f32.mrb[0].mxu0
      %908 = vmatprep.mubr.bf16.mxu0 %v645
      %909 = vmatmul.mubr.bf16.gmra.mrb[0].mxu0 %v644
      %v910 = vpop.f32.mrb[0].mxu0
      %v911 = vadd.f32 0.0, %v910
      %v912 = vpop.f32.mrb[0].mxu0
      %v913 = vpop.f32.mrb[0].mxu0
      %v914 = vadd.f32 0.0, %v913
      %v915 = vpop.f32.mrb[0].mxu0
      %916 = vmatprep.mubr.bf16.mxu0 %v647
      %917 = vmatmul.mubr.bf16.gmra.mrb[0].mxu0 %v646
      %v918 = vpop.f32.mrb[0].mxu0
      %v919 = vadd.f32 0.0, %v918
      %v920 = vpop.f32.mrb[0].mxu0
      %v921 = vpop.f32.mrb[0].mxu0
      %v922 = vadd.f32 0.0, %v921
      %v923 = vpop.f32.mrb[0].mxu0
      %924 = vmatprep.mubr.bf16.mxu0 %v649
      %925 = vmatmul.mubr.bf16.gmra.mrb[0].mxu0 %v648
      %v926 = vpop.f32.mrb[0].mxu0
      %v927 = vadd.f32 0.0, %v926
      %v928 = vpop.f32.mrb[0].mxu0
      %v929 = vpop.f32.mrb[0].mxu0
      %v930 = vadd.f32 0.0, %v929
      %v931 = vpop.f32.mrb[0].mxu0
      %932 = vmatprep.mubr.bf16.mxu0 %v651
      %933 = vmatmul.mubr.bf16.gmra.mrb[0].mxu0 %v650
      %v934 = vpop.f32.mrb[0].mxu0
      %v935 = vadd.f32 0.0, %v934
      %v936 = vpop.f32.mrb[0].mxu0
      %v937 = vpop.f32.mrb[0].mxu0
      %v938 = vadd.f32 0.0, %v937
      %v939 = vpop.f32.mrb[0].mxu0
      %940 = vdwg.mxu0
      %v941 = vpack.c.bf16 %v818, %v815
      %v942 = vpack.c.bf16 %v826, %v823
      %v943 = vpack.c.bf16 %v834, %v831
      %v944 = vpack.c.bf16 %v842, %v839
      %v945 = vpack.c.bf16 %v850, %v847
      %v946 = vpack.c.bf16 %v858, %v855
      %v947 = vpack.c.bf16 %v866, %v863
      %v948 = vpack.c.bf16 %v874, %v871
      %v949 = vpack.c.bf16 %v882, %v879
      %v950 = vpack.c.bf16 %v890, %v887
      %v951 = vpack.c.bf16 %v898, %v895
      %v952 = vpack.c.bf16 %v906, %v903
      %v953 = vpack.c.bf16 %v914, %v911
      %v954 = vpack.c.bf16 %v922, %v919
      %v955 = vpack.c.bf16 %v930, %v927
      %v956 = vpack.c.bf16 %v938, %v935
      %v957 = vld [vmem:[%s3] sm:$0xf]
      %v958 = vld [vmem:[%s3 + $0x4] sm:$0xf]
      %v959 = vld [vmem:[%s3 + $0x8] sm:$0xf]
      %v960 = vld [vmem:[%s3 + $0xc] sm:$0xf]
      %v961 = vld [vmem:[%s3 + $0x10] sm:$0xf]
      %v962 = vld [vmem:[%s3 + $0x14] sm:$0xf]
      %v963 = vld [vmem:[%s3 + $0x18] sm:$0xf]
      %v964 = vld [vmem:[%s3 + $0x1c] sm:$0xf]
      %v965 = vld [vmem:[%s3 + $0x20] sm:$0xf]
      %v966 = vld [vmem:[%s3 + $0x24] sm:$0xf]
      %v967 = vld [vmem:[%s3 + $0x28] sm:$0xf]
      %v968 = vld [vmem:[%s3 + $0x2c] sm:$0xf]
      %v969 = vld [vmem:[%s3 + $0x30] sm:$0xf]
      %v970 = vld [vmem:[%s3 + $0x34] sm:$0xf]
      %v971 = vld [vmem:[%s3 + $0x38] sm:$0xf]
      %v972 = vld [vmem:[%s3 + $0x3c] sm:$0xf]
      %v973 = vld [vmem:[%s4] sm:$0x1]
      %v975 = vlaneseq
      %v976 = vshrl.u32 %v975, 7
      %v977 = vsub.s32 0, %v976
      %v978 = vrot.slane %v973, %v977
      %v996 = vunpack.c.l.b16 %v957
      %v997 = vunpack.c.l.b16 %v958
      %v998 = vunpack.c.l.b16 %v959
      %v999 = vunpack.c.l.b16 %v960
      %v1000 = vunpack.c.l.b16 %v961
      %v1001 = vunpack.c.l.b16 %v962
      %v1002 = vunpack.c.l.b16 %v963
      %v1003 = vunpack.c.l.b16 %v964
      %v1004 = vunpack.c.l.b16 %v965
      %v1005 = vunpack.c.l.b16 %v966
      %v1006 = vunpack.c.l.b16 %v967
      %v1007 = vunpack.c.l.b16 %v968
      %v1008 = vunpack.c.l.b16 %v969
      %v1009 = vunpack.c.l.b16 %v970
      %v1010 = vunpack.c.l.b16 %v971
      %v1011 = vunpack.c.l.b16 %v972
      %v1012 = vpack.c.b16 %v997, %v996
      %v1013 = vpack.c.b16 %v999, %v998
      %v1014 = vpack.c.b16 %v1001, %v1000
      %v1015 = vpack.c.b16 %v1003, %v1002
      %v1016 = vpack.c.b16 %v1005, %v1004
      %v1017 = vpack.c.b16 %v1007, %v1006
      %v1018 = vpack.c.b16 %v1009, %v1008
      %v1019 = vpack.c.b16 %v1011, %v1010
      %1028 = vmatprep.subr.bf16.mxu0 0
      %1029 = vmatpush1.bf16.msra.mxu0 %v1012
      %1030 = vmatprep.subr.bf16.mxu0 0
      %1031 = vmatpush1.bf16.msra.mxu0 %v1013
      %1032 = vmatprep.subr.bf16.mxu0 0
      %1033 = vmatpush1.bf16.msra.mxu0 %v1014
      %1034 = vmatprep.subr.bf16.mxu0 0
      %1035 = vmatpush1.bf16.msra.mxu0 %v1015
      %1036 = vmatprep.subr.bf16.mxu0 0
      %1037 = vmatpush1.bf16.msra.mxu0 %v1016
      %1038 = vmatprep.subr.bf16.mxu0 0
      %1039 = vmatpush1.bf16.msra.mxu0 %v1017
      %1040 = vmatprep.subr.bf16.mxu0 0
      %1041 = vmatpush1.bf16.msra.mxu0 %v1018
      %1042 = vmatprep.subr.bf16.mxu0 0
      %1043 = vmatpush1.bf16.msra.mxu0 %v1019
      %1044 = vmatprep.subr.bf16.mxu0 0
      %1045 = vmatpush1.bf16.msra.mxu0 0
      %1046 = vmatprep.subr.bf16.mxu0 0
      %1047 = vmatpush1.bf16.msra.mxu0 0
      %1048 = vmatprep.subr.bf16.mxu0 0
      %1049 = vmatpush1.bf16.msra.mxu0 0
      %1050 = vmatprep.subr.bf16.mxu0 0
      %1051 = vmatpush1.bf16.msra.mxu0 0
      %1052 = vmatprep.subr.bf16.mxu0 0
      %1053 = vmatpush1.bf16.msra.mxu0 0
      %1054 = vmatprep.subr.bf16.mxu0 0
      %1055 = vmatpush1.bf16.msra.mxu0 0
      %1056 = vmatprep.subr.bf16.mxu0 0
      %1057 = vmatpush1.bf16.msra.mxu0 0
      %1058 = vmatprep.subr.bf16.mxu0 0
      %1059 = vmatpush1.bf16.msra.mxu0 0
      %1060 = vmatprep.mubr.bf16.mxu0 0
      %1061 = vmatmul.mubr.bf16.gmra.mrb[0].mxu0 %v941
      %v1062 = vpop.f32.mrb[0].mxu0
      %v1063 = vadd.f32 %v978, %v1062
      %v1064 = vpop.f32.mrb[0].mxu0
      %v1065 = vpop.f32.mrb[0].mxu0
      %v1066 = vadd.f32 %v978, %v1065
      %v1067 = vpop.f32.mrb[0].mxu0
      %1068 = vmatprep.mubr.bf16.mxu0 0
      %1069 = vmatmul.mubr.bf16.gmra.mrb[0].mxu0 %v942
      %v1070 = vpop.f32.mrb[0].mxu0
      %v1071 = vadd.f32 %v978, %v1070
      %v1072 = vpop.f32.mrb[0].mxu0
      %v1073 = vpop.f32.mrb[0].mxu0
      %v1074 = vadd.f32 %v978, %v1073
      %v1075 = vpop.f32.mrb[0].mxu0
      %1076 = vmatprep.mubr.bf16.mxu0 0
      %1077 = vmatmul.mubr.bf16.gmra.mrb[0].mxu0 %v943
      %v1078 = vpop.f32.mrb[0].mxu0
      %v1079 = vadd.f32 %v978, %v1078
      %v1080 = vpop.f32.mrb[0].mxu0
      %v1081 = vpop.f32.mrb[0].mxu0
      %v1082 = vadd.f32 %v978, %v1081
      %v1083 = vpop.f32.mrb[0].mxu0
      %1084 = vmatprep.mubr.bf16.mxu0 0
      %1085 = vmatmul.mubr.bf16.gmra.mrb[0].mxu0 %v944
      %v1086 = vpop.f32.mrb[0].mxu0
      %v1087 = vadd.f32 %v978, %v1086
      %v1088 = vpop.f32.mrb[0].mxu0
      %v1089 = vpop.f32.mrb[0].mxu0
      %v1090 = vadd.f32 %v978, %v1089
      %v1091 = vpop.f32.mrb[0].mxu0
      %1092 = vmatprep.mubr.bf16.mxu0 0
      %1093 = vmatmul.mubr.bf16.gmra.mrb[0].mxu0 %v945
      %v1094 = vpop.f32.mrb[0].mxu0
      %v1095 = vadd.f32 %v978, %v1094
      %v1096 = vpop.f32.mrb[0].mxu0
      %v1097 = vpop.f32.mrb[0].mxu0
      %v1098 = vadd.f32 %v978, %v1097
      %v1099 = vpop.f32.mrb[0].mxu0
      %1100 = vmatprep.mubr.bf16.mxu0 0
      %1101 = vmatmul.mubr.bf16.gmra.mrb[0].mxu0 %v946
      %v1102 = vpop.f32.mrb[0].mxu0
      %v1103 = vadd.f32 %v978, %v1102
      %v1104 = vpop.f32.mrb[0].mxu0
      %v1105 = vpop.f32.mrb[0].mxu0
      %v1106 = vadd.f32 %v978, %v1105
      %v1107 = vpop.f32.mrb[0].mxu0
      %1108 = vmatprep.mubr.bf16.mxu0 0
      %1109 = vmatmul.mubr.bf16.gmra.mrb[0].mxu0 %v947
      %v1110 = vpop.f32.mrb[0].mxu0
      %v1111 = vadd.f32 %v978, %v1110
      %v1112 = vpop.f32.mrb[0].mxu0
      %v1113 = vpop.f32.mrb[0].mxu0
      %v1114 = vadd.f32 %v978, %v1113
      %v1115 = vpop.f32.mrb[0].mxu0
      %1116 = vmatprep.mubr.bf16.mxu0 0
      %1117 = vmatmul.mubr.bf16.gmra.mrb[0].mxu0 %v948
      %v1118 = vpop.f32.mrb[0].mxu0
      %v1119 = vadd.f32 %v978, %v1118
      %v1120 = vpop.f32.mrb[0].mxu0
      %v1121 = vpop.f32.mrb[0].mxu0
      %v1122 = vadd.f32 %v978, %v1121
      %v1123 = vpop.f32.mrb[0].mxu0
      %1124 = vmatprep.mubr.bf16.mxu0 0
      %1125 = vmatmul.mubr.bf16.gmra.mrb[0].mxu0 %v949
      %v1126 = vpop.f32.mrb[0].mxu0
      %v1127 = vadd.f32 %v978, %v1126
      %v1128 = vpop.f32.mrb[0].mxu0
      %v1129 = vpop.f32.mrb[0].mxu0
      %v1130 = vadd.f32 %v978, %v1129
      %v1131 = vpop.f32.mrb[0].mxu0
      %1132 = vmatprep.mubr.bf16.mxu0 0
      %1133 = vmatmul.mubr.bf16.gmra.mrb[0].mxu0 %v950
      %v1134 = vpop.f32.mrb[0].mxu0
      %v1135 = vadd.f32 %v978, %v1134
      %v1136 = vpop.f32.mrb[0].mxu0
      %v1137 = vpop.f32.mrb[0].mxu0
      %v1138 = vadd.f32 %v978, %v1137
      %v1139 = vpop.f32.mrb[0].mxu0
      %1140 = vmatprep.mubr.bf16.mxu0 0
      %1141 = vmatmul.mubr.bf16.gmra.mrb[0].mxu0 %v951
      %v1142 = vpop.f32.mrb[0].mxu0
      %v1143 = vadd.f32 %v978, %v1142
      %v1144 = vpop.f32.mrb[0].mxu0
      %v1145 = vpop.f32.mrb[0].mxu0
      %v1146 = vadd.f32 %v978, %v1145
      %v1147 = vpop.f32.mrb[0].mxu0
      %1148 = vmatprep.mubr.bf16.mxu0 0
      %1149 = vmatmul.mubr.bf16.gmra.mrb[0].mxu0 %v952
      %v1150 = vpop.f32.mrb[0].mxu0
      %v1151 = vadd.f32 %v978, %v1150
      %v1152 = vpop.f32.mrb[0].mxu0
      %v1153 = vpop.f32.mrb[0].mxu0
      %v1154 = vadd.f32 %v978, %v1153
      %v1155 = vpop.f32.mrb[0].mxu0
      %1156 = vmatprep.mubr.bf16.mxu0 0
      %1157 = vmatmul.mubr.bf16.gmra.mrb[0].mxu0 %v953
      %v1158 = vpop.f32.mrb[0].mxu0
      %v1159 = vadd.f32 %v978, %v1158
      %v1160 = vpop.f32.mrb[0].mxu0
      %v1161 = vpop.f32.mrb[0].mxu0
      %v1162 = vadd.f32 %v978, %v1161
      %v1163 = vpop.f32.mrb[0].mxu0
      %1164 = vmatprep.mubr.bf16.mxu0 0
      %1165 = vmatmul.mubr.bf16.gmra.mrb[0].mxu0 %v954
      %v1166 = vpop.f32.mrb[0].mxu0
      %v1167 = vadd.f32 %v978, %v1166
      %v1168 = vpop.f32.mrb[0].mxu0
      %v1169 = vpop.f32.mrb[0].mxu0
      %v1170 = vadd.f32 %v978, %v1169
      %v1171 = vpop.f32.mrb[0].mxu0
      %1172 = vmatprep.mubr.bf16.mxu0 0
      %1173 = vmatmul.mubr.bf16.gmra.mrb[0].mxu0 %v955
      %v1174 = vpop.f32.mrb[0].mxu0
      %v1175 = vadd.f32 %v978, %v1174
      %v1176 = vpop.f32.mrb[0].mxu0
      %v1177 = vpop.f32.mrb[0].mxu0
      %v1178 = vadd.f32 %v978, %v1177
      %v1179 = vpop.f32.mrb[0].mxu0
      %1180 = vmatprep.mubr.bf16.mxu0 0
      %1181 = vmatmul.mubr.bf16.gmra.mrb[0].mxu0 %v956
      %v1182 = vpop.f32.mrb[0].mxu0
      %v1183 = vadd.f32 %v978, %v1182
      %v1184 = vpop.f32.mrb[0].mxu0
      %v1185 = vpop.f32.mrb[0].mxu0
      %v1186 = vadd.f32 %v978, %v1185
      %v1187 = vpop.f32.mrb[0].mxu0
      %1188 = vdwg.mxu0
      %v1189 = vmax.f32 %v1063, 0.0
      %v1190 = vmax.f32 %v1066, 0.0
      %v1191 = vmax.f32 %v1071, 0.0
      %v1192 = vmax.f32 %v1074, 0.0
      %v1193 = vmax.f32 %v1079, 0.0
      %v1194 = vmax.f32 %v1082, 0.0
      %v1195 = vmax.f32 %v1087, 0.0
      %v1196 = vmax.f32 %v1090, 0.0
      %v1197 = vmax.f32 %v1095, 0.0
      %v1198 = vmax.f32 %v1098, 0.0
      %v1199 = vmax.f32 %v1103, 0.0
      %v1200 = vmax.f32 %v1106, 0.0
      %v1201 = vmax.f32 %v1111, 0.0
      %v1202 = vmax.f32 %v1114, 0.0
      %v1203 = vmax.f32 %v1119, 0.0
      %v1204 = vmax.f32 %v1122, 0.0
      %v1205 = vmax.f32 %v1127, 0.0
      %v1206 = vmax.f32 %v1130, 0.0
      %v1207 = vmax.f32 %v1135, 0.0
      %v1208 = vmax.f32 %v1138, 0.0
      %v1209 = vmax.f32 %v1143, 0.0
      %v1210 = vmax.f32 %v1146, 0.0
      %v1211 = vmax.f32 %v1151, 0.0
      %v1212 = vmax.f32 %v1154, 0.0
      %v1213 = vmax.f32 %v1159, 0.0
      %v1214 = vmax.f32 %v1162, 0.0
      %v1215 = vmax.f32 %v1167, 0.0
      %v1216 = vmax.f32 %v1170, 0.0
      %v1217 = vmax.f32 %v1175, 0.0
      %v1218 = vmax.f32 %v1178, 0.0
      %v1219 = vmax.f32 %v1183, 0.0
      %v1220 = vmax.f32 %v1186, 0.0
      %v1221 = vpack.c.bf16 %v1190, %v1189
      %v1222 = vpack.c.bf16 %v1192, %v1191
      %v1223 = vpack.c.bf16 %v1194, %v1193
      %v1224 = vpack.c.bf16 %v1196, %v1195
      %v1225 = vpack.c.bf16 %v1198, %v1197
      %v1226 = vpack.c.bf16 %v1200, %v1199
      %v1227 = vpack.c.bf16 %v1202, %v1201
      %v1228 = vpack.c.bf16 %v1204, %v1203
      %v1229 = vpack.c.bf16 %v1206, %v1205
      %v1230 = vpack.c.bf16 %v1208, %v1207
      %v1231 = vpack.c.bf16 %v1210, %v1209
      %v1232 = vpack.c.bf16 %v1212, %v1211
      %v1233 = vpack.c.bf16 %v1214, %v1213
      %v1234 = vpack.c.bf16 %v1216, %v1215
      %v1235 = vpack.c.bf16 %v1218, %v1217
      %v1236 = vpack.c.bf16 %v1220, %v1219
      %v1237 = vld [vmem:[%s5] sm:$0xf]
      %v1238 = vld [vmem:[%s5 + $0x4] sm:$0xf]
      %v1239 = vld [vmem:[%s5 + $0x8] sm:$0xf]
      %v1240 = vld [vmem:[%s5 + $0xc] sm:$0xf]
      %v1241 = vld [vmem:[%s5 + $0x10] sm:$0xf]
      %v1242 = vld [vmem:[%s5 + $0x14] sm:$0xf]
      %v1243 = vld [vmem:[%s5 + $0x18] sm:$0xf]
      %v1244 = vld [vmem:[%s5 + $0x1c] sm:$0xf]
      %v1245 = vld [vmem:[%s5 + $0x20] sm:$0xf]
      %v1246 = vld [vmem:[%s5 + $0x24] sm:$0xf]
      %v1247 = vld [vmem:[%s5 + $0x28] sm:$0xf]
      %v1248 = vld [vmem:[%s5 + $0x2c] sm:$0xf]
      %v1249 = vld [vmem:[%s5 + $0x30] sm:$0xf]
      %v1250 = vld [vmem:[%s5 + $0x34] sm:$0xf]
      %v1251 = vld [vmem:[%s5 + $0x38] sm:$0xf]
      %v1252 = vld [vmem:[%s5 + $0x3c] sm:$0xf]
      %v1253 = vld [vmem:[%s6] sm:$0x1]
      %v1255 = vlaneseq
      %v1256 = vshrl.u32 %v1255, 7
      %v1257 = vsub.s32 0, %v1256
      %v1258 = vrot.slane %v1253, %v1257
      %v1276 = vunpack.c.l.b16 %v1237
      %v1277 = vunpack.c.l.b16 %v1238
      %v1278 = vunpack.c.l.b16 %v1239
      %v1279 = vunpack.c.l.b16 %v1240
      %v1280 = vunpack.c.l.b16 %v1241
      %v1281 = vunpack.c.l.b16 %v1242
      %v1282 = vunpack.c.l.b16 %v1243
      %v1283 = vunpack.c.l.b16 %v1244
      %v1284 = vunpack.c.l.b16 %v1245
      %v1285 = vunpack.c.l.b16 %v1246
      %v1286 = vunpack.c.l.b16 %v1247
      %v1287 = vunpack.c.l.b16 %v1248
      %v1288 = vunpack.c.l.b16 %v1249
      %v1289 = vunpack.c.l.b16 %v1250
      %v1290 = vunpack.c.l.b16 %v1251
      %v1291 = vunpack.c.l.b16 %v1252
      %v1292 = vpack.c.b16 %v1277, %v1276
      %v1293 = vpack.c.b16 %v1279, %v1278
      %v1294 = vpack.c.b16 %v1281, %v1280
      %v1295 = vpack.c.b16 %v1283, %v1282
      %v1296 = vpack.c.b16 %v1285, %v1284
      %v1297 = vpack.c.b16 %v1287, %v1286
      %v1298 = vpack.c.b16 %v1289, %v1288
      %v1299 = vpack.c.b16 %v1291, %v1290
      %1308 = vmatprep.subr.bf16.mxu0 0
      %1309 = vmatpush1.bf16.msra.mxu0 %v1292
      %1310 = vmatprep.subr.bf16.mxu0 0
      %1311 = vmatpush1.bf16.msra.mxu0 %v1293
      %1312 = vmatprep.subr.bf16.mxu0 0
      %1313 = vmatpush1.bf16.msra.mxu0 %v1294
      %1314 = vmatprep.subr.bf16.mxu0 0
      %1315 = vmatpush1.bf16.msra.mxu0 %v1295
      %1316 = vmatprep.subr.bf16.mxu0 0
      %1317 = vmatpush1.bf16.msra.mxu0 %v1296
      %1318 = vmatprep.subr.bf16.mxu0 0
      %1319 = vmatpush1.bf16.msra.mxu0 %v1297
      %1320 = vmatprep.subr.bf16.mxu0 0
      %1321 = vmatpush1.bf16.msra.mxu0 %v1298
      %1322 = vmatprep.subr.bf16.mxu0 0
      %1323 = vmatpush1.bf16.msra.mxu0 %v1299
      %1324 = vmatprep.subr.bf16.mxu0 0
      %1325 = vmatpush1.bf16.msra.mxu0 0
      %1326 = vmatprep.subr.bf16.mxu0 0
      %1327 = vmatpush1.bf16.msra.mxu0 0
      %1328 = vmatprep.subr.bf16.mxu0 0
      %1329 = vmatpush1.bf16.msra.mxu0 0
      %1330 = vmatprep.subr.bf16.mxu0 0
      %1331 = vmatpush1.bf16.msra.mxu0 0
      %1332 = vmatprep.subr.bf16.mxu0 0
      %1333 = vmatpush1.bf16.msra.mxu0 0
      %1334 = vmatprep.subr.bf16.mxu0 0
      %1335 = vmatpush1.bf16.msra.mxu0 0
      %1336 = vmatprep.subr.bf16.mxu0 0
      %1337 = vmatpush1.bf16.msra.mxu0 0
      %1338 = vmatprep.subr.bf16.mxu0 0
      %1339 = vmatpush1.bf16.msra.mxu0 0
      %1340 = vmatprep.mubr.bf16.mxu0 0
      %1341 = vmatmul.mubr.bf16.gmra.mrb[0].mxu0 %v1221
      %v1342 = vpop.f32.mrb[0].mxu0
      %v1343 = vadd.f32 %v1258, %v1342
      %v1344 = vpop.f32.mrb[0].mxu0
      %v1345 = vpop.f32.mrb[0].mxu0
      %v1346 = vadd.f32 %v1258, %v1345
      %v1347 = vpop.f32.mrb[0].mxu0
      %1348 = vmatprep.mubr.bf16.mxu0 0
      %1349 = vmatmul.mubr.bf16.gmra.mrb[0].mxu0 %v1222
      %v1350 = vpop.f32.mrb[0].mxu0
      %v1351 = vadd.f32 %v1258, %v1350
      %v1352 = vpop.f32.mrb[0].mxu0
      %v1353 = vpop.f32.mrb[0].mxu0
      %v1354 = vadd.f32 %v1258, %v1353
      %v1355 = vpop.f32.mrb[0].mxu0
      %1356 = vmatprep.mubr.bf16.mxu0 0
      %1357 = vmatmul.mubr.bf16.gmra.mrb[0].mxu0 %v1223
      %v1358 = vpop.f32.mrb[0].mxu0
      %v1359 = vadd.f32 %v1258, %v1358
      %v1360 = vpop.f32.mrb[0].mxu0
      %v1361 = vpop.f32.mrb[0].mxu0
      %v1362 = vadd.f32 %v1258, %v1361
      %v1363 = vpop.f32.mrb[0].mxu0
      %1364 = vmatprep.mubr.bf16.mxu0 0
      %1365 = vmatmul.mubr.bf16.gmra.mrb[0].mxu0 %v1224
      %v1366 = vpop.f32.mrb[0].mxu0
      %v1367 = vadd.f32 %v1258, %v1366
      %v1368 = vpop.f32.mrb[0].mxu0
      %v1369 = vpop.f32.mrb[0].mxu0
      %v1370 = vadd.f32 %v1258, %v1369
      %v1371 = vpop.f32.mrb[0].mxu0
      %1372 = vmatprep.mubr.bf16.mxu0 0
      %1373 = vmatmul.mubr.bf16.gmra.mrb[0].mxu0 %v1225
      %v1374 = vpop.f32.mrb[0].mxu0
      %v1375 = vadd.f32 %v1258, %v1374
      %v1376 = vpop.f32.mrb[0].mxu0
      %v1377 = vpop.f32.mrb[0].mxu0
      %v1378 = vadd.f32 %v1258, %v1377
      %v1379 = vpop.f32.mrb[0].mxu0
      %1380 = vmatprep.mubr.bf16.mxu0 0
      %1381 = vmatmul.mubr.bf16.gmra.mrb[0].mxu0 %v1226
      %v1382 = vpop.f32.mrb[0].mxu0
      %v1383 = vadd.f32 %v1258, %v1382
      %v1384 = vpop.f32.mrb[0].mxu0
      %v1385 = vpop.f32.mrb[0].mxu0
      %v1386 = vadd.f32 %v1258, %v1385
      %v1387 = vpop.f32.mrb[0].mxu0
      %1388 = vmatprep.mubr.bf16.mxu0 0
      %1389 = vmatmul.mubr.bf16.gmra.mrb[0].mxu0 %v1227
      %v1390 = vpop.f32.mrb[0].mxu0
      %v1391 = vadd.f32 %v1258, %v1390
      %v1392 = vpop.f32.mrb[0].mxu0
      %v1393 = vpop.f32.mrb[0].mxu0
      %v1394 = vadd.f32 %v1258, %v1393
      %v1395 = vpop.f32.mrb[0].mxu0
      %1396 = vmatprep.mubr.bf16.mxu0 0
      %1397 = vmatmul.mubr.bf16.gmra.mrb[0].mxu0 %v1228
      %v1398 = vpop.f32.mrb[0].mxu0
      %v1399 = vadd.f32 %v1258, %v1398
      %v1400 = vpop.f32.mrb[0].mxu0
      %v1401 = vpop.f32.mrb[0].mxu0
      %v1402 = vadd.f32 %v1258, %v1401
      %v1403 = vpop.f32.mrb[0].mxu0
      %1404 = vmatprep.mubr.bf16.mxu0 0
      %1405 = vmatmul.mubr.bf16.gmra.mrb[0].mxu0 %v1229
      %v1406 = vpop.f32.mrb[0].mxu0
      %v1407 = vadd.f32 %v1258, %v1406
      %v1408 = vpop.f32.mrb[0].mxu0
      %v1409 = vpop.f32.mrb[0].mxu0
      %v1410 = vadd.f32 %v1258, %v1409
      %v1411 = vpop.f32.mrb[0].mxu0
      %1412 = vmatprep.mubr.bf16.mxu0 0
      %1413 = vmatmul.mubr.bf16.gmra.mrb[0].mxu0 %v1230
      %v1414 = vpop.f32.mrb[0].mxu0
      %v1415 = vadd.f32 %v1258, %v1414
      %v1416 = vpop.f32.mrb[0].mxu0
      %v1417 = vpop.f32.mrb[0].mxu0
      %v1418 = vadd.f32 %v1258, %v1417
      %v1419 = vpop.f32.mrb[0].mxu0
      %1420 = vmatprep.mubr.bf16.mxu0 0
      %1421 = vmatmul.mubr.bf16.gmra.mrb[0].mxu0 %v1231
      %v1422 = vpop.f32.mrb[0].mxu0
      %v1423 = vadd.f32 %v1258, %v1422
      %v1424 = vpop.f32.mrb[0].mxu0
      %v1425 = vpop.f32.mrb[0].mxu0
      %v1426 = vadd.f32 %v1258, %v1425
      %v1427 = vpop.f32.mrb[0].mxu0
      %1428 = vmatprep.mubr.bf16.mxu0 0
      %1429 = vmatmul.mubr.bf16.gmra.mrb[0].mxu0 %v1232
      %v1430 = vpop.f32.mrb[0].mxu0
      %v1431 = vadd.f32 %v1258, %v1430
      %v1432 = vpop.f32.mrb[0].mxu0
      %v1433 = vpop.f32.mrb[0].mxu0
      %v1434 = vadd.f32 %v1258, %v1433
      %v1435 = vpop.f32.mrb[0].mxu0
      %1436 = vmatprep.mubr.bf16.mxu0 0
      %1437 = vmatmul.mubr.bf16.gmra.mrb[0].mxu0 %v1233
      %v1438 = vpop.f32.mrb[0].mxu0
      %v1439 = vadd.f32 %v1258, %v1438
      %v1440 = vpop.f32.mrb[0].mxu0
      %v1441 = vpop.f32.mrb[0].mxu0
      %v1442 = vadd.f32 %v1258, %v1441
      %v1443 = vpop.f32.mrb[0].mxu0
      %1444 = vmatprep.mubr.bf16.mxu0 0
      %1445 = vmatmul.mubr.bf16.gmra.mrb[0].mxu0 %v1234
      %v1446 = vpop.f32.mrb[0].mxu0
      %v1447 = vadd.f32 %v1258, %v1446
      %v1448 = vpop.f32.mrb[0].mxu0
      %v1449 = vpop.f32.mrb[0].mxu0
      %v1450 = vadd.f32 %v1258, %v1449
      %v1451 = vpop.f32.mrb[0].mxu0
      %1452 = vmatprep.mubr.bf16.mxu0 0
      %1453 = vmatmul.mubr.bf16.gmra.mrb[0].mxu0 %v1235
      %v1454 = vpop.f32.mrb[0].mxu0
      %v1455 = vadd.f32 %v1258, %v1454
      %v1456 = vpop.f32.mrb[0].mxu0
      %v1457 = vpop.f32.mrb[0].mxu0
      %v1458 = vadd.f32 %v1258, %v1457
      %v1459 = vpop.f32.mrb[0].mxu0
      %1460 = vmatprep.mubr.bf16.mxu0 0
      %1461 = vmatmul.mubr.bf16.gmra.mrb[0].mxu0 %v1236
      %v1462 = vpop.f32.mrb[0].mxu0
      %v1463 = vadd.f32 %v1258, %v1462
      %v1464 = vpop.f32.mrb[0].mxu0
      %v1465 = vpop.f32.mrb[0].mxu0
      %v1466 = vadd.f32 %v1258, %v1465
      %v1467 = vpop.f32.mrb[0].mxu0
      %1468 = vdwg.mxu0
      %v1469 = vmax.f32 %v1343, 0.0
      %v1470 = vmax.f32 %v1346, 0.0
      %v1471 = vmax.f32 %v1351, 0.0
      %v1472 = vmax.f32 %v1354, 0.0
      %v1473 = vmax.f32 %v1359, 0.0
      %v1474 = vmax.f32 %v1362, 0.0
      %v1475 = vmax.f32 %v1367, 0.0
      %v1476 = vmax.f32 %v1370, 0.0
      %v1477 = vmax.f32 %v1375, 0.0
      %v1478 = vmax.f32 %v1378, 0.0
      %v1479 = vmax.f32 %v1383, 0.0
      %v1480 = vmax.f32 %v1386, 0.0
      %v1481 = vmax.f32 %v1391, 0.0
      %v1482 = vmax.f32 %v1394, 0.0
      %v1483 = vmax.f32 %v1399, 0.0
      %v1484 = vmax.f32 %v1402, 0.0
      %v1485 = vmax.f32 %v1407, 0.0
      %v1486 = vmax.f32 %v1410, 0.0
      %v1487 = vmax.f32 %v1415, 0.0
      %v1488 = vmax.f32 %v1418, 0.0
      %v1489 = vmax.f32 %v1423, 0.0
      %v1490 = vmax.f32 %v1426, 0.0
      %v1491 = vmax.f32 %v1431, 0.0
      %v1492 = vmax.f32 %v1434, 0.0
      %v1493 = vmax.f32 %v1439, 0.0
      %v1494 = vmax.f32 %v1442, 0.0
      %v1495 = vmax.f32 %v1447, 0.0
      %v1496 = vmax.f32 %v1450, 0.0
      %v1497 = vmax.f32 %v1455, 0.0
      %v1498 = vmax.f32 %v1458, 0.0
      %v1499 = vmax.f32 %v1463, 0.0
      %v1500 = vmax.f32 %v1466, 0.0
      %v1501 = vpack.c.bf16 %v1470, %v1469
      %v1502 = vpack.c.bf16 %v1472, %v1471
      %v1503 = vpack.c.bf16 %v1474, %v1473
      %v1504 = vpack.c.bf16 %v1476, %v1475
      %v1505 = vpack.c.bf16 %v1478, %v1477
      %v1506 = vpack.c.bf16 %v1480, %v1479
      %v1507 = vpack.c.bf16 %v1482, %v1481
      %v1508 = vpack.c.bf16 %v1484, %v1483
      %v1509 = vpack.c.bf16 %v1486, %v1485
      %v1510 = vpack.c.bf16 %v1488, %v1487
      %v1511 = vpack.c.bf16 %v1490, %v1489
      %v1512 = vpack.c.bf16 %v1492, %v1491
      %v1513 = vpack.c.bf16 %v1494, %v1493
      %v1514 = vpack.c.bf16 %v1496, %v1495
      %v1515 = vpack.c.bf16 %v1498, %v1497
      %v1516 = vpack.c.bf16 %v1500, %v1499
      %1517 = vmatprep.subr.bf16.mxu0 0
      %1518 = vmatpush1.bf16.msra.mxu0 %v1501
      %1519 = vmatprep.subr.bf16.mxu0 0
      %1520 = vmatpush1.bf16.msra.mxu0 %v1502
      %1521 = vmatprep.subr.bf16.mxu0 0
      %1522 = vmatpush1.bf16.msra.mxu0 %v1503
      %1523 = vmatprep.subr.bf16.mxu0 0
      %1524 = vmatpush1.bf16.msra.mxu0 %v1504
      %1525 = vmatprep.subr.bf16.mxu0 0
      %1526 = vmatpush1.bf16.msra.mxu0 %v1505
      %1527 = vmatprep.subr.bf16.mxu0 0
      %1528 = vmatpush1.bf16.msra.mxu0 %v1506
      %1529 = vmatprep.subr.bf16.mxu0 0
      %1530 = vmatpush1.bf16.msra.mxu0 %v1507
      %1531 = vmatprep.subr.bf16.mxu0 0
      %1532 = vmatpush1.bf16.msra.mxu0 %v1508
      %1533 = vmatprep.subr.bf16.mxu0 0
      %1534 = vmatpush1.bf16.msra.mxu0 %v1509
      %1535 = vmatprep.subr.bf16.mxu0 0
      %1536 = vmatpush1.bf16.msra.mxu0 %v1510
      %1537 = vmatprep.subr.bf16.mxu0 0
      %1538 = vmatpush1.bf16.msra.mxu0 %v1511
      %1539 = vmatprep.subr.bf16.mxu0 0
      %1540 = vmatpush1.bf16.msra.mxu0 %v1512
      %1541 = vmatprep.subr.bf16.mxu0 0
      %1542 = vmatpush1.bf16.msra.mxu0 %v1513
      %1543 = vmatprep.subr.bf16.mxu0 0
      %1544 = vmatpush1.bf16.msra.mxu0 %v1514
      %1545 = vmatprep.subr.bf16.mxu0 0
      %1546 = vmatpush1.bf16.msra.mxu0 %v1515
      %1547 = vmatprep.subr.bf16.mxu0 0
      %1548 = vmatpush1.bf16.msra.mxu0 %v1516
      %1549 = vmatprep.mubr.bf16.mxu0 %v621
      %1550 = vmatmul.mubr.bf16.gmra.mrb[0].mxu0 %v620
      %v1551 = vpop.f32.mrb[0].mxu0
      %v1552 = vadd.f32 0.0, %v1551
      %v1553 = vpop.f32.mrb[0].mxu0
      %v1554 = vpop.f32.mrb[0].mxu0
      %v1555 = vadd.f32 0.0, %v1554
      %v1556 = vpop.f32.mrb[0].mxu0
      %1557 = vmatprep.mubr.bf16.mxu0 %v623
      %1558 = vmatmul.mubr.bf16.gmra.mrb[0].mxu0 %v622
      %v1559 = vpop.f32.mrb[0].mxu0
      %v1560 = vadd.f32 0.0, %v1559
      %v1561 = vpop.f32.mrb[0].mxu0
      %v1562 = vpop.f32.mrb[0].mxu0
      %v1563 = vadd.f32 0.0, %v1562
      %v1564 = vpop.f32.mrb[0].mxu0
      %1565 = vmatprep.mubr.bf16.mxu0 %v625
      %1566 = vmatmul.mubr.bf16.gmra.mrb[0].mxu0 %v624
      %v1567 = vpop.f32.mrb[0].mxu0
      %v1568 = vadd.f32 0.0, %v1567
      %v1569 = vpop.f32.mrb[0].mxu0
      %v1570 = vpop.f32.mrb[0].mxu0
      %v1571 = vadd.f32 0.0, %v1570
      %v1572 = vpop.f32.mrb[0].mxu0
      %1573 = vmatprep.mubr.bf16.mxu0 %v627
      %1574 = vmatmul.mubr.bf16.gmra.mrb[0].mxu0 %v626
      %v1575 = vpop.f32.mrb[0].mxu0
      %v1576 = vadd.f32 0.0, %v1575
      %v1577 = vpop.f32.mrb[0].mxu0
      %v1578 = vpop.f32.mrb[0].mxu0
      %v1579 = vadd.f32 0.0, %v1578
      %v1580 = vpop.f32.mrb[0].mxu0
      %1581 = vmatprep.mubr.bf16.mxu0 %v629
      %1582 = vmatmul.mubr.bf16.gmra.mrb[0].mxu0 %v628
      %v1583 = vpop.f32.mrb[0].mxu0
      %v1584 = vadd.f32 0.0, %v1583
      %v1585 = vpop.f32.mrb[0].mxu0
      %v1586 = vpop.f32.mrb[0].mxu0
      %v1587 = vadd.f32 0.0, %v1586
      %v1588 = vpop.f32.mrb[0].mxu0
      %1589 = vmatprep.mubr.bf16.mxu0 %v631
      %1590 = vmatmul.mubr.bf16.gmra.mrb[0].mxu0 %v630
      %v1591 = vpop.f32.mrb[0].mxu0
      %v1592 = vadd.f32 0.0, %v1591
      %v1593 = vpop.f32.mrb[0].mxu0
      %v1594 = vpop.f32.mrb[0].mxu0
      %v1595 = vadd.f32 0.0, %v1594
      %v1596 = vpop.f32.mrb[0].mxu0
      %1597 = vmatprep.mubr.bf16.mxu0 %v633
      %1598 = vmatmul.mubr.bf16.gmra.mrb[0].mxu0 %v632
      %v1599 = vpop.f32.mrb[0].mxu0
      %v1600 = vadd.f32 0.0, %v1599
      %v1601 = vpop.f32.mrb[0].mxu0
      %v1602 = vpop.f32.mrb[0].mxu0
      %v1603 = vadd.f32 0.0, %v1602
      %v1604 = vpop.f32.mrb[0].mxu0
      %1605 = vmatprep.mubr.bf16.mxu0 %v635
      %1606 = vmatmul.mubr.bf16.gmra.mrb[0].mxu0 %v634
      %v1607 = vpop.f32.mrb[0].mxu0
      %v1608 = vadd.f32 0.0, %v1607
      %v1609 = vpop.f32.mrb[0].mxu0
      %v1610 = vpop.f32.mrb[0].mxu0
      %v1611 = vadd.f32 0.0, %v1610
      %v1612 = vpop.f32.mrb[0].mxu0
      %1613 = vmatprep.mubr.bf16.mxu0 %v637
      %1614 = vmatmul.mubr.bf16.gmra.mrb[0].mxu0 %v636
      %v1615 = vpop.f32.mrb[0].mxu0
      %v1616 = vadd.f32 0.0, %v1615
      %v1617 = vpop.f32.mrb[0].mxu0
      %v1618 = vpop.f32.mrb[0].mxu0
      %v1619 = vadd.f32 0.0, %v1618
      %v1620 = vpop.f32.mrb[0].mxu0
      %1621 = vmatprep.mubr.bf16.mxu0 %v639
      %1622 = vmatmul.mubr.bf16.gmra.mrb[0].mxu0 %v638
      %v1623 = vpop.f32.mrb[0].mxu0
      %v1624 = vadd.f32 0.0, %v1623
      %v1625 = vpop.f32.mrb[0].mxu0
      %v1626 = vpop.f32.mrb[0].mxu0
      %v1627 = vadd.f32 0.0, %v1626
      %v1628 = vpop.f32.mrb[0].mxu0
      %1629 = vmatprep.mubr.bf16.mxu0 %v641
      %1630 = vmatmul.mubr.bf16.gmra.mrb[0].mxu0 %v640
      %v1631 = vpop.f32.mrb[0].mxu0
      %v1632 = vadd.f32 0.0, %v1631
      %v1633 = vpop.f32.mrb[0].mxu0
      %v1634 = vpop.f32.mrb[0].mxu0
      %v1635 = vadd.f32 0.0, %v1634
      %v1636 = vpop.f32.mrb[0].mxu0
      %1637 = vmatprep.mubr.bf16.mxu0 %v643
      %1638 = vmatmul.mubr.bf16.gmra.mrb[0].mxu0 %v642
      %v1639 = vpop.f32.mrb[0].mxu0
      %v1640 = vadd.f32 0.0, %v1639
      %v1641 = vpop.f32.mrb[0].mxu0
      %v1642 = vpop.f32.mrb[0].mxu0
      %v1643 = vadd.f32 0.0, %v1642
      %v1644 = vpop.f32.mrb[0].mxu0
      %1645 = vmatprep.mubr.bf16.mxu0 %v645
      %1646 = vmatmul.mubr.bf16.gmra.mrb[0].mxu0 %v644
      %v1647 = vpop.f32.mrb[0].mxu0
      %v1648 = vadd.f32 0.0, %v1647
      %v1649 = vpop.f32.mrb[0].mxu0
      %v1650 = vpop.f32.mrb[0].mxu0
      %v1651 = vadd.f32 0.0, %v1650
      %v1652 = vpop.f32.mrb[0].mxu0
      %1653 = vmatprep.mubr.bf16.mxu0 %v647
      %1654 = vmatmul.mubr.bf16.gmra.mrb[0].mxu0 %v646
      %v1655 = vpop.f32.mrb[0].mxu0
      %v1656 = vadd.f32 0.0, %v1655
      %v1657 = vpop.f32.mrb[0].mxu0
      %v1658 = vpop.f32.mrb[0].mxu0
      %v1659 = vadd.f32 0.0, %v1658
      %v1660 = vpop.f32.mrb[0].mxu0
      %1661 = vmatprep.mubr.bf16.mxu0 %v649
      %1662 = vmatmul.mubr.bf16.gmra.mrb[0].mxu0 %v648
      %v1663 = vpop.f32.mrb[0].mxu0
      %v1664 = vadd.f32 0.0, %v1663
      %v1665 = vpop.f32.mrb[0].mxu0
      %v1666 = vpop.f32.mrb[0].mxu0
      %v1667 = vadd.f32 0.0, %v1666
      %v1668 = vpop.f32.mrb[0].mxu0
      %1669 = vmatprep.mubr.bf16.mxu0 %v651
      %1670 = vmatmul.mubr.bf16.gmra.mrb[0].mxu0 %v650
      %v1671 = vpop.f32.mrb[0].mxu0
      %v1672 = vadd.f32 0.0, %v1671
      %v1673 = vpop.f32.mrb[0].mxu0
      %v1674 = vpop.f32.mrb[0].mxu0
      %v1675 = vadd.f32 0.0, %v1674
      %v1676 = vpop.f32.mrb[0].mxu0
      %1677 = vdwg.mxu0
      %v1678 = vpack.c.bf16 %v1555, %v1552
      %v1679 = vpack.c.bf16 %v1563, %v1560
      %v1680 = vpack.c.bf16 %v1571, %v1568
      %v1681 = vpack.c.bf16 %v1579, %v1576
      %v1682 = vpack.c.bf16 %v1587, %v1584
      %v1683 = vpack.c.bf16 %v1595, %v1592
      %v1684 = vpack.c.bf16 %v1603, %v1600
      %v1685 = vpack.c.bf16 %v1611, %v1608
      %v1686 = vpack.c.bf16 %v1619, %v1616
      %v1687 = vpack.c.bf16 %v1627, %v1624
      %v1688 = vpack.c.bf16 %v1635, %v1632
      %v1689 = vpack.c.bf16 %v1643, %v1640
      %v1690 = vpack.c.bf16 %v1651, %v1648
      %v1691 = vpack.c.bf16 %v1659, %v1656
      %v1692 = vpack.c.bf16 %v1667, %v1664
      %v1693 = vpack.c.bf16 %v1675, %v1672
      %s1694 = scalar_lea.vmem %s3, 64
      %v1695 = vld [vmem:[%s1694] sm:$0xf]
      %v1696 = vld [vmem:[%s1694 + $0x4] sm:$0xf]
      %v1697 = vld [vmem:[%s1694 + $0x8] sm:$0xf]
      %v1698 = vld [vmem:[%s1694 + $0xc] sm:$0xf]
      %v1699 = vld [vmem:[%s1694 + $0x10] sm:$0xf]
      %v1700 = vld [vmem:[%s1694 + $0x14] sm:$0xf]
      %v1701 = vld [vmem:[%s1694 + $0x18] sm:$0xf]
      %v1702 = vld [vmem:[%s1694 + $0x1c] sm:$0xf]
      %v1703 = vld [vmem:[%s1694 + $0x20] sm:$0xf]
      %v1704 = vld [vmem:[%s1694 + $0x24] sm:$0xf]
      %v1705 = vld [vmem:[%s1694 + $0x28] sm:$0xf]
      %v1706 = vld [vmem:[%s1694 + $0x2c] sm:$0xf]
      %v1707 = vld [vmem:[%s1694 + $0x30] sm:$0xf]
      %v1708 = vld [vmem:[%s1694 + $0x34] sm:$0xf]
      %v1709 = vld [vmem:[%s1694 + $0x38] sm:$0xf]
      %v1710 = vld [vmem:[%s1694 + $0x3c] sm:$0xf]
      %s1711 = scalar_lea.vmem %s4, 1
      %v1712 = vld [vmem:[%s1711] sm:$0x1]
      %v1714 = vlaneseq
      %v1715 = vshrl.u32 %v1714, 7
      %v1716 = vsub.s32 0, %v1715
      %v1717 = vrot.slane %v1712, %v1716
      %v1735 = vunpack.c.l.b16 %v1695
      %v1736 = vunpack.c.l.b16 %v1696
      %v1737 = vunpack.c.l.b16 %v1697
      %v1738 = vunpack.c.l.b16 %v1698
      %v1739 = vunpack.c.l.b16 %v1699
      %v1740 = vunpack.c.l.b16 %v1700
      %v1741 = vunpack.c.l.b16 %v1701
      %v1742 = vunpack.c.l.b16 %v1702
      %v1743 = vunpack.c.l.b16 %v1703
      %v1744 = vunpack.c.l.b16 %v1704
      %v1745 = vunpack.c.l.b16 %v1705
      %v1746 = vunpack.c.l.b16 %v1706
      %v1747 = vunpack.c.l.b16 %v1707
      %v1748 = vunpack.c.l.b16 %v1708
      %v1749 = vunpack.c.l.b16 %v1709
      %v1750 = vunpack.c.l.b16 %v1710
      %v1751 = vpack.c.b16 %v1736, %v1735
      %v1752 = vpack.c.b16 %v1738, %v1737
      %v1753 = vpack.c.b16 %v1740, %v1739
      %v1754 = vpack.c.b16 %v1742, %v1741
      %v1755 = vpack.c.b16 %v1744, %v1743
      %v1756 = vpack.c.b16 %v1746, %v1745
      %v1757 = vpack.c.b16 %v1748, %v1747
      %v1758 = vpack.c.b16 %v1750, %v1749
      %1767 = vmatprep.subr.bf16.mxu0 0
      %1768 = vmatpush1.bf16.msra.mxu0 %v1751
      %1769 = vmatprep.subr.bf16.mxu0 0
      %1770 = vmatpush1.bf16.msra.mxu0 %v1752
      %1771 = vmatprep.subr.bf16.mxu0 0
      %1772 = vmatpush1.bf16.msra.mxu0 %v1753
      %1773 = vmatprep.subr.bf16.mxu0 0
      %1774 = vmatpush1.bf16.msra.mxu0 %v1754
      %1775 = vmatprep.subr.bf16.mxu0 0
      %1776 = vmatpush1.bf16.msra.mxu0 %v1755
      %1777 = vmatprep.subr.bf16.mxu0 0
      %1778 = vmatpush1.bf16.msra.mxu0 %v1756
      %1779 = vmatprep.subr.bf16.mxu0 0
      %1780 = vmatpush1.bf16.msra.mxu0 %v1757
      %1781 = vmatprep.subr.bf16.mxu0 0
      %1782 = vmatpush1.bf16.msra.mxu0 %v1758
      %1783 = vmatprep.subr.bf16.mxu0 0
      %1784 = vmatpush1.bf16.msra.mxu0 0
      %1785 = vmatprep.subr.bf16.mxu0 0
      %1786 = vmatpush1.bf16.msra.mxu0 0
      %1787 = vmatprep.subr.bf16.mxu0 0
      %1788 = vmatpush1.bf16.msra.mxu0 0
      %1789 = vmatprep.subr.bf16.mxu0 0
      %1790 = vmatpush1.bf16.msra.mxu0 0
      %1791 = vmatprep.subr.bf16.mxu0 0
      %1792 = vmatpush1.bf16.msra.mxu0 0
      %1793 = vmatprep.subr.bf16.mxu0 0
      %1794 = vmatpush1.bf16.msra.mxu0 0
      %1795 = vmatprep.subr.bf16.mxu0 0
      %1796 = vmatpush1.bf16.msra.mxu0 0
      %1797 = vmatprep.subr.bf16.mxu0 0
      %1798 = vmatpush1.bf16.msra.mxu0 0
      %1799 = vmatprep.mubr.bf16.mxu0 0
      %1800 = vmatmul.mubr.bf16.gmra.mrb[0].mxu0 %v1678
      %v1801 = vpop.f32.mrb[0].mxu0
      %v1802 = vadd.f32 %v1717, %v1801
      %v1803 = vpop.f32.mrb[0].mxu0
      %v1804 = vpop.f32.mrb[0].mxu0
      %v1805 = vadd.f32 %v1717, %v1804
      %v1806 = vpop.f32.mrb[0].mxu0
      %1807 = vmatprep.mubr.bf16.mxu0 0
      %1808 = vmatmul.mubr.bf16.gmra.mrb[0].mxu0 %v1679
      %v1809 = vpop.f32.mrb[0].mxu0
      %v1810 = vadd.f32 %v1717, %v1809
      %v1811 = vpop.f32.mrb[0].mxu0
      %v1812 = vpop.f32.mrb[0].mxu0
      %v1813 = vadd.f32 %v1717, %v1812
      %v1814 = vpop.f32.mrb[0].mxu0
      %1815 = vmatprep.mubr.bf16.mxu0 0
      %1816 = vmatmul.mubr.bf16.gmra.mrb[0].mxu0 %v1680
      %v1817 = vpop.f32.mrb[0].mxu0
      %v1818 = vadd.f32 %v1717, %v1817
      %v1819 = vpop.f32.mrb[0].mxu0
      %v1820 = vpop.f32.mrb[0].mxu0
      %v1821 = vadd.f32 %v1717, %v1820
      %v1822 = vpop.f32.mrb[0].mxu0
      %1823 = vmatprep.mubr.bf16.mxu0 0
      %1824 = vmatmul.mubr.bf16.gmra.mrb[0].mxu0 %v1681
      %v1825 = vpop.f32.mrb[0].mxu0
      %v1826 = vadd.f32 %v1717, %v1825
      %v1827 = vpop.f32.mrb[0].mxu0
      %v1828 = vpop.f32.mrb[0].mxu0
      %v1829 = vadd.f32 %v1717, %v1828
      %v1830 = vpop.f32.mrb[0].mxu0
      %1831 = vmatprep.mubr.bf16.mxu0 0
      %1832 = vmatmul.mubr.bf16.gmra.mrb[0].mxu0 %v1682
      %v1833 = vpop.f32.mrb[0].mxu0
      %v1834 = vadd.f32 %v1717, %v1833
      %v1835 = vpop.f32.mrb[0].mxu0
      %v1836 = vpop.f32.mrb[0].mxu0
      %v1837 = vadd.f32 %v1717, %v1836
      %v1838 = vpop.f32.mrb[0].mxu0
      %1839 = vmatprep.mubr.bf16.mxu0 0
      %1840 = vmatmul.mubr.bf16.gmra.mrb[0].mxu0 %v1683
      %v1841 = vpop.f32.mrb[0].mxu0
      %v1842 = vadd.f32 %v1717, %v1841
      %v1843 = vpop.f32.mrb[0].mxu0
      %v1844 = vpop.f32.mrb[0].mxu0
      %v1845 = vadd.f32 %v1717, %v1844
      %v1846 = vpop.f32.mrb[0].mxu0
      %1847 = vmatprep.mubr.bf16.mxu0 0
      %1848 = vmatmul.mubr.bf16.gmra.mrb[0].mxu0 %v1684
      %v1849 = vpop.f32.mrb[0].mxu0
      %v1850 = vadd.f32 %v1717, %v1849
      %v1851 = vpop.f32.mrb[0].mxu0
      %v1852 = vpop.f32.mrb[0].mxu0
      %v1853 = vadd.f32 %v1717, %v1852
      %v1854 = vpop.f32.mrb[0].mxu0
      %1855 = vmatprep.mubr.bf16.mxu0 0
      %1856 = vmatmul.mubr.bf16.gmra.mrb[0].mxu0 %v1685
      %v1857 = vpop.f32.mrb[0].mxu0
      %v1858 = vadd.f32 %v1717, %v1857
      %v1859 = vpop.f32.mrb[0].mxu0
      %v1860 = vpop.f32.mrb[0].mxu0
      %v1861 = vadd.f32 %v1717, %v1860
      %v1862 = vpop.f32.mrb[0].mxu0
      %1863 = vmatprep.mubr.bf16.mxu0 0
      %1864 = vmatmul.mubr.bf16.gmra.mrb[0].mxu0 %v1686
      %v1865 = vpop.f32.mrb[0].mxu0
      %v1866 = vadd.f32 %v1717, %v1865
      %v1867 = vpop.f32.mrb[0].mxu0
      %v1868 = vpop.f32.mrb[0].mxu0
      %v1869 = vadd.f32 %v1717, %v1868
      %v1870 = vpop.f32.mrb[0].mxu0
      %1871 = vmatprep.mubr.bf16.mxu0 0
      %1872 = vmatmul.mubr.bf16.gmra.mrb[0].mxu0 %v1687
      %v1873 = vpop.f32.mrb[0].mxu0
      %v1874 = vadd.f32 %v1717, %v1873
      %v1875 = vpop.f32.mrb[0].mxu0
      %v1876 = vpop.f32.mrb[0].mxu0
      %v1877 = vadd.f32 %v1717, %v1876
      %v1878 = vpop.f32.mrb[0].mxu0
      %1879 = vmatprep.mubr.bf16.mxu0 0
      %1880 = vmatmul.mubr.bf16.gmra.mrb[0].mxu0 %v1688
      %v1881 = vpop.f32.mrb[0].mxu0
      %v1882 = vadd.f32 %v1717, %v1881
      %v1883 = vpop.f32.mrb[0].mxu0
      %v1884 = vpop.f32.mrb[0].mxu0
      %v1885 = vadd.f32 %v1717, %v1884
      %v1886 = vpop.f32.mrb[0].mxu0
      %1887 = vmatprep.mubr.bf16.mxu0 0
      %1888 = vmatmul.mubr.bf16.gmra.mrb[0].mxu0 %v1689
      %v1889 = vpop.f32.mrb[0].mxu0
      %v1890 = vadd.f32 %v1717, %v1889
      %v1891 = vpop.f32.mrb[0].mxu0
      %v1892 = vpop.f32.mrb[0].mxu0
      %v1893 = vadd.f32 %v1717, %v1892
      %v1894 = vpop.f32.mrb[0].mxu0
      %1895 = vmatprep.mubr.bf16.mxu0 0
      %1896 = vmatmul.mubr.bf16.gmra.mrb[0].mxu0 %v1690
      %v1897 = vpop.f32.mrb[0].mxu0
      %v1898 = vadd.f32 %v1717, %v1897
      %v1899 = vpop.f32.mrb[0].mxu0
      %v1900 = vpop.f32.mrb[0].mxu0
      %v1901 = vadd.f32 %v1717, %v1900
      %v1902 = vpop.f32.mrb[0].mxu0
      %1903 = vmatprep.mubr.bf16.mxu0 0
      %1904 = vmatmul.mubr.bf16.gmra.mrb[0].mxu0 %v1691
      %v1905 = vpop.f32.mrb[0].mxu0
      %v1906 = vadd.f32 %v1717, %v1905
      %v1907 = vpop.f32.mrb[0].mxu0
      %v1908 = vpop.f32.mrb[0].mxu0
      %v1909 = vadd.f32 %v1717, %v1908
      %v1910 = vpop.f32.mrb[0].mxu0
      %1911 = vmatprep.mubr.bf16.mxu0 0
      %1912 = vmatmul.mubr.bf16.gmra.mrb[0].mxu0 %v1692
      %v1913 = vpop.f32.mrb[0].mxu0
      %v1914 = vadd.f32 %v1717, %v1913
      %v1915 = vpop.f32.mrb[0].mxu0
      %v1916 = vpop.f32.mrb[0].mxu0
      %v1917 = vadd.f32 %v1717, %v1916
      %v1918 = vpop.f32.mrb[0].mxu0
      %1919 = vmatprep.mubr.bf16.mxu0 0
      %1920 = vmatmul.mubr.bf16.gmra.mrb[0].mxu0 %v1693
      %v1921 = vpop.f32.mrb[0].mxu0
      %v1922 = vadd.f32 %v1717, %v1921
      %v1923 = vpop.f32.mrb[0].mxu0
      %v1924 = vpop.f32.mrb[0].mxu0
      %v1925 = vadd.f32 %v1717, %v1924
      %v1926 = vpop.f32.mrb[0].mxu0
      %1927 = vdwg.mxu0
      %v1928 = vmax.f32 %v1802, 0.0
      %v1929 = vmax.f32 %v1805, 0.0
      %v1930 = vmax.f32 %v1810, 0.0
      %v1931 = vmax.f32 %v1813, 0.0
      %v1932 = vmax.f32 %v1818, 0.0
      %v1933 = vmax.f32 %v1821, 0.0
      %v1934 = vmax.f32 %v1826, 0.0
      %v1935 = vmax.f32 %v1829, 0.0
      %v1936 = vmax.f32 %v1834, 0.0
      %v1937 = vmax.f32 %v1837, 0.0
      %v1938 = vmax.f32 %v1842, 0.0
      %v1939 = vmax.f32 %v1845, 0.0
      %v1940 = vmax.f32 %v1850, 0.0
      %v1941 = vmax.f32 %v1853, 0.0
      %v1942 = vmax.f32 %v1858, 0.0
      %v1943 = vmax.f32 %v1861, 0.0
      %v1944 = vmax.f32 %v1866, 0.0
      %v1945 = vmax.f32 %v1869, 0.0
      %v1946 = vmax.f32 %v1874, 0.0
      %v1947 = vmax.f32 %v1877, 0.0
      %v1948 = vmax.f32 %v1882, 0.0
      %v1949 = vmax.f32 %v1885, 0.0
      %v1950 = vmax.f32 %v1890, 0.0
      %v1951 = vmax.f32 %v1893, 0.0
      %v1952 = vmax.f32 %v1898, 0.0
      %v1953 = vmax.f32 %v1901, 0.0
      %v1954 = vmax.f32 %v1906, 0.0
      %v1955 = vmax.f32 %v1909, 0.0
      %v1956 = vmax.f32 %v1914, 0.0
      %v1957 = vmax.f32 %v1917, 0.0
      %v1958 = vmax.f32 %v1922, 0.0
      %v1959 = vmax.f32 %v1925, 0.0
      %v1960 = vpack.c.bf16 %v1929, %v1928
      %v1961 = vpack.c.bf16 %v1931, %v1930
      %v1962 = vpack.c.bf16 %v1933, %v1932
      %v1963 = vpack.c.bf16 %v1935, %v1934
      %v1964 = vpack.c.bf16 %v1937, %v1936
      %v1965 = vpack.c.bf16 %v1939, %v1938
      %v1966 = vpack.c.bf16 %v1941, %v1940
      %v1967 = vpack.c.bf16 %v1943, %v1942
      %v1968 = vpack.c.bf16 %v1945, %v1944
      %v1969 = vpack.c.bf16 %v1947, %v1946
      %v1970 = vpack.c.bf16 %v1949, %v1948
      %v1971 = vpack.c.bf16 %v1951, %v1950
      %v1972 = vpack.c.bf16 %v1953, %v1952
      %v1973 = vpack.c.bf16 %v1955, %v1954
      %v1974 = vpack.c.bf16 %v1957, %v1956
      %v1975 = vpack.c.bf16 %v1959, %v1958
      %s1976 = scalar_lea.vmem %s5, 64
      %v1977 = vld [vmem:[%s1976] sm:$0xf]
      %v1978 = vld [vmem:[%s1976 + $0x4] sm:$0xf]
      %v1979 = vld [vmem:[%s1976 + $0x8] sm:$0xf]
      %v1980 = vld [vmem:[%s1976 + $0xc] sm:$0xf]
      %v1981 = vld [vmem:[%s1976 + $0x10] sm:$0xf]
      %v1982 = vld [vmem:[%s1976 + $0x14] sm:$0xf]
      %v1983 = vld [vmem:[%s1976 + $0x18] sm:$0xf]
      %v1984 = vld [vmem:[%s1976 + $0x1c] sm:$0xf]
      %v1985 = vld [vmem:[%s1976 + $0x20] sm:$0xf]
      %v1986 = vld [vmem:[%s1976 + $0x24] sm:$0xf]
      %v1987 = vld [vmem:[%s1976 + $0x28] sm:$0xf]
      %v1988 = vld [vmem:[%s1976 + $0x2c] sm:$0xf]
      %v1989 = vld [vmem:[%s1976 + $0x30] sm:$0xf]
      %v1990 = vld [vmem:[%s1976 + $0x34] sm:$0xf]
      %v1991 = vld [vmem:[%s1976 + $0x38] sm:$0xf]
      %v1992 = vld [vmem:[%s1976 + $0x3c] sm:$0xf]
      %s1993 = scalar_lea.vmem %s6, 1
      %v1994 = vld [vmem:[%s1993] sm:$0x1]
      %v1996 = vlaneseq
      %v1997 = vshrl.u32 %v1996, 7
      %v1998 = vsub.s32 0, %v1997
      %v1999 = vrot.slane %v1994, %v1998
      %v2017 = vunpack.c.l.b16 %v1977
      %v2018 = vunpack.c.l.b16 %v1978
      %v2019 = vunpack.c.l.b16 %v1979
      %v2020 = vunpack.c.l.b16 %v1980
      %v2021 = vunpack.c.l.b16 %v1981
      %v2022 = vunpack.c.l.b16 %v1982
      %v2023 = vunpack.c.l.b16 %v1983
      %v2024 = vunpack.c.l.b16 %v1984
      %v2025 = vunpack.c.l.b16 %v1985
      %v2026 = vunpack.c.l.b16 %v1986
      %v2027 = vunpack.c.l.b16 %v1987
      %v2028 = vunpack.c.l.b16 %v1988
      %v2029 = vunpack.c.l.b16 %v1989
      %v2030 = vunpack.c.l.b16 %v1990
      %v2031 = vunpack.c.l.b16 %v1991
      %v2032 = vunpack.c.l.b16 %v1992
      %v2033 = vpack.c.b16 %v2018, %v2017
      %v2034 = vpack.c.b16 %v2020, %v2019
      %v2035 = vpack.c.b16 %v2022, %v2021
      %v2036 = vpack.c.b16 %v2024, %v2023
      %v2037 = vpack.c.b16 %v2026, %v2025
      %v2038 = vpack.c.b16 %v2028, %v2027
      %v2039 = vpack.c.b16 %v2030, %v2029
      %v2040 = vpack.c.b16 %v2032, %v2031
      %2049 = vmatprep.subr.bf16.mxu0 0
      %2050 = vmatpush1.bf16.msra.mxu0 %v2033
      %2051 = vmatprep.subr.bf16.mxu0 0
      %2052 = vmatpush1.bf16.msra.mxu0 %v2034
      %2053 = vmatprep.subr.bf16.mxu0 0
      %2054 = vmatpush1.bf16.msra.mxu0 %v2035
      %2055 = vmatprep.subr.bf16.mxu0 0
      %2056 = vmatpush1.bf16.msra.mxu0 %v2036
      %2057 = vmatprep.subr.bf16.mxu0 0
      %2058 = vmatpush1.bf16.msra.mxu0 %v2037
      %2059 = vmatprep.subr.bf16.mxu0 0
      %2060 = vmatpush1.bf16.msra.mxu0 %v2038
      %2061 = vmatprep.subr.bf16.mxu0 0
      %2062 = vmatpush1.bf16.msra.mxu0 %v2039
      %2063 = vmatprep.subr.bf16.mxu0 0
      %2064 = vmatpush1.bf16.msra.mxu0 %v2040
      %2065 = vmatprep.subr.bf16.mxu0 0
      %2066 = vmatpush1.bf16.msra.mxu0 0
      %2067 = vmatprep.subr.bf16.mxu0 0
      %2068 = vmatpush1.bf16.msra.mxu0 0
      %2069 = vmatprep.subr.bf16.mxu0 0
      %2070 = vmatpush1.bf16.msra.mxu0 0
      %2071 = vmatprep.subr.bf16.mxu0 0
      %2072 = vmatpush1.bf16.msra.mxu0 0
      %2073 = vmatprep.subr.bf16.mxu0 0
      %2074 = vmatpush1.bf16.msra.mxu0 0
      %2075 = vmatprep.subr.bf16.mxu0 0
      %2076 = vmatpush1.bf16.msra.mxu0 0
      %2077 = vmatprep.subr.bf16.mxu0 0
      %2078 = vmatpush1.bf16.msra.mxu0 0
      %2079 = vmatprep.subr.bf16.mxu0 0
      %2080 = vmatpush1.bf16.msra.mxu0 0
      %2081 = vmatprep.mubr.bf16.mxu0 0
      %2082 = vmatmul.mubr.bf16.gmra.mrb[0].mxu0 %v1960
      %v2083 = vpop.f32.mrb[0].mxu0
      %v2084 = vadd.f32 %v1999, %v2083
      %v2085 = vpop.f32.mrb[0].mxu0
      %v2086 = vpop.f32.mrb[0].mxu0
      %v2087 = vadd.f32 %v1999, %v2086
      %v2088 = vpop.f32.mrb[0].mxu0
      %2089 = vmatprep.mubr.bf16.mxu0 0
      %2090 = vmatmul.mubr.bf16.gmra.mrb[0].mxu0 %v1961
      %v2091 = vpop.f32.mrb[0].mxu0
      %v2092 = vadd.f32 %v1999, %v2091
      %v2093 = vpop.f32.mrb[0].mxu0
      %v2094 = vpop.f32.mrb[0].mxu0
      %v2095 = vadd.f32 %v1999, %v2094
      %v2096 = vpop.f32.mrb[0].mxu0
      %2097 = vmatprep.mubr.bf16.mxu0 0
      %2098 = vmatmul.mubr.bf16.gmra.mrb[0].mxu0 %v1962
      %v2099 = vpop.f32.mrb[0].mxu0
      %v2100 = vadd.f32 %v1999, %v2099
      %v2101 = vpop.f32.mrb[0].mxu0
      %v2102 = vpop.f32.mrb[0].mxu0
      %v2103 = vadd.f32 %v1999, %v2102
      %v2104 = vpop.f32.mrb[0].mxu0
      %2105 = vmatprep.mubr.bf16.mxu0 0
      %2106 = vmatmul.mubr.bf16.gmra.mrb[0].mxu0 %v1963
      %v2107 = vpop.f32.mrb[0].mxu0
      %v2108 = vadd.f32 %v1999, %v2107
      %v2109 = vpop.f32.mrb[0].mxu0
      %v2110 = vpop.f32.mrb[0].mxu0
      %v2111 = vadd.f32 %v1999, %v2110
      %v2112 = vpop.f32.mrb[0].mxu0
      %2113 = vmatprep.mubr.bf16.mxu0 0
      %2114 = vmatmul.mubr.bf16.gmra.mrb[0].mxu0 %v1964
      %v2115 = vpop.f32.mrb[0].mxu0
      %v2116 = vadd.f32 %v1999, %v2115
      %v2117 = vpop.f32.mrb[0].mxu0
      %v2118 = vpop.f32.mrb[0].mxu0
      %v2119 = vadd.f32 %v1999, %v2118
      %v2120 = vpop.f32.mrb[0].mxu0
      %2121 = vmatprep.mubr.bf16.mxu0 0
      %2122 = vmatmul.mubr.bf16.gmra.mrb[0].mxu0 %v1965
      %v2123 = vpop.f32.mrb[0].mxu0
      %v2124 = vadd.f32 %v1999, %v2123
      %v2125 = vpop.f32.mrb[0].mxu0
      %v2126 = vpop.f32.mrb[0].mxu0
      %v2127 = vadd.f32 %v1999, %v2126
      %v2128 = vpop.f32.mrb[0].mxu0
      %2129 = vmatprep.mubr.bf16.mxu0 0
      %2130 = vmatmul.mubr.bf16.gmra.mrb[0].mxu0 %v1966
      %v2131 = vpop.f32.mrb[0].mxu0
      %v2132 = vadd.f32 %v1999, %v2131
      %v2133 = vpop.f32.mrb[0].mxu0
      %v2134 = vpop.f32.mrb[0].mxu0
      %v2135 = vadd.f32 %v1999, %v2134
      %v2136 = vpop.f32.mrb[0].mxu0
      %2137 = vmatprep.mubr.bf16.mxu0 0
      %2138 = vmatmul.mubr.bf16.gmra.mrb[0].mxu0 %v1967
      %v2139 = vpop.f32.mrb[0].mxu0
      %v2140 = vadd.f32 %v1999, %v2139
      %v2141 = vpop.f32.mrb[0].mxu0
      %v2142 = vpop.f32.mrb[0].mxu0
      %v2143 = vadd.f32 %v1999, %v2142
      %v2144 = vpop.f32.mrb[0].mxu0
      %2145 = vmatprep.mubr.bf16.mxu0 0
      %2146 = vmatmul.mubr.bf16.gmra.mrb[0].mxu0 %v1968
      %v2147 = vpop.f32.mrb[0].mxu0
      %v2148 = vadd.f32 %v1999, %v2147
      %v2149 = vpop.f32.mrb[0].mxu0
      %v2150 = vpop.f32.mrb[0].mxu0
      %v2151 = vadd.f32 %v1999, %v2150
      %v2152 = vpop.f32.mrb[0].mxu0
      %2153 = vmatprep.mubr.bf16.mxu0 0
      %2154 = vmatmul.mubr.bf16.gmra.mrb[0].mxu0 %v1969
      %v2155 = vpop.f32.mrb[0].mxu0
      %v2156 = vadd.f32 %v1999, %v2155
      %v2157 = vpop.f32.mrb[0].mxu0
      %v2158 = vpop.f32.mrb[0].mxu0
      %v2159 = vadd.f32 %v1999, %v2158
      %v2160 = vpop.f32.mrb[0].mxu0
      %2161 = vmatprep.mubr.bf16.mxu0 0
      %2162 = vmatmul.mubr.bf16.gmra.mrb[0].mxu0 %v1970
      %v2163 = vpop.f32.mrb[0].mxu0
      %v2164 = vadd.f32 %v1999, %v2163
      %v2165 = vpop.f32.mrb[0].mxu0
      %v2166 = vpop.f32.mrb[0].mxu0
      %v2167 = vadd.f32 %v1999, %v2166
      %v2168 = vpop.f32.mrb[0].mxu0
      %2169 = vmatprep.mubr.bf16.mxu0 0
      %2170 = vmatmul.mubr.bf16.gmra.mrb[0].mxu0 %v1971
      %v2171 = vpop.f32.mrb[0].mxu0
      %v2172 = vadd.f32 %v1999, %v2171
      %v2173 = vpop.f32.mrb[0].mxu0
      %v2174 = vpop.f32.mrb[0].mxu0
      %v2175 = vadd.f32 %v1999, %v2174
      %v2176 = vpop.f32.mrb[0].mxu0
      %2177 = vmatprep.mubr.bf16.mxu0 0
      %2178 = vmatmul.mubr.bf16.gmra.mrb[0].mxu0 %v1972
      %v2179 = vpop.f32.mrb[0].mxu0
      %v2180 = vadd.f32 %v1999, %v2179
      %v2181 = vpop.f32.mrb[0].mxu0
      %v2182 = vpop.f32.mrb[0].mxu0
      %v2183 = vadd.f32 %v1999, %v2182
      %v2184 = vpop.f32.mrb[0].mxu0
      %2185 = vmatprep.mubr.bf16.mxu0 0
      %2186 = vmatmul.mubr.bf16.gmra.mrb[0].mxu0 %v1973
      %v2187 = vpop.f32.mrb[0].mxu0
      %v2188 = vadd.f32 %v1999, %v2187
      %v2189 = vpop.f32.mrb[0].mxu0
      %v2190 = vpop.f32.mrb[0].mxu0
      %v2191 = vadd.f32 %v1999, %v2190
      %v2192 = vpop.f32.mrb[0].mxu0
      %2193 = vmatprep.mubr.bf16.mxu0 0
      %2194 = vmatmul.mubr.bf16.gmra.mrb[0].mxu0 %v1974
      %v2195 = vpop.f32.mrb[0].mxu0
      %v2196 = vadd.f32 %v1999, %v2195
      %v2197 = vpop.f32.mrb[0].mxu0
      %v2198 = vpop.f32.mrb[0].mxu0
      %v2199 = vadd.f32 %v1999, %v2198
      %v2200 = vpop.f32.mrb[0].mxu0
      %2201 = vmatprep.mubr.bf16.mxu0 0
      %2202 = vmatmul.mubr.bf16.gmra.mrb[0].mxu0 %v1975
      %v2203 = vpop.f32.mrb[0].mxu0
      %v2204 = vadd.f32 %v1999, %v2203
      %v2205 = vpop.f32.mrb[0].mxu0
      %v2206 = vpop.f32.mrb[0].mxu0
      %v2207 = vadd.f32 %v1999, %v2206
      %v2208 = vpop.f32.mrb[0].mxu0
      %2209 = vdwg.mxu0
      %v2210 = vmax.f32 %v2084, 0.0
      %v2211 = vmax.f32 %v2087, 0.0
      %v2212 = vmax.f32 %v2092, 0.0
      %v2213 = vmax.f32 %v2095, 0.0
      %v2214 = vmax.f32 %v2100, 0.0
      %v2215 = vmax.f32 %v2103, 0.0
      %v2216 = vmax.f32 %v2108, 0.0
      %v2217 = vmax.f32 %v2111, 0.0
      %v2218 = vmax.f32 %v2116, 0.0
      %v2219 = vmax.f32 %v2119, 0.0
      %v2220 = vmax.f32 %v2124, 0.0
      %v2221 = vmax.f32 %v2127, 0.0
      %v2222 = vmax.f32 %v2132, 0.0
      %v2223 = vmax.f32 %v2135, 0.0
      %v2224 = vmax.f32 %v2140, 0.0
      %v2225 = vmax.f32 %v2143, 0.0
      %v2226 = vmax.f32 %v2148, 0.0
      %v2227 = vmax.f32 %v2151, 0.0
      %v2228 = vmax.f32 %v2156, 0.0
      %v2229 = vmax.f32 %v2159, 0.0
      %v2230 = vmax.f32 %v2164, 0.0
      %v2231 = vmax.f32 %v2167, 0.0
      %v2232 = vmax.f32 %v2172, 0.0
      %v2233 = vmax.f32 %v2175, 0.0
      %v2234 = vmax.f32 %v2180, 0.0
      %v2235 = vmax.f32 %v2183, 0.0
      %v2236 = vmax.f32 %v2188, 0.0
      %v2237 = vmax.f32 %v2191, 0.0
      %v2238 = vmax.f32 %v2196, 0.0
      %v2239 = vmax.f32 %v2199, 0.0
      %v2240 = vmax.f32 %v2204, 0.0
      %v2241 = vmax.f32 %v2207, 0.0
      %v2242 = vpack.c.bf16 %v2211, %v2210
      %v2243 = vpack.c.bf16 %v2213, %v2212
      %v2244 = vpack.c.bf16 %v2215, %v2214
      %v2245 = vpack.c.bf16 %v2217, %v2216
      %v2246 = vpack.c.bf16 %v2219, %v2218
      %v2247 = vpack.c.bf16 %v2221, %v2220
      %v2248 = vpack.c.bf16 %v2223, %v2222
      %v2249 = vpack.c.bf16 %v2225, %v2224
      %v2250 = vpack.c.bf16 %v2227, %v2226
      %v2251 = vpack.c.bf16 %v2229, %v2228
      %v2252 = vpack.c.bf16 %v2231, %v2230
      %v2253 = vpack.c.bf16 %v2233, %v2232
      %v2254 = vpack.c.bf16 %v2235, %v2234
      %v2255 = vpack.c.bf16 %v2237, %v2236
      %v2256 = vpack.c.bf16 %v2239, %v2238
      %v2257 = vpack.c.bf16 %v2241, %v2240
      %2258 = vmatprep.subr.bf16.mxu0 0
      %2259 = vmatpush1.bf16.msra.mxu0 %v2242
      %2260 = vmatprep.subr.bf16.mxu0 0
      %2261 = vmatpush1.bf16.msra.mxu0 %v2243
      %2262 = vmatprep.subr.bf16.mxu0 0
      %2263 = vmatpush1.bf16.msra.mxu0 %v2244
      %2264 = vmatprep.subr.bf16.mxu0 0
      %2265 = vmatpush1.bf16.msra.mxu0 %v2245
      %2266 = vmatprep.subr.bf16.mxu0 0
      %2267 = vmatpush1.bf16.msra.mxu0 %v2246
      %2268 = vmatprep.subr.bf16.mxu0 0
      %2269 = vmatpush1.bf16.msra.mxu0 %v2247
      %2270 = vmatprep.subr.bf16.mxu0 0
      %2271 = vmatpush1.bf16.msra.mxu0 %v2248
      %2272 = vmatprep.subr.bf16.mxu0 0
      %2273 = vmatpush1.bf16.msra.mxu0 %v2249
      %2274 = vmatprep.subr.bf16.mxu0 0
      %2275 = vmatpush1.bf16.msra.mxu0 %v2250
      %2276 = vmatprep.subr.bf16.mxu0 0
      %2277 = vmatpush1.bf16.msra.mxu0 %v2251
      %2278 = vmatprep.subr.bf16.mxu0 0
      %2279 = vmatpush1.bf16.msra.mxu0 %v2252
      %2280 = vmatprep.subr.bf16.mxu0 0
      %2281 = vmatpush1.bf16.msra.mxu0 %v2253
      %2282 = vmatprep.subr.bf16.mxu0 0
      %2283 = vmatpush1.bf16.msra.mxu0 %v2254
      %2284 = vmatprep.subr.bf16.mxu0 0
      %2285 = vmatpush1.bf16.msra.mxu0 %v2255
      %2286 = vmatprep.subr.bf16.mxu0 0
      %2287 = vmatpush1.bf16.msra.mxu0 %v2256
      %2288 = vmatprep.subr.bf16.mxu0 0
      %2289 = vmatpush1.bf16.msra.mxu0 %v2257
      %2290 = vmatprep.mubr.bf16.mxu0 %v621
      %2291 = vmatmul.mubr.bf16.gmra.mrb[0].mxu0 %v620
      %v2292 = vpop.f32.mrb[0].mxu0
      %v2293 = vadd.f32 0.0, %v2292
      %v2294 = vpop.f32.mrb[0].mxu0
      %v2295 = vpop.f32.mrb[0].mxu0
      %v2296 = vadd.f32 0.0, %v2295
      %v2297 = vpop.f32.mrb[0].mxu0
      %2298 = vmatprep.mubr.bf16.mxu0 %v623
      %2299 = vmatmul.mubr.bf16.gmra.mrb[0].mxu0 %v622
      %v2300 = vpop.f32.mrb[0].mxu0
      %v2301 = vadd.f32 0.0, %v2300
      %v2302 = vpop.f32.mrb[0].mxu0
      %v2303 = vpop.f32.mrb[0].mxu0
      %v2304 = vadd.f32 0.0, %v2303
      %v2305 = vpop.f32.mrb[0].mxu0
      %2306 = vmatprep.mubr.bf16.mxu0 %v625
      %2307 = vmatmul.mubr.bf16.gmra.mrb[0].mxu0 %v624
      %v2308 = vpop.f32.mrb[0].mxu0
      %v2309 = vadd.f32 0.0, %v2308
      %v2310 = vpop.f32.mrb[0].mxu0
      %v2311 = vpop.f32.mrb[0].mxu0
      %v2312 = vadd.f32 0.0, %v2311
      %v2313 = vpop.f32.mrb[0].mxu0
      %2314 = vmatprep.mubr.bf16.mxu0 %v627
      %2315 = vmatmul.mubr.bf16.gmra.mrb[0].mxu0 %v626
      %v2316 = vpop.f32.mrb[0].mxu0
      %v2317 = vadd.f32 0.0, %v2316
      %v2318 = vpop.f32.mrb[0].mxu0
      %v2319 = vpop.f32.mrb[0].mxu0
      %v2320 = vadd.f32 0.0, %v2319
      %v2321 = vpop.f32.mrb[0].mxu0
      %2322 = vmatprep.mubr.bf16.mxu0 %v629
      %2323 = vmatmul.mubr.bf16.gmra.mrb[0].mxu0 %v628
      %v2324 = vpop.f32.mrb[0].mxu0
      %v2325 = vadd.f32 0.0, %v2324
      %v2326 = vpop.f32.mrb[0].mxu0
      %v2327 = vpop.f32.mrb[0].mxu0
      %v2328 = vadd.f32 0.0, %v2327
      %v2329 = vpop.f32.mrb[0].mxu0
      %2330 = vmatprep.mubr.bf16.mxu0 %v631
      %2331 = vmatmul.mubr.bf16.gmra.mrb[0].mxu0 %v630
      %v2332 = vpop.f32.mrb[0].mxu0
      %v2333 = vadd.f32 0.0, %v2332
      %v2334 = vpop.f32.mrb[0].mxu0
      %v2335 = vpop.f32.mrb[0].mxu0
      %v2336 = vadd.f32 0.0, %v2335
      %v2337 = vpop.f32.mrb[0].mxu0
      %2338 = vmatprep.mubr.bf16.mxu0 %v633
      %2339 = vmatmul.mubr.bf16.gmra.mrb[0].mxu0 %v632
      %v2340 = vpop.f32.mrb[0].mxu0
      %v2341 = vadd.f32 0.0, %v2340
      %v2342 = vpop.f32.mrb[0].mxu0
      %v2343 = vpop.f32.mrb[0].mxu0
      %v2344 = vadd.f32 0.0, %v2343
      %v2345 = vpop.f32.mrb[0].mxu0
      %2346 = vmatprep.mubr.bf16.mxu0 %v635
      %2347 = vmatmul.mubr.bf16.gmra.mrb[0].mxu0 %v634
      %v2348 = vpop.f32.mrb[0].mxu0
      %v2349 = vadd.f32 0.0, %v2348
      %v2350 = vpop.f32.mrb[0].mxu0
      %v2351 = vpop.f32.mrb[0].mxu0
      %v2352 = vadd.f32 0.0, %v2351
      %v2353 = vpop.f32.mrb[0].mxu0
      %2354 = vmatprep.mubr.bf16.mxu0 %v637
      %2355 = vmatmul.mubr.bf16.gmra.mrb[0].mxu0 %v636
      %v2356 = vpop.f32.mrb[0].mxu0
      %v2357 = vadd.f32 0.0, %v2356
      %v2358 = vpop.f32.mrb[0].mxu0
      %v2359 = vpop.f32.mrb[0].mxu0
      %v2360 = vadd.f32 0.0, %v2359
      %v2361 = vpop.f32.mrb[0].mxu0
      %2362 = vmatprep.mubr.bf16.mxu0 %v639
      %2363 = vmatmul.mubr.bf16.gmra.mrb[0].mxu0 %v638
      %v2364 = vpop.f32.mrb[0].mxu0
      %v2365 = vadd.f32 0.0, %v2364
      %v2366 = vpop.f32.mrb[0].mxu0
      %v2367 = vpop.f32.mrb[0].mxu0
      %v2368 = vadd.f32 0.0, %v2367
      %v2369 = vpop.f32.mrb[0].mxu0
      %2370 = vmatprep.mubr.bf16.mxu0 %v641
      %2371 = vmatmul.mubr.bf16.gmra.mrb[0].mxu0 %v640
      %v2372 = vpop.f32.mrb[0].mxu0
      %v2373 = vadd.f32 0.0, %v2372
      %v2374 = vpop.f32.mrb[0].mxu0
      %v2375 = vpop.f32.mrb[0].mxu0
      %v2376 = vadd.f32 0.0, %v2375
      %v2377 = vpop.f32.mrb[0].mxu0
      %2378 = vmatprep.mubr.bf16.mxu0 %v643
      %2379 = vmatmul.mubr.bf16.gmra.mrb[0].mxu0 %v642
      %v2380 = vpop.f32.mrb[0].mxu0
      %v2381 = vadd.f32 0.0, %v2380
      %v2382 = vpop.f32.mrb[0].mxu0
      %v2383 = vpop.f32.mrb[0].mxu0
      %v2384 = vadd.f32 0.0, %v2383
      %v2385 = vpop.f32.mrb[0].mxu0
      %2386 = vmatprep.mubr.bf16.mxu0 %v645
      %2387 = vmatmul.mubr.bf16.gmra.mrb[0].mxu0 %v644
      %v2388 = vpop.f32.mrb[0].mxu0
      %v2389 = vadd.f32 0.0, %v2388
      %v2390 = vpop.f32.mrb[0].mxu0
      %v2391 = vpop.f32.mrb[0].mxu0
      %v2392 = vadd.f32 0.0, %v2391
      %v2393 = vpop.f32.mrb[0].mxu0
      %2394 = vmatprep.mubr.bf16.mxu0 %v647
      %2395 = vmatmul.mubr.bf16.gmra.mrb[0].mxu0 %v646
      %v2396 = vpop.f32.mrb[0].mxu0
      %v2397 = vadd.f32 0.0, %v2396
      %v2398 = vpop.f32.mrb[0].mxu0
      %v2399 = vpop.f32.mrb[0].mxu0
      %v2400 = vadd.f32 0.0, %v2399
      %v2401 = vpop.f32.mrb[0].mxu0
      %2402 = vmatprep.mubr.bf16.mxu0 %v649
      %2403 = vmatmul.mubr.bf16.gmra.mrb[0].mxu0 %v648
      %v2404 = vpop.f32.mrb[0].mxu0
      %v2405 = vadd.f32 0.0, %v2404
      %v2406 = vpop.f32.mrb[0].mxu0
      %v2407 = vpop.f32.mrb[0].mxu0
      %v2408 = vadd.f32 0.0, %v2407
      %v2409 = vpop.f32.mrb[0].mxu0
      %2410 = vmatprep.mubr.bf16.mxu0 %v651
      %2411 = vmatmul.mubr.bf16.gmra.mrb[0].mxu0 %v650
      %v2412 = vpop.f32.mrb[0].mxu0
      %v2413 = vadd.f32 0.0, %v2412
      %v2414 = vpop.f32.mrb[0].mxu0
      %v2415 = vpop.f32.mrb[0].mxu0
      %v2416 = vadd.f32 0.0, %v2415
      %v2417 = vpop.f32.mrb[0].mxu0
      %2418 = vdwg.mxu0
      %v2419 = vpack.c.bf16 %v2296, %v2293
      %v2420 = vpack.c.bf16 %v2304, %v2301
      %v2421 = vpack.c.bf16 %v2312, %v2309
      %v2422 = vpack.c.bf16 %v2320, %v2317
      %v2423 = vpack.c.bf16 %v2328, %v2325
      %v2424 = vpack.c.bf16 %v2336, %v2333
      %v2425 = vpack.c.bf16 %v2344, %v2341
      %v2426 = vpack.c.bf16 %v2352, %v2349
      %v2427 = vpack.c.bf16 %v2360, %v2357
      %v2428 = vpack.c.bf16 %v2368, %v2365
      %v2429 = vpack.c.bf16 %v2376, %v2373
      %v2430 = vpack.c.bf16 %v2384, %v2381
      %v2431 = vpack.c.bf16 %v2392, %v2389
      %v2432 = vpack.c.bf16 %v2400, %v2397
      %v2433 = vpack.c.bf16 %v2408, %v2405
      %v2434 = vpack.c.bf16 %v2416, %v2413
      %s2435 = scalar_lea.vmem %s3, 128
      %v2436 = vld [vmem:[%s2435] sm:$0xf]
      %v2437 = vld [vmem:[%s2435 + $0x4] sm:$0xf]
      %v2438 = vld [vmem:[%s2435 + $0x8] sm:$0xf]
      %v2439 = vld [vmem:[%s2435 + $0xc] sm:$0xf]
      %v2440 = vld [vmem:[%s2435 + $0x10] sm:$0xf]
      %v2441 = vld [vmem:[%s2435 + $0x14] sm:$0xf]
      %v2442 = vld [vmem:[%s2435 + $0x18] sm:$0xf]
      %v2443 = vld [vmem:[%s2435 + $0x1c] sm:$0xf]
      %v2444 = vld [vmem:[%s2435 + $0x20] sm:$0xf]
      %v2445 = vld [vmem:[%s2435 + $0x24] sm:$0xf]
      %v2446 = vld [vmem:[%s2435 + $0x28] sm:$0xf]
      %v2447 = vld [vmem:[%s2435 + $0x2c] sm:$0xf]
      %v2448 = vld [vmem:[%s2435 + $0x30] sm:$0xf]
      %v2449 = vld [vmem:[%s2435 + $0x34] sm:$0xf]
      %v2450 = vld [vmem:[%s2435 + $0x38] sm:$0xf]
      %v2451 = vld [vmem:[%s2435 + $0x3c] sm:$0xf]
      %s2452 = scalar_lea.vmem %s4, 2
      %v2453 = vld [vmem:[%s2452] sm:$0x1]
      %v2455 = vlaneseq
      %v2456 = vshrl.u32 %v2455, 7
      %v2457 = vsub.s32 0, %v2456
      %v2458 = vrot.slane %v2453, %v2457
      %v2476 = vunpack.c.l.b16 %v2436
      %v2477 = vunpack.c.l.b16 %v2437
      %v2478 = vunpack.c.l.b16 %v2438
      %v2479 = vunpack.c.l.b16 %v2439
      %v2480 = vunpack.c.l.b16 %v2440
      %v2481 = vunpack.c.l.b16 %v2441
      %v2482 = vunpack.c.l.b16 %v2442
      %v2483 = vunpack.c.l.b16 %v2443
      %v2484 = vunpack.c.l.b16 %v2444
      %v2485 = vunpack.c.l.b16 %v2445
      %v2486 = vunpack.c.l.b16 %v2446
      %v2487 = vunpack.c.l.b16 %v2447
      %v2488 = vunpack.c.l.b16 %v2448
      %v2489 = vunpack.c.l.b16 %v2449
      %v2490 = vunpack.c.l.b16 %v2450
      %v2491 = vunpack.c.l.b16 %v2451
      %v2492 = vpack.c.b16 %v2477, %v2476
      %v2493 = vpack.c.b16 %v2479, %v2478
      %v2494 = vpack.c.b16 %v2481, %v2480
      %v2495 = vpack.c.b16 %v2483, %v2482
      %v2496 = vpack.c.b16 %v2485, %v2484
      %v2497 = vpack.c.b16 %v2487, %v2486
      %v2498 = vpack.c.b16 %v2489, %v2488
      %v2499 = vpack.c.b16 %v2491, %v2490
      %2508 = vmatprep.subr.bf16.mxu0 0
      %2509 = vmatpush1.bf16.msra.mxu0 %v2492
      %2510 = vmatprep.subr.bf16.mxu0 0
      %2511 = vmatpush1.bf16.msra.mxu0 %v2493
      %2512 = vmatprep.subr.bf16.mxu0 0
      %2513 = vmatpush1.bf16.msra.mxu0 %v2494
      %2514 = vmatprep.subr.bf16.mxu0 0
      %2515 = vmatpush1.bf16.msra.mxu0 %v2495
      %2516 = vmatprep.subr.bf16.mxu0 0
      %2517 = vmatpush1.bf16.msra.mxu0 %v2496
      %2518 = vmatprep.subr.bf16.mxu0 0
      %2519 = vmatpush1.bf16.msra.mxu0 %v2497
      %2520 = vmatprep.subr.bf16.mxu0 0
      %2521 = vmatpush1.bf16.msra.mxu0 %v2498
      %2522 = vmatprep.subr.bf16.mxu0 0
      %2523 = vmatpush1.bf16.msra.mxu0 %v2499
      %2524 = vmatprep.subr.bf16.mxu0 0
      %2525 = vmatpush1.bf16.msra.mxu0 0
      %2526 = vmatprep.subr.bf16.mxu0 0
      %2527 = vmatpush1.bf16.msra.mxu0 0
      %2528 = vmatprep.subr.bf16.mxu0 0
      %2529 = vmatpush1.bf16.msra.mxu0 0
      %2530 = vmatprep.subr.bf16.mxu0 0
      %2531 = vmatpush1.bf16.msra.mxu0 0
      %2532 = vmatprep.subr.bf16.mxu0 0
      %2533 = vmatpush1.bf16.msra.mxu0 0
      %2534 = vmatprep.subr.bf16.mxu0 0
      %2535 = vmatpush1.bf16.msra.mxu0 0
      %2536 = vmatprep.subr.bf16.mxu0 0
      %2537 = vmatpush1.bf16.msra.mxu0 0
      %2538 = vmatprep.subr.bf16.mxu0 0
      %2539 = vmatpush1.bf16.msra.mxu0 0
      %2540 = vmatprep.mubr.bf16.mxu0 0
      %2541 = vmatmul.mubr.bf16.gmra.mrb[0].mxu0 %v2419
      %v2542 = vpop.f32.mrb[0].mxu0
      %v2543 = vadd.f32 %v2458, %v2542
      %v2544 = vpop.f32.mrb[0].mxu0
      %v2545 = vpop.f32.mrb[0].mxu0
      %v2546 = vadd.f32 %v2458, %v2545
      %v2547 = vpop.f32.mrb[0].mxu0
      %2548 = vmatprep.mubr.bf16.mxu0 0
      %2549 = vmatmul.mubr.bf16.gmra.mrb[0].mxu0 %v2420
      %v2550 = vpop.f32.mrb[0].mxu0
      %v2551 = vadd.f32 %v2458, %v2550
      %v2552 = vpop.f32.mrb[0].mxu0
      %v2553 = vpop.f32.mrb[0].mxu0
      %v2554 = vadd.f32 %v2458, %v2553
      %v2555 = vpop.f32.mrb[0].mxu0
      %2556 = vmatprep.mubr.bf16.mxu0 0
      %2557 = vmatmul.mubr.bf16.gmra.mrb[0].mxu0 %v2421
      %v2558 = vpop.f32.mrb[0].mxu0
      %v2559 = vadd.f32 %v2458, %v2558
      %v2560 = vpop.f32.mrb[0].mxu0
      %v2561 = vpop.f32.mrb[0].mxu0
      %v2562 = vadd.f32 %v2458, %v2561
      %v2563 = vpop.f32.mrb[0].mxu0
      %2564 = vmatprep.mubr.bf16.mxu0 0
      %2565 = vmatmul.mubr.bf16.gmra.mrb[0].mxu0 %v2422
      %v2566 = vpop.f32.mrb[0].mxu0
      %v2567 = vadd.f32 %v2458, %v2566
      %v2568 = vpop.f32.mrb[0].mxu0
      %v2569 = vpop.f32.mrb[0].mxu0
      %v2570 = vadd.f32 %v2458, %v2569
      %v2571 = vpop.f32.mrb[0].mxu0
      %2572 = vmatprep.mubr.bf16.mxu0 0
      %2573 = vmatmul.mubr.bf16.gmra.mrb[0].mxu0 %v2423
      %v2574 = vpop.f32.mrb[0].mxu0
      %v2575 = vadd.f32 %v2458, %v2574
      %v2576 = vpop.f32.mrb[0].mxu0
      %v2577 = vpop.f32.mrb[0].mxu0
      %v2578 = vadd.f32 %v2458, %v2577
      %v2579 = vpop.f32.mrb[0].mxu0
      %2580 = vmatprep.mubr.bf16.mxu0 0
      %2581 = vmatmul.mubr.bf16.gmra.mrb[0].mxu0 %v2424
      %v2582 = vpop.f32.mrb[0].mxu0
      %v2583 = vadd.f32 %v2458, %v2582
      %v2584 = vpop.f32.mrb[0].mxu0
      %v2585 = vpop.f32.mrb[0].mxu0
      %v2586 = vadd.f32 %v2458, %v2585
      %v2587 = vpop.f32.mrb[0].mxu0
      %2588 = vmatprep.mubr.bf16.mxu0 0
      %2589 = vmatmul.mubr.bf16.gmra.mrb[0].mxu0 %v2425
      %v2590 = vpop.f32.mrb[0].mxu0
      %v2591 = vadd.f32 %v2458, %v2590
      %v2592 = vpop.f32.mrb[0].mxu0
      %v2593 = vpop.f32.mrb[0].mxu0
      %v2594 = vadd.f32 %v2458, %v2593
      %v2595 = vpop.f32.mrb[0].mxu0
      %2596 = vmatprep.mubr.bf16.mxu0 0
      %2597 = vmatmul.mubr.bf16.gmra.mrb[0].mxu0 %v2426
      %v2598 = vpop.f32.mrb[0].mxu0
      %v2599 = vadd.f32 %v2458, %v2598
      %v2600 = vpop.f32.mrb[0].mxu0
      %v2601 = vpop.f32.mrb[0].mxu0
      %v2602 = vadd.f32 %v2458, %v2601
      %v2603 = vpop.f32.mrb[0].mxu0
      %2604 = vmatprep.mubr.bf16.mxu0 0
      %2605 = vmatmul.mubr.bf16.gmra.mrb[0].mxu0 %v2427
      %v2606 = vpop.f32.mrb[0].mxu0
      %v2607 = vadd.f32 %v2458, %v2606
      %v2608 = vpop.f32.mrb[0].mxu0
      %v2609 = vpop.f32.mrb[0].mxu0
      %v2610 = vadd.f32 %v2458, %v2609
      %v2611 = vpop.f32.mrb[0].mxu0
      %2612 = vmatprep.mubr.bf16.mxu0 0
      %2613 = vmatmul.mubr.bf16.gmra.mrb[0].mxu0 %v2428
      %v2614 = vpop.f32.mrb[0].mxu0
      %v2615 = vadd.f32 %v2458, %v2614
      %v2616 = vpop.f32.mrb[0].mxu0
      %v2617 = vpop.f32.mrb[0].mxu0
      %v2618 = vadd.f32 %v2458, %v2617
      %v2619 = vpop.f32.mrb[0].mxu0
      %2620 = vmatprep.mubr.bf16.mxu0 0
      %2621 = vmatmul.mubr.bf16.gmra.mrb[0].mxu0 %v2429
      %v2622 = vpop.f32.mrb[0].mxu0
      %v2623 = vadd.f32 %v2458, %v2622
      %v2624 = vpop.f32.mrb[0].mxu0
      %v2625 = vpop.f32.mrb[0].mxu0
      %v2626 = vadd.f32 %v2458, %v2625
      %v2627 = vpop.f32.mrb[0].mxu0
      %2628 = vmatprep.mubr.bf16.mxu0 0
      %2629 = vmatmul.mubr.bf16.gmra.mrb[0].mxu0 %v2430
      %v2630 = vpop.f32.mrb[0].mxu0
      %v2631 = vadd.f32 %v2458, %v2630
      %v2632 = vpop.f32.mrb[0].mxu0
      %v2633 = vpop.f32.mrb[0].mxu0
      %v2634 = vadd.f32 %v2458, %v2633
      %v2635 = vpop.f32.mrb[0].mxu0
      %2636 = vmatprep.mubr.bf16.mxu0 0
      %2637 = vmatmul.mubr.bf16.gmra.mrb[0].mxu0 %v2431
      %v2638 = vpop.f32.mrb[0].mxu0
      %v2639 = vadd.f32 %v2458, %v2638
      %v2640 = vpop.f32.mrb[0].mxu0
      %v2641 = vpop.f32.mrb[0].mxu0
      %v2642 = vadd.f32 %v2458, %v2641
      %v2643 = vpop.f32.mrb[0].mxu0
      %2644 = vmatprep.mubr.bf16.mxu0 0
      %2645 = vmatmul.mubr.bf16.gmra.mrb[0].mxu0 %v2432
      %v2646 = vpop.f32.mrb[0].mxu0
      %v2647 = vadd.f32 %v2458, %v2646
      %v2648 = vpop.f32.mrb[0].mxu0
      %v2649 = vpop.f32.mrb[0].mxu0
      %v2650 = vadd.f32 %v2458, %v2649
      %v2651 = vpop.f32.mrb[0].mxu0
      %2652 = vmatprep.mubr.bf16.mxu0 0
      %2653 = vmatmul.mubr.bf16.gmra.mrb[0].mxu0 %v2433
      %v2654 = vpop.f32.mrb[0].mxu0
      %v2655 = vadd.f32 %v2458, %v2654
      %v2656 = vpop.f32.mrb[0].mxu0
      %v2657 = vpop.f32.mrb[0].mxu0
      %v2658 = vadd.f32 %v2458, %v2657
      %v2659 = vpop.f32.mrb[0].mxu0
      %2660 = vmatprep.mubr.bf16.mxu0 0
      %2661 = vmatmul.mubr.bf16.gmra.mrb[0].mxu0 %v2434
      %v2662 = vpop.f32.mrb[0].mxu0
      %v2663 = vadd.f32 %v2458, %v2662
      %v2664 = vpop.f32.mrb[0].mxu0
      %v2665 = vpop.f32.mrb[0].mxu0
      %v2666 = vadd.f32 %v2458, %v2665
      %v2667 = vpop.f32.mrb[0].mxu0
      %2668 = vdwg.mxu0
      %v2669 = vmax.f32 %v2543, 0.0
      %v2670 = vmax.f32 %v2546, 0.0
      %v2671 = vmax.f32 %v2551, 0.0
      %v2672 = vmax.f32 %v2554, 0.0
      %v2673 = vmax.f32 %v2559, 0.0
      %v2674 = vmax.f32 %v2562, 0.0
      %v2675 = vmax.f32 %v2567, 0.0
      %v2676 = vmax.f32 %v2570, 0.0
      %v2677 = vmax.f32 %v2575, 0.0
      %v2678 = vmax.f32 %v2578, 0.0
      %v2679 = vmax.f32 %v2583, 0.0
      %v2680 = vmax.f32 %v2586, 0.0
      %v2681 = vmax.f32 %v2591, 0.0
      %v2682 = vmax.f32 %v2594, 0.0
      %v2683 = vmax.f32 %v2599, 0.0
      %v2684 = vmax.f32 %v2602, 0.0
      %v2685 = vmax.f32 %v2607, 0.0
      %v2686 = vmax.f32 %v2610, 0.0
      %v2687 = vmax.f32 %v2615, 0.0
      %v2688 = vmax.f32 %v2618, 0.0
      %v2689 = vmax.f32 %v2623, 0.0
      %v2690 = vmax.f32 %v2626, 0.0
      %v2691 = vmax.f32 %v2631, 0.0
      %v2692 = vmax.f32 %v2634, 0.0
      %v2693 = vmax.f32 %v2639, 0.0
      %v2694 = vmax.f32 %v2642, 0.0
      %v2695 = vmax.f32 %v2647, 0.0
      %v2696 = vmax.f32 %v2650, 0.0
      %v2697 = vmax.f32 %v2655, 0.0
      %v2698 = vmax.f32 %v2658, 0.0
      %v2699 = vmax.f32 %v2663, 0.0
      %v2700 = vmax.f32 %v2666, 0.0
      %v2701 = vpack.c.bf16 %v2670, %v2669
      %v2702 = vpack.c.bf16 %v2672, %v2671
      %v2703 = vpack.c.bf16 %v2674, %v2673
      %v2704 = vpack.c.bf16 %v2676, %v2675
      %v2705 = vpack.c.bf16 %v2678, %v2677
      %v2706 = vpack.c.bf16 %v2680, %v2679
      %v2707 = vpack.c.bf16 %v2682, %v2681
      %v2708 = vpack.c.bf16 %v2684, %v2683
      %v2709 = vpack.c.bf16 %v2686, %v2685
      %v2710 = vpack.c.bf16 %v2688, %v2687
      %v2711 = vpack.c.bf16 %v2690, %v2689
      %v2712 = vpack.c.bf16 %v2692, %v2691
      %v2713 = vpack.c.bf16 %v2694, %v2693
      %v2714 = vpack.c.bf16 %v2696, %v2695
      %v2715 = vpack.c.bf16 %v2698, %v2697
      %v2716 = vpack.c.bf16 %v2700, %v2699
      %s2717 = scalar_lea.vmem %s5, 128
      %v2718 = vld [vmem:[%s2717] sm:$0xf]
      %v2719 = vld [vmem:[%s2717 + $0x4] sm:$0xf]
      %v2720 = vld [vmem:[%s2717 + $0x8] sm:$0xf]
      %v2721 = vld [vmem:[%s2717 + $0xc] sm:$0xf]
      %v2722 = vld [vmem:[%s2717 + $0x10] sm:$0xf]
      %v2723 = vld [vmem:[%s2717 + $0x14] sm:$0xf]
      %v2724 = vld [vmem:[%s2717 + $0x18] sm:$0xf]
      %v2725 = vld [vmem:[%s2717 + $0x1c] sm:$0xf]
      %v2726 = vld [vmem:[%s2717 + $0x20] sm:$0xf]
      %v2727 = vld [vmem:[%s2717 + $0x24] sm:$0xf]
      %v2728 = vld [vmem:[%s2717 + $0x28] sm:$0xf]
      %v2729 = vld [vmem:[%s2717 + $0x2c] sm:$0xf]
      %v2730 = vld [vmem:[%s2717 + $0x30] sm:$0xf]
      %v2731 = vld [vmem:[%s2717 + $0x34] sm:$0xf]
      %v2732 = vld [vmem:[%s2717 + $0x38] sm:$0xf]
      %v2733 = vld [vmem:[%s2717 + $0x3c] sm:$0xf]
      %s2734 = scalar_lea.vmem %s6, 2
      %v2735 = vld [vmem:[%s2734] sm:$0x1]
      %v2737 = vlaneseq
      %v2738 = vshrl.u32 %v2737, 7
      %v2739 = vsub.s32 0, %v2738
      %v2740 = vrot.slane %v2735, %v2739
      %v2758 = vunpack.c.l.b16 %v2718
      %v2759 = vunpack.c.l.b16 %v2719
      %v2760 = vunpack.c.l.b16 %v2720
      %v2761 = vunpack.c.l.b16 %v2721
      %v2762 = vunpack.c.l.b16 %v2722
      %v2763 = vunpack.c.l.b16 %v2723
      %v2764 = vunpack.c.l.b16 %v2724
      %v2765 = vunpack.c.l.b16 %v2725
      %v2766 = vunpack.c.l.b16 %v2726
      %v2767 = vunpack.c.l.b16 %v2727
      %v2768 = vunpack.c.l.b16 %v2728
      %v2769 = vunpack.c.l.b16 %v2729
      %v2770 = vunpack.c.l.b16 %v2730
      %v2771 = vunpack.c.l.b16 %v2731
      %v2772 = vunpack.c.l.b16 %v2732
      %v2773 = vunpack.c.l.b16 %v2733
      %v2774 = vpack.c.b16 %v2759, %v2758
      %v2775 = vpack.c.b16 %v2761, %v2760
      %v2776 = vpack.c.b16 %v2763, %v2762
      %v2777 = vpack.c.b16 %v2765, %v2764
      %v2778 = vpack.c.b16 %v2767, %v2766
      %v2779 = vpack.c.b16 %v2769, %v2768
      %v2780 = vpack.c.b16 %v2771, %v2770
      %v2781 = vpack.c.b16 %v2773, %v2772
      %2790 = vmatprep.subr.bf16.mxu0 0
      %2791 = vmatpush1.bf16.msra.mxu0 %v2774
      %2792 = vmatprep.subr.bf16.mxu0 0
      %2793 = vmatpush1.bf16.msra.mxu0 %v2775
      %2794 = vmatprep.subr.bf16.mxu0 0
      %2795 = vmatpush1.bf16.msra.mxu0 %v2776
      %2796 = vmatprep.subr.bf16.mxu0 0
      %2797 = vmatpush1.bf16.msra.mxu0 %v2777
      %2798 = vmatprep.subr.bf16.mxu0 0
      %2799 = vmatpush1.bf16.msra.mxu0 %v2778
      %2800 = vmatprep.subr.bf16.mxu0 0
      %2801 = vmatpush1.bf16.msra.mxu0 %v2779
      %2802 = vmatprep.subr.bf16.mxu0 0
      %2803 = vmatpush1.bf16.msra.mxu0 %v2780
      %2804 = vmatprep.subr.bf16.mxu0 0
      %2805 = vmatpush1.bf16.msra.mxu0 %v2781
      %2806 = vmatprep.subr.bf16.mxu0 0
      %2807 = vmatpush1.bf16.msra.mxu0 0
      %2808 = vmatprep.subr.bf16.mxu0 0
      %2809 = vmatpush1.bf16.msra.mxu0 0
      %2810 = vmatprep.subr.bf16.mxu0 0
      %2811 = vmatpush1.bf16.msra.mxu0 0
      %2812 = vmatprep.subr.bf16.mxu0 0
      %2813 = vmatpush1.bf16.msra.mxu0 0
      %2814 = vmatprep.subr.bf16.mxu0 0
      %2815 = vmatpush1.bf16.msra.mxu0 0
      %2816 = vmatprep.subr.bf16.mxu0 0
      %2817 = vmatpush1.bf16.msra.mxu0 0
      %2818 = vmatprep.subr.bf16.mxu0 0
      %2819 = vmatpush1.bf16.msra.mxu0 0
      %2820 = vmatprep.subr.bf16.mxu0 0
      %2821 = vmatpush1.bf16.msra.mxu0 0
      %2822 = vmatprep.mubr.bf16.mxu0 0
      %2823 = vmatmul.mubr.bf16.gmra.mrb[0].mxu0 %v2701
      %v2824 = vpop.f32.mrb[0].mxu0
      %v2825 = vadd.f32 %v2740, %v2824
      %v2826 = vpop.f32.mrb[0].mxu0
      %v2827 = vpop.f32.mrb[0].mxu0
      %v2828 = vadd.f32 %v2740, %v2827
      %v2829 = vpop.f32.mrb[0].mxu0
      %2830 = vmatprep.mubr.bf16.mxu0 0
      %2831 = vmatmul.mubr.bf16.gmra.mrb[0].mxu0 %v2702
      %v2832 = vpop.f32.mrb[0].mxu0
      %v2833 = vadd.f32 %v2740, %v2832
      %v2834 = vpop.f32.mrb[0].mxu0
      %v2835 = vpop.f32.mrb[0].mxu0
      %v2836 = vadd.f32 %v2740, %v2835
      %v2837 = vpop.f32.mrb[0].mxu0
      %2838 = vmatprep.mubr.bf16.mxu0 0
      %2839 = vmatmul.mubr.bf16.gmra.mrb[0].mxu0 %v2703
      %v2840 = vpop.f32.mrb[0].mxu0
      %v2841 = vadd.f32 %v2740, %v2840
      %v2842 = vpop.f32.mrb[0].mxu0
      %v2843 = vpop.f32.mrb[0].mxu0
      %v2844 = vadd.f32 %v2740, %v2843
      %v2845 = vpop.f32.mrb[0].mxu0
      %2846 = vmatprep.mubr.bf16.mxu0 0
      %2847 = vmatmul.mubr.bf16.gmra.mrb[0].mxu0 %v2704
      %v2848 = vpop.f32.mrb[0].mxu0
      %v2849 = vadd.f32 %v2740, %v2848
      %v2850 = vpop.f32.mrb[0].mxu0
      %v2851 = vpop.f32.mrb[0].mxu0
      %v2852 = vadd.f32 %v2740, %v2851
      %v2853 = vpop.f32.mrb[0].mxu0
      %2854 = vmatprep.mubr.bf16.mxu0 0
      %2855 = vmatmul.mubr.bf16.gmra.mrb[0].mxu0 %v2705
      %v2856 = vpop.f32.mrb[0].mxu0
      %v2857 = vadd.f32 %v2740, %v2856
      %v2858 = vpop.f32.mrb[0].mxu0
      %v2859 = vpop.f32.mrb[0].mxu0
      %v2860 = vadd.f32 %v2740, %v2859
      %v2861 = vpop.f32.mrb[0].mxu0
      %2862 = vmatprep.mubr.bf16.mxu0 0
      %2863 = vmatmul.mubr.bf16.gmra.mrb[0].mxu0 %v2706
      %v2864 = vpop.f32.mrb[0].mxu0
      %v2865 = vadd.f32 %v2740, %v2864
      %v2866 = vpop.f32.mrb[0].mxu0
      %v2867 = vpop.f32.mrb[0].mxu0
      %v2868 = vadd.f32 %v2740, %v2867
      %v2869 = vpop.f32.mrb[0].mxu0
      %2870 = vmatprep.mubr.bf16.mxu0 0
      %2871 = vmatmul.mubr.bf16.gmra.mrb[0].mxu0 %v2707
      %v2872 = vpop.f32.mrb[0].mxu0
      %v2873 = vadd.f32 %v2740, %v2872
      %v2874 = vpop.f32.mrb[0].mxu0
      %v2875 = vpop.f32.mrb[0].mxu0
      %v2876 = vadd.f32 %v2740, %v2875
      %v2877 = vpop.f32.mrb[0].mxu0
      %2878 = vmatprep.mubr.bf16.mxu0 0
      %2879 = vmatmul.mubr.bf16.gmra.mrb[0].mxu0 %v2708
      %v2880 = vpop.f32.mrb[0].mxu0
      %v2881 = vadd.f32 %v2740, %v2880
      %v2882 = vpop.f32.mrb[0].mxu0
      %v2883 = vpop.f32.mrb[0].mxu0
      %v2884 = vadd.f32 %v2740, %v2883
      %v2885 = vpop.f32.mrb[0].mxu0
      %2886 = vmatprep.mubr.bf16.mxu0 0
      %2887 = vmatmul.mubr.bf16.gmra.mrb[0].mxu0 %v2709
      %v2888 = vpop.f32.mrb[0].mxu0
      %v2889 = vadd.f32 %v2740, %v2888
      %v2890 = vpop.f32.mrb[0].mxu0
      %v2891 = vpop.f32.mrb[0].mxu0
      %v2892 = vadd.f32 %v2740, %v2891
      %v2893 = vpop.f32.mrb[0].mxu0
      %2894 = vmatprep.mubr.bf16.mxu0 0
      %2895 = vmatmul.mubr.bf16.gmra.mrb[0].mxu0 %v2710
      %v2896 = vpop.f32.mrb[0].mxu0
      %v2897 = vadd.f32 %v2740, %v2896
      %v2898 = vpop.f32.mrb[0].mxu0
      %v2899 = vpop.f32.mrb[0].mxu0
      %v2900 = vadd.f32 %v2740, %v2899
      %v2901 = vpop.f32.mrb[0].mxu0
      %2902 = vmatprep.mubr.bf16.mxu0 0
      %2903 = vmatmul.mubr.bf16.gmra.mrb[0].mxu0 %v2711
      %v2904 = vpop.f32.mrb[0].mxu0
      %v2905 = vadd.f32 %v2740, %v2904
      %v2906 = vpop.f32.mrb[0].mxu0
      %v2907 = vpop.f32.mrb[0].mxu0
      %v2908 = vadd.f32 %v2740, %v2907
      %v2909 = vpop.f32.mrb[0].mxu0
      %2910 = vmatprep.mubr.bf16.mxu0 0
      %2911 = vmatmul.mubr.bf16.gmra.mrb[0].mxu0 %v2712
      %v2912 = vpop.f32.mrb[0].mxu0
      %v2913 = vadd.f32 %v2740, %v2912
      %v2914 = vpop.f32.mrb[0].mxu0
      %v2915 = vpop.f32.mrb[0].mxu0
      %v2916 = vadd.f32 %v2740, %v2915
      %v2917 = vpop.f32.mrb[0].mxu0
      %2918 = vmatprep.mubr.bf16.mxu0 0
      %2919 = vmatmul.mubr.bf16.gmra.mrb[0].mxu0 %v2713
      %v2920 = vpop.f32.mrb[0].mxu0
      %v2921 = vadd.f32 %v2740, %v2920
      %v2922 = vpop.f32.mrb[0].mxu0
      %v2923 = vpop.f32.mrb[0].mxu0
      %v2924 = vadd.f32 %v2740, %v2923
      %v2925 = vpop.f32.mrb[0].mxu0
      %2926 = vmatprep.mubr.bf16.mxu0 0
      %2927 = vmatmul.mubr.bf16.gmra.mrb[0].mxu0 %v2714
      %v2928 = vpop.f32.mrb[0].mxu0
      %v2929 = vadd.f32 %v2740, %v2928
      %v2930 = vpop.f32.mrb[0].mxu0
      %v2931 = vpop.f32.mrb[0].mxu0
      %v2932 = vadd.f32 %v2740, %v2931
      %v2933 = vpop.f32.mrb[0].mxu0
      %2934 = vmatprep.mubr.bf16.mxu0 0
      %2935 = vmatmul.mubr.bf16.gmra.mrb[0].mxu0 %v2715
      %v2936 = vpop.f32.mrb[0].mxu0
      %v2937 = vadd.f32 %v2740, %v2936
      %v2938 = vpop.f32.mrb[0].mxu0
      %v2939 = vpop.f32.mrb[0].mxu0
      %v2940 = vadd.f32 %v2740, %v2939
      %v2941 = vpop.f32.mrb[0].mxu0
      %2942 = vmatprep.mubr.bf16.mxu0 0
      %2943 = vmatmul.mubr.bf16.gmra.mrb[0].mxu0 %v2716
      %v2944 = vpop.f32.mrb[0].mxu0
      %v2945 = vadd.f32 %v2740, %v2944
      %v2946 = vpop.f32.mrb[0].mxu0
      %v2947 = vpop.f32.mrb[0].mxu0
      %v2948 = vadd.f32 %v2740, %v2947
      %v2949 = vpop.f32.mrb[0].mxu0
      %2950 = vdwg.mxu0
      %v2951 = vmax.f32 %v2825, 0.0
      %v2952 = vmax.f32 %v2828, 0.0
      %v2953 = vmax.f32 %v2833, 0.0
      %v2954 = vmax.f32 %v2836, 0.0
      %v2955 = vmax.f32 %v2841, 0.0
      %v2956 = vmax.f32 %v2844, 0.0
      %v2957 = vmax.f32 %v2849, 0.0
      %v2958 = vmax.f32 %v2852, 0.0
      %v2959 = vmax.f32 %v2857, 0.0
      %v2960 = vmax.f32 %v2860, 0.0
      %v2961 = vmax.f32 %v2865, 0.0
      %v2962 = vmax.f32 %v2868, 0.0
      %v2963 = vmax.f32 %v2873, 0.0
      %v2964 = vmax.f32 %v2876, 0.0
      %v2965 = vmax.f32 %v2881, 0.0
      %v2966 = vmax.f32 %v2884, 0.0
      %v2967 = vmax.f32 %v2889, 0.0
      %v2968 = vmax.f32 %v2892, 0.0
      %v2969 = vmax.f32 %v2897, 0.0
      %v2970 = vmax.f32 %v2900, 0.0
      %v2971 = vmax.f32 %v2905, 0.0
      %v2972 = vmax.f32 %v2908, 0.0
      %v2973 = vmax.f32 %v2913, 0.0
      %v2974 = vmax.f32 %v2916, 0.0
      %v2975 = vmax.f32 %v2921, 0.0
      %v2976 = vmax.f32 %v2924, 0.0
      %v2977 = vmax.f32 %v2929, 0.0
      %v2978 = vmax.f32 %v2932, 0.0
      %v2979 = vmax.f32 %v2937, 0.0
      %v2980 = vmax.f32 %v2940, 0.0
      %v2981 = vmax.f32 %v2945, 0.0
      %v2982 = vmax.f32 %v2948, 0.0
      %v2983 = vpack.c.bf16 %v2952, %v2951
      %v2984 = vpack.c.bf16 %v2954, %v2953
      %v2985 = vpack.c.bf16 %v2956, %v2955
      %v2986 = vpack.c.bf16 %v2958, %v2957
      %v2987 = vpack.c.bf16 %v2960, %v2959
      %v2988 = vpack.c.bf16 %v2962, %v2961
      %v2989 = vpack.c.bf16 %v2964, %v2963
      %v2990 = vpack.c.bf16 %v2966, %v2965
      %v2991 = vpack.c.bf16 %v2968, %v2967
      %v2992 = vpack.c.bf16 %v2970, %v2969
      %v2993 = vpack.c.bf16 %v2972, %v2971
      %v2994 = vpack.c.bf16 %v2974, %v2973
      %v2995 = vpack.c.bf16 %v2976, %v2975
      %v2996 = vpack.c.bf16 %v2978, %v2977
      %v2997 = vpack.c.bf16 %v2980, %v2979
      %v2998 = vpack.c.bf16 %v2982, %v2981
      %v2999 = vld [vmem:[%s444] sm:$0xff]
      %v3000 = vld [vmem:[%s444 + $0x8] sm:$0xff]
      %v3001 = vld [vmem:[%s444 + $0x10] sm:$0xff]
      %v3002 = vld [vmem:[%s444 + $0x18] sm:$0xff]
      %v3003 = vld [vmem:[%s444 + $0x20] sm:$0xff]
      %v3004 = vld [vmem:[%s444 + $0x28] sm:$0xff]
      %v3005 = vld [vmem:[%s444 + $0x30] sm:$0xff]
      %v3006 = vld [vmem:[%s444 + $0x38] sm:$0xff]
      %v3007 = vld [vmem:[%s444 + $0x40] sm:$0xff]
      %v3008 = vld [vmem:[%s444 + $0x48] sm:$0xff]
      %v3009 = vld [vmem:[%s444 + $0x50] sm:$0xff]
      %v3010 = vld [vmem:[%s444 + $0x58] sm:$0xff]
      %v3011 = vld [vmem:[%s444 + $0x60] sm:$0xff]
      %v3012 = vld [vmem:[%s444 + $0x68] sm:$0xff]
      %v3013 = vld [vmem:[%s444 + $0x70] sm:$0xff]
      %v3014 = vld [vmem:[%s444 + $0x78] sm:$0xff]
      %v3015 = vld [vmem:[%s444 + $0x80] sm:$0xff]
      %v3016 = vld [vmem:[%s444 + $0x88] sm:$0xff]
      %v3017 = vld [vmem:[%s444 + $0x90] sm:$0xff]
      %v3018 = vld [vmem:[%s444 + $0x98] sm:$0xff]
      %v3019 = vld [vmem:[%s444 + $0xa0] sm:$0xff]
      %v3020 = vld [vmem:[%s444 + $0xa8] sm:$0xff]
      %v3021 = vld [vmem:[%s444 + $0xb0] sm:$0xff]
      %v3022 = vld [vmem:[%s444 + $0xb8] sm:$0xff]
      %v3023 = vld [vmem:[%s444 + $0xc0] sm:$0xff]
      %v3024 = vld [vmem:[%s444 + $0xc8] sm:$0xff]
      %v3025 = vld [vmem:[%s444 + $0xd0] sm:$0xff]
      %v3026 = vld [vmem:[%s444 + $0xd8] sm:$0xff]
      %v3027 = vld [vmem:[%s444 + $0xe0] sm:$0xff]
      %v3028 = vld [vmem:[%s444 + $0xe8] sm:$0xff]
      %v3029 = vld [vmem:[%s444 + $0xf0] sm:$0xff]
      %v3030 = vld [vmem:[%s444 + $0xf8] sm:$0xff]
      %v3031 = vld [vmem:[%s7] sm:$0xf]
      %v3032 = vld [vmem:[%s7 + $0x4] sm:$0xf]
      %v3033 = vld [vmem:[%s7 + $0x8] sm:$0xf]
      %v3034 = vld [vmem:[%s7 + $0xc] sm:$0xf]
      %v3035 = vld [vmem:[%s7 + $0x10] sm:$0xf]
      %v3036 = vld [vmem:[%s7 + $0x14] sm:$0xf]
      %v3037 = vld [vmem:[%s7 + $0x18] sm:$0xf]
      %v3038 = vld [vmem:[%s7 + $0x1c] sm:$0xf]
      %v3039 = vld [vmem:[%s7 + $0x20] sm:$0xf]
      %v3040 = vld [vmem:[%s7 + $0x24] sm:$0xf]
      %v3041 = vld [vmem:[%s7 + $0x28] sm:$0xf]
      %v3042 = vld [vmem:[%s7 + $0x2c] sm:$0xf]
      %v3043 = vld [vmem:[%s7 + $0x30] sm:$0xf]
      %v3044 = vld [vmem:[%s7 + $0x34] sm:$0xf]
      %v3045 = vld [vmem:[%s7 + $0x38] sm:$0xf]
      %v3046 = vld [vmem:[%s7 + $0x3c] sm:$0xf]
      %v3047 = vld [vmem:[%s8] sm:$0x1]
      %v3049 = vlaneseq
      %v3050 = vshrl.u32 %v3049, 7
      %v3051 = vsub.s32 0, %v3050
      %v3052 = vrot.slane %v3047, %v3051
      %v3070 = vunpack.c.l.b16 %v3031
      %v3071 = vunpack.c.l.b16 %v3032
      %v3072 = vunpack.c.l.b16 %v3033
      %v3073 = vunpack.c.l.b16 %v3034
      %v3074 = vunpack.c.l.b16 %v3035
      %v3075 = vunpack.c.l.b16 %v3036
      %v3076 = vunpack.c.l.b16 %v3037
      %v3077 = vunpack.c.l.b16 %v3038
      %v3078 = vunpack.c.l.b16 %v3039
      %v3079 = vunpack.c.l.b16 %v3040
      %v3080 = vunpack.c.l.b16 %v3041
      %v3081 = vunpack.c.l.b16 %v3042
      %v3082 = vunpack.c.l.b16 %v3043
      %v3083 = vunpack.c.l.b16 %v3044
      %v3084 = vunpack.c.l.b16 %v3045
      %v3085 = vunpack.c.l.b16 %v3046
      %v3086 = vpack.c.b16 %v3071, %v3070
      %v3087 = vpack.c.b16 %v3073, %v3072
      %v3088 = vpack.c.b16 %v3075, %v3074
      %v3089 = vpack.c.b16 %v3077, %v3076
      %v3090 = vpack.c.b16 %v3079, %v3078
      %v3091 = vpack.c.b16 %v3081, %v3080
      %v3092 = vpack.c.b16 %v3083, %v3082
      %v3093 = vpack.c.b16 %v3085, %v3084
      %3102 = vmatprep.subr.bf16.mxu0 0
      %3103 = vmatpush1.bf16.msra.mxu0 %v3086
      %3104 = vmatprep.subr.bf16.mxu0 0
      %3105 = vmatpush1.bf16.msra.mxu0 %v3087
      %3106 = vmatprep.subr.bf16.mxu0 0
      %3107 = vmatpush1.bf16.msra.mxu0 %v3088
      %3108 = vmatprep.subr.bf16.mxu0 0
      %3109 = vmatpush1.bf16.msra.mxu0 %v3089
      %3110 = vmatprep.subr.bf16.mxu0 0
      %3111 = vmatpush1.bf16.msra.mxu0 %v3090
      %3112 = vmatprep.subr.bf16.mxu0 0
      %3113 = vmatpush1.bf16.msra.mxu0 %v3091
      %3114 = vmatprep.subr.bf16.mxu0 0
      %3115 = vmatpush1.bf16.msra.mxu0 %v3092
      %3116 = vmatprep.subr.bf16.mxu0 0
      %3117 = vmatpush1.bf16.msra.mxu0 %v3093
      %3118 = vmatprep.subr.bf16.mxu0 0
      %3119 = vmatpush1.bf16.msra.mxu0 0
      %3120 = vmatprep.subr.bf16.mxu0 0
      %3121 = vmatpush1.bf16.msra.mxu0 0
      %3122 = vmatprep.subr.bf16.mxu0 0
      %3123 = vmatpush1.bf16.msra.mxu0 0
      %3124 = vmatprep.subr.bf16.mxu0 0
      %3125 = vmatpush1.bf16.msra.mxu0 0
      %3126 = vmatprep.subr.bf16.mxu0 0
      %3127 = vmatpush1.bf16.msra.mxu0 0
      %3128 = vmatprep.subr.bf16.mxu0 0
      %3129 = vmatpush1.bf16.msra.mxu0 0
      %3130 = vmatprep.subr.bf16.mxu0 0
      %3131 = vmatpush1.bf16.msra.mxu0 0
      %3132 = vmatprep.subr.bf16.mxu0 0
      %3133 = vmatpush1.bf16.msra.mxu0 0
      %3134 = vmatprep.mubr.bf16.mxu0 0
      %3135 = vmatmul.mubr.bf16.gmra.mrb[0].mxu0 %v2983
      %v3136 = vpop.f32.mrb[0].mxu0
      %v3137 = vadd.f32 %v3052, %v3136
      %v3138 = vpop.f32.mrb[0].mxu0
      %v3139 = vpop.f32.mrb[0].mxu0
      %v3140 = vadd.f32 %v3052, %v3139
      %v3141 = vpop.f32.mrb[0].mxu0
      %3142 = vmatprep.mubr.bf16.mxu0 0
      %3143 = vmatmul.mubr.bf16.gmra.mrb[0].mxu0 %v2984
      %v3144 = vpop.f32.mrb[0].mxu0
      %v3145 = vadd.f32 %v3052, %v3144
      %v3146 = vpop.f32.mrb[0].mxu0
      %v3147 = vpop.f32.mrb[0].mxu0
      %v3148 = vadd.f32 %v3052, %v3147
      %v3149 = vpop.f32.mrb[0].mxu0
      %3150 = vmatprep.mubr.bf16.mxu0 0
      %3151 = vmatmul.mubr.bf16.gmra.mrb[0].mxu0 %v2985
      %v3152 = vpop.f32.mrb[0].mxu0
      %v3153 = vadd.f32 %v3052, %v3152
      %v3154 = vpop.f32.mrb[0].mxu0
      %v3155 = vpop.f32.mrb[0].mxu0
      %v3156 = vadd.f32 %v3052, %v3155
      %v3157 = vpop.f32.mrb[0].mxu0
      %3158 = vmatprep.mubr.bf16.mxu0 0
      %3159 = vmatmul.mubr.bf16.gmra.mrb[0].mxu0 %v2986
      %v3160 = vpop.f32.mrb[0].mxu0
      %v3161 = vadd.f32 %v3052, %v3160
      %v3162 = vpop.f32.mrb[0].mxu0
      %v3163 = vpop.f32.mrb[0].mxu0
      %v3164 = vadd.f32 %v3052, %v3163
      %v3165 = vpop.f32.mrb[0].mxu0
      %3166 = vmatprep.mubr.bf16.mxu0 0
      %3167 = vmatmul.mubr.bf16.gmra.mrb[0].mxu0 %v2987
      %v3168 = vpop.f32.mrb[0].mxu0
      %v3169 = vadd.f32 %v3052, %v3168
      %v3170 = vpop.f32.mrb[0].mxu0
      %v3171 = vpop.f32.mrb[0].mxu0
      %v3172 = vadd.f32 %v3052, %v3171
      %v3173 = vpop.f32.mrb[0].mxu0
      %3174 = vmatprep.mubr.bf16.mxu0 0
      %3175 = vmatmul.mubr.bf16.gmra.mrb[0].mxu0 %v2988
      %v3176 = vpop.f32.mrb[0].mxu0
      %v3177 = vadd.f32 %v3052, %v3176
      %v3178 = vpop.f32.mrb[0].mxu0
      %v3179 = vpop.f32.mrb[0].mxu0
      %v3180 = vadd.f32 %v3052, %v3179
      %v3181 = vpop.f32.mrb[0].mxu0
      %3182 = vmatprep.mubr.bf16.mxu0 0
      %3183 = vmatmul.mubr.bf16.gmra.mrb[0].mxu0 %v2989
      %v3184 = vpop.f32.mrb[0].mxu0
      %v3185 = vadd.f32 %v3052, %v3184
      %v3186 = vpop.f32.mrb[0].mxu0
      %v3187 = vpop.f32.mrb[0].mxu0
      %v3188 = vadd.f32 %v3052, %v3187
      %v3189 = vpop.f32.mrb[0].mxu0
      %3190 = vmatprep.mubr.bf16.mxu0 0
      %3191 = vmatmul.mubr.bf16.gmra.mrb[0].mxu0 %v2990
      %v3192 = vpop.f32.mrb[0].mxu0
      %v3193 = vadd.f32 %v3052, %v3192
      %v3194 = vpop.f32.mrb[0].mxu0
      %v3195 = vpop.f32.mrb[0].mxu0
      %v3196 = vadd.f32 %v3052, %v3195
      %v3197 = vpop.f32.mrb[0].mxu0
      %3198 = vmatprep.mubr.bf16.mxu0 0
      %3199 = vmatmul.mubr.bf16.gmra.mrb[0].mxu0 %v2991
      %v3200 = vpop.f32.mrb[0].mxu0
      %v3201 = vadd.f32 %v3052, %v3200
      %v3202 = vpop.f32.mrb[0].mxu0
      %v3203 = vpop.f32.mrb[0].mxu0
      %v3204 = vadd.f32 %v3052, %v3203
      %v3205 = vpop.f32.mrb[0].mxu0
      %3206 = vmatprep.mubr.bf16.mxu0 0
      %3207 = vmatmul.mubr.bf16.gmra.mrb[0].mxu0 %v2992
      %v3208 = vpop.f32.mrb[0].mxu0
      %v3209 = vadd.f32 %v3052, %v3208
      %v3210 = vpop.f32.mrb[0].mxu0
      %v3211 = vpop.f32.mrb[0].mxu0
      %v3212 = vadd.f32 %v3052, %v3211
      %v3213 = vpop.f32.mrb[0].mxu0
      %3214 = vmatprep.mubr.bf16.mxu0 0
      %3215 = vmatmul.mubr.bf16.gmra.mrb[0].mxu0 %v2993
      %v3216 = vpop.f32.mrb[0].mxu0
      %v3217 = vadd.f32 %v3052, %v3216
      %v3218 = vpop.f32.mrb[0].mxu0
      %v3219 = vpop.f32.mrb[0].mxu0
      %v3220 = vadd.f32 %v3052, %v3219
      %v3221 = vpop.f32.mrb[0].mxu0
      %3222 = vmatprep.mubr.bf16.mxu0 0
      %3223 = vmatmul.mubr.bf16.gmra.mrb[0].mxu0 %v2994
      %v3224 = vpop.f32.mrb[0].mxu0
      %v3225 = vadd.f32 %v3052, %v3224
      %v3226 = vpop.f32.mrb[0].mxu0
      %v3227 = vpop.f32.mrb[0].mxu0
      %v3228 = vadd.f32 %v3052, %v3227
      %v3229 = vpop.f32.mrb[0].mxu0
      %3230 = vmatprep.mubr.bf16.mxu0 0
      %3231 = vmatmul.mubr.bf16.gmra.mrb[0].mxu0 %v2995
      %v3232 = vpop.f32.mrb[0].mxu0
      %v3233 = vadd.f32 %v3052, %v3232
      %v3234 = vpop.f32.mrb[0].mxu0
      %v3235 = vpop.f32.mrb[0].mxu0
      %v3236 = vadd.f32 %v3052, %v3235
      %v3237 = vpop.f32.mrb[0].mxu0
      %3238 = vmatprep.mubr.bf16.mxu0 0
      %3239 = vmatmul.mubr.bf16.gmra.mrb[0].mxu0 %v2996
      %v3240 = vpop.f32.mrb[0].mxu0
      %v3241 = vadd.f32 %v3052, %v3240
      %v3242 = vpop.f32.mrb[0].mxu0
      %v3243 = vpop.f32.mrb[0].mxu0
      %v3244 = vadd.f32 %v3052, %v3243
      %v3245 = vpop.f32.mrb[0].mxu0
      %3246 = vmatprep.mubr.bf16.mxu0 0
      %3247 = vmatmul.mubr.bf16.gmra.mrb[0].mxu0 %v2997
      %v3248 = vpop.f32.mrb[0].mxu0
      %v3249 = vadd.f32 %v3052, %v3248
      %v3250 = vpop.f32.mrb[0].mxu0
      %v3251 = vpop.f32.mrb[0].mxu0
      %v3252 = vadd.f32 %v3052, %v3251
      %v3253 = vpop.f32.mrb[0].mxu0
      %3254 = vmatprep.mubr.bf16.mxu0 0
      %3255 = vmatmul.mubr.bf16.gmra.mrb[0].mxu0 %v2998
      %v3256 = vpop.f32.mrb[0].mxu0
      %v3257 = vadd.f32 %v3052, %v3256
      %v3258 = vpop.f32.mrb[0].mxu0
      %v3259 = vpop.f32.mrb[0].mxu0
      %v3260 = vadd.f32 %v3052, %v3259
      %v3261 = vpop.f32.mrb[0].mxu0
      %3262 = vdwg.mxu0
      %v3263 = vld [vmem:[%s10] sm:$0x1]
      %v3265 = vlaneseq
      %v3266 = vshrl.u32 %v3265, 7
      %v3267 = vsub.s32 0, %v3266
      %v3268 = vrot.slane %v3263, %v3267
      %v3270 = vmul.f32 %v3137, %v3268
      %v3271 = vmul.f32 %v3140, %v3268
      %v3272 = vmul.f32 %v3145, %v3268
      %v3273 = vmul.f32 %v3148, %v3268
      %v3274 = vmul.f32 %v3153, %v3268
      %v3275 = vmul.f32 %v3156, %v3268
      %v3276 = vmul.f32 %v3161, %v3268
      %v3277 = vmul.f32 %v3164, %v3268
      %v3278 = vmul.f32 %v3169, %v3268
      %v3279 = vmul.f32 %v3172, %v3268
      %v3280 = vmul.f32 %v3177, %v3268
      %v3281 = vmul.f32 %v3180, %v3268
      %v3282 = vmul.f32 %v3185, %v3268
      %v3283 = vmul.f32 %v3188, %v3268
      %v3284 = vmul.f32 %v3193, %v3268
      %v3285 = vmul.f32 %v3196, %v3268
      %v3286 = vmul.f32 %v3201, %v3268
      %v3287 = vmul.f32 %v3204, %v3268
      %v3288 = vmul.f32 %v3209, %v3268
      %v3289 = vmul.f32 %v3212, %v3268
      %v3290 = vmul.f32 %v3217, %v3268
      %v3291 = vmul.f32 %v3220, %v3268
      %v3292 = vmul.f32 %v3225, %v3268
      %v3293 = vmul.f32 %v3228, %v3268
      %v3294 = vmul.f32 %v3233, %v3268
      %v3295 = vmul.f32 %v3236, %v3268
      %v3296 = vmul.f32 %v3241, %v3268
      %v3297 = vmul.f32 %v3244, %v3268
      %v3298 = vmul.f32 %v3249, %v3268
      %v3299 = vmul.f32 %v3252, %v3268
      %v3300 = vmul.f32 %v3257, %v3268
      %v3301 = vmul.f32 %v3260, %v3268
      %3302 = vadd.xlane.f32.xlu0 %v3270
      %v3303 = vpop.xlane.xlu0 %3302
      %3304 = vadd.xlane.f32.xlu0 %v3271
      %v3305 = vpop.xlane.xlu0 %3304
      %3306 = vadd.xlane.f32.xlu0 %v3272
      %v3307 = vpop.xlane.xlu0 %3306
      %3308 = vadd.xlane.f32.xlu0 %v3273
      %v3309 = vpop.xlane.xlu0 %3308
      %3310 = vadd.xlane.f32.xlu0 %v3274
      %v3311 = vpop.xlane.xlu0 %3310
      %3312 = vadd.xlane.f32.xlu0 %v3275
      %v3313 = vpop.xlane.xlu0 %3312
      %3314 = vadd.xlane.f32.xlu0 %v3276
      %v3315 = vpop.xlane.xlu0 %3314
      %3316 = vadd.xlane.f32.xlu0 %v3277
      %v3317 = vpop.xlane.xlu0 %3316
      %3318 = vadd.xlane.f32.xlu0 %v3278
      %v3319 = vpop.xlane.xlu0 %3318
      %3320 = vadd.xlane.f32.xlu0 %v3279
      %v3321 = vpop.xlane.xlu0 %3320
      %3322 = vadd.xlane.f32.xlu0 %v3280
      %v3323 = vpop.xlane.xlu0 %3322
      %3324 = vadd.xlane.f32.xlu0 %v3281
      %v3325 = vpop.xlane.xlu0 %3324
      %3326 = vadd.xlane.f32.xlu0 %v3282
      %v3327 = vpop.xlane.xlu0 %3326
      %3328 = vadd.xlane.f32.xlu0 %v3283
      %v3329 = vpop.xlane.xlu0 %3328
      %3330 = vadd.xlane.f32.xlu0 %v3284
      %v3331 = vpop.xlane.xlu0 %3330
      %3332 = vadd.xlane.f32.xlu0 %v3285
      %v3333 = vpop.xlane.xlu0 %3332
      %3334 = vadd.xlane.f32.xlu0 %v3286
      %v3335 = vpop.xlane.xlu0 %3334
      %3336 = vadd.xlane.f32.xlu0 %v3287
      %v3337 = vpop.xlane.xlu0 %3336
      %3338 = vadd.xlane.f32.xlu0 %v3288
      %v3339 = vpop.xlane.xlu0 %3338
      %3340 = vadd.xlane.f32.xlu0 %v3289
      %v3341 = vpop.xlane.xlu0 %3340
      %3342 = vadd.xlane.f32.xlu0 %v3290
      %v3343 = vpop.xlane.xlu0 %3342
      %3344 = vadd.xlane.f32.xlu0 %v3291
      %v3345 = vpop.xlane.xlu0 %3344
      %3346 = vadd.xlane.f32.xlu0 %v3292
      %v3347 = vpop.xlane.xlu0 %3346
      %3348 = vadd.xlane.f32.xlu0 %v3293
      %v3349 = vpop.xlane.xlu0 %3348
      %3350 = vadd.xlane.f32.xlu0 %v3294
      %v3351 = vpop.xlane.xlu0 %3350
      %3352 = vadd.xlane.f32.xlu0 %v3295
      %v3353 = vpop.xlane.xlu0 %3352
      %3354 = vadd.xlane.f32.xlu0 %v3296
      %v3355 = vpop.xlane.xlu0 %3354
      %3356 = vadd.xlane.f32.xlu0 %v3297
      %v3357 = vpop.xlane.xlu0 %3356
      %3358 = vadd.xlane.f32.xlu0 %v3298
      %v3359 = vpop.xlane.xlu0 %3358
      %3360 = vadd.xlane.f32.xlu0 %v3299
      %v3361 = vpop.xlane.xlu0 %3360
      %3362 = vadd.xlane.f32.xlu0 %v3300
      %v3363 = vpop.xlane.xlu0 %3362
      %3364 = vadd.xlane.f32.xlu0 %v3301
      %v3365 = vpop.xlane.xlu0 %3364
      %v3366 = vld [vmem:[%s9] sm:$0x1]
      %3367 = vmatprep.subr.mxu0 0.0
      %3368 = vmatpush1.xpose.msra.mxu0 %v3137
      %3369 = vmatprep.subr.mxu0 0.0
      %3370 = vmatpush1.xpose.msra.mxu0 %v3140
      %3371 = vmatprep.subr.mxu0 0.0
      %3372 = vmatpush1.xpose.msra.mxu0 %v3145
      %3373 = vmatprep.subr.mxu0 0.0
      %3374 = vmatpush1.xpose.msra.mxu0 %v3148
      %3375 = vmatprep.subr.mxu0 0.0
      %3376 = vmatpush1.xpose.msra.mxu0 %v3153
      %3377 = vmatprep.subr.mxu0 0.0
      %3378 = vmatpush1.xpose.msra.mxu0 %v3156
      %3379 = vmatprep.subr.mxu0 0.0
      %3380 = vmatpush1.xpose.msra.mxu0 %v3161
      %3381 = vmatprep.subr.mxu0 0.0
      %3382 = vmatpush1.xpose.msra.mxu0 %v3164
      %3383 = vmatprep.subr.mxu0 0.0
      %3384 = vmatpush1.xpose.msra.mxu0 %v3169
      %3385 = vmatprep.subr.mxu0 0.0
      %3386 = vmatpush1.xpose.msra.mxu0 %v3172
      %3387 = vmatprep.subr.mxu0 0.0
      %3388 = vmatpush1.xpose.msra.mxu0 %v3177
      %3389 = vmatprep.subr.mxu0 0.0
      %3390 = vmatpush1.xpose.msra.mxu0 %v3180
      %3391 = vmatprep.subr.mxu0 0.0
      %3392 = vmatpush1.xpose.msra.mxu0 %v3185
      %3393 = vmatprep.subr.mxu0 0.0
      %3394 = vmatpush1.xpose.msra.mxu0 %v3188
      %3395 = vmatprep.subr.mxu0 0.0
      %3396 = vmatpush1.xpose.msra.mxu0 %v3193
      %3397 = vmatprep.subr.mxu0 0.0
      %3398 = vmatpush1.xpose.msra.mxu0 %v3196
      %3399 = vmatprep.subr.mxu0 0.0
      %3400 = vmatpush1.xpose.msra.mxu0 %v3201
      %3401 = vmatprep.subr.mxu0 0.0
      %3402 = vmatpush1.xpose.msra.mxu0 %v3204
      %3403 = vmatprep.subr.mxu0 0.0
      %3404 = vmatpush1.xpose.msra.mxu0 %v3209
      %3405 = vmatprep.subr.mxu0 0.0
      %3406 = vmatpush1.xpose.msra.mxu0 %v3212
      %3407 = vmatprep.subr.mxu0 0.0
      %3408 = vmatpush1.xpose.msra.mxu0 %v3217
      %3409 = vmatprep.subr.mxu0 0.0
      %3410 = vmatpush1.xpose.msra.mxu0 %v3220
      %3411 = vmatprep.subr.mxu0 0.0
      %3412 = vmatpush1.xpose.msra.mxu0 %v3225
      %3413 = vmatprep.subr.mxu0 0.0
      %3414 = vmatpush1.xpose.msra.mxu0 %v3228
      %3415 = vmatprep.subr.mxu0 0.0
      %3416 = vmatpush1.xpose.msra.mxu0 %v3233
      %3417 = vmatprep.subr.mxu0 0.0
      %3418 = vmatpush1.xpose.msra.mxu0 %v3236
      %3419 = vmatprep.subr.mxu0 0.0
      %3420 = vmatpush1.xpose.msra.mxu0 %v3241
      %3421 = vmatprep.subr.mxu0 0.0
      %3422 = vmatpush1.xpose.msra.mxu0 %v3244
      %3423 = vmatprep.subr.mxu0 0.0
      %3424 = vmatpush1.xpose.msra.mxu0 %v3249
      %3425 = vmatprep.subr.mxu0 0.0
      %3426 = vmatpush1.xpose.msra.mxu0 %v3252
      %3427 = vmatprep.subr.mxu0 0.0
      %3428 = vmatpush1.xpose.msra.mxu0 %v3257
      %3429 = vmatprep.subr.mxu0 0.0
      %3430 = vmatpush1.xpose.msra.mxu0 %v3260
      %3431 = vmatprep.mubr.f32.mxu0 0.0
      %3432 = vmatmul.mubr.f32.gmra.mrb[0].mxu0 %v3366
      %v3433 = vpop.f32.mrb[0].mxu0
      %v3434 = vadd.f32 0.0, %v3433
      %v3435 = vpop.f32.mrb[0].mxu0
      %v3436 = vadd.f32 0.0, %v3435
      %3437 = vdwg.mxu0
      %v3438 = vlaneseq
      %v3439 = vshrl.u32 %v3438, 7
      %v3440 = vsub.s32 0, %v3439
      %v3441 = vrot.slane %v3434, %v3440
      %v3442 = vlaneseq
      %v3443 = vshrl.u32 %v3442, 7
      %v3444 = vsub.s32 0, %v3443
      %v3445 = vrot.slane %v3436, %v3444
      %v3446 = vadd.f32 %v3303, %v3441
      %v3447 = vadd.f32 %v3303, %v3445
      %v3448 = vadd.f32 %v3305, %v3441
      %v3449 = vadd.f32 %v3305, %v3445
      %v3450 = vadd.f32 %v3307, %v3441
      %v3451 = vadd.f32 %v3307, %v3445
      %v3452 = vadd.f32 %v3309, %v3441
      %v3453 = vadd.f32 %v3309, %v3445
      %v3454 = vadd.f32 %v3311, %v3441
      %v3455 = vadd.f32 %v3311, %v3445
      %v3456 = vadd.f32 %v3313, %v3441
      %v3457 = vadd.f32 %v3313, %v3445
      %v3458 = vadd.f32 %v3315, %v3441
      %v3459 = vadd.f32 %v3315, %v3445
      %v3460 = vadd.f32 %v3317, %v3441
      %v3461 = vadd.f32 %v3317, %v3445
      %v3462 = vadd.f32 %v3319, %v3441
      %v3463 = vadd.f32 %v3319, %v3445
      %v3464 = vadd.f32 %v3321, %v3441
      %v3465 = vadd.f32 %v3321, %v3445
      %v3466 = vadd.f32 %v3323, %v3441
      %v3467 = vadd.f32 %v3323, %v3445
      %v3468 = vadd.f32 %v3325, %v3441
      %v3469 = vadd.f32 %v3325, %v3445
      %v3470 = vadd.f32 %v3327, %v3441
      %v3471 = vadd.f32 %v3327, %v3445
      %v3472 = vadd.f32 %v3329, %v3441
      %v3473 = vadd.f32 %v3329, %v3445
      %v3474 = vadd.f32 %v3331, %v3441
      %v3475 = vadd.f32 %v3331, %v3445
      %v3476 = vadd.f32 %v3333, %v3441
      %v3477 = vadd.f32 %v3333, %v3445
      %v3478 = vadd.f32 %v3335, %v3441
      %v3479 = vadd.f32 %v3335, %v3445
      %v3480 = vadd.f32 %v3337, %v3441
      %v3481 = vadd.f32 %v3337, %v3445
      %v3482 = vadd.f32 %v3339, %v3441
      %v3483 = vadd.f32 %v3339, %v3445
      %v3484 = vadd.f32 %v3341, %v3441
      %v3485 = vadd.f32 %v3341, %v3445
      %v3486 = vadd.f32 %v3343, %v3441
      %v3487 = vadd.f32 %v3343, %v3445
      %v3488 = vadd.f32 %v3345, %v3441
      %v3489 = vadd.f32 %v3345, %v3445
      %v3490 = vadd.f32 %v3347, %v3441
      %v3491 = vadd.f32 %v3347, %v3445
      %v3492 = vadd.f32 %v3349, %v3441
      %v3493 = vadd.f32 %v3349, %v3445
      %v3494 = vadd.f32 %v3351, %v3441
      %v3495 = vadd.f32 %v3351, %v3445
      %v3496 = vadd.f32 %v3353, %v3441
      %v3497 = vadd.f32 %v3353, %v3445
      %v3498 = vadd.f32 %v3355, %v3441
      %v3499 = vadd.f32 %v3355, %v3445
      %v3500 = vadd.f32 %v3357, %v3441
      %v3501 = vadd.f32 %v3357, %v3445
      %v3502 = vadd.f32 %v3359, %v3441
      %v3503 = vadd.f32 %v3359, %v3445
      %v3504 = vadd.f32 %v3361, %v3441
      %v3505 = vadd.f32 %v3361, %v3445
      %v3506 = vadd.f32 %v3363, %v3441
      %v3507 = vadd.f32 %v3363, %v3445
      %v3508 = vadd.f32 %v3365, %v3441
      %v3509 = vadd.f32 %v3365, %v3445
      %vm3510 = vcmp.gt.f32.partialorder %v3446, 0.0
      %vm3511 = vcmp.gt.f32.partialorder %v3447, 0.0
      %vm3512 = vcmp.gt.f32.partialorder %v3448, 0.0
      %vm3513 = vcmp.gt.f32.partialorder %v3449, 0.0
      %vm3514 = vcmp.gt.f32.partialorder %v3450, 0.0
      %vm3515 = vcmp.gt.f32.partialorder %v3451, 0.0
      %vm3516 = vcmp.gt.f32.partialorder %v3452, 0.0
      %vm3517 = vcmp.gt.f32.partialorder %v3453, 0.0
      %vm3518 = vcmp.gt.f32.partialorder %v3454, 0.0
      %vm3519 = vcmp.gt.f32.partialorder %v3455, 0.0
      %vm3520 = vcmp.gt.f32.partialorder %v3456, 0.0
      %vm3521 = vcmp.gt.f32.partialorder %v3457, 0.0
      %vm3522 = vcmp.gt.f32.partialorder %v3458, 0.0
      %vm3523 = vcmp.gt.f32.partialorder %v3459, 0.0
      %vm3524 = vcmp.gt.f32.partialorder %v3460, 0.0
      %vm3525 = vcmp.gt.f32.partialorder %v3461, 0.0
      %vm3526 = vcmp.gt.f32.partialorder %v3462, 0.0
      %vm3527 = vcmp.gt.f32.partialorder %v3463, 0.0
      %vm3528 = vcmp.gt.f32.partialorder %v3464, 0.0
      %vm3529 = vcmp.gt.f32.partialorder %v3465, 0.0
      %vm3530 = vcmp.gt.f32.partialorder %v3466, 0.0
      %vm3531 = vcmp.gt.f32.partialorder %v3467, 0.0
      %vm3532 = vcmp.gt.f32.partialorder %v3468, 0.0
      %vm3533 = vcmp.gt.f32.partialorder %v3469, 0.0
      %vm3534 = vcmp.gt.f32.partialorder %v3470, 0.0
      %vm3535 = vcmp.gt.f32.partialorder %v3471, 0.0
      %vm3536 = vcmp.gt.f32.partialorder %v3472, 0.0
      %vm3537 = vcmp.gt.f32.partialorder %v3473, 0.0
      %vm3538 = vcmp.gt.f32.partialorder %v3474, 0.0
      %vm3539 = vcmp.gt.f32.partialorder %v3475, 0.0
      %vm3540 = vcmp.gt.f32.partialorder %v3476, 0.0
      %vm3541 = vcmp.gt.f32.partialorder %v3477, 0.0
      %vm3542 = vcmp.gt.f32.partialorder %v3478, 0.0
      %vm3543 = vcmp.gt.f32.partialorder %v3479, 0.0
      %vm3544 = vcmp.gt.f32.partialorder %v3480, 0.0
      %vm3545 = vcmp.gt.f32.partialorder %v3481, 0.0
      %vm3546 = vcmp.gt.f32.partialorder %v3482, 0.0
      %vm3547 = vcmp.gt.f32.partialorder %v3483, 0.0
      %vm3548 = vcmp.gt.f32.partialorder %v3484, 0.0
      %vm3549 = vcmp.gt.f32.partialorder %v3485, 0.0
      %vm3550 = vcmp.gt.f32.partialorder %v3486, 0.0
      %vm3551 = vcmp.gt.f32.partialorder %v3487, 0.0
      %vm3552 = vcmp.gt.f32.partialorder %v3488, 0.0
      %vm3553 = vcmp.gt.f32.partialorder %v3489, 0.0
      %vm3554 = vcmp.gt.f32.partialorder %v3490, 0.0
      %vm3555 = vcmp.gt.f32.partialorder %v3491, 0.0
      %vm3556 = vcmp.gt.f32.partialorder %v3492, 0.0
      %vm3557 = vcmp.gt.f32.partialorder %v3493, 0.0
      %vm3558 = vcmp.gt.f32.partialorder %v3494, 0.0
      %vm3559 = vcmp.gt.f32.partialorder %v3495, 0.0
      %vm3560 = vcmp.gt.f32.partialorder %v3496, 0.0
      %vm3561 = vcmp.gt.f32.partialorder %v3497, 0.0
      %vm3562 = vcmp.gt.f32.partialorder %v3498, 0.0
      %vm3563 = vcmp.gt.f32.partialorder %v3499, 0.0
      %vm3564 = vcmp.gt.f32.partialorder %v3500, 0.0
      %vm3565 = vcmp.gt.f32.partialorder %v3501, 0.0
      %vm3566 = vcmp.gt.f32.partialorder %v3502, 0.0
      %vm3567 = vcmp.gt.f32.partialorder %v3503, 0.0
      %vm3568 = vcmp.gt.f32.partialorder %v3504, 0.0
      %vm3569 = vcmp.gt.f32.partialorder %v3505, 0.0
      %vm3570 = vcmp.gt.f32.partialorder %v3506, 0.0
      %vm3571 = vcmp.gt.f32.partialorder %v3507, 0.0
      %vm3572 = vcmp.gt.f32.partialorder %v3508, 0.0
      %vm3573 = vcmp.gt.f32.partialorder %v3509, 0.0
      %v3574 = vmul.f32 %v3446, 0.2
      %v3575 = vmul.f32 %v3447, 0.2
      %v3576 = vmul.f32 %v3448, 0.2
      %v3577 = vmul.f32 %v3449, 0.2
      %v3578 = vmul.f32 %v3450, 0.2
      %v3579 = vmul.f32 %v3451, 0.2
      %v3580 = vmul.f32 %v3452, 0.2
      %v3581 = vmul.f32 %v3453, 0.2
      %v3582 = vmul.f32 %v3454, 0.2
      %v3583 = vmul.f32 %v3455, 0.2
      %v3584 = vmul.f32 %v3456, 0.2
      %v3585 = vmul.f32 %v3457, 0.2
      %v3586 = vmul.f32 %v3458, 0.2
      %v3587 = vmul.f32 %v3459, 0.2
      %v3588 = vmul.f32 %v3460, 0.2
      %v3589 = vmul.f32 %v3461, 0.2
      %v3590 = vmul.f32 %v3462, 0.2
      %v3591 = vmul.f32 %v3463, 0.2
      %v3592 = vmul.f32 %v3464, 0.2
      %v3593 = vmul.f32 %v3465, 0.2
      %v3594 = vmul.f32 %v3466, 0.2
      %v3595 = vmul.f32 %v3467, 0.2
      %v3596 = vmul.f32 %v3468, 0.2
      %v3597 = vmul.f32 %v3469, 0.2
      %v3598 = vmul.f32 %v3470, 0.2
      %v3599 = vmul.f32 %v3471, 0.2
      %v3600 = vmul.f32 %v3472, 0.2
      %v3601 = vmul.f32 %v3473, 0.2
      %v3602 = vmul.f32 %v3474, 0.2
      %v3603 = vmul.f32 %v3475, 0.2
      %v3604 = vmul.f32 %v3476, 0.2
      %v3605 = vmul.f32 %v3477, 0.2
      %v3606 = vmul.f32 %v3478, 0.2
      %v3607 = vmul.f32 %v3479, 0.2
      %v3608 = vmul.f32 %v3480, 0.2
      %v3609 = vmul.f32 %v3481, 0.2
      %v3610 = vmul.f32 %v3482, 0.2
      %v3611 = vmul.f32 %v3483, 0.2
      %v3612 = vmul.f32 %v3484, 0.2
      %v3613 = vmul.f32 %v3485, 0.2
      %v3614 = vmul.f32 %v3486, 0.2
      %v3615 = vmul.f32 %v3487, 0.2
      %v3616 = vmul.f32 %v3488, 0.2
      %v3617 = vmul.f32 %v3489, 0.2
      %v3618 = vmul.f32 %v3490, 0.2
      %v3619 = vmul.f32 %v3491, 0.2
      %v3620 = vmul.f32 %v3492, 0.2
      %v3621 = vmul.f32 %v3493, 0.2
      %v3622 = vmul.f32 %v3494, 0.2
      %v3623 = vmul.f32 %v3495, 0.2
      %v3624 = vmul.f32 %v3496, 0.2
      %v3625 = vmul.f32 %v3497, 0.2
      %v3626 = vmul.f32 %v3498, 0.2
      %v3627 = vmul.f32 %v3499, 0.2
      %v3628 = vmul.f32 %v3500, 0.2
      %v3629 = vmul.f32 %v3501, 0.2
      %v3630 = vmul.f32 %v3502, 0.2
      %v3631 = vmul.f32 %v3503, 0.2
      %v3632 = vmul.f32 %v3504, 0.2
      %v3633 = vmul.f32 %v3505, 0.2
      %v3634 = vmul.f32 %v3506, 0.2
      %v3635 = vmul.f32 %v3507, 0.2
      %v3636 = vmul.f32 %v3508, 0.2
      %v3637 = vmul.f32 %v3509, 0.2
      %v3638 = vsel %vm3510, %v3446, %v3574
      %v3639 = vsel %vm3511, %v3447, %v3575
      %v3640 = vsel %vm3512, %v3448, %v3576
      %v3641 = vsel %vm3513, %v3449, %v3577
      %v3642 = vsel %vm3514, %v3450, %v3578
      %v3643 = vsel %vm3515, %v3451, %v3579
      %v3644 = vsel %vm3516, %v3452, %v3580
      %v3645 = vsel %vm3517, %v3453, %v3581
      %v3646 = vsel %vm3518, %v3454, %v3582
      %v3647 = vsel %vm3519, %v3455, %v3583
      %v3648 = vsel %vm3520, %v3456, %v3584
      %v3649 = vsel %vm3521, %v3457, %v3585
      %v3650 = vsel %vm3522, %v3458, %v3586
      %v3651 = vsel %vm3523, %v3459, %v3587
      %v3652 = vsel %vm3524, %v3460, %v3588
      %v3653 = vsel %vm3525, %v3461, %v3589
      %v3654 = vsel %vm3526, %v3462, %v3590
      %v3655 = vsel %vm3527, %v3463, %v3591
      %v3656 = vsel %vm3528, %v3464, %v3592
      %v3657 = vsel %vm3529, %v3465, %v3593
      %v3658 = vsel %vm3530, %v3466, %v3594
      %v3659 = vsel %vm3531, %v3467, %v3595
      %v3660 = vsel %vm3532, %v3468, %v3596
      %v3661 = vsel %vm3533, %v3469, %v3597
      %v3662 = vsel %vm3534, %v3470, %v3598
      %v3663 = vsel %vm3535, %v3471, %v3599
      %v3664 = vsel %vm3536, %v3472, %v3600
      %v3665 = vsel %vm3537, %v3473, %v3601
      %v3666 = vsel %vm3538, %v3474, %v3602
      %v3667 = vsel %vm3539, %v3475, %v3603
      %v3668 = vsel %vm3540, %v3476, %v3604
      %v3669 = vsel %vm3541, %v3477, %v3605
      %v3670 = vsel %vm3542, %v3478, %v3606
      %v3671 = vsel %vm3543, %v3479, %v3607
      %v3672 = vsel %vm3544, %v3480, %v3608
      %v3673 = vsel %vm3545, %v3481, %v3609
      %v3674 = vsel %vm3546, %v3482, %v3610
      %v3675 = vsel %vm3547, %v3483, %v3611
      %v3676 = vsel %vm3548, %v3484, %v3612
      %v3677 = vsel %vm3549, %v3485, %v3613
      %v3678 = vsel %vm3550, %v3486, %v3614
      %v3679 = vsel %vm3551, %v3487, %v3615
      %v3680 = vsel %vm3552, %v3488, %v3616
      %v3681 = vsel %vm3553, %v3489, %v3617
      %v3682 = vsel %vm3554, %v3490, %v3618
      %v3683 = vsel %vm3555, %v3491, %v3619
      %v3684 = vsel %vm3556, %v3492, %v3620
      %v3685 = vsel %vm3557, %v3493, %v3621
      %v3686 = vsel %vm3558, %v3494, %v3622
      %v3687 = vsel %vm3559, %v3495, %v3623
      %v3688 = vsel %vm3560, %v3496, %v3624
      %v3689 = vsel %vm3561, %v3497, %v3625
      %v3690 = vsel %vm3562, %v3498, %v3626
      %v3691 = vsel %vm3563, %v3499, %v3627
      %v3692 = vsel %vm3564, %v3500, %v3628
      %v3693 = vsel %vm3565, %v3501, %v3629
      %v3694 = vsel %vm3566, %v3502, %v3630
      %v3695 = vsel %vm3567, %v3503, %v3631
      %v3696 = vsel %vm3568, %v3504, %v3632
      %v3697 = vsel %vm3569, %v3505, %v3633
      %v3698 = vsel %vm3570, %v3506, %v3634
      %v3699 = vsel %vm3571, %v3507, %v3635
      %v3700 = vsel %vm3572, %v3508, %v3636
      %v3701 = vsel %vm3573, %v3509, %v3637
      %vm3702 = vcmp.gt.bf16.partialorder %v2999, 0
      %vm3703 = vcmp.gt.bf16.partialorder %v3000, 0
      %vm3704 = vcmp.gt.bf16.partialorder %v3001, 0
      %vm3705 = vcmp.gt.bf16.partialorder %v3002, 0
      %vm3706 = vcmp.gt.bf16.partialorder %v3003, 0
      %vm3707 = vcmp.gt.bf16.partialorder %v3004, 0
      %vm3708 = vcmp.gt.bf16.partialorder %v3005, 0
      %vm3709 = vcmp.gt.bf16.partialorder %v3006, 0
      %vm3710 = vcmp.gt.bf16.partialorder %v3007, 0
      %vm3711 = vcmp.gt.bf16.partialorder %v3008, 0
      %vm3712 = vcmp.gt.bf16.partialorder %v3009, 0
      %vm3713 = vcmp.gt.bf16.partialorder %v3010, 0
      %vm3714 = vcmp.gt.bf16.partialorder %v3011, 0
      %vm3715 = vcmp.gt.bf16.partialorder %v3012, 0
      %vm3716 = vcmp.gt.bf16.partialorder %v3013, 0
      %vm3717 = vcmp.gt.bf16.partialorder %v3014, 0
      %vm3718 = vcmp.gt.bf16.partialorder %v3015, 0
      %vm3719 = vcmp.gt.bf16.partialorder %v3016, 0
      %vm3720 = vcmp.gt.bf16.partialorder %v3017, 0
      %vm3721 = vcmp.gt.bf16.partialorder %v3018, 0
      %vm3722 = vcmp.gt.bf16.partialorder %v3019, 0
      %vm3723 = vcmp.gt.bf16.partialorder %v3020, 0
      %vm3724 = vcmp.gt.bf16.partialorder %v3021, 0
      %vm3725 = vcmp.gt.bf16.partialorder %v3022, 0
      %vm3726 = vcmp.gt.bf16.partialorder %v3023, 0
      %vm3727 = vcmp.gt.bf16.partialorder %v3024, 0
      %vm3728 = vcmp.gt.bf16.partialorder %v3025, 0
      %vm3729 = vcmp.gt.bf16.partialorder %v3026, 0
      %vm3730 = vcmp.gt.bf16.partialorder %v3027, 0
      %vm3731 = vcmp.gt.bf16.partialorder %v3028, 0
      %vm3732 = vcmp.gt.bf16.partialorder %v3029, 0
      %vm3733 = vcmp.gt.bf16.partialorder %v3030, 0
      %v3734 = vsel %vm3702, 65537, 0
      %v3735 = vsel %vm3703, 65537, 0
      %v3736 = vsel %vm3704, 65537, 0
      %v3737 = vsel %vm3705, 65537, 0
      %v3738 = vsel %vm3706, 65537, 0
      %v3739 = vsel %vm3707, 65537, 0
      %v3740 = vsel %vm3708, 65537, 0
      %v3741 = vsel %vm3709, 65537, 0
      %v3742 = vsel %vm3710, 65537, 0
      %v3743 = vsel %vm3711, 65537, 0
      %v3744 = vsel %vm3712, 65537, 0
      %v3745 = vsel %vm3713, 65537, 0
      %v3746 = vsel %vm3714, 65537, 0
      %v3747 = vsel %vm3715, 65537, 0
      %v3748 = vsel %vm3716, 65537, 0
      %v3749 = vsel %vm3717, 65537, 0
      %v3750 = vsel %vm3718, 65537, 0
      %v3751 = vsel %vm3719, 65537, 0
      %v3752 = vsel %vm3720, 65537, 0
      %v3753 = vsel %vm3721, 65537, 0
      %v3754 = vsel %vm3722, 65537, 0
      %v3755 = vsel %vm3723, 65537, 0
      %v3756 = vsel %vm3724, 65537, 0
      %v3757 = vsel %vm3725, 65537, 0
      %v3758 = vsel %vm3726, 65537, 0
      %v3759 = vsel %vm3727, 65537, 0
      %v3760 = vsel %vm3728, 65537, 0
      %v3761 = vsel %vm3729, 65537, 0
      %v3762 = vsel %vm3730, 65537, 0
      %v3763 = vsel %vm3731, 65537, 0
      %v3764 = vsel %vm3732, 65537, 0
      %v3765 = vsel %vm3733, 65537, 0
      %v3766 = vunpack.c.l.b16 %v3734
      %v3767 = vunpack.c.h.b16 %v3734
      %v3768 = vunpack.c.l.b16 %v3735
      %v3769 = vunpack.c.h.b16 %v3735
      %v3770 = vunpack.c.l.b16 %v3736
      %v3771 = vunpack.c.h.b16 %v3736
      %v3772 = vunpack.c.l.b16 %v3737
      %v3773 = vunpack.c.h.b16 %v3737
      %v3774 = vunpack.c.l.b16 %v3738
      %v3775 = vunpack.c.h.b16 %v3738
      %v3776 = vunpack.c.l.b16 %v3739
      %v3777 = vunpack.c.h.b16 %v3739
      %v3778 = vunpack.c.l.b16 %v3740
      %v3779 = vunpack.c.h.b16 %v3740
      %v3780 = vunpack.c.l.b16 %v3741
      %v3781 = vunpack.c.h.b16 %v3741
      %v3782 = vunpack.c.l.b16 %v3742
      %v3783 = vunpack.c.h.b16 %v3742
      %v3784 = vunpack.c.l.b16 %v3743
      %v3785 = vunpack.c.h.b16 %v3743
      %v3786 = vunpack.c.l.b16 %v3744
      %v3787 = vunpack.c.h.b16 %v3744
      %v3788 = vunpack.c.l.b16 %v3745
      %v3789 = vunpack.c.h.b16 %v3745
      %v3790 = vunpack.c.l.b16 %v3746
      %v3791 = vunpack.c.h.b16 %v3746
      %v3792 = vunpack.c.l.b16 %v3747
      %v3793 = vunpack.c.h.b16 %v3747
      %v3794 = vunpack.c.l.b16 %v3748
      %v3795 = vunpack.c.h.b16 %v3748
      %v3796 = vunpack.c.l.b16 %v3749
      %v3797 = vunpack.c.h.b16 %v3749
      %v3798 = vunpack.c.l.b16 %v3750
      %v3799 = vunpack.c.h.b16 %v3750
      %v3800 = vunpack.c.l.b16 %v3751
      %v3801 = vunpack.c.h.b16 %v3751
      %v3802 = vunpack.c.l.b16 %v3752
      %v3803 = vunpack.c.h.b16 %v3752
      %v3804 = vunpack.c.l.b16 %v3753
      %v3805 = vunpack.c.h.b16 %v3753
      %v3806 = vunpack.c.l.b16 %v3754
      %v3807 = vunpack.c.h.b16 %v3754
      %v3808 = vunpack.c.l.b16 %v3755
      %v3809 = vunpack.c.h.b16 %v3755
      %v3810 = vunpack.c.l.b16 %v3756
      %v3811 = vunpack.c.h.b16 %v3756
      %v3812 = vunpack.c.l.b16 %v3757
      %v3813 = vunpack.c.h.b16 %v3757
      %v3814 = vunpack.c.l.b16 %v3758
      %v3815 = vunpack.c.h.b16 %v3758
      %v3816 = vunpack.c.l.b16 %v3759
      %v3817 = vunpack.c.h.b16 %v3759
      %v3818 = vunpack.c.l.b16 %v3760
      %v3819 = vunpack.c.h.b16 %v3760
      %v3820 = vunpack.c.l.b16 %v3761
      %v3821 = vunpack.c.h.b16 %v3761
      %v3822 = vunpack.c.l.b16 %v3762
      %v3823 = vunpack.c.h.b16 %v3762
      %v3824 = vunpack.c.l.b16 %v3763
      %v3825 = vunpack.c.h.b16 %v3763
      %v3826 = vunpack.c.l.b16 %v3764
      %v3827 = vunpack.c.h.b16 %v3764
      %v3828 = vunpack.c.l.b16 %v3765
      %v3829 = vunpack.c.h.b16 %v3765
      %vm3830 = vcmp.ne.s32.totalorder %v3766, 0
      %vm3831 = vcmp.ne.s32.totalorder %v3767, 0
      %vm3832 = vcmp.ne.s32.totalorder %v3768, 0
      %vm3833 = vcmp.ne.s32.totalorder %v3769, 0
      %vm3834 = vcmp.ne.s32.totalorder %v3770, 0
      %vm3835 = vcmp.ne.s32.totalorder %v3771, 0
      %vm3836 = vcmp.ne.s32.totalorder %v3772, 0
      %vm3837 = vcmp.ne.s32.totalorder %v3773, 0
      %vm3838 = vcmp.ne.s32.totalorder %v3774, 0
      %vm3839 = vcmp.ne.s32.totalorder %v3775, 0
      %vm3840 = vcmp.ne.s32.totalorder %v3776, 0
      %vm3841 = vcmp.ne.s32.totalorder %v3777, 0
      %vm3842 = vcmp.ne.s32.totalorder %v3778, 0
      %vm3843 = vcmp.ne.s32.totalorder %v3779, 0
      %vm3844 = vcmp.ne.s32.totalorder %v3780, 0
      %vm3845 = vcmp.ne.s32.totalorder %v3781, 0
      %vm3846 = vcmp.ne.s32.totalorder %v3782, 0
      %vm3847 = vcmp.ne.s32.totalorder %v3783, 0
      %vm3848 = vcmp.ne.s32.totalorder %v3784, 0
      %vm3849 = vcmp.ne.s32.totalorder %v3785, 0
      %vm3850 = vcmp.ne.s32.totalorder %v3786, 0
      %vm3851 = vcmp.ne.s32.totalorder %v3787, 0
      %vm3852 = vcmp.ne.s32.totalorder %v3788, 0
      %vm3853 = vcmp.ne.s32.totalorder %v3789, 0
      %vm3854 = vcmp.ne.s32.totalorder %v3790, 0
      %vm3855 = vcmp.ne.s32.totalorder %v3791, 0
      %vm3856 = vcmp.ne.s32.totalorder %v3792, 0
      %vm3857 = vcmp.ne.s32.totalorder %v3793, 0
      %vm3858 = vcmp.ne.s32.totalorder %v3794, 0
      %vm3859 = vcmp.ne.s32.totalorder %v3795, 0
      %vm3860 = vcmp.ne.s32.totalorder %v3796, 0
      %vm3861 = vcmp.ne.s32.totalorder %v3797, 0
      %vm3862 = vcmp.ne.s32.totalorder %v3798, 0
      %vm3863 = vcmp.ne.s32.totalorder %v3799, 0
      %vm3864 = vcmp.ne.s32.totalorder %v3800, 0
      %vm3865 = vcmp.ne.s32.totalorder %v3801, 0
      %vm3866 = vcmp.ne.s32.totalorder %v3802, 0
      %vm3867 = vcmp.ne.s32.totalorder %v3803, 0
      %vm3868 = vcmp.ne.s32.totalorder %v3804, 0
      %vm3869 = vcmp.ne.s32.totalorder %v3805, 0
      %vm3870 = vcmp.ne.s32.totalorder %v3806, 0
      %vm3871 = vcmp.ne.s32.totalorder %v3807, 0
      %vm3872 = vcmp.ne.s32.totalorder %v3808, 0
      %vm3873 = vcmp.ne.s32.totalorder %v3809, 0
      %vm3874 = vcmp.ne.s32.totalorder %v3810, 0
      %vm3875 = vcmp.ne.s32.totalorder %v3811, 0
      %vm3876 = vcmp.ne.s32.totalorder %v3812, 0
      %vm3877 = vcmp.ne.s32.totalorder %v3813, 0
      %vm3878 = vcmp.ne.s32.totalorder %v3814, 0
      %vm3879 = vcmp.ne.s32.totalorder %v3815, 0
      %vm3880 = vcmp.ne.s32.totalorder %v3816, 0
      %vm3881 = vcmp.ne.s32.totalorder %v3817, 0
      %vm3882 = vcmp.ne.s32.totalorder %v3818, 0
      %vm3883 = vcmp.ne.s32.totalorder %v3819, 0
      %vm3884 = vcmp.ne.s32.totalorder %v3820, 0
      %vm3885 = vcmp.ne.s32.totalorder %v3821, 0
      %vm3886 = vcmp.ne.s32.totalorder %v3822, 0
      %vm3887 = vcmp.ne.s32.totalorder %v3823, 0
      %vm3888 = vcmp.ne.s32.totalorder %v3824, 0
      %vm3889 = vcmp.ne.s32.totalorder %v3825, 0
      %vm3890 = vcmp.ne.s32.totalorder %v3826, 0
      %vm3891 = vcmp.ne.s32.totalorder %v3827, 0
      %vm3892 = vcmp.ne.s32.totalorder %v3828, 0
      %vm3893 = vcmp.ne.s32.totalorder %v3829, 0
      %v3894 = vsel %vm3830, %v3638, -1e+30
      %v3895 = vsel %vm3831, %v3639, -1e+30
      %v3896 = vsel %vm3832, %v3640, -1e+30
      %v3897 = vsel %vm3833, %v3641, -1e+30
      %v3898 = vsel %vm3834, %v3642, -1e+30
      %v3899 = vsel %vm3835, %v3643, -1e+30
      %v3900 = vsel %vm3836, %v3644, -1e+30
      %v3901 = vsel %vm3837, %v3645, -1e+30
      %v3902 = vsel %vm3838, %v3646, -1e+30
      %v3903 = vsel %vm3839, %v3647, -1e+30
      %v3904 = vsel %vm3840, %v3648, -1e+30
      %v3905 = vsel %vm3841, %v3649, -1e+30
      %v3906 = vsel %vm3842, %v3650, -1e+30
      %v3907 = vsel %vm3843, %v3651, -1e+30
      %v3908 = vsel %vm3844, %v3652, -1e+30
      %v3909 = vsel %vm3845, %v3653, -1e+30
      %v3910 = vsel %vm3846, %v3654, -1e+30
      %v3911 = vsel %vm3847, %v3655, -1e+30
      %v3912 = vsel %vm3848, %v3656, -1e+30
      %v3913 = vsel %vm3849, %v3657, -1e+30
      %v3914 = vsel %vm3850, %v3658, -1e+30
      %v3915 = vsel %vm3851, %v3659, -1e+30
      %v3916 = vsel %vm3852, %v3660, -1e+30
      %v3917 = vsel %vm3853, %v3661, -1e+30
      %v3918 = vsel %vm3854, %v3662, -1e+30
      %v3919 = vsel %vm3855, %v3663, -1e+30
      %v3920 = vsel %vm3856, %v3664, -1e+30
      %v3921 = vsel %vm3857, %v3665, -1e+30
      %v3922 = vsel %vm3858, %v3666, -1e+30
      %v3923 = vsel %vm3859, %v3667, -1e+30
      %v3924 = vsel %vm3860, %v3668, -1e+30
      %v3925 = vsel %vm3861, %v3669, -1e+30
      %v3926 = vsel %vm3862, %v3670, -1e+30
      %v3927 = vsel %vm3863, %v3671, -1e+30
      %v3928 = vsel %vm3864, %v3672, -1e+30
      %v3929 = vsel %vm3865, %v3673, -1e+30
      %v3930 = vsel %vm3866, %v3674, -1e+30
      %v3931 = vsel %vm3867, %v3675, -1e+30
      %v3932 = vsel %vm3868, %v3676, -1e+30
      %v3933 = vsel %vm3869, %v3677, -1e+30
      %v3934 = vsel %vm3870, %v3678, -1e+30
      %v3935 = vsel %vm3871, %v3679, -1e+30
      %v3936 = vsel %vm3872, %v3680, -1e+30
      %v3937 = vsel %vm3873, %v3681, -1e+30
      %v3938 = vsel %vm3874, %v3682, -1e+30
      %v3939 = vsel %vm3875, %v3683, -1e+30
      %v3940 = vsel %vm3876, %v3684, -1e+30
      %v3941 = vsel %vm3877, %v3685, -1e+30
      %v3942 = vsel %vm3878, %v3686, -1e+30
      %v3943 = vsel %vm3879, %v3687, -1e+30
      %v3944 = vsel %vm3880, %v3688, -1e+30
      %v3945 = vsel %vm3881, %v3689, -1e+30
      %v3946 = vsel %vm3882, %v3690, -1e+30
      %v3947 = vsel %vm3883, %v3691, -1e+30
      %v3948 = vsel %vm3884, %v3692, -1e+30
      %v3949 = vsel %vm3885, %v3693, -1e+30
      %v3950 = vsel %vm3886, %v3694, -1e+30
      %v3951 = vsel %vm3887, %v3695, -1e+30
      %v3952 = vsel %vm3888, %v3696, -1e+30
      %v3953 = vsel %vm3889, %v3697, -1e+30
      %v3954 = vsel %vm3890, %v3698, -1e+30
      %v3955 = vsel %vm3891, %v3699, -1e+30
      %v3956 = vsel %vm3892, %v3700, -1e+30
      %v3957 = vsel %vm3893, %v3701, -1e+30
      %v3958 = vmax.f32 %v3894, %v3895
      %3959 = vmax.xlane.f32.xlu0 %v3958
      %v3960 = vpop.xlane.xlu0 %3959
      %v3961 = vmax.f32 %v3896, %v3897
      %3962 = vmax.xlane.f32.xlu0 %v3961
      %v3963 = vpop.xlane.xlu0 %3962
      %v3964 = vmax.f32 %v3898, %v3899
      %3965 = vmax.xlane.f32.xlu0 %v3964
      %v3966 = vpop.xlane.xlu0 %3965
      %v3967 = vmax.f32 %v3900, %v3901
      %3968 = vmax.xlane.f32.xlu0 %v3967
      %v3969 = vpop.xlane.xlu0 %3968
      %v3970 = vmax.f32 %v3902, %v3903
      %3971 = vmax.xlane.f32.xlu0 %v3970
      %v3972 = vpop.xlane.xlu0 %3971
      %v3973 = vmax.f32 %v3904, %v3905
      %3974 = vmax.xlane.f32.xlu0 %v3973
      %v3975 = vpop.xlane.xlu0 %3974
      %v3976 = vmax.f32 %v3906, %v3907
      %3977 = vmax.xlane.f32.xlu0 %v3976
      %v3978 = vpop.xlane.xlu0 %3977
      %v3979 = vmax.f32 %v3908, %v3909
      %3980 = vmax.xlane.f32.xlu0 %v3979
      %v3981 = vpop.xlane.xlu0 %3980
      %v3982 = vmax.f32 %v3910, %v3911
      %3983 = vmax.xlane.f32.xlu0 %v3982
      %v3984 = vpop.xlane.xlu0 %3983
      %v3985 = vmax.f32 %v3912, %v3913
      %3986 = vmax.xlane.f32.xlu0 %v3985
      %v3987 = vpop.xlane.xlu0 %3986
      %v3988 = vmax.f32 %v3914, %v3915
      %3989 = vmax.xlane.f32.xlu0 %v3988
      %v3990 = vpop.xlane.xlu0 %3989
      %v3991 = vmax.f32 %v3916, %v3917
      %3992 = vmax.xlane.f32.xlu0 %v3991
      %v3993 = vpop.xlane.xlu0 %3992
      %v3994 = vmax.f32 %v3918, %v3919
      %3995 = vmax.xlane.f32.xlu0 %v3994
      %v3996 = vpop.xlane.xlu0 %3995
      %v3997 = vmax.f32 %v3920, %v3921
      %3998 = vmax.xlane.f32.xlu0 %v3997
      %v3999 = vpop.xlane.xlu0 %3998
      %v4000 = vmax.f32 %v3922, %v3923
      %4001 = vmax.xlane.f32.xlu0 %v4000
      %v4002 = vpop.xlane.xlu0 %4001
      %v4003 = vmax.f32 %v3924, %v3925
      %4004 = vmax.xlane.f32.xlu0 %v4003
      %v4005 = vpop.xlane.xlu0 %4004
      %v4006 = vmax.f32 %v3926, %v3927
      %4007 = vmax.xlane.f32.xlu0 %v4006
      %v4008 = vpop.xlane.xlu0 %4007
      %v4009 = vmax.f32 %v3928, %v3929
      %4010 = vmax.xlane.f32.xlu0 %v4009
      %v4011 = vpop.xlane.xlu0 %4010
      %v4012 = vmax.f32 %v3930, %v3931
      %4013 = vmax.xlane.f32.xlu0 %v4012
      %v4014 = vpop.xlane.xlu0 %4013
      %v4015 = vmax.f32 %v3932, %v3933
      %4016 = vmax.xlane.f32.xlu0 %v4015
      %v4017 = vpop.xlane.xlu0 %4016
      %v4018 = vmax.f32 %v3934, %v3935
      %4019 = vmax.xlane.f32.xlu0 %v4018
      %v4020 = vpop.xlane.xlu0 %4019
      %v4021 = vmax.f32 %v3936, %v3937
      %4022 = vmax.xlane.f32.xlu0 %v4021
      %v4023 = vpop.xlane.xlu0 %4022
      %v4024 = vmax.f32 %v3938, %v3939
      %4025 = vmax.xlane.f32.xlu0 %v4024
      %v4026 = vpop.xlane.xlu0 %4025
      %v4027 = vmax.f32 %v3940, %v3941
      %4028 = vmax.xlane.f32.xlu0 %v4027
      %v4029 = vpop.xlane.xlu0 %4028
      %v4030 = vmax.f32 %v3942, %v3943
      %4031 = vmax.xlane.f32.xlu0 %v4030
      %v4032 = vpop.xlane.xlu0 %4031
      %v4033 = vmax.f32 %v3944, %v3945
      %4034 = vmax.xlane.f32.xlu0 %v4033
      %v4035 = vpop.xlane.xlu0 %4034
      %v4036 = vmax.f32 %v3946, %v3947
      %4037 = vmax.xlane.f32.xlu0 %v4036
      %v4038 = vpop.xlane.xlu0 %4037
      %v4039 = vmax.f32 %v3948, %v3949
      %4040 = vmax.xlane.f32.xlu0 %v4039
      %v4041 = vpop.xlane.xlu0 %4040
      %v4042 = vmax.f32 %v3950, %v3951
      %4043 = vmax.xlane.f32.xlu0 %v4042
      %v4044 = vpop.xlane.xlu0 %4043
      %v4045 = vmax.f32 %v3952, %v3953
      %4046 = vmax.xlane.f32.xlu0 %v4045
      %v4047 = vpop.xlane.xlu0 %4046
      %v4048 = vmax.f32 %v3954, %v3955
      %4049 = vmax.xlane.f32.xlu0 %v4048
      %v4050 = vpop.xlane.xlu0 %4049
      %v4051 = vmax.f32 %v3956, %v3957
      %4052 = vmax.xlane.f32.xlu0 %v4051
      %v4053 = vpop.xlane.xlu0 %4052
      %v4054 = vunpack.c.l.bf16 %v2999
      %v4055 = vunpack.c.h.bf16 %v2999
      %v4056 = vunpack.c.l.bf16 %v3000
      %v4057 = vunpack.c.h.bf16 %v3000
      %v4058 = vunpack.c.l.bf16 %v3001
      %v4059 = vunpack.c.h.bf16 %v3001
      %v4060 = vunpack.c.l.bf16 %v3002
      %v4061 = vunpack.c.h.bf16 %v3002
      %v4062 = vunpack.c.l.bf16 %v3003
      %v4063 = vunpack.c.h.bf16 %v3003
      %v4064 = vunpack.c.l.bf16 %v3004
      %v4065 = vunpack.c.h.bf16 %v3004
      %v4066 = vunpack.c.l.bf16 %v3005
      %v4067 = vunpack.c.h.bf16 %v3005
      %v4068 = vunpack.c.l.bf16 %v3006
      %v4069 = vunpack.c.h.bf16 %v3006
      %v4070 = vunpack.c.l.bf16 %v3007
      %v4071 = vunpack.c.h.bf16 %v3007
      %v4072 = vunpack.c.l.bf16 %v3008
      %v4073 = vunpack.c.h.bf16 %v3008
      %v4074 = vunpack.c.l.bf16 %v3009
      %v4075 = vunpack.c.h.bf16 %v3009
      %v4076 = vunpack.c.l.bf16 %v3010
      %v4077 = vunpack.c.h.bf16 %v3010
      %v4078 = vunpack.c.l.bf16 %v3011
      %v4079 = vunpack.c.h.bf16 %v3011
      %v4080 = vunpack.c.l.bf16 %v3012
      %v4081 = vunpack.c.h.bf16 %v3012
      %v4082 = vunpack.c.l.bf16 %v3013
      %v4083 = vunpack.c.h.bf16 %v3013
      %v4084 = vunpack.c.l.bf16 %v3014
      %v4085 = vunpack.c.h.bf16 %v3014
      %v4086 = vunpack.c.l.bf16 %v3015
      %v4087 = vunpack.c.h.bf16 %v3015
      %v4088 = vunpack.c.l.bf16 %v3016
      %v4089 = vunpack.c.h.bf16 %v3016
      %v4090 = vunpack.c.l.bf16 %v3017
      %v4091 = vunpack.c.h.bf16 %v3017
      %v4092 = vunpack.c.l.bf16 %v3018
      %v4093 = vunpack.c.h.bf16 %v3018
      %v4094 = vunpack.c.l.bf16 %v3019
      %v4095 = vunpack.c.h.bf16 %v3019
      %v4096 = vunpack.c.l.bf16 %v3020
      %v4097 = vunpack.c.h.bf16 %v3020
      %v4098 = vunpack.c.l.bf16 %v3021
      %v4099 = vunpack.c.h.bf16 %v3021
      %v4100 = vunpack.c.l.bf16 %v3022
      %v4101 = vunpack.c.h.bf16 %v3022
      %v4102 = vunpack.c.l.bf16 %v3023
      %v4103 = vunpack.c.h.bf16 %v3023
      %v4104 = vunpack.c.l.bf16 %v3024
      %v4105 = vunpack.c.h.bf16 %v3024
      %v4106 = vunpack.c.l.bf16 %v3025
      %v4107 = vunpack.c.h.bf16 %v3025
      %v4108 = vunpack.c.l.bf16 %v3026
      %v4109 = vunpack.c.h.bf16 %v3026
      %v4110 = vunpack.c.l.bf16 %v3027
      %v4111 = vunpack.c.h.bf16 %v3027
      %v4112 = vunpack.c.l.bf16 %v3028
      %v4113 = vunpack.c.h.bf16 %v3028
      %v4114 = vunpack.c.l.bf16 %v3029
      %v4115 = vunpack.c.h.bf16 %v3029
      %v4116 = vunpack.c.l.bf16 %v3030
      %v4117 = vunpack.c.h.bf16 %v3030
      %v4118 = vsub.f32 %v3894, %v3960
      %v4119 = vsub.f32 %v3895, %v3960
      %v4120 = vsub.f32 %v3896, %v3963
      %v4121 = vsub.f32 %v3897, %v3963
      %v4122 = vsub.f32 %v3898, %v3966
      %v4123 = vsub.f32 %v3899, %v3966
      %v4124 = vsub.f32 %v3900, %v3969
      %v4125 = vsub.f32 %v3901, %v3969
      %v4126 = vsub.f32 %v3902, %v3972
      %v4127 = vsub.f32 %v3903, %v3972
      %v4128 = vsub.f32 %v3904, %v3975
      %v4129 = vsub.f32 %v3905, %v3975
      %v4130 = vsub.f32 %v3906, %v3978
      %v4131 = vsub.f32 %v3907, %v3978
      %v4132 = vsub.f32 %v3908, %v3981
      %v4133 = vsub.f32 %v3909, %v3981
      %v4134 = vsub.f32 %v3910, %v3984
      %v4135 = vsub.f32 %v3911, %v3984
      %v4136 = vsub.f32 %v3912, %v3987
      %v4137 = vsub.f32 %v3913, %v3987
      %v4138 = vsub.f32 %v3914, %v3990
      %v4139 = vsub.f32 %v3915, %v3990
      %v4140 = vsub.f32 %v3916, %v3993
      %v4141 = vsub.f32 %v3917, %v3993
      %v4142 = vsub.f32 %v3918, %v3996
      %v4143 = vsub.f32 %v3919, %v3996
      %v4144 = vsub.f32 %v3920, %v3999
      %v4145 = vsub.f32 %v3921, %v3999
      %v4146 = vsub.f32 %v3922, %v4002
      %v4147 = vsub.f32 %v3923, %v4002
      %v4148 = vsub.f32 %v3924, %v4005
      %v4149 = vsub.f32 %v3925, %v4005
      %v4150 = vsub.f32 %v3926, %v4008
      %v4151 = vsub.f32 %v3927, %v4008
      %v4152 = vsub.f32 %v3928, %v4011
      %v4153 = vsub.f32 %v3929, %v4011
      %v4154 = vsub.f32 %v3930, %v4014
      %v4155 = vsub.f32 %v3931, %v4014
      %v4156 = vsub.f32 %v3932, %v4017
      %v4157 = vsub.f32 %v3933, %v4017
      %v4158 = vsub.f32 %v3934, %v4020
      %v4159 = vsub.f32 %v3935, %v4020
      %v4160 = vsub.f32 %v3936, %v4023
      %v4161 = vsub.f32 %v3937, %v4023
      %v4162 = vsub.f32 %v3938, %v4026
      %v4163 = vsub.f32 %v3939, %v4026
      %v4164 = vsub.f32 %v3940, %v4029
      %v4165 = vsub.f32 %v3941, %v4029
      %v4166 = vsub.f32 %v3942, %v4032
      %v4167 = vsub.f32 %v3943, %v4032
      %v4168 = vsub.f32 %v3944, %v4035
      %v4169 = vsub.f32 %v3945, %v4035
      %v4170 = vsub.f32 %v3946, %v4038
      %v4171 = vsub.f32 %v3947, %v4038
      %v4172 = vsub.f32 %v3948, %v4041
      %v4173 = vsub.f32 %v3949, %v4041
      %v4174 = vsub.f32 %v3950, %v4044
      %v4175 = vsub.f32 %v3951, %v4044
      %v4176 = vsub.f32 %v3952, %v4047
      %v4177 = vsub.f32 %v3953, %v4047
      %v4178 = vsub.f32 %v3954, %v4050
      %v4179 = vsub.f32 %v3955, %v4050
      %v4180 = vsub.f32 %v3956, %v4053
      %v4181 = vsub.f32 %v3957, %v4053
      %v4182 = vmul.f32 %v4118, 1.442695
      %v4183 = vpow.pop %v4182
      %v4184 = vmul.f32 %v4119, 1.442695
      %v4185 = vpow.pop %v4184
      %v4186 = vmul.f32 %v4120, 1.442695
      %v4187 = vpow.pop %v4186
      %v4188 = vmul.f32 %v4121, 1.442695
      %v4189 = vpow.pop %v4188
      %v4190 = vmul.f32 %v4122, 1.442695
      %v4191 = vpow.pop %v4190
      %v4192 = vmul.f32 %v4123, 1.442695
      %v4193 = vpow.pop %v4192
      %v4194 = vmul.f32 %v4124, 1.442695
      %v4195 = vpow.pop %v4194
      %v4196 = vmul.f32 %v4125, 1.442695
      %v4197 = vpow.pop %v4196
      %v4198 = vmul.f32 %v4126, 1.442695
      %v4199 = vpow.pop %v4198
      %v4200 = vmul.f32 %v4127, 1.442695
      %v4201 = vpow.pop %v4200
      %v4202 = vmul.f32 %v4128, 1.442695
      %v4203 = vpow.pop %v4202
      %v4204 = vmul.f32 %v4129, 1.442695
      %v4205 = vpow.pop %v4204
      %v4206 = vmul.f32 %v4130, 1.442695
      %v4207 = vpow.pop %v4206
      %v4208 = vmul.f32 %v4131, 1.442695
      %v4209 = vpow.pop %v4208
      %v4210 = vmul.f32 %v4132, 1.442695
      %v4211 = vpow.pop %v4210
      %v4212 = vmul.f32 %v4133, 1.442695
      %v4213 = vpow.pop %v4212
      %v4214 = vmul.f32 %v4134, 1.442695
      %v4215 = vpow.pop %v4214
      %v4216 = vmul.f32 %v4135, 1.442695
      %v4217 = vpow.pop %v4216
      %v4218 = vmul.f32 %v4136, 1.442695
      %v4219 = vpow.pop %v4218
      %v4220 = vmul.f32 %v4137, 1.442695
      %v4221 = vpow.pop %v4220
      %v4222 = vmul.f32 %v4138, 1.442695
      %v4223 = vpow.pop %v4222
      %v4224 = vmul.f32 %v4139, 1.442695
      %v4225 = vpow.pop %v4224
      %v4226 = vmul.f32 %v4140, 1.442695
      %v4227 = vpow.pop %v4226
      %v4228 = vmul.f32 %v4141, 1.442695
      %v4229 = vpow.pop %v4228
      %v4230 = vmul.f32 %v4142, 1.442695
      %v4231 = vpow.pop %v4230
      %v4232 = vmul.f32 %v4143, 1.442695
      %v4233 = vpow.pop %v4232
      %v4234 = vmul.f32 %v4144, 1.442695
      %v4235 = vpow.pop %v4234
      %v4236 = vmul.f32 %v4145, 1.442695
      %v4237 = vpow.pop %v4236
      %v4238 = vmul.f32 %v4146, 1.442695
      %v4239 = vpow.pop %v4238
      %v4240 = vmul.f32 %v4147, 1.442695
      %v4241 = vpow.pop %v4240
      %v4242 = vmul.f32 %v4148, 1.442695
      %v4243 = vpow.pop %v4242
      %v4244 = vmul.f32 %v4149, 1.442695
      %v4245 = vpow.pop %v4244
      %v4246 = vmul.f32 %v4150, 1.442695
      %v4247 = vpow.pop %v4246
      %v4248 = vmul.f32 %v4151, 1.442695
      %v4249 = vpow.pop %v4248
      %v4250 = vmul.f32 %v4152, 1.442695
      %v4251 = vpow.pop %v4250
      %v4252 = vmul.f32 %v4153, 1.442695
      %v4253 = vpow.pop %v4252
      %v4254 = vmul.f32 %v4154, 1.442695
      %v4255 = vpow.pop %v4254
      %v4256 = vmul.f32 %v4155, 1.442695
      %v4257 = vpow.pop %v4256
      %v4258 = vmul.f32 %v4156, 1.442695
      %v4259 = vpow.pop %v4258
      %v4260 = vmul.f32 %v4157, 1.442695
      %v4261 = vpow.pop %v4260
      %v4262 = vmul.f32 %v4158, 1.442695
      %v4263 = vpow.pop %v4262
      %v4264 = vmul.f32 %v4159, 1.442695
      %v4265 = vpow.pop %v4264
      %v4266 = vmul.f32 %v4160, 1.442695
      %v4267 = vpow.pop %v4266
      %v4268 = vmul.f32 %v4161, 1.442695
      %v4269 = vpow.pop %v4268
      %v4270 = vmul.f32 %v4162, 1.442695
      %v4271 = vpow.pop %v4270
      %v4272 = vmul.f32 %v4163, 1.442695
      %v4273 = vpow.pop %v4272
      %v4274 = vmul.f32 %v4164, 1.442695
      %v4275 = vpow.pop %v4274
      %v4276 = vmul.f32 %v4165, 1.442695
      %v4277 = vpow.pop %v4276
      %v4278 = vmul.f32 %v4166, 1.442695
      %v4279 = vpow.pop %v4278
      %v4280 = vmul.f32 %v4167, 1.442695
      %v4281 = vpow.pop %v4280
      %v4282 = vmul.f32 %v4168, 1.442695
      %v4283 = vpow.pop %v4282
      %v4284 = vmul.f32 %v4169, 1.442695
      %v4285 = vpow.pop %v4284
      %v4286 = vmul.f32 %v4170, 1.442695
      %v4287 = vpow.pop %v4286
      %v4288 = vmul.f32 %v4171, 1.442695
      %v4289 = vpow.pop %v4288
      %v4290 = vmul.f32 %v4172, 1.442695
      %v4291 = vpow.pop %v4290
      %v4292 = vmul.f32 %v4173, 1.442695
      %v4293 = vpow.pop %v4292
      %v4294 = vmul.f32 %v4174, 1.442695
      %v4295 = vpow.pop %v4294
      %v4296 = vmul.f32 %v4175, 1.442695
      %v4297 = vpow.pop %v4296
      %v4298 = vmul.f32 %v4176, 1.442695
      %v4299 = vpow.pop %v4298
      %v4300 = vmul.f32 %v4177, 1.442695
      %v4301 = vpow.pop %v4300
      %v4302 = vmul.f32 %v4178, 1.442695
      %v4303 = vpow.pop %v4302
      %v4304 = vmul.f32 %v4179, 1.442695
      %v4305 = vpow.pop %v4304
      %v4306 = vmul.f32 %v4180, 1.442695
      %v4307 = vpow.pop %v4306
      %v4308 = vmul.f32 %v4181, 1.442695
      %v4309 = vpow.pop %v4308
      %v4310 = vmul.f32 %v4054, %v4183
      %v4311 = vmul.f32 %v4055, %v4185
      %v4312 = vmul.f32 %v4056, %v4187
      %v4313 = vmul.f32 %v4057, %v4189
      %v4314 = vmul.f32 %v4058, %v4191
      %v4315 = vmul.f32 %v4059, %v4193
      %v4316 = vmul.f32 %v4060, %v4195
      %v4317 = vmul.f32 %v4061, %v4197
      %v4318 = vmul.f32 %v4062, %v4199
      %v4319 = vmul.f32 %v4063, %v4201
      %v4320 = vmul.f32 %v4064, %v4203
      %v4321 = vmul.f32 %v4065, %v4205
      %v4322 = vmul.f32 %v4066, %v4207
      %v4323 = vmul.f32 %v4067, %v4209
      %v4324 = vmul.f32 %v4068, %v4211
      %v4325 = vmul.f32 %v4069, %v4213
      %v4326 = vmul.f32 %v4070, %v4215
      %v4327 = vmul.f32 %v4071, %v4217
      %v4328 = vmul.f32 %v4072, %v4219
      %v4329 = vmul.f32 %v4073, %v4221
      %v4330 = vmul.f32 %v4074, %v4223
      %v4331 = vmul.f32 %v4075, %v4225
      %v4332 = vmul.f32 %v4076, %v4227
      %v4333 = vmul.f32 %v4077, %v4229
      %v4334 = vmul.f32 %v4078, %v4231
      %v4335 = vmul.f32 %v4079, %v4233
      %v4336 = vmul.f32 %v4080, %v4235
      %v4337 = vmul.f32 %v4081, %v4237
      %v4338 = vmul.f32 %v4082, %v4239
      %v4339 = vmul.f32 %v4083, %v4241
      %v4340 = vmul.f32 %v4084, %v4243
      %v4341 = vmul.f32 %v4085, %v4245
      %v4342 = vmul.f32 %v4086, %v4247
      %v4343 = vmul.f32 %v4087, %v4249
      %v4344 = vmul.f32 %v4088, %v4251
      %v4345 = vmul.f32 %v4089, %v4253
      %v4346 = vmul.f32 %v4090, %v4255
      %v4347 = vmul.f32 %v4091, %v4257
      %v4348 = vmul.f32 %v4092, %v4259
      %v4349 = vmul.f32 %v4093, %v4261
      %v4350 = vmul.f32 %v4094, %v4263
      %v4351 = vmul.f32 %v4095, %v4265
      %v4352 = vmul.f32 %v4096, %v4267
      %v4353 = vmul.f32 %v4097, %v4269
      %v4354 = vmul.f32 %v4098, %v4271
      %v4355 = vmul.f32 %v4099, %v4273
      %v4356 = vmul.f32 %v4100, %v4275
      %v4357 = vmul.f32 %v4101, %v4277
      %v4358 = vmul.f32 %v4102, %v4279
      %v4359 = vmul.f32 %v4103, %v4281
      %v4360 = vmul.f32 %v4104, %v4283
      %v4361 = vmul.f32 %v4105, %v4285
      %v4362 = vmul.f32 %v4106, %v4287
      %v4363 = vmul.f32 %v4107, %v4289
      %v4364 = vmul.f32 %v4108, %v4291
      %v4365 = vmul.f32 %v4109, %v4293
      %v4366 = vmul.f32 %v4110, %v4295
      %v4367 = vmul.f32 %v4111, %v4297
      %v4368 = vmul.f32 %v4112, %v4299
      %v4369 = vmul.f32 %v4113, %v4301
      %v4370 = vmul.f32 %v4114, %v4303
      %v4371 = vmul.f32 %v4115, %v4305
      %v4372 = vmul.f32 %v4116, %v4307
      %v4373 = vmul.f32 %v4117, %v4309
      %v4374 = vadd.f32 %v4310, %v4311
      %4375 = vadd.xlane.f32.xlu0 %v4374
      %v4376 = vpop.xlane.xlu0 %4375
      %v4377 = vadd.f32 %v4312, %v4313
      %4378 = vadd.xlane.f32.xlu0 %v4377
      %v4379 = vpop.xlane.xlu0 %4378
      %v4380 = vadd.f32 %v4314, %v4315
      %4381 = vadd.xlane.f32.xlu0 %v4380
      %v4382 = vpop.xlane.xlu0 %4381
      %v4383 = vadd.f32 %v4316, %v4317
      %4384 = vadd.xlane.f32.xlu0 %v4383
      %v4385 = vpop.xlane.xlu0 %4384
      %v4386 = vadd.f32 %v4318, %v4319
      %4387 = vadd.xlane.f32.xlu0 %v4386
      %v4388 = vpop.xlane.xlu0 %4387
      %v4389 = vadd.f32 %v4320, %v4321
      %4390 = vadd.xlane.f32.xlu0 %v4389
      %v4391 = vpop.xlane.xlu0 %4390
      %v4392 = vadd.f32 %v4322, %v4323
      %4393 = vadd.xlane.f32.xlu0 %v4392
      %v4394 = vpop.xlane.xlu0 %4393
      %v4395 = vadd.f32 %v4324, %v4325
      %4396 = vadd.xlane.f32.xlu0 %v4395
      %v4397 = vpop.xlane.xlu0 %4396
      %v4398 = vadd.f32 %v4326, %v4327
      %4399 = vadd.xlane.f32.xlu0 %v4398
      %v4400 = vpop.xlane.xlu0 %4399
      %v4401 = vadd.f32 %v4328, %v4329
      %4402 = vadd.xlane.f32.xlu0 %v4401
      %v4403 = vpop.xlane.xlu0 %4402
      %v4404 = vadd.f32 %v4330, %v4331
      %4405 = vadd.xlane.f32.xlu0 %v4404
      %v4406 = vpop.xlane.xlu0 %4405
      %v4407 = vadd.f32 %v4332, %v4333
      %4408 = vadd.xlane.f32.xlu0 %v4407
      %v4409 = vpop.xlane.xlu0 %4408
      %v4410 = vadd.f32 %v4334, %v4335
      %4411 = vadd.xlane.f32.xlu0 %v4410
      %v4412 = vpop.xlane.xlu0 %4411
      %v4413 = vadd.f32 %v4336, %v4337
      %4414 = vadd.xlane.f32.xlu0 %v4413
      %v4415 = vpop.xlane.xlu0 %4414
      %v4416 = vadd.f32 %v4338, %v4339
      %4417 = vadd.xlane.f32.xlu0 %v4416
      %v4418 = vpop.xlane.xlu0 %4417
      %v4419 = vadd.f32 %v4340, %v4341
      %4420 = vadd.xlane.f32.xlu0 %v4419
      %v4421 = vpop.xlane.xlu0 %4420
      %v4422 = vadd.f32 %v4342, %v4343
      %4423 = vadd.xlane.f32.xlu0 %v4422
      %v4424 = vpop.xlane.xlu0 %4423
      %v4425 = vadd.f32 %v4344, %v4345
      %4426 = vadd.xlane.f32.xlu0 %v4425
      %v4427 = vpop.xlane.xlu0 %4426
      %v4428 = vadd.f32 %v4346, %v4347
      %4429 = vadd.xlane.f32.xlu0 %v4428
      %v4430 = vpop.xlane.xlu0 %4429
      %v4431 = vadd.f32 %v4348, %v4349
      %4432 = vadd.xlane.f32.xlu0 %v4431
      %v4433 = vpop.xlane.xlu0 %4432
      %v4434 = vadd.f32 %v4350, %v4351
      %4435 = vadd.xlane.f32.xlu0 %v4434
      %v4436 = vpop.xlane.xlu0 %4435
      %v4437 = vadd.f32 %v4352, %v4353
      %4438 = vadd.xlane.f32.xlu0 %v4437
      %v4439 = vpop.xlane.xlu0 %4438
      %v4440 = vadd.f32 %v4354, %v4355
      %4441 = vadd.xlane.f32.xlu0 %v4440
      %v4442 = vpop.xlane.xlu0 %4441
      %v4443 = vadd.f32 %v4356, %v4357
      %4444 = vadd.xlane.f32.xlu0 %v4443
      %v4445 = vpop.xlane.xlu0 %4444
      %v4446 = vadd.f32 %v4358, %v4359
      %4447 = vadd.xlane.f32.xlu0 %v4446
      %v4448 = vpop.xlane.xlu0 %4447
      %v4449 = vadd.f32 %v4360, %v4361
      %4450 = vadd.xlane.f32.xlu0 %v4449
      %v4451 = vpop.xlane.xlu0 %4450
      %v4452 = vadd.f32 %v4362, %v4363
      %4453 = vadd.xlane.f32.xlu0 %v4452
      %v4454 = vpop.xlane.xlu0 %4453
      %v4455 = vadd.f32 %v4364, %v4365
      %4456 = vadd.xlane.f32.xlu0 %v4455
      %v4457 = vpop.xlane.xlu0 %4456
      %v4458 = vadd.f32 %v4366, %v4367
      %4459 = vadd.xlane.f32.xlu0 %v4458
      %v4460 = vpop.xlane.xlu0 %4459
      %v4461 = vadd.f32 %v4368, %v4369
      %4462 = vadd.xlane.f32.xlu0 %v4461
      %v4463 = vpop.xlane.xlu0 %4462
      %v4464 = vadd.f32 %v4370, %v4371
      %4465 = vadd.xlane.f32.xlu0 %v4464
      %v4466 = vpop.xlane.xlu0 %4465
      %v4467 = vadd.f32 %v4372, %v4373
      %4468 = vadd.xlane.f32.xlu0 %v4467
      %v4469 = vpop.xlane.xlu0 %4468
      %v4470 = vrcp.pop %v4376
      %v4471 = vrcp.pop %v4379
      %v4472 = vrcp.pop %v4382
      %v4473 = vrcp.pop %v4385
      %v4474 = vrcp.pop %v4388
      %v4475 = vrcp.pop %v4391
      %v4476 = vrcp.pop %v4394
      %v4477 = vrcp.pop %v4397
      %v4478 = vrcp.pop %v4400
      %v4479 = vrcp.pop %v4403
      %v4480 = vrcp.pop %v4406
      %v4481 = vrcp.pop %v4409
      %v4482 = vrcp.pop %v4412
      %v4483 = vrcp.pop %v4415
      %v4484 = vrcp.pop %v4418
      %v4485 = vrcp.pop %v4421
      %v4486 = vrcp.pop %v4424
      %v4487 = vrcp.pop %v4427
      %v4488 = vrcp.pop %v4430
      %v4489 = vrcp.pop %v4433
      %v4490 = vrcp.pop %v4436
      %v4491 = vrcp.pop %v4439
      %v4492 = vrcp.pop %v4442
      %v4493 = vrcp.pop %v4445
      %v4494 = vrcp.pop %v4448
      %v4495 = vrcp.pop %v4451
      %v4496 = vrcp.pop %v4454
      %v4497 = vrcp.pop %v4457
      %v4498 = vrcp.pop %v4460
      %v4499 = vrcp.pop %v4463
      %v4500 = vrcp.pop %v4466
      %v4501 = vrcp.pop %v4469
      %v4502 = vpack.c.bf16 %v4312, %v4310
      %v4503 = vpack.c.bf16 %v4313, %v4311
      %v4504 = vpack.c.bf16 %v4316, %v4314
      %v4505 = vpack.c.bf16 %v4317, %v4315
      %v4506 = vpack.c.bf16 %v4320, %v4318
      %v4507 = vpack.c.bf16 %v4321, %v4319
      %v4508 = vpack.c.bf16 %v4324, %v4322
      %v4509 = vpack.c.bf16 %v4325, %v4323
      %v4510 = vpack.c.bf16 %v4328, %v4326
      %v4511 = vpack.c.bf16 %v4329, %v4327
      %v4512 = vpack.c.bf16 %v4332, %v4330
      %v4513 = vpack.c.bf16 %v4333, %v4331
      %v4514 = vpack.c.bf16 %v4336, %v4334
      %v4515 = vpack.c.bf16 %v4337, %v4335
      %v4516 = vpack.c.bf16 %v4340, %v4338
      %v4517 = vpack.c.bf16 %v4341, %v4339
      %v4518 = vpack.c.bf16 %v4344, %v4342
      %v4519 = vpack.c.bf16 %v4345, %v4343
      %v4520 = vpack.c.bf16 %v4348, %v4346
      %v4521 = vpack.c.bf16 %v4349, %v4347
      %v4522 = vpack.c.bf16 %v4352, %v4350
      %v4523 = vpack.c.bf16 %v4353, %v4351
      %v4524 = vpack.c.bf16 %v4356, %v4354
      %v4525 = vpack.c.bf16 %v4357, %v4355
      %v4526 = vpack.c.bf16 %v4360, %v4358
      %v4527 = vpack.c.bf16 %v4361, %v4359
      %v4528 = vpack.c.bf16 %v4364, %v4362
      %v4529 = vpack.c.bf16 %v4365, %v4363
      %v4530 = vpack.c.bf16 %v4368, %v4366
      %v4531 = vpack.c.bf16 %v4369, %v4367
      %v4532 = vpack.c.bf16 %v4372, %v4370
      %v4533 = vpack.c.bf16 %v4373, %v4371
      %v4534 = vpack.c.bf16 %v3140, %v3137
      %v4535 = vpack.c.bf16 %v3148, %v3145
      %v4536 = vpack.c.bf16 %v3156, %v3153
      %v4537 = vpack.c.bf16 %v3164, %v3161
      %v4538 = vpack.c.bf16 %v3172, %v3169
      %v4539 = vpack.c.bf16 %v3180, %v3177
      %v4540 = vpack.c.bf16 %v3188, %v3185
      %v4541 = vpack.c.bf16 %v3196, %v3193
      %v4542 = vpack.c.bf16 %v3204, %v3201
      %v4543 = vpack.c.bf16 %v3212, %v3209
      %v4544 = vpack.c.bf16 %v3220, %v3217
      %v4545 = vpack.c.bf16 %v3228, %v3225
      %v4546 = vpack.c.bf16 %v3236, %v3233
      %v4547 = vpack.c.bf16 %v3244, %v3241
      %v4548 = vpack.c.bf16 %v3252, %v3249
      %v4549 = vpack.c.bf16 %v3260, %v3257
      %4550 = vmatprep.subr.bf16.mxu0 0
      %4551 = vmatpush1.bf16.msra.mxu0 %v4534
      %4552 = vmatprep.subr.bf16.mxu0 0
      %4553 = vmatpush1.bf16.msra.mxu0 %v4535
      %4554 = vmatprep.subr.bf16.mxu0 0
      %4555 = vmatpush1.bf16.msra.mxu0 %v4536
      %4556 = vmatprep.subr.bf16.mxu0 0
      %4557 = vmatpush1.bf16.msra.mxu0 %v4537
      %4558 = vmatprep.subr.bf16.mxu0 0
      %4559 = vmatpush1.bf16.msra.mxu0 %v4538
      %4560 = vmatprep.subr.bf16.mxu0 0
      %4561 = vmatpush1.bf16.msra.mxu0 %v4539
      %4562 = vmatprep.subr.bf16.mxu0 0
      %4563 = vmatpush1.bf16.msra.mxu0 %v4540
      %4564 = vmatprep.subr.bf16.mxu0 0
      %4565 = vmatpush1.bf16.msra.mxu0 %v4541
      %4566 = vmatprep.subr.bf16.mxu0 0
      %4567 = vmatpush1.bf16.msra.mxu0 %v4542
      %4568 = vmatprep.subr.bf16.mxu0 0
      %4569 = vmatpush1.bf16.msra.mxu0 %v4543
      %4570 = vmatprep.subr.bf16.mxu0 0
      %4571 = vmatpush1.bf16.msra.mxu0 %v4544
      %4572 = vmatprep.subr.bf16.mxu0 0
      %4573 = vmatpush1.bf16.msra.mxu0 %v4545
      %4574 = vmatprep.subr.bf16.mxu0 0
      %4575 = vmatpush1.bf16.msra.mxu0 %v4546
      %4576 = vmatprep.subr.bf16.mxu0 0
      %4577 = vmatpush1.bf16.msra.mxu0 %v4547
      %4578 = vmatprep.subr.bf16.mxu0 0
      %4579 = vmatpush1.bf16.msra.mxu0 %v4548
      %4580 = vmatprep.subr.bf16.mxu0 0
      %4581 = vmatpush1.bf16.msra.mxu0 %v4549
      %4582 = vmatprep.mubr.bf16.mxu0 %v4503
      %4583 = vmatmul.mubr.bf16.gmra.mrb[0].mxu0 %v4502
      %v4584 = vpop.f32.mrb[0].mxu0
      %v4585 = vadd.f32 0.0, %v4584
      %v4586 = vpop.f32.mrb[0].mxu0
      %v4587 = vpop.f32.mrb[0].mxu0
      %v4588 = vadd.f32 0.0, %v4587
      %v4589 = vpop.f32.mrb[0].mxu0
      %4590 = vmatprep.mubr.bf16.mxu0 %v4505
      %4591 = vmatmul.mubr.bf16.gmra.mrb[0].mxu0 %v4504
      %v4592 = vpop.f32.mrb[0].mxu0
      %v4593 = vadd.f32 0.0, %v4592
      %v4594 = vpop.f32.mrb[0].mxu0
      %v4595 = vpop.f32.mrb[0].mxu0
      %v4596 = vadd.f32 0.0, %v4595
      %v4597 = vpop.f32.mrb[0].mxu0
      %4598 = vmatprep.mubr.bf16.mxu0 %v4507
      %4599 = vmatmul.mubr.bf16.gmra.mrb[0].mxu0 %v4506
      %v4600 = vpop.f32.mrb[0].mxu0
      %v4601 = vadd.f32 0.0, %v4600
      %v4602 = vpop.f32.mrb[0].mxu0
      %v4603 = vpop.f32.mrb[0].mxu0
      %v4604 = vadd.f32 0.0, %v4603
      %v4605 = vpop.f32.mrb[0].mxu0
      %4606 = vmatprep.mubr.bf16.mxu0 %v4509
      %4607 = vmatmul.mubr.bf16.gmra.mrb[0].mxu0 %v4508
      %v4608 = vpop.f32.mrb[0].mxu0
      %v4609 = vadd.f32 0.0, %v4608
      %v4610 = vpop.f32.mrb[0].mxu0
      %v4611 = vpop.f32.mrb[0].mxu0
      %v4612 = vadd.f32 0.0, %v4611
      %v4613 = vpop.f32.mrb[0].mxu0
      %4614 = vmatprep.mubr.bf16.mxu0 %v4511
      %4615 = vmatmul.mubr.bf16.gmra.mrb[0].mxu0 %v4510
      %v4616 = vpop.f32.mrb[0].mxu0
      %v4617 = vadd.f32 0.0, %v4616
      %v4618 = vpop.f32.mrb[0].mxu0
      %v4619 = vpop.f32.mrb[0].mxu0
      %v4620 = vadd.f32 0.0, %v4619
      %v4621 = vpop.f32.mrb[0].mxu0
      %4622 = vmatprep.mubr.bf16.mxu0 %v4513
      %4623 = vmatmul.mubr.bf16.gmra.mrb[0].mxu0 %v4512
      %v4624 = vpop.f32.mrb[0].mxu0
      %v4625 = vadd.f32 0.0, %v4624
      %v4626 = vpop.f32.mrb[0].mxu0
      %v4627 = vpop.f32.mrb[0].mxu0
      %v4628 = vadd.f32 0.0, %v4627
      %v4629 = vpop.f32.mrb[0].mxu0
      %4630 = vmatprep.mubr.bf16.mxu0 %v4515
      %4631 = vmatmul.mubr.bf16.gmra.mrb[0].mxu0 %v4514
      %v4632 = vpop.f32.mrb[0].mxu0
      %v4633 = vadd.f32 0.0, %v4632
      %v4634 = vpop.f32.mrb[0].mxu0
      %v4635 = vpop.f32.mrb[0].mxu0
      %v4636 = vadd.f32 0.0, %v4635
      %v4637 = vpop.f32.mrb[0].mxu0
      %4638 = vmatprep.mubr.bf16.mxu0 %v4517
      %4639 = vmatmul.mubr.bf16.gmra.mrb[0].mxu0 %v4516
      %v4640 = vpop.f32.mrb[0].mxu0
      %v4641 = vadd.f32 0.0, %v4640
      %v4642 = vpop.f32.mrb[0].mxu0
      %v4643 = vpop.f32.mrb[0].mxu0
      %v4644 = vadd.f32 0.0, %v4643
      %v4645 = vpop.f32.mrb[0].mxu0
      %4646 = vmatprep.mubr.bf16.mxu0 %v4519
      %4647 = vmatmul.mubr.bf16.gmra.mrb[0].mxu0 %v4518
      %v4648 = vpop.f32.mrb[0].mxu0
      %v4649 = vadd.f32 0.0, %v4648
      %v4650 = vpop.f32.mrb[0].mxu0
      %v4651 = vpop.f32.mrb[0].mxu0
      %v4652 = vadd.f32 0.0, %v4651
      %v4653 = vpop.f32.mrb[0].mxu0
      %4654 = vmatprep.mubr.bf16.mxu0 %v4521
      %4655 = vmatmul.mubr.bf16.gmra.mrb[0].mxu0 %v4520
      %v4656 = vpop.f32.mrb[0].mxu0
      %v4657 = vadd.f32 0.0, %v4656
      %v4658 = vpop.f32.mrb[0].mxu0
      %v4659 = vpop.f32.mrb[0].mxu0
      %v4660 = vadd.f32 0.0, %v4659
      %v4661 = vpop.f32.mrb[0].mxu0
      %4662 = vmatprep.mubr.bf16.mxu0 %v4523
      %4663 = vmatmul.mubr.bf16.gmra.mrb[0].mxu0 %v4522
      %v4664 = vpop.f32.mrb[0].mxu0
      %v4665 = vadd.f32 0.0, %v4664
      %v4666 = vpop.f32.mrb[0].mxu0
      %v4667 = vpop.f32.mrb[0].mxu0
      %v4668 = vadd.f32 0.0, %v4667
      %v4669 = vpop.f32.mrb[0].mxu0
      %4670 = vmatprep.mubr.bf16.mxu0 %v4525
      %4671 = vmatmul.mubr.bf16.gmra.mrb[0].mxu0 %v4524
      %v4672 = vpop.f32.mrb[0].mxu0
      %v4673 = vadd.f32 0.0, %v4672
      %v4674 = vpop.f32.mrb[0].mxu0
      %v4675 = vpop.f32.mrb[0].mxu0
      %v4676 = vadd.f32 0.0, %v4675
      %v4677 = vpop.f32.mrb[0].mxu0
      %4678 = vmatprep.mubr.bf16.mxu0 %v4527
      %4679 = vmatmul.mubr.bf16.gmra.mrb[0].mxu0 %v4526
      %v4680 = vpop.f32.mrb[0].mxu0
      %v4681 = vadd.f32 0.0, %v4680
      %v4682 = vpop.f32.mrb[0].mxu0
      %v4683 = vpop.f32.mrb[0].mxu0
      %v4684 = vadd.f32 0.0, %v4683
      %v4685 = vpop.f32.mrb[0].mxu0
      %4686 = vmatprep.mubr.bf16.mxu0 %v4529
      %4687 = vmatmul.mubr.bf16.gmra.mrb[0].mxu0 %v4528
      %v4688 = vpop.f32.mrb[0].mxu0
      %v4689 = vadd.f32 0.0, %v4688
      %v4690 = vpop.f32.mrb[0].mxu0
      %v4691 = vpop.f32.mrb[0].mxu0
      %v4692 = vadd.f32 0.0, %v4691
      %v4693 = vpop.f32.mrb[0].mxu0
      %4694 = vmatprep.mubr.bf16.mxu0 %v4531
      %4695 = vmatmul.mubr.bf16.gmra.mrb[0].mxu0 %v4530
      %v4696 = vpop.f32.mrb[0].mxu0
      %v4697 = vadd.f32 0.0, %v4696
      %v4698 = vpop.f32.mrb[0].mxu0
      %v4699 = vpop.f32.mrb[0].mxu0
      %v4700 = vadd.f32 0.0, %v4699
      %v4701 = vpop.f32.mrb[0].mxu0
      %4702 = vmatprep.mubr.bf16.mxu0 %v4533
      %4703 = vmatmul.mubr.bf16.gmra.mrb[0].mxu0 %v4532
      %v4704 = vpop.f32.mrb[0].mxu0
      %v4705 = vadd.f32 0.0, %v4704
      %v4706 = vpop.f32.mrb[0].mxu0
      %v4707 = vpop.f32.mrb[0].mxu0
      %v4708 = vadd.f32 0.0, %v4707
      %v4709 = vpop.f32.mrb[0].mxu0
      %4710 = vdwg.mxu0
      %v4711 = vmul.f32 %v4585, %v4470
      %v4712 = vmul.f32 %v4588, %v4471
      %v4713 = vmul.f32 %v4593, %v4472
      %v4714 = vmul.f32 %v4596, %v4473
      %v4715 = vmul.f32 %v4601, %v4474
      %v4716 = vmul.f32 %v4604, %v4475
      %v4717 = vmul.f32 %v4609, %v4476
      %v4718 = vmul.f32 %v4612, %v4477
      %v4719 = vmul.f32 %v4617, %v4478
      %v4720 = vmul.f32 %v4620, %v4479
      %v4721 = vmul.f32 %v4625, %v4480
      %v4722 = vmul.f32 %v4628, %v4481
      %v4723 = vmul.f32 %v4633, %v4482
      %v4724 = vmul.f32 %v4636, %v4483
      %v4725 = vmul.f32 %v4641, %v4484
      %v4726 = vmul.f32 %v4644, %v4485
      %v4727 = vmul.f32 %v4649, %v4486
      %v4728 = vmul.f32 %v4652, %v4487
      %v4729 = vmul.f32 %v4657, %v4488
      %v4730 = vmul.f32 %v4660, %v4489
      %v4731 = vmul.f32 %v4665, %v4490
      %v4732 = vmul.f32 %v4668, %v4491
      %v4733 = vmul.f32 %v4673, %v4492
      %v4734 = vmul.f32 %v4676, %v4493
      %v4735 = vmul.f32 %v4681, %v4494
      %v4736 = vmul.f32 %v4684, %v4495
      %v4737 = vmul.f32 %v4689, %v4496
      %v4738 = vmul.f32 %v4692, %v4497
      %v4739 = vmul.f32 %v4697, %v4498
      %v4740 = vmul.f32 %v4700, %v4499
      %v4741 = vmul.f32 %v4705, %v4500
      %v4742 = vmul.f32 %v4708, %v4501
      %v4743 = vld [vmem:[%s11] sm:$0x1]
      %v4745 = vlaneseq
      %v4746 = vshrl.u32 %v4745, 7
      %v4747 = vsub.s32 0, %v4746
      %v4748 = vrot.slane %v4743, %v4747
      %v4750 = vadd.f32 %v4711, %v4748
      %v4751 = vadd.f32 %v4712, %v4748
      %v4752 = vadd.f32 %v4713, %v4748
      %v4753 = vadd.f32 %v4714, %v4748
      %v4754 = vadd.f32 %v4715, %v4748
      %v4755 = vadd.f32 %v4716, %v4748
      %v4756 = vadd.f32 %v4717, %v4748
      %v4757 = vadd.f32 %v4718, %v4748
      %v4758 = vadd.f32 %v4719, %v4748
      %v4759 = vadd.f32 %v4720, %v4748
      %v4760 = vadd.f32 %v4721, %v4748
      %v4761 = vadd.f32 %v4722, %v4748
      %v4762 = vadd.f32 %v4723, %v4748
      %v4763 = vadd.f32 %v4724, %v4748
      %v4764 = vadd.f32 %v4725, %v4748
      %v4765 = vadd.f32 %v4726, %v4748
      %v4766 = vadd.f32 %v4727, %v4748
      %v4767 = vadd.f32 %v4728, %v4748
      %v4768 = vadd.f32 %v4729, %v4748
      %v4769 = vadd.f32 %v4730, %v4748
      %v4770 = vadd.f32 %v4731, %v4748
      %v4771 = vadd.f32 %v4732, %v4748
      %v4772 = vadd.f32 %v4733, %v4748
      %v4773 = vadd.f32 %v4734, %v4748
      %v4774 = vadd.f32 %v4735, %v4748
      %v4775 = vadd.f32 %v4736, %v4748
      %v4776 = vadd.f32 %v4737, %v4748
      %v4777 = vadd.f32 %v4738, %v4748
      %v4778 = vadd.f32 %v4739, %v4748
      %v4779 = vadd.f32 %v4740, %v4748
      %v4780 = vadd.f32 %v4741, %v4748
      %v4781 = vadd.f32 %v4742, %v4748
      %v4782 = vmax.f32 %v4750, 0.0
      %v4783 = vmax.f32 %v4751, 0.0
      %v4784 = vmax.f32 %v4752, 0.0
      %v4785 = vmax.f32 %v4753, 0.0
      %v4786 = vmax.f32 %v4754, 0.0
      %v4787 = vmax.f32 %v4755, 0.0
      %v4788 = vmax.f32 %v4756, 0.0
      %v4789 = vmax.f32 %v4757, 0.0
      %v4790 = vmax.f32 %v4758, 0.0
      %v4791 = vmax.f32 %v4759, 0.0
      %v4792 = vmax.f32 %v4760, 0.0
      %v4793 = vmax.f32 %v4761, 0.0
      %v4794 = vmax.f32 %v4762, 0.0
      %v4795 = vmax.f32 %v4763, 0.0
      %v4796 = vmax.f32 %v4764, 0.0
      %v4797 = vmax.f32 %v4765, 0.0
      %v4798 = vmax.f32 %v4766, 0.0
      %v4799 = vmax.f32 %v4767, 0.0
      %v4800 = vmax.f32 %v4768, 0.0
      %v4801 = vmax.f32 %v4769, 0.0
      %v4802 = vmax.f32 %v4770, 0.0
      %v4803 = vmax.f32 %v4771, 0.0
      %v4804 = vmax.f32 %v4772, 0.0
      %v4805 = vmax.f32 %v4773, 0.0
      %v4806 = vmax.f32 %v4774, 0.0
      %v4807 = vmax.f32 %v4775, 0.0
      %v4808 = vmax.f32 %v4776, 0.0
      %v4809 = vmax.f32 %v4777, 0.0
      %v4810 = vmax.f32 %v4778, 0.0
      %v4811 = vmax.f32 %v4779, 0.0
      %v4812 = vmax.f32 %v4780, 0.0
      %v4813 = vmax.f32 %v4781, 0.0
      %v4814 = vpack.c.bf16 %v4783, %v4782
      %v4815 = vpack.c.bf16 %v4785, %v4784
      %v4816 = vpack.c.bf16 %v4787, %v4786
      %v4817 = vpack.c.bf16 %v4789, %v4788
      %v4818 = vpack.c.bf16 %v4791, %v4790
      %v4819 = vpack.c.bf16 %v4793, %v4792
      %v4820 = vpack.c.bf16 %v4795, %v4794
      %v4821 = vpack.c.bf16 %v4797, %v4796
      %v4822 = vpack.c.bf16 %v4799, %v4798
      %v4823 = vpack.c.bf16 %v4801, %v4800
      %v4824 = vpack.c.bf16 %v4803, %v4802
      %v4825 = vpack.c.bf16 %v4805, %v4804
      %v4826 = vpack.c.bf16 %v4807, %v4806
      %v4827 = vpack.c.bf16 %v4809, %v4808
      %v4828 = vpack.c.bf16 %v4811, %v4810
      %v4829 = vpack.c.bf16 %v4813, %v4812
      %s4830 = scalar_lea.vmem %s7, 64
      %v4831 = vld [vmem:[%s4830] sm:$0xf]
      %v4832 = vld [vmem:[%s4830 + $0x4] sm:$0xf]
      %v4833 = vld [vmem:[%s4830 + $0x8] sm:$0xf]
      %v4834 = vld [vmem:[%s4830 + $0xc] sm:$0xf]
      %v4835 = vld [vmem:[%s4830 + $0x10] sm:$0xf]
      %v4836 = vld [vmem:[%s4830 + $0x14] sm:$0xf]
      %v4837 = vld [vmem:[%s4830 + $0x18] sm:$0xf]
      %v4838 = vld [vmem:[%s4830 + $0x1c] sm:$0xf]
      %v4839 = vld [vmem:[%s4830 + $0x20] sm:$0xf]
      %v4840 = vld [vmem:[%s4830 + $0x24] sm:$0xf]
      %v4841 = vld [vmem:[%s4830 + $0x28] sm:$0xf]
      %v4842 = vld [vmem:[%s4830 + $0x2c] sm:$0xf]
      %v4843 = vld [vmem:[%s4830 + $0x30] sm:$0xf]
      %v4844 = vld [vmem:[%s4830 + $0x34] sm:$0xf]
      %v4845 = vld [vmem:[%s4830 + $0x38] sm:$0xf]
      %v4846 = vld [vmem:[%s4830 + $0x3c] sm:$0xf]
      %s4847 = scalar_lea.vmem %s8, 1
      %v4848 = vld [vmem:[%s4847] sm:$0x1]
      %v4850 = vlaneseq
      %v4851 = vshrl.u32 %v4850, 7
      %v4852 = vsub.s32 0, %v4851
      %v4853 = vrot.slane %v4848, %v4852
      %v4871 = vunpack.c.l.b16 %v4831
      %v4872 = vunpack.c.l.b16 %v4832
      %v4873 = vunpack.c.l.b16 %v4833
      %v4874 = vunpack.c.l.b16 %v4834
      %v4875 = vunpack.c.l.b16 %v4835
      %v4876 = vunpack.c.l.b16 %v4836
      %v4877 = vunpack.c.l.b16 %v4837
      %v4878 = vunpack.c.l.b16 %v4838
      %v4879 = vunpack.c.l.b16 %v4839
      %v4880 = vunpack.c.l.b16 %v4840
      %v4881 = vunpack.c.l.b16 %v4841
      %v4882 = vunpack.c.l.b16 %v4842
      %v4883 = vunpack.c.l.b16 %v4843
      %v4884 = vunpack.c.l.b16 %v4844
      %v4885 = vunpack.c.l.b16 %v4845
      %v4886 = vunpack.c.l.b16 %v4846
      %v4887 = vpack.c.b16 %v4872, %v4871
      %v4888 = vpack.c.b16 %v4874, %v4873
      %v4889 = vpack.c.b16 %v4876, %v4875
      %v4890 = vpack.c.b16 %v4878, %v4877
      %v4891 = vpack.c.b16 %v4880, %v4879
      %v4892 = vpack.c.b16 %v4882, %v4881
      %v4893 = vpack.c.b16 %v4884, %v4883
      %v4894 = vpack.c.b16 %v4886, %v4885
      %4903 = vmatprep.subr.bf16.mxu0 0
      %4904 = vmatpush1.bf16.msra.mxu0 %v4887
      %4905 = vmatprep.subr.bf16.mxu0 0
      %4906 = vmatpush1.bf16.msra.mxu0 %v4888
      %4907 = vmatprep.subr.bf16.mxu0 0
      %4908 = vmatpush1.bf16.msra.mxu0 %v4889
      %4909 = vmatprep.subr.bf16.mxu0 0
      %4910 = vmatpush1.bf16.msra.mxu0 %v4890
      %4911 = vmatprep.subr.bf16.mxu0 0
      %4912 = vmatpush1.bf16.msra.mxu0 %v4891
      %4913 = vmatprep.subr.bf16.mxu0 0
      %4914 = vmatpush1.bf16.msra.mxu0 %v4892
      %4915 = vmatprep.subr.bf16.mxu0 0
      %4916 = vmatpush1.bf16.msra.mxu0 %v4893
      %4917 = vmatprep.subr.bf16.mxu0 0
      %4918 = vmatpush1.bf16.msra.mxu0 %v4894
      %4919 = vmatprep.subr.bf16.mxu0 0
      %4920 = vmatpush1.bf16.msra.mxu0 0
      %4921 = vmatprep.subr.bf16.mxu0 0
      %4922 = vmatpush1.bf16.msra.mxu0 0
      %4923 = vmatprep.subr.bf16.mxu0 0
      %4924 = vmatpush1.bf16.msra.mxu0 0
      %4925 = vmatprep.subr.bf16.mxu0 0
      %4926 = vmatpush1.bf16.msra.mxu0 0
      %4927 = vmatprep.subr.bf16.mxu0 0
      %4928 = vmatpush1.bf16.msra.mxu0 0
      %4929 = vmatprep.subr.bf16.mxu0 0
      %4930 = vmatpush1.bf16.msra.mxu0 0
      %4931 = vmatprep.subr.bf16.mxu0 0
      %4932 = vmatpush1.bf16.msra.mxu0 0
      %4933 = vmatprep.subr.bf16.mxu0 0
      %4934 = vmatpush1.bf16.msra.mxu0 0
      %4935 = vmatprep.mubr.bf16.mxu0 0
      %4936 = vmatmul.mubr.bf16.gmra.mrb[0].mxu0 %v4814
      %v4937 = vpop.f32.mrb[0].mxu0
      %v4938 = vadd.f32 %v4853, %v4937
      %v4939 = vpop.f32.mrb[0].mxu0
      %v4940 = vpop.f32.mrb[0].mxu0
      %v4941 = vadd.f32 %v4853, %v4940
      %v4942 = vpop.f32.mrb[0].mxu0
      %4943 = vmatprep.mubr.bf16.mxu0 0
      %4944 = vmatmul.mubr.bf16.gmra.mrb[0].mxu0 %v4815
      %v4945 = vpop.f32.mrb[0].mxu0
      %v4946 = vadd.f32 %v4853, %v4945
      %v4947 = vpop.f32.mrb[0].mxu0
      %v4948 = vpop.f32.mrb[0].mxu0
      %v4949 = vadd.f32 %v4853, %v4948
      %v4950 = vpop.f32.mrb[0].mxu0
      %4951 = vmatprep.mubr.bf16.mxu0 0
      %4952 = vmatmul.mubr.bf16.gmra.mrb[0].mxu0 %v4816
      %v4953 = vpop.f32.mrb[0].mxu0
      %v4954 = vadd.f32 %v4853, %v4953
      %v4955 = vpop.f32.mrb[0].mxu0
      %v4956 = vpop.f32.mrb[0].mxu0
      %v4957 = vadd.f32 %v4853, %v4956
      %v4958 = vpop.f32.mrb[0].mxu0
      %4959 = vmatprep.mubr.bf16.mxu0 0
      %4960 = vmatmul.mubr.bf16.gmra.mrb[0].mxu0 %v4817
      %v4961 = vpop.f32.mrb[0].mxu0
      %v4962 = vadd.f32 %v4853, %v4961
      %v4963 = vpop.f32.mrb[0].mxu0
      %v4964 = vpop.f32.mrb[0].mxu0
      %v4965 = vadd.f32 %v4853, %v4964
      %v4966 = vpop.f32.mrb[0].mxu0
      %4967 = vmatprep.mubr.bf16.mxu0 0
      %4968 = vmatmul.mubr.bf16.gmra.mrb[0].mxu0 %v4818
      %v4969 = vpop.f32.mrb[0].mxu0
      %v4970 = vadd.f32 %v4853, %v4969
      %v4971 = vpop.f32.mrb[0].mxu0
      %v4972 = vpop.f32.mrb[0].mxu0
      %v4973 = vadd.f32 %v4853, %v4972
      %v4974 = vpop.f32.mrb[0].mxu0
      %4975 = vmatprep.mubr.bf16.mxu0 0
      %4976 = vmatmul.mubr.bf16.gmra.mrb[0].mxu0 %v4819
      %v4977 = vpop.f32.mrb[0].mxu0
      %v4978 = vadd.f32 %v4853, %v4977
      %v4979 = vpop.f32.mrb[0].mxu0
      %v4980 = vpop.f32.mrb[0].mxu0
      %v4981 = vadd.f32 %v4853, %v4980
      %v4982 = vpop.f32.mrb[0].mxu0
      %4983 = vmatprep.mubr.bf16.mxu0 0
      %4984 = vmatmul.mubr.bf16.gmra.mrb[0].mxu0 %v4820
      %v4985 = vpop.f32.mrb[0].mxu0
      %v4986 = vadd.f32 %v4853, %v4985
      %v4987 = vpop.f32.mrb[0].mxu0
      %v4988 = vpop.f32.mrb[0].mxu0
      %v4989 = vadd.f32 %v4853, %v4988
      %v4990 = vpop.f32.mrb[0].mxu0
      %4991 = vmatprep.mubr.bf16.mxu0 0
      %4992 = vmatmul.mubr.bf16.gmra.mrb[0].mxu0 %v4821
      %v4993 = vpop.f32.mrb[0].mxu0
      %v4994 = vadd.f32 %v4853, %v4993
      %v4995 = vpop.f32.mrb[0].mxu0
      %v4996 = vpop.f32.mrb[0].mxu0
      %v4997 = vadd.f32 %v4853, %v4996
      %v4998 = vpop.f32.mrb[0].mxu0
      %4999 = vmatprep.mubr.bf16.mxu0 0
      %5000 = vmatmul.mubr.bf16.gmra.mrb[0].mxu0 %v4822
      %v5001 = vpop.f32.mrb[0].mxu0
      %v5002 = vadd.f32 %v4853, %v5001
      %v5003 = vpop.f32.mrb[0].mxu0
      %v5004 = vpop.f32.mrb[0].mxu0
      %v5005 = vadd.f32 %v4853, %v5004
      %v5006 = vpop.f32.mrb[0].mxu0
      %5007 = vmatprep.mubr.bf16.mxu0 0
      %5008 = vmatmul.mubr.bf16.gmra.mrb[0].mxu0 %v4823
      %v5009 = vpop.f32.mrb[0].mxu0
      %v5010 = vadd.f32 %v4853, %v5009
      %v5011 = vpop.f32.mrb[0].mxu0
      %v5012 = vpop.f32.mrb[0].mxu0
      %v5013 = vadd.f32 %v4853, %v5012
      %v5014 = vpop.f32.mrb[0].mxu0
      %5015 = vmatprep.mubr.bf16.mxu0 0
      %5016 = vmatmul.mubr.bf16.gmra.mrb[0].mxu0 %v4824
      %v5017 = vpop.f32.mrb[0].mxu0
      %v5018 = vadd.f32 %v4853, %v5017
      %v5019 = vpop.f32.mrb[0].mxu0
      %v5020 = vpop.f32.mrb[0].mxu0
      %v5021 = vadd.f32 %v4853, %v5020
      %v5022 = vpop.f32.mrb[0].mxu0
      %5023 = vmatprep.mubr.bf16.mxu0 0
      %5024 = vmatmul.mubr.bf16.gmra.mrb[0].mxu0 %v4825
      %v5025 = vpop.f32.mrb[0].mxu0
      %v5026 = vadd.f32 %v4853, %v5025
      %v5027 = vpop.f32.mrb[0].mxu0
      %v5028 = vpop.f32.mrb[0].mxu0
      %v5029 = vadd.f32 %v4853, %v5028
      %v5030 = vpop.f32.mrb[0].mxu0
      %5031 = vmatprep.mubr.bf16.mxu0 0
      %5032 = vmatmul.mubr.bf16.gmra.mrb[0].mxu0 %v4826
      %v5033 = vpop.f32.mrb[0].mxu0
      %v5034 = vadd.f32 %v4853, %v5033
      %v5035 = vpop.f32.mrb[0].mxu0
      %v5036 = vpop.f32.mrb[0].mxu0
      %v5037 = vadd.f32 %v4853, %v5036
      %v5038 = vpop.f32.mrb[0].mxu0
      %5039 = vmatprep.mubr.bf16.mxu0 0
      %5040 = vmatmul.mubr.bf16.gmra.mrb[0].mxu0 %v4827
      %v5041 = vpop.f32.mrb[0].mxu0
      %v5042 = vadd.f32 %v4853, %v5041
      %v5043 = vpop.f32.mrb[0].mxu0
      %v5044 = vpop.f32.mrb[0].mxu0
      %v5045 = vadd.f32 %v4853, %v5044
      %v5046 = vpop.f32.mrb[0].mxu0
      %5047 = vmatprep.mubr.bf16.mxu0 0
      %5048 = vmatmul.mubr.bf16.gmra.mrb[0].mxu0 %v4828
      %v5049 = vpop.f32.mrb[0].mxu0
      %v5050 = vadd.f32 %v4853, %v5049
      %v5051 = vpop.f32.mrb[0].mxu0
      %v5052 = vpop.f32.mrb[0].mxu0
      %v5053 = vadd.f32 %v4853, %v5052
      %v5054 = vpop.f32.mrb[0].mxu0
      %5055 = vmatprep.mubr.bf16.mxu0 0
      %5056 = vmatmul.mubr.bf16.gmra.mrb[0].mxu0 %v4829
      %v5057 = vpop.f32.mrb[0].mxu0
      %v5058 = vadd.f32 %v4853, %v5057
      %v5059 = vpop.f32.mrb[0].mxu0
      %v5060 = vpop.f32.mrb[0].mxu0
      %v5061 = vadd.f32 %v4853, %v5060
      %v5062 = vpop.f32.mrb[0].mxu0
      %5063 = vdwg.mxu0
      %s5064 = scalar_lea.vmem %s10, 1
      %v5065 = vld [vmem:[%s5064] sm:$0x1]
      %v5067 = vlaneseq
      %v5068 = vshrl.u32 %v5067, 7
      %v5069 = vsub.s32 0, %v5068
      %v5070 = vrot.slane %v5065, %v5069
      %v5072 = vmul.f32 %v4938, %v5070
      %v5073 = vmul.f32 %v4941, %v5070
      %v5074 = vmul.f32 %v4946, %v5070
      %v5075 = vmul.f32 %v4949, %v5070
      %v5076 = vmul.f32 %v4954, %v5070
      %v5077 = vmul.f32 %v4957, %v5070
      %v5078 = vmul.f32 %v4962, %v5070
      %v5079 = vmul.f32 %v4965, %v5070
      %v5080 = vmul.f32 %v4970, %v5070
      %v5081 = vmul.f32 %v4973, %v5070
      %v5082 = vmul.f32 %v4978, %v5070
      %v5083 = vmul.f32 %v4981, %v5070
      %v5084 = vmul.f32 %v4986, %v5070
      %v5085 = vmul.f32 %v4989, %v5070
      %v5086 = vmul.f32 %v4994, %v5070
      %v5087 = vmul.f32 %v4997, %v5070
      %v5088 = vmul.f32 %v5002, %v5070
      %v5089 = vmul.f32 %v5005, %v5070
      %v5090 = vmul.f32 %v5010, %v5070
      %v5091 = vmul.f32 %v5013, %v5070
      %v5092 = vmul.f32 %v5018, %v5070
      %v5093 = vmul.f32 %v5021, %v5070
      %v5094 = vmul.f32 %v5026, %v5070
      %v5095 = vmul.f32 %v5029, %v5070
      %v5096 = vmul.f32 %v5034, %v5070
      %v5097 = vmul.f32 %v5037, %v5070
      %v5098 = vmul.f32 %v5042, %v5070
      %v5099 = vmul.f32 %v5045, %v5070
      %v5100 = vmul.f32 %v5050, %v5070
      %v5101 = vmul.f32 %v5053, %v5070
      %v5102 = vmul.f32 %v5058, %v5070
      %v5103 = vmul.f32 %v5061, %v5070
      %5104 = vadd.xlane.f32.xlu0 %v5072
      %v5105 = vpop.xlane.xlu0 %5104
      %5106 = vadd.xlane.f32.xlu0 %v5073
      %v5107 = vpop.xlane.xlu0 %5106
      %5108 = vadd.xlane.f32.xlu0 %v5074
      %v5109 = vpop.xlane.xlu0 %5108
      %5110 = vadd.xlane.f32.xlu0 %v5075
      %v5111 = vpop.xlane.xlu0 %5110
      %5112 = vadd.xlane.f32.xlu0 %v5076
      %v5113 = vpop.xlane.xlu0 %5112
      %5114 = vadd.xlane.f32.xlu0 %v5077
      %v5115 = vpop.xlane.xlu0 %5114
      %5116 = vadd.xlane.f32.xlu0 %v5078
      %v5117 = vpop.xlane.xlu0 %5116
      %5118 = vadd.xlane.f32.xlu0 %v5079
      %v5119 = vpop.xlane.xlu0 %5118
      %5120 = vadd.xlane.f32.xlu0 %v5080
      %v5121 = vpop.xlane.xlu0 %5120
      %5122 = vadd.xlane.f32.xlu0 %v5081
      %v5123 = vpop.xlane.xlu0 %5122
      %5124 = vadd.xlane.f32.xlu0 %v5082
      %v5125 = vpop.xlane.xlu0 %5124
      %5126 = vadd.xlane.f32.xlu0 %v5083
      %v5127 = vpop.xlane.xlu0 %5126
      %5128 = vadd.xlane.f32.xlu0 %v5084
      %v5129 = vpop.xlane.xlu0 %5128
      %5130 = vadd.xlane.f32.xlu0 %v5085
      %v5131 = vpop.xlane.xlu0 %5130
      %5132 = vadd.xlane.f32.xlu0 %v5086
      %v5133 = vpop.xlane.xlu0 %5132
      %5134 = vadd.xlane.f32.xlu0 %v5087
      %v5135 = vpop.xlane.xlu0 %5134
      %5136 = vadd.xlane.f32.xlu0 %v5088
      %v5137 = vpop.xlane.xlu0 %5136
      %5138 = vadd.xlane.f32.xlu0 %v5089
      %v5139 = vpop.xlane.xlu0 %5138
      %5140 = vadd.xlane.f32.xlu0 %v5090
      %v5141 = vpop.xlane.xlu0 %5140
      %5142 = vadd.xlane.f32.xlu0 %v5091
      %v5143 = vpop.xlane.xlu0 %5142
      %5144 = vadd.xlane.f32.xlu0 %v5092
      %v5145 = vpop.xlane.xlu0 %5144
      %5146 = vadd.xlane.f32.xlu0 %v5093
      %v5147 = vpop.xlane.xlu0 %5146
      %5148 = vadd.xlane.f32.xlu0 %v5094
      %v5149 = vpop.xlane.xlu0 %5148
      %5150 = vadd.xlane.f32.xlu0 %v5095
      %v5151 = vpop.xlane.xlu0 %5150
      %5152 = vadd.xlane.f32.xlu0 %v5096
      %v5153 = vpop.xlane.xlu0 %5152
      %5154 = vadd.xlane.f32.xlu0 %v5097
      %v5155 = vpop.xlane.xlu0 %5154
      %5156 = vadd.xlane.f32.xlu0 %v5098
      %v5157 = vpop.xlane.xlu0 %5156
      %5158 = vadd.xlane.f32.xlu0 %v5099
      %v5159 = vpop.xlane.xlu0 %5158
      %5160 = vadd.xlane.f32.xlu0 %v5100
      %v5161 = vpop.xlane.xlu0 %5160
      %5162 = vadd.xlane.f32.xlu0 %v5101
      %v5163 = vpop.xlane.xlu0 %5162
      %5164 = vadd.xlane.f32.xlu0 %v5102
      %v5165 = vpop.xlane.xlu0 %5164
      %5166 = vadd.xlane.f32.xlu0 %v5103
      %v5167 = vpop.xlane.xlu0 %5166
      %s5168 = scalar_lea.vmem %s9, 1
      %v5169 = vld [vmem:[%s5168] sm:$0x1]
      %5170 = vmatprep.subr.mxu0 0.0
      %5171 = vmatpush1.xpose.msra.mxu0 %v4938
      %5172 = vmatprep.subr.mxu0 0.0
      %5173 = vmatpush1.xpose.msra.mxu0 %v4941
      %5174 = vmatprep.subr.mxu0 0.0
      %5175 = vmatpush1.xpose.msra.mxu0 %v4946
      %5176 = vmatprep.subr.mxu0 0.0
      %5177 = vmatpush1.xpose.msra.mxu0 %v4949
      %5178 = vmatprep.subr.mxu0 0.0
      %5179 = vmatpush1.xpose.msra.mxu0 %v4954
      %5180 = vmatprep.subr.mxu0 0.0
      %5181 = vmatpush1.xpose.msra.mxu0 %v4957
      %5182 = vmatprep.subr.mxu0 0.0
      %5183 = vmatpush1.xpose.msra.mxu0 %v4962
      %5184 = vmatprep.subr.mxu0 0.0
      %5185 = vmatpush1.xpose.msra.mxu0 %v4965
      %5186 = vmatprep.subr.mxu0 0.0
      %5187 = vmatpush1.xpose.msra.mxu0 %v4970
      %5188 = vmatprep.subr.mxu0 0.0
      %5189 = vmatpush1.xpose.msra.mxu0 %v4973
      %5190 = vmatprep.subr.mxu0 0.0
      %5191 = vmatpush1.xpose.msra.mxu0 %v4978
      %5192 = vmatprep.subr.mxu0 0.0
      %5193 = vmatpush1.xpose.msra.mxu0 %v4981
      %5194 = vmatprep.subr.mxu0 0.0
      %5195 = vmatpush1.xpose.msra.mxu0 %v4986
      %5196 = vmatprep.subr.mxu0 0.0
      %5197 = vmatpush1.xpose.msra.mxu0 %v4989
      %5198 = vmatprep.subr.mxu0 0.0
      %5199 = vmatpush1.xpose.msra.mxu0 %v4994
      %5200 = vmatprep.subr.mxu0 0.0
      %5201 = vmatpush1.xpose.msra.mxu0 %v4997
      %5202 = vmatprep.subr.mxu0 0.0
      %5203 = vmatpush1.xpose.msra.mxu0 %v5002
      %5204 = vmatprep.subr.mxu0 0.0
      %5205 = vmatpush1.xpose.msra.mxu0 %v5005
      %5206 = vmatprep.subr.mxu0 0.0
      %5207 = vmatpush1.xpose.msra.mxu0 %v5010
      %5208 = vmatprep.subr.mxu0 0.0
      %5209 = vmatpush1.xpose.msra.mxu0 %v5013
      %5210 = vmatprep.subr.mxu0 0.0
      %5211 = vmatpush1.xpose.msra.mxu0 %v5018
      %5212 = vmatprep.subr.mxu0 0.0
      %5213 = vmatpush1.xpose.msra.mxu0 %v5021
      %5214 = vmatprep.subr.mxu0 0.0
      %5215 = vmatpush1.xpose.msra.mxu0 %v5026
      %5216 = vmatprep.subr.mxu0 0.0
      %5217 = vmatpush1.xpose.msra.mxu0 %v5029
      %5218 = vmatprep.subr.mxu0 0.0
      %5219 = vmatpush1.xpose.msra.mxu0 %v5034
      %5220 = vmatprep.subr.mxu0 0.0
      %5221 = vmatpush1.xpose.msra.mxu0 %v5037
      %5222 = vmatprep.subr.mxu0 0.0
      %5223 = vmatpush1.xpose.msra.mxu0 %v5042
      %5224 = vmatprep.subr.mxu0 0.0
      %5225 = vmatpush1.xpose.msra.mxu0 %v5045
      %5226 = vmatprep.subr.mxu0 0.0
      %5227 = vmatpush1.xpose.msra.mxu0 %v5050
      %5228 = vmatprep.subr.mxu0 0.0
      %5229 = vmatpush1.xpose.msra.mxu0 %v5053
      %5230 = vmatprep.subr.mxu0 0.0
      %5231 = vmatpush1.xpose.msra.mxu0 %v5058
      %5232 = vmatprep.subr.mxu0 0.0
      %5233 = vmatpush1.xpose.msra.mxu0 %v5061
      %5234 = vmatprep.mubr.f32.mxu0 0.0
      %5235 = vmatmul.mubr.f32.gmra.mrb[0].mxu0 %v5169
      %v5236 = vpop.f32.mrb[0].mxu0
      %v5237 = vadd.f32 0.0, %v5236
      %v5238 = vpop.f32.mrb[0].mxu0
      %v5239 = vadd.f32 0.0, %v5238
      %5240 = vdwg.mxu0
      %v5241 = vlaneseq
      %v5242 = vshrl.u32 %v5241, 7
      %v5243 = vsub.s32 0, %v5242
      %v5244 = vrot.slane %v5237, %v5243
      %v5245 = vlaneseq
      %v5246 = vshrl.u32 %v5245, 7
      %v5247 = vsub.s32 0, %v5246
      %v5248 = vrot.slane %v5239, %v5247
      %v5249 = vadd.f32 %v5105, %v5244
      %v5250 = vadd.f32 %v5105, %v5248
      %v5251 = vadd.f32 %v5107, %v5244
      %v5252 = vadd.f32 %v5107, %v5248
      %v5253 = vadd.f32 %v5109, %v5244
      %v5254 = vadd.f32 %v5109, %v5248
      %v5255 = vadd.f32 %v5111, %v5244
      %v5256 = vadd.f32 %v5111, %v5248
      %v5257 = vadd.f32 %v5113, %v5244
      %v5258 = vadd.f32 %v5113, %v5248
      %v5259 = vadd.f32 %v5115, %v5244
      %v5260 = vadd.f32 %v5115, %v5248
      %v5261 = vadd.f32 %v5117, %v5244
      %v5262 = vadd.f32 %v5117, %v5248
      %v5263 = vadd.f32 %v5119, %v5244
      %v5264 = vadd.f32 %v5119, %v5248
      %v5265 = vadd.f32 %v5121, %v5244
      %v5266 = vadd.f32 %v5121, %v5248
      %v5267 = vadd.f32 %v5123, %v5244
      %v5268 = vadd.f32 %v5123, %v5248
      %v5269 = vadd.f32 %v5125, %v5244
      %v5270 = vadd.f32 %v5125, %v5248
      %v5271 = vadd.f32 %v5127, %v5244
      %v5272 = vadd.f32 %v5127, %v5248
      %v5273 = vadd.f32 %v5129, %v5244
      %v5274 = vadd.f32 %v5129, %v5248
      %v5275 = vadd.f32 %v5131, %v5244
      %v5276 = vadd.f32 %v5131, %v5248
      %v5277 = vadd.f32 %v5133, %v5244
      %v5278 = vadd.f32 %v5133, %v5248
      %v5279 = vadd.f32 %v5135, %v5244
      %v5280 = vadd.f32 %v5135, %v5248
      %v5281 = vadd.f32 %v5137, %v5244
      %v5282 = vadd.f32 %v5137, %v5248
      %v5283 = vadd.f32 %v5139, %v5244
      %v5284 = vadd.f32 %v5139, %v5248
      %v5285 = vadd.f32 %v5141, %v5244
      %v5286 = vadd.f32 %v5141, %v5248
      %v5287 = vadd.f32 %v5143, %v5244
      %v5288 = vadd.f32 %v5143, %v5248
      %v5289 = vadd.f32 %v5145, %v5244
      %v5290 = vadd.f32 %v5145, %v5248
      %v5291 = vadd.f32 %v5147, %v5244
      %v5292 = vadd.f32 %v5147, %v5248
      %v5293 = vadd.f32 %v5149, %v5244
      %v5294 = vadd.f32 %v5149, %v5248
      %v5295 = vadd.f32 %v5151, %v5244
      %v5296 = vadd.f32 %v5151, %v5248
      %v5297 = vadd.f32 %v5153, %v5244
      %v5298 = vadd.f32 %v5153, %v5248
      %v5299 = vadd.f32 %v5155, %v5244
      %v5300 = vadd.f32 %v5155, %v5248
      %v5301 = vadd.f32 %v5157, %v5244
      %v5302 = vadd.f32 %v5157, %v5248
      %v5303 = vadd.f32 %v5159, %v5244
      %v5304 = vadd.f32 %v5159, %v5248
      %v5305 = vadd.f32 %v5161, %v5244
      %v5306 = vadd.f32 %v5161, %v5248
      %v5307 = vadd.f32 %v5163, %v5244
      %v5308 = vadd.f32 %v5163, %v5248
      %v5309 = vadd.f32 %v5165, %v5244
      %v5310 = vadd.f32 %v5165, %v5248
      %v5311 = vadd.f32 %v5167, %v5244
      %v5312 = vadd.f32 %v5167, %v5248
      %vm5313 = vcmp.gt.f32.partialorder %v5249, 0.0
      %vm5314 = vcmp.gt.f32.partialorder %v5250, 0.0
      %vm5315 = vcmp.gt.f32.partialorder %v5251, 0.0
      %vm5316 = vcmp.gt.f32.partialorder %v5252, 0.0
      %vm5317 = vcmp.gt.f32.partialorder %v5253, 0.0
      %vm5318 = vcmp.gt.f32.partialorder %v5254, 0.0
      %vm5319 = vcmp.gt.f32.partialorder %v5255, 0.0
      %vm5320 = vcmp.gt.f32.partialorder %v5256, 0.0
      %vm5321 = vcmp.gt.f32.partialorder %v5257, 0.0
      %vm5322 = vcmp.gt.f32.partialorder %v5258, 0.0
      %vm5323 = vcmp.gt.f32.partialorder %v5259, 0.0
      %vm5324 = vcmp.gt.f32.partialorder %v5260, 0.0
      %vm5325 = vcmp.gt.f32.partialorder %v5261, 0.0
      %vm5326 = vcmp.gt.f32.partialorder %v5262, 0.0
      %vm5327 = vcmp.gt.f32.partialorder %v5263, 0.0
      %vm5328 = vcmp.gt.f32.partialorder %v5264, 0.0
      %vm5329 = vcmp.gt.f32.partialorder %v5265, 0.0
      %vm5330 = vcmp.gt.f32.partialorder %v5266, 0.0
      %vm5331 = vcmp.gt.f32.partialorder %v5267, 0.0
      %vm5332 = vcmp.gt.f32.partialorder %v5268, 0.0
      %vm5333 = vcmp.gt.f32.partialorder %v5269, 0.0
      %vm5334 = vcmp.gt.f32.partialorder %v5270, 0.0
      %vm5335 = vcmp.gt.f32.partialorder %v5271, 0.0
      %vm5336 = vcmp.gt.f32.partialorder %v5272, 0.0
      %vm5337 = vcmp.gt.f32.partialorder %v5273, 0.0
      %vm5338 = vcmp.gt.f32.partialorder %v5274, 0.0
      %vm5339 = vcmp.gt.f32.partialorder %v5275, 0.0
      %vm5340 = vcmp.gt.f32.partialorder %v5276, 0.0
      %vm5341 = vcmp.gt.f32.partialorder %v5277, 0.0
      %vm5342 = vcmp.gt.f32.partialorder %v5278, 0.0
      %vm5343 = vcmp.gt.f32.partialorder %v5279, 0.0
      %vm5344 = vcmp.gt.f32.partialorder %v5280, 0.0
      %vm5345 = vcmp.gt.f32.partialorder %v5281, 0.0
      %vm5346 = vcmp.gt.f32.partialorder %v5282, 0.0
      %vm5347 = vcmp.gt.f32.partialorder %v5283, 0.0
      %vm5348 = vcmp.gt.f32.partialorder %v5284, 0.0
      %vm5349 = vcmp.gt.f32.partialorder %v5285, 0.0
      %vm5350 = vcmp.gt.f32.partialorder %v5286, 0.0
      %vm5351 = vcmp.gt.f32.partialorder %v5287, 0.0
      %vm5352 = vcmp.gt.f32.partialorder %v5288, 0.0
      %vm5353 = vcmp.gt.f32.partialorder %v5289, 0.0
      %vm5354 = vcmp.gt.f32.partialorder %v5290, 0.0
      %vm5355 = vcmp.gt.f32.partialorder %v5291, 0.0
      %vm5356 = vcmp.gt.f32.partialorder %v5292, 0.0
      %vm5357 = vcmp.gt.f32.partialorder %v5293, 0.0
      %vm5358 = vcmp.gt.f32.partialorder %v5294, 0.0
      %vm5359 = vcmp.gt.f32.partialorder %v5295, 0.0
      %vm5360 = vcmp.gt.f32.partialorder %v5296, 0.0
      %vm5361 = vcmp.gt.f32.partialorder %v5297, 0.0
      %vm5362 = vcmp.gt.f32.partialorder %v5298, 0.0
      %vm5363 = vcmp.gt.f32.partialorder %v5299, 0.0
      %vm5364 = vcmp.gt.f32.partialorder %v5300, 0.0
      %vm5365 = vcmp.gt.f32.partialorder %v5301, 0.0
      %vm5366 = vcmp.gt.f32.partialorder %v5302, 0.0
      %vm5367 = vcmp.gt.f32.partialorder %v5303, 0.0
      %vm5368 = vcmp.gt.f32.partialorder %v5304, 0.0
      %vm5369 = vcmp.gt.f32.partialorder %v5305, 0.0
      %vm5370 = vcmp.gt.f32.partialorder %v5306, 0.0
      %vm5371 = vcmp.gt.f32.partialorder %v5307, 0.0
      %vm5372 = vcmp.gt.f32.partialorder %v5308, 0.0
      %vm5373 = vcmp.gt.f32.partialorder %v5309, 0.0
      %vm5374 = vcmp.gt.f32.partialorder %v5310, 0.0
      %vm5375 = vcmp.gt.f32.partialorder %v5311, 0.0
      %vm5376 = vcmp.gt.f32.partialorder %v5312, 0.0
      %v5377 = vmul.f32 %v5249, 0.2
      %v5378 = vmul.f32 %v5250, 0.2
      %v5379 = vmul.f32 %v5251, 0.2
      %v5380 = vmul.f32 %v5252, 0.2
      %v5381 = vmul.f32 %v5253, 0.2
      %v5382 = vmul.f32 %v5254, 0.2
      %v5383 = vmul.f32 %v5255, 0.2
      %v5384 = vmul.f32 %v5256, 0.2
      %v5385 = vmul.f32 %v5257, 0.2
      %v5386 = vmul.f32 %v5258, 0.2
      %v5387 = vmul.f32 %v5259, 0.2
      %v5388 = vmul.f32 %v5260, 0.2
      %v5389 = vmul.f32 %v5261, 0.2
      %v5390 = vmul.f32 %v5262, 0.2
      %v5391 = vmul.f32 %v5263, 0.2
      %v5392 = vmul.f32 %v5264, 0.2
      %v5393 = vmul.f32 %v5265, 0.2
      %v5394 = vmul.f32 %v5266, 0.2
      %v5395 = vmul.f32 %v5267, 0.2
      %v5396 = vmul.f32 %v5268, 0.2
      %v5397 = vmul.f32 %v5269, 0.2
      %v5398 = vmul.f32 %v5270, 0.2
      %v5399 = vmul.f32 %v5271, 0.2
      %v5400 = vmul.f32 %v5272, 0.2
      %v5401 = vmul.f32 %v5273, 0.2
      %v5402 = vmul.f32 %v5274, 0.2
      %v5403 = vmul.f32 %v5275, 0.2
      %v5404 = vmul.f32 %v5276, 0.2
      %v5405 = vmul.f32 %v5277, 0.2
      %v5406 = vmul.f32 %v5278, 0.2
      %v5407 = vmul.f32 %v5279, 0.2
      %v5408 = vmul.f32 %v5280, 0.2
      %v5409 = vmul.f32 %v5281, 0.2
      %v5410 = vmul.f32 %v5282, 0.2
      %v5411 = vmul.f32 %v5283, 0.2
      %v5412 = vmul.f32 %v5284, 0.2
      %v5413 = vmul.f32 %v5285, 0.2
      %v5414 = vmul.f32 %v5286, 0.2
      %v5415 = vmul.f32 %v5287, 0.2
      %v5416 = vmul.f32 %v5288, 0.2
      %v5417 = vmul.f32 %v5289, 0.2
      %v5418 = vmul.f32 %v5290, 0.2
      %v5419 = vmul.f32 %v5291, 0.2
      %v5420 = vmul.f32 %v5292, 0.2
      %v5421 = vmul.f32 %v5293, 0.2
      %v5422 = vmul.f32 %v5294, 0.2
      %v5423 = vmul.f32 %v5295, 0.2
      %v5424 = vmul.f32 %v5296, 0.2
      %v5425 = vmul.f32 %v5297, 0.2
      %v5426 = vmul.f32 %v5298, 0.2
      %v5427 = vmul.f32 %v5299, 0.2
      %v5428 = vmul.f32 %v5300, 0.2
      %v5429 = vmul.f32 %v5301, 0.2
      %v5430 = vmul.f32 %v5302, 0.2
      %v5431 = vmul.f32 %v5303, 0.2
      %v5432 = vmul.f32 %v5304, 0.2
      %v5433 = vmul.f32 %v5305, 0.2
      %v5434 = vmul.f32 %v5306, 0.2
      %v5435 = vmul.f32 %v5307, 0.2
      %v5436 = vmul.f32 %v5308, 0.2
      %v5437 = vmul.f32 %v5309, 0.2
      %v5438 = vmul.f32 %v5310, 0.2
      %v5439 = vmul.f32 %v5311, 0.2
      %v5440 = vmul.f32 %v5312, 0.2
      %v5441 = vsel %vm5313, %v5249, %v5377
      %v5442 = vsel %vm5314, %v5250, %v5378
      %v5443 = vsel %vm5315, %v5251, %v5379
      %v5444 = vsel %vm5316, %v5252, %v5380
      %v5445 = vsel %vm5317, %v5253, %v5381
      %v5446 = vsel %vm5318, %v5254, %v5382
      %v5447 = vsel %vm5319, %v5255, %v5383
      %v5448 = vsel %vm5320, %v5256, %v5384
      %v5449 = vsel %vm5321, %v5257, %v5385
      %v5450 = vsel %vm5322, %v5258, %v5386
      %v5451 = vsel %vm5323, %v5259, %v5387
      %v5452 = vsel %vm5324, %v5260, %v5388
      %v5453 = vsel %vm5325, %v5261, %v5389
      %v5454 = vsel %vm5326, %v5262, %v5390
      %v5455 = vsel %vm5327, %v5263, %v5391
      %v5456 = vsel %vm5328, %v5264, %v5392
      %v5457 = vsel %vm5329, %v5265, %v5393
      %v5458 = vsel %vm5330, %v5266, %v5394
      %v5459 = vsel %vm5331, %v5267, %v5395
      %v5460 = vsel %vm5332, %v5268, %v5396
      %v5461 = vsel %vm5333, %v5269, %v5397
      %v5462 = vsel %vm5334, %v5270, %v5398
      %v5463 = vsel %vm5335, %v5271, %v5399
      %v5464 = vsel %vm5336, %v5272, %v5400
      %v5465 = vsel %vm5337, %v5273, %v5401
      %v5466 = vsel %vm5338, %v5274, %v5402
      %v5467 = vsel %vm5339, %v5275, %v5403
      %v5468 = vsel %vm5340, %v5276, %v5404
      %v5469 = vsel %vm5341, %v5277, %v5405
      %v5470 = vsel %vm5342, %v5278, %v5406
      %v5471 = vsel %vm5343, %v5279, %v5407
      %v5472 = vsel %vm5344, %v5280, %v5408
      %v5473 = vsel %vm5345, %v5281, %v5409
      %v5474 = vsel %vm5346, %v5282, %v5410
      %v5475 = vsel %vm5347, %v5283, %v5411
      %v5476 = vsel %vm5348, %v5284, %v5412
      %v5477 = vsel %vm5349, %v5285, %v5413
      %v5478 = vsel %vm5350, %v5286, %v5414
      %v5479 = vsel %vm5351, %v5287, %v5415
      %v5480 = vsel %vm5352, %v5288, %v5416
      %v5481 = vsel %vm5353, %v5289, %v5417
      %v5482 = vsel %vm5354, %v5290, %v5418
      %v5483 = vsel %vm5355, %v5291, %v5419
      %v5484 = vsel %vm5356, %v5292, %v5420
      %v5485 = vsel %vm5357, %v5293, %v5421
      %v5486 = vsel %vm5358, %v5294, %v5422
      %v5487 = vsel %vm5359, %v5295, %v5423
      %v5488 = vsel %vm5360, %v5296, %v5424
      %v5489 = vsel %vm5361, %v5297, %v5425
      %v5490 = vsel %vm5362, %v5298, %v5426
      %v5491 = vsel %vm5363, %v5299, %v5427
      %v5492 = vsel %vm5364, %v5300, %v5428
      %v5493 = vsel %vm5365, %v5301, %v5429
      %v5494 = vsel %vm5366, %v5302, %v5430
      %v5495 = vsel %vm5367, %v5303, %v5431
      %v5496 = vsel %vm5368, %v5304, %v5432
      %v5497 = vsel %vm5369, %v5305, %v5433
      %v5498 = vsel %vm5370, %v5306, %v5434
      %v5499 = vsel %vm5371, %v5307, %v5435
      %v5500 = vsel %vm5372, %v5308, %v5436
      %v5501 = vsel %vm5373, %v5309, %v5437
      %v5502 = vsel %vm5374, %v5310, %v5438
      %v5503 = vsel %vm5375, %v5311, %v5439
      %v5504 = vsel %vm5376, %v5312, %v5440
      %v5505 = vsel %vm3830, %v5441, -1e+30
      %v5506 = vsel %vm3831, %v5442, -1e+30
      %v5507 = vsel %vm3832, %v5443, -1e+30
      %v5508 = vsel %vm3833, %v5444, -1e+30
      %v5509 = vsel %vm3834, %v5445, -1e+30
      %v5510 = vsel %vm3835, %v5446, -1e+30
      %v5511 = vsel %vm3836, %v5447, -1e+30
      %v5512 = vsel %vm3837, %v5448, -1e+30
      %v5513 = vsel %vm3838, %v5449, -1e+30
      %v5514 = vsel %vm3839, %v5450, -1e+30
      %v5515 = vsel %vm3840, %v5451, -1e+30
      %v5516 = vsel %vm3841, %v5452, -1e+30
      %v5517 = vsel %vm3842, %v5453, -1e+30
      %v5518 = vsel %vm3843, %v5454, -1e+30
      %v5519 = vsel %vm3844, %v5455, -1e+30
      %v5520 = vsel %vm3845, %v5456, -1e+30
      %v5521 = vsel %vm3846, %v5457, -1e+30
      %v5522 = vsel %vm3847, %v5458, -1e+30
      %v5523 = vsel %vm3848, %v5459, -1e+30
      %v5524 = vsel %vm3849, %v5460, -1e+30
      %v5525 = vsel %vm3850, %v5461, -1e+30
      %v5526 = vsel %vm3851, %v5462, -1e+30
      %v5527 = vsel %vm3852, %v5463, -1e+30
      %v5528 = vsel %vm3853, %v5464, -1e+30
      %v5529 = vsel %vm3854, %v5465, -1e+30
      %v5530 = vsel %vm3855, %v5466, -1e+30
      %v5531 = vsel %vm3856, %v5467, -1e+30
      %v5532 = vsel %vm3857, %v5468, -1e+30
      %v5533 = vsel %vm3858, %v5469, -1e+30
      %v5534 = vsel %vm3859, %v5470, -1e+30
      %v5535 = vsel %vm3860, %v5471, -1e+30
      %v5536 = vsel %vm3861, %v5472, -1e+30
      %v5537 = vsel %vm3862, %v5473, -1e+30
      %v5538 = vsel %vm3863, %v5474, -1e+30
      %v5539 = vsel %vm3864, %v5475, -1e+30
      %v5540 = vsel %vm3865, %v5476, -1e+30
      %v5541 = vsel %vm3866, %v5477, -1e+30
      %v5542 = vsel %vm3867, %v5478, -1e+30
      %v5543 = vsel %vm3868, %v5479, -1e+30
      %v5544 = vsel %vm3869, %v5480, -1e+30
      %v5545 = vsel %vm3870, %v5481, -1e+30
      %v5546 = vsel %vm3871, %v5482, -1e+30
      %v5547 = vsel %vm3872, %v5483, -1e+30
      %v5548 = vsel %vm3873, %v5484, -1e+30
      %v5549 = vsel %vm3874, %v5485, -1e+30
      %v5550 = vsel %vm3875, %v5486, -1e+30
      %v5551 = vsel %vm3876, %v5487, -1e+30
      %v5552 = vsel %vm3877, %v5488, -1e+30
      %v5553 = vsel %vm3878, %v5489, -1e+30
      %v5554 = vsel %vm3879, %v5490, -1e+30
      %v5555 = vsel %vm3880, %v5491, -1e+30
      %v5556 = vsel %vm3881, %v5492, -1e+30
      %v5557 = vsel %vm3882, %v5493, -1e+30
      %v5558 = vsel %vm3883, %v5494, -1e+30
      %v5559 = vsel %vm3884, %v5495, -1e+30
      %v5560 = vsel %vm3885, %v5496, -1e+30
      %v5561 = vsel %vm3886, %v5497, -1e+30
      %v5562 = vsel %vm3887, %v5498, -1e+30
      %v5563 = vsel %vm3888, %v5499, -1e+30
      %v5564 = vsel %vm3889, %v5500, -1e+30
      %v5565 = vsel %vm3890, %v5501, -1e+30
      %v5566 = vsel %vm3891, %v5502, -1e+30
      %v5567 = vsel %vm3892, %v5503, -1e+30
      %v5568 = vsel %vm3893, %v5504, -1e+30
      %v5569 = vmax.f32 %v5505, %v5506
      %5570 = vmax.xlane.f32.xlu0 %v5569
      %v5571 = vpop.xlane.xlu0 %5570
      %v5572 = vmax.f32 %v5507, %v5508
      %5573 = vmax.xlane.f32.xlu0 %v5572
      %v5574 = vpop.xlane.xlu0 %5573
      %v5575 = vmax.f32 %v5509, %v5510
      %5576 = vmax.xlane.f32.xlu0 %v5575
      %v5577 = vpop.xlane.xlu0 %5576
      %v5578 = vmax.f32 %v5511, %v5512
      %5579 = vmax.xlane.f32.xlu0 %v5578
      %v5580 = vpop.xlane.xlu0 %5579
      %v5581 = vmax.f32 %v5513, %v5514
      %5582 = vmax.xlane.f32.xlu0 %v5581
      %v5583 = vpop.xlane.xlu0 %5582
      %v5584 = vmax.f32 %v5515, %v5516
      %5585 = vmax.xlane.f32.xlu0 %v5584
      %v5586 = vpop.xlane.xlu0 %5585
      %v5587 = vmax.f32 %v5517, %v5518
      %5588 = vmax.xlane.f32.xlu0 %v5587
      %v5589 = vpop.xlane.xlu0 %5588
      %v5590 = vmax.f32 %v5519, %v5520
      %5591 = vmax.xlane.f32.xlu0 %v5590
      %v5592 = vpop.xlane.xlu0 %5591
      %v5593 = vmax.f32 %v5521, %v5522
      %5594 = vmax.xlane.f32.xlu0 %v5593
      %v5595 = vpop.xlane.xlu0 %5594
      %v5596 = vmax.f32 %v5523, %v5524
      %5597 = vmax.xlane.f32.xlu0 %v5596
      %v5598 = vpop.xlane.xlu0 %5597
      %v5599 = vmax.f32 %v5525, %v5526
      %5600 = vmax.xlane.f32.xlu0 %v5599
      %v5601 = vpop.xlane.xlu0 %5600
      %v5602 = vmax.f32 %v5527, %v5528
      %5603 = vmax.xlane.f32.xlu0 %v5602
      %v5604 = vpop.xlane.xlu0 %5603
      %v5605 = vmax.f32 %v5529, %v5530
      %5606 = vmax.xlane.f32.xlu0 %v5605
      %v5607 = vpop.xlane.xlu0 %5606
      %v5608 = vmax.f32 %v5531, %v5532
      %5609 = vmax.xlane.f32.xlu0 %v5608
      %v5610 = vpop.xlane.xlu0 %5609
      %v5611 = vmax.f32 %v5533, %v5534
      %5612 = vmax.xlane.f32.xlu0 %v5611
      %v5613 = vpop.xlane.xlu0 %5612
      %v5614 = vmax.f32 %v5535, %v5536
      %5615 = vmax.xlane.f32.xlu0 %v5614
      %v5616 = vpop.xlane.xlu0 %5615
      %v5617 = vmax.f32 %v5537, %v5538
      %5618 = vmax.xlane.f32.xlu0 %v5617
      %v5619 = vpop.xlane.xlu0 %5618
      %v5620 = vmax.f32 %v5539, %v5540
      %5621 = vmax.xlane.f32.xlu0 %v5620
      %v5622 = vpop.xlane.xlu0 %5621
      %v5623 = vmax.f32 %v5541, %v5542
      %5624 = vmax.xlane.f32.xlu0 %v5623
      %v5625 = vpop.xlane.xlu0 %5624
      %v5626 = vmax.f32 %v5543, %v5544
      %5627 = vmax.xlane.f32.xlu0 %v5626
      %v5628 = vpop.xlane.xlu0 %5627
      %v5629 = vmax.f32 %v5545, %v5546
      %5630 = vmax.xlane.f32.xlu0 %v5629
      %v5631 = vpop.xlane.xlu0 %5630
      %v5632 = vmax.f32 %v5547, %v5548
      %5633 = vmax.xlane.f32.xlu0 %v5632
      %v5634 = vpop.xlane.xlu0 %5633
      %v5635 = vmax.f32 %v5549, %v5550
      %5636 = vmax.xlane.f32.xlu0 %v5635
      %v5637 = vpop.xlane.xlu0 %5636
      %v5638 = vmax.f32 %v5551, %v5552
      %5639 = vmax.xlane.f32.xlu0 %v5638
      %v5640 = vpop.xlane.xlu0 %5639
      %v5641 = vmax.f32 %v5553, %v5554
      %5642 = vmax.xlane.f32.xlu0 %v5641
      %v5643 = vpop.xlane.xlu0 %5642
      %v5644 = vmax.f32 %v5555, %v5556
      %5645 = vmax.xlane.f32.xlu0 %v5644
      %v5646 = vpop.xlane.xlu0 %5645
      %v5647 = vmax.f32 %v5557, %v5558
      %5648 = vmax.xlane.f32.xlu0 %v5647
      %v5649 = vpop.xlane.xlu0 %5648
      %v5650 = vmax.f32 %v5559, %v5560
      %5651 = vmax.xlane.f32.xlu0 %v5650
      %v5652 = vpop.xlane.xlu0 %5651
      %v5653 = vmax.f32 %v5561, %v5562
      %5654 = vmax.xlane.f32.xlu0 %v5653
      %v5655 = vpop.xlane.xlu0 %5654
      %v5656 = vmax.f32 %v5563, %v5564
      %5657 = vmax.xlane.f32.xlu0 %v5656
      %v5658 = vpop.xlane.xlu0 %5657
      %v5659 = vmax.f32 %v5565, %v5566
      %5660 = vmax.xlane.f32.xlu0 %v5659
      %v5661 = vpop.xlane.xlu0 %5660
      %v5662 = vmax.f32 %v5567, %v5568
      %5663 = vmax.xlane.f32.xlu0 %v5662
      %v5664 = vpop.xlane.xlu0 %5663
      %v5665 = vsub.f32 %v5505, %v5571
      %v5666 = vsub.f32 %v5506, %v5571
      %v5667 = vsub.f32 %v5507, %v5574
      %v5668 = vsub.f32 %v5508, %v5574
      %v5669 = vsub.f32 %v5509, %v5577
      %v5670 = vsub.f32 %v5510, %v5577
      %v5671 = vsub.f32 %v5511, %v5580
      %v5672 = vsub.f32 %v5512, %v5580
      %v5673 = vsub.f32 %v5513, %v5583
      %v5674 = vsub.f32 %v5514, %v5583
      %v5675 = vsub.f32 %v5515, %v5586
      %v5676 = vsub.f32 %v5516, %v5586
      %v5677 = vsub.f32 %v5517, %v5589
      %v5678 = vsub.f32 %v5518, %v5589
      %v5679 = vsub.f32 %v5519, %v5592
      %v5680 = vsub.f32 %v5520, %v5592
      %v5681 = vsub.f32 %v5521, %v5595
      %v5682 = vsub.f32 %v5522, %v5595
      %v5683 = vsub.f32 %v5523, %v5598
      %v5684 = vsub.f32 %v5524, %v5598
      %v5685 = vsub.f32 %v5525, %v5601
      %v5686 = vsub.f32 %v5526, %v5601
      %v5687 = vsub.f32 %v5527, %v5604
      %v5688 = vsub.f32 %v5528, %v5604
      %v5689 = vsub.f32 %v5529, %v5607
      %v5690 = vsub.f32 %v5530, %v5607
      %v5691 = vsub.f32 %v5531, %v5610
      %v5692 = vsub.f32 %v5532, %v5610
      %v5693 = vsub.f32 %v5533, %v5613
      %v5694 = vsub.f32 %v5534, %v5613
      %v5695 = vsub.f32 %v5535, %v5616
      %v5696 = vsub.f32 %v5536, %v5616
      %v5697 = vsub.f32 %v5537, %v5619
      %v5698 = vsub.f32 %v5538, %v5619
      %v5699 = vsub.f32 %v5539, %v5622
      %v5700 = vsub.f32 %v5540, %v5622
      %v5701 = vsub.f32 %v5541, %v5625
      %v5702 = vsub.f32 %v5542, %v5625
      %v5703 = vsub.f32 %v5543, %v5628
      %v5704 = vsub.f32 %v5544, %v5628
      %v5705 = vsub.f32 %v5545, %v5631
      %v5706 = vsub.f32 %v5546, %v5631
      %v5707 = vsub.f32 %v5547, %v5634
      %v5708 = vsub.f32 %v5548, %v5634
      %v5709 = vsub.f32 %v5549, %v5637
      %v5710 = vsub.f32 %v5550, %v5637
      %v5711 = vsub.f32 %v5551, %v5640
      %v5712 = vsub.f32 %v5552, %v5640
      %v5713 = vsub.f32 %v5553, %v5643
      %v5714 = vsub.f32 %v5554, %v5643
      %v5715 = vsub.f32 %v5555, %v5646
      %v5716 = vsub.f32 %v5556, %v5646
      %v5717 = vsub.f32 %v5557, %v5649
      %v5718 = vsub.f32 %v5558, %v5649
      %v5719 = vsub.f32 %v5559, %v5652
      %v5720 = vsub.f32 %v5560, %v5652
      %v5721 = vsub.f32 %v5561, %v5655
      %v5722 = vsub.f32 %v5562, %v5655
      %v5723 = vsub.f32 %v5563, %v5658
      %v5724 = vsub.f32 %v5564, %v5658
      %v5725 = vsub.f32 %v5565, %v5661
      %v5726 = vsub.f32 %v5566, %v5661
      %v5727 = vsub.f32 %v5567, %v5664
      %v5728 = vsub.f32 %v5568, %v5664
      %v5729 = vmul.f32 %v5665, 1.442695
      %v5730 = vpow.pop %v5729
      %v5731 = vmul.f32 %v5666, 1.442695
      %v5732 = vpow.pop %v5731
      %v5733 = vmul.f32 %v5667, 1.442695
      %v5734 = vpow.pop %v5733
      %v5735 = vmul.f32 %v5668, 1.442695
      %v5736 = vpow.pop %v5735
      %v5737 = vmul.f32 %v5669, 1.442695
      %v5738 = vpow.pop %v5737
      %v5739 = vmul.f32 %v5670, 1.442695
      %v5740 = vpow.pop %v5739
      %v5741 = vmul.f32 %v5671, 1.442695
      %v5742 = vpow.pop %v5741
      %v5743 = vmul.f32 %v5672, 1.442695
      %v5744 = vpow.pop %v5743
      %v5745 = vmul.f32 %v5673, 1.442695
      %v5746 = vpow.pop %v5745
      %v5747 = vmul.f32 %v5674, 1.442695
      %v5748 = vpow.pop %v5747
      %v5749 = vmul.f32 %v5675, 1.442695
      %v5750 = vpow.pop %v5749
      %v5751 = vmul.f32 %v5676, 1.442695
      %v5752 = vpow.pop %v5751
      %v5753 = vmul.f32 %v5677, 1.442695
      %v5754 = vpow.pop %v5753
      %v5755 = vmul.f32 %v5678, 1.442695
      %v5756 = vpow.pop %v5755
      %v5757 = vmul.f32 %v5679, 1.442695
      %v5758 = vpow.pop %v5757
      %v5759 = vmul.f32 %v5680, 1.442695
      %v5760 = vpow.pop %v5759
      %v5761 = vmul.f32 %v5681, 1.442695
      %v5762 = vpow.pop %v5761
      %v5763 = vmul.f32 %v5682, 1.442695
      %v5764 = vpow.pop %v5763
      %v5765 = vmul.f32 %v5683, 1.442695
      %v5766 = vpow.pop %v5765
      %v5767 = vmul.f32 %v5684, 1.442695
      %v5768 = vpow.pop %v5767
      %v5769 = vmul.f32 %v5685, 1.442695
      %v5770 = vpow.pop %v5769
      %v5771 = vmul.f32 %v5686, 1.442695
      %v5772 = vpow.pop %v5771
      %v5773 = vmul.f32 %v5687, 1.442695
      %v5774 = vpow.pop %v5773
      %v5775 = vmul.f32 %v5688, 1.442695
      %v5776 = vpow.pop %v5775
      %v5777 = vmul.f32 %v5689, 1.442695
      %v5778 = vpow.pop %v5777
      %v5779 = vmul.f32 %v5690, 1.442695
      %v5780 = vpow.pop %v5779
      %v5781 = vmul.f32 %v5691, 1.442695
      %v5782 = vpow.pop %v5781
      %v5783 = vmul.f32 %v5692, 1.442695
      %v5784 = vpow.pop %v5783
      %v5785 = vmul.f32 %v5693, 1.442695
      %v5786 = vpow.pop %v5785
      %v5787 = vmul.f32 %v5694, 1.442695
      %v5788 = vpow.pop %v5787
      %v5789 = vmul.f32 %v5695, 1.442695
      %v5790 = vpow.pop %v5789
      %v5791 = vmul.f32 %v5696, 1.442695
      %v5792 = vpow.pop %v5791
      %v5793 = vmul.f32 %v5697, 1.442695
      %v5794 = vpow.pop %v5793
      %v5795 = vmul.f32 %v5698, 1.442695
      %v5796 = vpow.pop %v5795
      %v5797 = vmul.f32 %v5699, 1.442695
      %v5798 = vpow.pop %v5797
      %v5799 = vmul.f32 %v5700, 1.442695
      %v5800 = vpow.pop %v5799
      %v5801 = vmul.f32 %v5701, 1.442695
      %v5802 = vpow.pop %v5801
      %v5803 = vmul.f32 %v5702, 1.442695
      %v5804 = vpow.pop %v5803
      %v5805 = vmul.f32 %v5703, 1.442695
      %v5806 = vpow.pop %v5805
      %v5807 = vmul.f32 %v5704, 1.442695
      %v5808 = vpow.pop %v5807
      %v5809 = vmul.f32 %v5705, 1.442695
      %v5810 = vpow.pop %v5809
      %v5811 = vmul.f32 %v5706, 1.442695
      %v5812 = vpow.pop %v5811
      %v5813 = vmul.f32 %v5707, 1.442695
      %v5814 = vpow.pop %v5813
      %v5815 = vmul.f32 %v5708, 1.442695
      %v5816 = vpow.pop %v5815
      %v5817 = vmul.f32 %v5709, 1.442695
      %v5818 = vpow.pop %v5817
      %v5819 = vmul.f32 %v5710, 1.442695
      %v5820 = vpow.pop %v5819
      %v5821 = vmul.f32 %v5711, 1.442695
      %v5822 = vpow.pop %v5821
      %v5823 = vmul.f32 %v5712, 1.442695
      %v5824 = vpow.pop %v5823
      %v5825 = vmul.f32 %v5713, 1.442695
      %v5826 = vpow.pop %v5825
      %v5827 = vmul.f32 %v5714, 1.442695
      %v5828 = vpow.pop %v5827
      %v5829 = vmul.f32 %v5715, 1.442695
      %v5830 = vpow.pop %v5829
      %v5831 = vmul.f32 %v5716, 1.442695
      %v5832 = vpow.pop %v5831
      %v5833 = vmul.f32 %v5717, 1.442695
      %v5834 = vpow.pop %v5833
      %v5835 = vmul.f32 %v5718, 1.442695
      %v5836 = vpow.pop %v5835
      %v5837 = vmul.f32 %v5719, 1.442695
      %v5838 = vpow.pop %v5837
      %v5839 = vmul.f32 %v5720, 1.442695
      %v5840 = vpow.pop %v5839
      %v5841 = vmul.f32 %v5721, 1.442695
      %v5842 = vpow.pop %v5841
      %v5843 = vmul.f32 %v5722, 1.442695
      %v5844 = vpow.pop %v5843
      %v5845 = vmul.f32 %v5723, 1.442695
      %v5846 = vpow.pop %v5845
      %v5847 = vmul.f32 %v5724, 1.442695
      %v5848 = vpow.pop %v5847
      %v5849 = vmul.f32 %v5725, 1.442695
      %v5850 = vpow.pop %v5849
      %v5851 = vmul.f32 %v5726, 1.442695
      %v5852 = vpow.pop %v5851
      %v5853 = vmul.f32 %v5727, 1.442695
      %v5854 = vpow.pop %v5853
      %v5855 = vmul.f32 %v5728, 1.442695
      %v5856 = vpow.pop %v5855
      %v5857 = vmul.f32 %v4054, %v5730
      %v5858 = vmul.f32 %v4055, %v5732
      %v5859 = vmul.f32 %v4056, %v5734
      %v5860 = vmul.f32 %v4057, %v5736
      %v5861 = vmul.f32 %v4058, %v5738
      %v5862 = vmul.f32 %v4059, %v5740
      %v5863 = vmul.f32 %v4060, %v5742
      %v5864 = vmul.f32 %v4061, %v5744
      %v5865 = vmul.f32 %v4062, %v5746
      %v5866 = vmul.f32 %v4063, %v5748
      %v5867 = vmul.f32 %v4064, %v5750
      %v5868 = vmul.f32 %v4065, %v5752
      %v5869 = vmul.f32 %v4066, %v5754
      %v5870 = vmul.f32 %v4067, %v5756
      %v5871 = vmul.f32 %v4068, %v5758
      %v5872 = vmul.f32 %v4069, %v5760
      %v5873 = vmul.f32 %v4070, %v5762
      %v5874 = vmul.f32 %v4071, %v5764
      %v5875 = vmul.f32 %v4072, %v5766
      %v5876 = vmul.f32 %v4073, %v5768
      %v5877 = vmul.f32 %v4074, %v5770
      %v5878 = vmul.f32 %v4075, %v5772
      %v5879 = vmul.f32 %v4076, %v5774
      %v5880 = vmul.f32 %v4077, %v5776
      %v5881 = vmul.f32 %v4078, %v5778
      %v5882 = vmul.f32 %v4079, %v5780
      %v5883 = vmul.f32 %v4080, %v5782
      %v5884 = vmul.f32 %v4081, %v5784
      %v5885 = vmul.f32 %v4082, %v5786
      %v5886 = vmul.f32 %v4083, %v5788
      %v5887 = vmul.f32 %v4084, %v5790
      %v5888 = vmul.f32 %v4085, %v5792
      %v5889 = vmul.f32 %v4086, %v5794
      %v5890 = vmul.f32 %v4087, %v5796
      %v5891 = vmul.f32 %v4088, %v5798
      %v5892 = vmul.f32 %v4089, %v5800
      %v5893 = vmul.f32 %v4090, %v5802
      %v5894 = vmul.f32 %v4091, %v5804
      %v5895 = vmul.f32 %v4092, %v5806
      %v5896 = vmul.f32 %v4093, %v5808
      %v5897 = vmul.f32 %v4094, %v5810
      %v5898 = vmul.f32 %v4095, %v5812
      %v5899 = vmul.f32 %v4096, %v5814
      %v5900 = vmul.f32 %v4097, %v5816
      %v5901 = vmul.f32 %v4098, %v5818
      %v5902 = vmul.f32 %v4099, %v5820
      %v5903 = vmul.f32 %v4100, %v5822
      %v5904 = vmul.f32 %v4101, %v5824
      %v5905 = vmul.f32 %v4102, %v5826
      %v5906 = vmul.f32 %v4103, %v5828
      %v5907 = vmul.f32 %v4104, %v5830
      %v5908 = vmul.f32 %v4105, %v5832
      %v5909 = vmul.f32 %v4106, %v5834
      %v5910 = vmul.f32 %v4107, %v5836
      %v5911 = vmul.f32 %v4108, %v5838
      %v5912 = vmul.f32 %v4109, %v5840
      %v5913 = vmul.f32 %v4110, %v5842
      %v5914 = vmul.f32 %v4111, %v5844
      %v5915 = vmul.f32 %v4112, %v5846
      %v5916 = vmul.f32 %v4113, %v5848
      %v5917 = vmul.f32 %v4114, %v5850
      %v5918 = vmul.f32 %v4115, %v5852
      %v5919 = vmul.f32 %v4116, %v5854
      %v5920 = vmul.f32 %v4117, %v5856
      %v5921 = vadd.f32 %v5857, %v5858
      %5922 = vadd.xlane.f32.xlu0 %v5921
      %v5923 = vpop.xlane.xlu0 %5922
      %v5924 = vadd.f32 %v5859, %v5860
      %5925 = vadd.xlane.f32.xlu0 %v5924
      %v5926 = vpop.xlane.xlu0 %5925
      %v5927 = vadd.f32 %v5861, %v5862
      %5928 = vadd.xlane.f32.xlu0 %v5927
      %v5929 = vpop.xlane.xlu0 %5928
      %v5930 = vadd.f32 %v5863, %v5864
      %5931 = vadd.xlane.f32.xlu0 %v5930
      %v5932 = vpop.xlane.xlu0 %5931
      %v5933 = vadd.f32 %v5865, %v5866
      %5934 = vadd.xlane.f32.xlu0 %v5933
      %v5935 = vpop.xlane.xlu0 %5934
      %v5936 = vadd.f32 %v5867, %v5868
      %5937 = vadd.xlane.f32.xlu0 %v5936
      %v5938 = vpop.xlane.xlu0 %5937
      %v5939 = vadd.f32 %v5869, %v5870
      %5940 = vadd.xlane.f32.xlu0 %v5939
      %v5941 = vpop.xlane.xlu0 %5940
      %v5942 = vadd.f32 %v5871, %v5872
      %5943 = vadd.xlane.f32.xlu0 %v5942
      %v5944 = vpop.xlane.xlu0 %5943
      %v5945 = vadd.f32 %v5873, %v5874
      %5946 = vadd.xlane.f32.xlu0 %v5945
      %v5947 = vpop.xlane.xlu0 %5946
      %v5948 = vadd.f32 %v5875, %v5876
      %5949 = vadd.xlane.f32.xlu0 %v5948
      %v5950 = vpop.xlane.xlu0 %5949
      %v5951 = vadd.f32 %v5877, %v5878
      %5952 = vadd.xlane.f32.xlu0 %v5951
      %v5953 = vpop.xlane.xlu0 %5952
      %v5954 = vadd.f32 %v5879, %v5880
      %5955 = vadd.xlane.f32.xlu0 %v5954
      %v5956 = vpop.xlane.xlu0 %5955
      %v5957 = vadd.f32 %v5881, %v5882
      %5958 = vadd.xlane.f32.xlu0 %v5957
      %v5959 = vpop.xlane.xlu0 %5958
      %v5960 = vadd.f32 %v5883, %v5884
      %5961 = vadd.xlane.f32.xlu0 %v5960
      %v5962 = vpop.xlane.xlu0 %5961
      %v5963 = vadd.f32 %v5885, %v5886
      %5964 = vadd.xlane.f32.xlu0 %v5963
      %v5965 = vpop.xlane.xlu0 %5964
      %v5966 = vadd.f32 %v5887, %v5888
      %5967 = vadd.xlane.f32.xlu0 %v5966
      %v5968 = vpop.xlane.xlu0 %5967
      %v5969 = vadd.f32 %v5889, %v5890
      %5970 = vadd.xlane.f32.xlu0 %v5969
      %v5971 = vpop.xlane.xlu0 %5970
      %v5972 = vadd.f32 %v5891, %v5892
      %5973 = vadd.xlane.f32.xlu0 %v5972
      %v5974 = vpop.xlane.xlu0 %5973
      %v5975 = vadd.f32 %v5893, %v5894
      %5976 = vadd.xlane.f32.xlu0 %v5975
      %v5977 = vpop.xlane.xlu0 %5976
      %v5978 = vadd.f32 %v5895, %v5896
      %5979 = vadd.xlane.f32.xlu0 %v5978
      %v5980 = vpop.xlane.xlu0 %5979
      %v5981 = vadd.f32 %v5897, %v5898
      %5982 = vadd.xlane.f32.xlu0 %v5981
      %v5983 = vpop.xlane.xlu0 %5982
      %v5984 = vadd.f32 %v5899, %v5900
      %5985 = vadd.xlane.f32.xlu0 %v5984
      %v5986 = vpop.xlane.xlu0 %5985
      %v5987 = vadd.f32 %v5901, %v5902
      %5988 = vadd.xlane.f32.xlu0 %v5987
      %v5989 = vpop.xlane.xlu0 %5988
      %v5990 = vadd.f32 %v5903, %v5904
      %5991 = vadd.xlane.f32.xlu0 %v5990
      %v5992 = vpop.xlane.xlu0 %5991
      %v5993 = vadd.f32 %v5905, %v5906
      %5994 = vadd.xlane.f32.xlu0 %v5993
      %v5995 = vpop.xlane.xlu0 %5994
      %v5996 = vadd.f32 %v5907, %v5908
      %5997 = vadd.xlane.f32.xlu0 %v5996
      %v5998 = vpop.xlane.xlu0 %5997
      %v5999 = vadd.f32 %v5909, %v5910
      %6000 = vadd.xlane.f32.xlu0 %v5999
      %v6001 = vpop.xlane.xlu0 %6000
      %v6002 = vadd.f32 %v5911, %v5912
      %6003 = vadd.xlane.f32.xlu0 %v6002
      %v6004 = vpop.xlane.xlu0 %6003
      %v6005 = vadd.f32 %v5913, %v5914
      %6006 = vadd.xlane.f32.xlu0 %v6005
      %v6007 = vpop.xlane.xlu0 %6006
      %v6008 = vadd.f32 %v5915, %v5916
      %6009 = vadd.xlane.f32.xlu0 %v6008
      %v6010 = vpop.xlane.xlu0 %6009
      %v6011 = vadd.f32 %v5917, %v5918
      %6012 = vadd.xlane.f32.xlu0 %v6011
      %v6013 = vpop.xlane.xlu0 %6012
      %v6014 = vadd.f32 %v5919, %v5920
      %6015 = vadd.xlane.f32.xlu0 %v6014
      %v6016 = vpop.xlane.xlu0 %6015
      %v6017 = vrcp.pop %v5923
      %v6018 = vrcp.pop %v5926
      %v6019 = vrcp.pop %v5929
      %v6020 = vrcp.pop %v5932
      %v6021 = vrcp.pop %v5935
      %v6022 = vrcp.pop %v5938
      %v6023 = vrcp.pop %v5941
      %v6024 = vrcp.pop %v5944
      %v6025 = vrcp.pop %v5947
      %v6026 = vrcp.pop %v5950
      %v6027 = vrcp.pop %v5953
      %v6028 = vrcp.pop %v5956
      %v6029 = vrcp.pop %v5959
      %v6030 = vrcp.pop %v5962
      %v6031 = vrcp.pop %v5965
      %v6032 = vrcp.pop %v5968
      %v6033 = vrcp.pop %v5971
      %v6034 = vrcp.pop %v5974
      %v6035 = vrcp.pop %v5977
      %v6036 = vrcp.pop %v5980
      %v6037 = vrcp.pop %v5983
      %v6038 = vrcp.pop %v5986
      %v6039 = vrcp.pop %v5989
      %v6040 = vrcp.pop %v5992
      %v6041 = vrcp.pop %v5995
      %v6042 = vrcp.pop %v5998
      %v6043 = vrcp.pop %v6001
      %v6044 = vrcp.pop %v6004
      %v6045 = vrcp.pop %v6007
      %v6046 = vrcp.pop %v6010
      %v6047 = vrcp.pop %v6013
      %v6048 = vrcp.pop %v6016
      %v6049 = vpack.c.bf16 %v5859, %v5857
      %v6050 = vpack.c.bf16 %v5860, %v5858
      %v6051 = vpack.c.bf16 %v5863, %v5861
      %v6052 = vpack.c.bf16 %v5864, %v5862
      %v6053 = vpack.c.bf16 %v5867, %v5865
      %v6054 = vpack.c.bf16 %v5868, %v5866
      %v6055 = vpack.c.bf16 %v5871, %v5869
      %v6056 = vpack.c.bf16 %v5872, %v5870
      %v6057 = vpack.c.bf16 %v5875, %v5873
      %v6058 = vpack.c.bf16 %v5876, %v5874
      %v6059 = vpack.c.bf16 %v5879, %v5877
      %v6060 = vpack.c.bf16 %v5880, %v5878
      %v6061 = vpack.c.bf16 %v5883, %v5881
      %v6062 = vpack.c.bf16 %v5884, %v5882
      %v6063 = vpack.c.bf16 %v5887, %v5885
      %v6064 = vpack.c.bf16 %v5888, %v5886
      %v6065 = vpack.c.bf16 %v5891, %v5889
      %v6066 = vpack.c.bf16 %v5892, %v5890
      %v6067 = vpack.c.bf16 %v5895, %v5893
      %v6068 = vpack.c.bf16 %v5896, %v5894
      %v6069 = vpack.c.bf16 %v5899, %v5897
      %v6070 = vpack.c.bf16 %v5900, %v5898
      %v6071 = vpack.c.bf16 %v5903, %v5901
      %v6072 = vpack.c.bf16 %v5904, %v5902
      %v6073 = vpack.c.bf16 %v5907, %v5905
      %v6074 = vpack.c.bf16 %v5908, %v5906
      %v6075 = vpack.c.bf16 %v5911, %v5909
      %v6076 = vpack.c.bf16 %v5912, %v5910
      %v6077 = vpack.c.bf16 %v5915, %v5913
      %v6078 = vpack.c.bf16 %v5916, %v5914
      %v6079 = vpack.c.bf16 %v5919, %v5917
      %v6080 = vpack.c.bf16 %v5920, %v5918
      %v6081 = vpack.c.bf16 %v4941, %v4938
      %v6082 = vpack.c.bf16 %v4949, %v4946
      %v6083 = vpack.c.bf16 %v4957, %v4954
      %v6084 = vpack.c.bf16 %v4965, %v4962
      %v6085 = vpack.c.bf16 %v4973, %v4970
      %v6086 = vpack.c.bf16 %v4981, %v4978
      %v6087 = vpack.c.bf16 %v4989, %v4986
      %v6088 = vpack.c.bf16 %v4997, %v4994
      %v6089 = vpack.c.bf16 %v5005, %v5002
      %v6090 = vpack.c.bf16 %v5013, %v5010
      %v6091 = vpack.c.bf16 %v5021, %v5018
      %v6092 = vpack.c.bf16 %v5029, %v5026
      %v6093 = vpack.c.bf16 %v5037, %v5034
      %v6094 = vpack.c.bf16 %v5045, %v5042
      %v6095 = vpack.c.bf16 %v5053, %v5050
      %v6096 = vpack.c.bf16 %v5061, %v5058
      %6097 = vmatprep.subr.bf16.mxu0 0
      %6098 = vmatpush1.bf16.msra.mxu0 %v6081
      %6099 = vmatprep.subr.bf16.mxu0 0
      %6100 = vmatpush1.bf16.msra.mxu0 %v6082
      %6101 = vmatprep.subr.bf16.mxu0 0
      %6102 = vmatpush1.bf16.msra.mxu0 %v6083
      %6103 = vmatprep.subr.bf16.mxu0 0
      %6104 = vmatpush1.bf16.msra.mxu0 %v6084
      %6105 = vmatprep.subr.bf16.mxu0 0
      %6106 = vmatpush1.bf16.msra.mxu0 %v6085
      %6107 = vmatprep.subr.bf16.mxu0 0
      %6108 = vmatpush1.bf16.msra.mxu0 %v6086
      %6109 = vmatprep.subr.bf16.mxu0 0
      %6110 = vmatpush1.bf16.msra.mxu0 %v6087
      %6111 = vmatprep.subr.bf16.mxu0 0
      %6112 = vmatpush1.bf16.msra.mxu0 %v6088
      %6113 = vmatprep.subr.bf16.mxu0 0
      %6114 = vmatpush1.bf16.msra.mxu0 %v6089
      %6115 = vmatprep.subr.bf16.mxu0 0
      %6116 = vmatpush1.bf16.msra.mxu0 %v6090
      %6117 = vmatprep.subr.bf16.mxu0 0
      %6118 = vmatpush1.bf16.msra.mxu0 %v6091
      %6119 = vmatprep.subr.bf16.mxu0 0
      %6120 = vmatpush1.bf16.msra.mxu0 %v6092
      %6121 = vmatprep.subr.bf16.mxu0 0
      %6122 = vmatpush1.bf16.msra.mxu0 %v6093
      %6123 = vmatprep.subr.bf16.mxu0 0
      %6124 = vmatpush1.bf16.msra.mxu0 %v6094
      %6125 = vmatprep.subr.bf16.mxu0 0
      %6126 = vmatpush1.bf16.msra.mxu0 %v6095
      %6127 = vmatprep.subr.bf16.mxu0 0
      %6128 = vmatpush1.bf16.msra.mxu0 %v6096
      %6129 = vmatprep.mubr.bf16.mxu0 %v6050
      %6130 = vmatmul.mubr.bf16.gmra.mrb[0].mxu0 %v6049
      %v6131 = vpop.f32.mrb[0].mxu0
      %v6132 = vadd.f32 0.0, %v6131
      %v6133 = vpop.f32.mrb[0].mxu0
      %v6134 = vpop.f32.mrb[0].mxu0
      %v6135 = vadd.f32 0.0, %v6134
      %v6136 = vpop.f32.mrb[0].mxu0
      %6137 = vmatprep.mubr.bf16.mxu0 %v6052
      %6138 = vmatmul.mubr.bf16.gmra.mrb[0].mxu0 %v6051
      %v6139 = vpop.f32.mrb[0].mxu0
      %v6140 = vadd.f32 0.0, %v6139
      %v6141 = vpop.f32.mrb[0].mxu0
      %v6142 = vpop.f32.mrb[0].mxu0
      %v6143 = vadd.f32 0.0, %v6142
      %v6144 = vpop.f32.mrb[0].mxu0
      %6145 = vmatprep.mubr.bf16.mxu0 %v6054
      %6146 = vmatmul.mubr.bf16.gmra.mrb[0].mxu0 %v6053
      %v6147 = vpop.f32.mrb[0].mxu0
      %v6148 = vadd.f32 0.0, %v6147
      %v6149 = vpop.f32.mrb[0].mxu0
      %v6150 = vpop.f32.mrb[0].mxu0
      %v6151 = vadd.f32 0.0, %v6150
      %v6152 = vpop.f32.mrb[0].mxu0
      %6153 = vmatprep.mubr.bf16.mxu0 %v6056
      %6154 = vmatmul.mubr.bf16.gmra.mrb[0].mxu0 %v6055
      %v6155 = vpop.f32.mrb[0].mxu0
      %v6156 = vadd.f32 0.0, %v6155
      %v6157 = vpop.f32.mrb[0].mxu0
      %v6158 = vpop.f32.mrb[0].mxu0
      %v6159 = vadd.f32 0.0, %v6158
      %v6160 = vpop.f32.mrb[0].mxu0
      %6161 = vmatprep.mubr.bf16.mxu0 %v6058
      %6162 = vmatmul.mubr.bf16.gmra.mrb[0].mxu0 %v6057
      %v6163 = vpop.f32.mrb[0].mxu0
      %v6164 = vadd.f32 0.0, %v6163
      %v6165 = vpop.f32.mrb[0].mxu0
      %v6166 = vpop.f32.mrb[0].mxu0
      %v6167 = vadd.f32 0.0, %v6166
      %v6168 = vpop.f32.mrb[0].mxu0
      %6169 = vmatprep.mubr.bf16.mxu0 %v6060
      %6170 = vmatmul.mubr.bf16.gmra.mrb[0].mxu0 %v6059
      %v6171 = vpop.f32.mrb[0].mxu0
      %v6172 = vadd.f32 0.0, %v6171
      %v6173 = vpop.f32.mrb[0].mxu0
      %v6174 = vpop.f32.mrb[0].mxu0
      %v6175 = vadd.f32 0.0, %v6174
      %v6176 = vpop.f32.mrb[0].mxu0
      %6177 = vmatprep.mubr.bf16.mxu0 %v6062
      %6178 = vmatmul.mubr.bf16.gmra.mrb[0].mxu0 %v6061
      %v6179 = vpop.f32.mrb[0].mxu0
      %v6180 = vadd.f32 0.0, %v6179
      %v6181 = vpop.f32.mrb[0].mxu0
      %v6182 = vpop.f32.mrb[0].mxu0
      %v6183 = vadd.f32 0.0, %v6182
      %v6184 = vpop.f32.mrb[0].mxu0
      %6185 = vmatprep.mubr.bf16.mxu0 %v6064
      %6186 = vmatmul.mubr.bf16.gmra.mrb[0].mxu0 %v6063
      %v6187 = vpop.f32.mrb[0].mxu0
      %v6188 = vadd.f32 0.0, %v6187
      %v6189 = vpop.f32.mrb[0].mxu0
      %v6190 = vpop.f32.mrb[0].mxu0
      %v6191 = vadd.f32 0.0, %v6190
      %v6192 = vpop.f32.mrb[0].mxu0
      %6193 = vmatprep.mubr.bf16.mxu0 %v6066
      %6194 = vmatmul.mubr.bf16.gmra.mrb[0].mxu0 %v6065
      %v6195 = vpop.f32.mrb[0].mxu0
      %v6196 = vadd.f32 0.0, %v6195
      %v6197 = vpop.f32.mrb[0].mxu0
      %v6198 = vpop.f32.mrb[0].mxu0
      %v6199 = vadd.f32 0.0, %v6198
      %v6200 = vpop.f32.mrb[0].mxu0
      %6201 = vmatprep.mubr.bf16.mxu0 %v6068
      %6202 = vmatmul.mubr.bf16.gmra.mrb[0].mxu0 %v6067
      %v6203 = vpop.f32.mrb[0].mxu0
      %v6204 = vadd.f32 0.0, %v6203
      %v6205 = vpop.f32.mrb[0].mxu0
      %v6206 = vpop.f32.mrb[0].mxu0
      %v6207 = vadd.f32 0.0, %v6206
      %v6208 = vpop.f32.mrb[0].mxu0
      %6209 = vmatprep.mubr.bf16.mxu0 %v6070
      %6210 = vmatmul.mubr.bf16.gmra.mrb[0].mxu0 %v6069
      %v6211 = vpop.f32.mrb[0].mxu0
      %v6212 = vadd.f32 0.0, %v6211
      %v6213 = vpop.f32.mrb[0].mxu0
      %v6214 = vpop.f32.mrb[0].mxu0
      %v6215 = vadd.f32 0.0, %v6214
      %v6216 = vpop.f32.mrb[0].mxu0
      %6217 = vmatprep.mubr.bf16.mxu0 %v6072
      %6218 = vmatmul.mubr.bf16.gmra.mrb[0].mxu0 %v6071
      %v6219 = vpop.f32.mrb[0].mxu0
      %v6220 = vadd.f32 0.0, %v6219
      %v6221 = vpop.f32.mrb[0].mxu0
      %v6222 = vpop.f32.mrb[0].mxu0
      %v6223 = vadd.f32 0.0, %v6222
      %v6224 = vpop.f32.mrb[0].mxu0
      %6225 = vmatprep.mubr.bf16.mxu0 %v6074
      %6226 = vmatmul.mubr.bf16.gmra.mrb[0].mxu0 %v6073
      %v6227 = vpop.f32.mrb[0].mxu0
      %v6228 = vadd.f32 0.0, %v6227
      %v6229 = vpop.f32.mrb[0].mxu0
      %v6230 = vpop.f32.mrb[0].mxu0
      %v6231 = vadd.f32 0.0, %v6230
      %v6232 = vpop.f32.mrb[0].mxu0
      %6233 = vmatprep.mubr.bf16.mxu0 %v6076
      %6234 = vmatmul.mubr.bf16.gmra.mrb[0].mxu0 %v6075
      %v6235 = vpop.f32.mrb[0].mxu0
      %v6236 = vadd.f32 0.0, %v6235
      %v6237 = vpop.f32.mrb[0].mxu0
      %v6238 = vpop.f32.mrb[0].mxu0
      %v6239 = vadd.f32 0.0, %v6238
      %v6240 = vpop.f32.mrb[0].mxu0
      %6241 = vmatprep.mubr.bf16.mxu0 %v6078
      %6242 = vmatmul.mubr.bf16.gmra.mrb[0].mxu0 %v6077
      %v6243 = vpop.f32.mrb[0].mxu0
      %v6244 = vadd.f32 0.0, %v6243
      %v6245 = vpop.f32.mrb[0].mxu0
      %v6246 = vpop.f32.mrb[0].mxu0
      %v6247 = vadd.f32 0.0, %v6246
      %v6248 = vpop.f32.mrb[0].mxu0
      %6249 = vmatprep.mubr.bf16.mxu0 %v6080
      %6250 = vmatmul.mubr.bf16.gmra.mrb[0].mxu0 %v6079
      %v6251 = vpop.f32.mrb[0].mxu0
      %v6252 = vadd.f32 0.0, %v6251
      %v6253 = vpop.f32.mrb[0].mxu0
      %v6254 = vpop.f32.mrb[0].mxu0
      %v6255 = vadd.f32 0.0, %v6254
      %v6256 = vpop.f32.mrb[0].mxu0
      %6257 = vdwg.mxu0
      %v6258 = vmul.f32 %v6132, %v6017
      %v6259 = vmul.f32 %v6135, %v6018
      %v6260 = vmul.f32 %v6140, %v6019
      %v6261 = vmul.f32 %v6143, %v6020
      %v6262 = vmul.f32 %v6148, %v6021
      %v6263 = vmul.f32 %v6151, %v6022
      %v6264 = vmul.f32 %v6156, %v6023
      %v6265 = vmul.f32 %v6159, %v6024
      %v6266 = vmul.f32 %v6164, %v6025
      %v6267 = vmul.f32 %v6167, %v6026
      %v6268 = vmul.f32 %v6172, %v6027
      %v6269 = vmul.f32 %v6175, %v6028
      %v6270 = vmul.f32 %v6180, %v6029
      %v6271 = vmul.f32 %v6183, %v6030
      %v6272 = vmul.f32 %v6188, %v6031
      %v6273 = vmul.f32 %v6191, %v6032
      %v6274 = vmul.f32 %v6196, %v6033
      %v6275 = vmul.f32 %v6199, %v6034
      %v6276 = vmul.f32 %v6204, %v6035
      %v6277 = vmul.f32 %v6207, %v6036
      %v6278 = vmul.f32 %v6212, %v6037
      %v6279 = vmul.f32 %v6215, %v6038
      %v6280 = vmul.f32 %v6220, %v6039
      %v6281 = vmul.f32 %v6223, %v6040
      %v6282 = vmul.f32 %v6228, %v6041
      %v6283 = vmul.f32 %v6231, %v6042
      %v6284 = vmul.f32 %v6236, %v6043
      %v6285 = vmul.f32 %v6239, %v6044
      %v6286 = vmul.f32 %v6244, %v6045
      %v6287 = vmul.f32 %v6247, %v6046
      %v6288 = vmul.f32 %v6252, %v6047
      %v6289 = vmul.f32 %v6255, %v6048
      %s6290 = scalar_lea.vmem %s11, 1
      %v6291 = vld [vmem:[%s6290] sm:$0x1]
      %v6293 = vlaneseq
      %v6294 = vshrl.u32 %v6293, 7
      %v6295 = vsub.s32 0, %v6294
      %v6296 = vrot.slane %v6291, %v6295
      %v6298 = vadd.f32 %v6258, %v6296
      %v6299 = vadd.f32 %v6259, %v6296
      %v6300 = vadd.f32 %v6260, %v6296
      %v6301 = vadd.f32 %v6261, %v6296
      %v6302 = vadd.f32 %v6262, %v6296
      %v6303 = vadd.f32 %v6263, %v6296
      %v6304 = vadd.f32 %v6264, %v6296
      %v6305 = vadd.f32 %v6265, %v6296
      %v6306 = vadd.f32 %v6266, %v6296
      %v6307 = vadd.f32 %v6267, %v6296
      %v6308 = vadd.f32 %v6268, %v6296
      %v6309 = vadd.f32 %v6269, %v6296
      %v6310 = vadd.f32 %v6270, %v6296
      %v6311 = vadd.f32 %v6271, %v6296
      %v6312 = vadd.f32 %v6272, %v6296
      %v6313 = vadd.f32 %v6273, %v6296
      %v6314 = vadd.f32 %v6274, %v6296
      %v6315 = vadd.f32 %v6275, %v6296
      %v6316 = vadd.f32 %v6276, %v6296
      %v6317 = vadd.f32 %v6277, %v6296
      %v6318 = vadd.f32 %v6278, %v6296
      %v6319 = vadd.f32 %v6279, %v6296
      %v6320 = vadd.f32 %v6280, %v6296
      %v6321 = vadd.f32 %v6281, %v6296
      %v6322 = vadd.f32 %v6282, %v6296
      %v6323 = vadd.f32 %v6283, %v6296
      %v6324 = vadd.f32 %v6284, %v6296
      %v6325 = vadd.f32 %v6285, %v6296
      %v6326 = vadd.f32 %v6286, %v6296
      %v6327 = vadd.f32 %v6287, %v6296
      %v6328 = vadd.f32 %v6288, %v6296
      %v6329 = vadd.f32 %v6289, %v6296
      %v6330 = vmax.f32 %v6298, 0.0
      %v6331 = vmax.f32 %v6299, 0.0
      %v6332 = vmax.f32 %v6300, 0.0
      %v6333 = vmax.f32 %v6301, 0.0
      %v6334 = vmax.f32 %v6302, 0.0
      %v6335 = vmax.f32 %v6303, 0.0
      %v6336 = vmax.f32 %v6304, 0.0
      %v6337 = vmax.f32 %v6305, 0.0
      %v6338 = vmax.f32 %v6306, 0.0
      %v6339 = vmax.f32 %v6307, 0.0
      %v6340 = vmax.f32 %v6308, 0.0
      %v6341 = vmax.f32 %v6309, 0.0
      %v6342 = vmax.f32 %v6310, 0.0
      %v6343 = vmax.f32 %v6311, 0.0
      %v6344 = vmax.f32 %v6312, 0.0
      %v6345 = vmax.f32 %v6313, 0.0
      %v6346 = vmax.f32 %v6314, 0.0
      %v6347 = vmax.f32 %v6315, 0.0
      %v6348 = vmax.f32 %v6316, 0.0
      %v6349 = vmax.f32 %v6317, 0.0
      %v6350 = vmax.f32 %v6318, 0.0
      %v6351 = vmax.f32 %v6319, 0.0
      %v6352 = vmax.f32 %v6320, 0.0
      %v6353 = vmax.f32 %v6321, 0.0
      %v6354 = vmax.f32 %v6322, 0.0
      %v6355 = vmax.f32 %v6323, 0.0
      %v6356 = vmax.f32 %v6324, 0.0
      %v6357 = vmax.f32 %v6325, 0.0
      %v6358 = vmax.f32 %v6326, 0.0
      %v6359 = vmax.f32 %v6327, 0.0
      %v6360 = vmax.f32 %v6328, 0.0
      %v6361 = vmax.f32 %v6329, 0.0
      %v6362 = vpack.c.bf16 %v6331, %v6330
      %v6363 = vpack.c.bf16 %v6333, %v6332
      %v6364 = vpack.c.bf16 %v6335, %v6334
      %v6365 = vpack.c.bf16 %v6337, %v6336
      %v6366 = vpack.c.bf16 %v6339, %v6338
      %v6367 = vpack.c.bf16 %v6341, %v6340
      %v6368 = vpack.c.bf16 %v6343, %v6342
      %v6369 = vpack.c.bf16 %v6345, %v6344
      %v6370 = vpack.c.bf16 %v6347, %v6346
      %v6371 = vpack.c.bf16 %v6349, %v6348
      %v6372 = vpack.c.bf16 %v6351, %v6350
      %v6373 = vpack.c.bf16 %v6353, %v6352
      %v6374 = vpack.c.bf16 %v6355, %v6354
      %v6375 = vpack.c.bf16 %v6357, %v6356
      %v6376 = vpack.c.bf16 %v6359, %v6358
      %v6377 = vpack.c.bf16 %v6361, %v6360
      %s6378 = scalar_lea.vmem %s7, 128
      %v6379 = vld [vmem:[%s6378] sm:$0xf]
      %v6380 = vld [vmem:[%s6378 + $0x4] sm:$0xf]
      %v6381 = vld [vmem:[%s6378 + $0x8] sm:$0xf]
      %v6382 = vld [vmem:[%s6378 + $0xc] sm:$0xf]
      %v6383 = vld [vmem:[%s6378 + $0x10] sm:$0xf]
      %v6384 = vld [vmem:[%s6378 + $0x14] sm:$0xf]
      %v6385 = vld [vmem:[%s6378 + $0x18] sm:$0xf]
      %v6386 = vld [vmem:[%s6378 + $0x1c] sm:$0xf]
      %v6387 = vld [vmem:[%s6378 + $0x20] sm:$0xf]
      %v6388 = vld [vmem:[%s6378 + $0x24] sm:$0xf]
      %v6389 = vld [vmem:[%s6378 + $0x28] sm:$0xf]
      %v6390 = vld [vmem:[%s6378 + $0x2c] sm:$0xf]
      %v6391 = vld [vmem:[%s6378 + $0x30] sm:$0xf]
      %v6392 = vld [vmem:[%s6378 + $0x34] sm:$0xf]
      %v6393 = vld [vmem:[%s6378 + $0x38] sm:$0xf]
      %v6394 = vld [vmem:[%s6378 + $0x3c] sm:$0xf]
      %s6395 = scalar_lea.vmem %s8, 2
      %v6396 = vld [vmem:[%s6395] sm:$0x1]
      %v6398 = vlaneseq
      %v6399 = vshrl.u32 %v6398, 7
      %v6400 = vsub.s32 0, %v6399
      %v6401 = vrot.slane %v6396, %v6400
      %v6419 = vunpack.c.l.b16 %v6379
      %v6420 = vunpack.c.l.b16 %v6380
      %v6421 = vunpack.c.l.b16 %v6381
      %v6422 = vunpack.c.l.b16 %v6382
      %v6423 = vunpack.c.l.b16 %v6383
      %v6424 = vunpack.c.l.b16 %v6384
      %v6425 = vunpack.c.l.b16 %v6385
      %v6426 = vunpack.c.l.b16 %v6386
      %v6427 = vunpack.c.l.b16 %v6387
      %v6428 = vunpack.c.l.b16 %v6388
      %v6429 = vunpack.c.l.b16 %v6389
      %v6430 = vunpack.c.l.b16 %v6390
      %v6431 = vunpack.c.l.b16 %v6391
      %v6432 = vunpack.c.l.b16 %v6392
      %v6433 = vunpack.c.l.b16 %v6393
      %v6434 = vunpack.c.l.b16 %v6394
      %v6435 = vpack.c.b16 %v6420, %v6419
      %v6436 = vpack.c.b16 %v6422, %v6421
      %v6437 = vpack.c.b16 %v6424, %v6423
      %v6438 = vpack.c.b16 %v6426, %v6425
      %v6439 = vpack.c.b16 %v6428, %v6427
      %v6440 = vpack.c.b16 %v6430, %v6429
      %v6441 = vpack.c.b16 %v6432, %v6431
      %v6442 = vpack.c.b16 %v6434, %v6433
      %6451 = vmatprep.subr.bf16.mxu0 0
      %6452 = vmatpush1.bf16.msra.mxu0 %v6435
      %6453 = vmatprep.subr.bf16.mxu0 0
      %6454 = vmatpush1.bf16.msra.mxu0 %v6436
      %6455 = vmatprep.subr.bf16.mxu0 0
      %6456 = vmatpush1.bf16.msra.mxu0 %v6437
      %6457 = vmatprep.subr.bf16.mxu0 0
      %6458 = vmatpush1.bf16.msra.mxu0 %v6438
      %6459 = vmatprep.subr.bf16.mxu0 0
      %6460 = vmatpush1.bf16.msra.mxu0 %v6439
      %6461 = vmatprep.subr.bf16.mxu0 0
      %6462 = vmatpush1.bf16.msra.mxu0 %v6440
      %6463 = vmatprep.subr.bf16.mxu0 0
      %6464 = vmatpush1.bf16.msra.mxu0 %v6441
      %6465 = vmatprep.subr.bf16.mxu0 0
      %6466 = vmatpush1.bf16.msra.mxu0 %v6442
      %6467 = vmatprep.subr.bf16.mxu0 0
      %6468 = vmatpush1.bf16.msra.mxu0 0
      %6469 = vmatprep.subr.bf16.mxu0 0
      %6470 = vmatpush1.bf16.msra.mxu0 0
      %6471 = vmatprep.subr.bf16.mxu0 0
      %6472 = vmatpush1.bf16.msra.mxu0 0
      %6473 = vmatprep.subr.bf16.mxu0 0
      %6474 = vmatpush1.bf16.msra.mxu0 0
      %6475 = vmatprep.subr.bf16.mxu0 0
      %6476 = vmatpush1.bf16.msra.mxu0 0
      %6477 = vmatprep.subr.bf16.mxu0 0
      %6478 = vmatpush1.bf16.msra.mxu0 0
      %6479 = vmatprep.subr.bf16.mxu0 0
      %6480 = vmatpush1.bf16.msra.mxu0 0
      %6481 = vmatprep.subr.bf16.mxu0 0
      %6482 = vmatpush1.bf16.msra.mxu0 0
      %6483 = vmatprep.mubr.bf16.mxu0 0
      %6484 = vmatmul.mubr.bf16.gmra.mrb[0].mxu0 %v6362
      %v6485 = vpop.f32.mrb[0].mxu0
      %v6486 = vadd.f32 %v6401, %v6485
      %v6487 = vpop.f32.mrb[0].mxu0
      %v6488 = vpop.f32.mrb[0].mxu0
      %v6489 = vadd.f32 %v6401, %v6488
      %v6490 = vpop.f32.mrb[0].mxu0
      %6491 = vmatprep.mubr.bf16.mxu0 0
      %6492 = vmatmul.mubr.bf16.gmra.mrb[0].mxu0 %v6363
      %v6493 = vpop.f32.mrb[0].mxu0
      %v6494 = vadd.f32 %v6401, %v6493
      %v6495 = vpop.f32.mrb[0].mxu0
      %v6496 = vpop.f32.mrb[0].mxu0
      %v6497 = vadd.f32 %v6401, %v6496
      %v6498 = vpop.f32.mrb[0].mxu0
      %6499 = vmatprep.mubr.bf16.mxu0 0
      %6500 = vmatmul.mubr.bf16.gmra.mrb[0].mxu0 %v6364
      %v6501 = vpop.f32.mrb[0].mxu0
      %v6502 = vadd.f32 %v6401, %v6501
      %v6503 = vpop.f32.mrb[0].mxu0
      %v6504 = vpop.f32.mrb[0].mxu0
      %v6505 = vadd.f32 %v6401, %v6504
      %v6506 = vpop.f32.mrb[0].mxu0
      %6507 = vmatprep.mubr.bf16.mxu0 0
      %6508 = vmatmul.mubr.bf16.gmra.mrb[0].mxu0 %v6365
      %v6509 = vpop.f32.mrb[0].mxu0
      %v6510 = vadd.f32 %v6401, %v6509
      %v6511 = vpop.f32.mrb[0].mxu0
      %v6512 = vpop.f32.mrb[0].mxu0
      %v6513 = vadd.f32 %v6401, %v6512
      %v6514 = vpop.f32.mrb[0].mxu0
      %6515 = vmatprep.mubr.bf16.mxu0 0
      %6516 = vmatmul.mubr.bf16.gmra.mrb[0].mxu0 %v6366
      %v6517 = vpop.f32.mrb[0].mxu0
      %v6518 = vadd.f32 %v6401, %v6517
      %v6519 = vpop.f32.mrb[0].mxu0
      %v6520 = vpop.f32.mrb[0].mxu0
      %v6521 = vadd.f32 %v6401, %v6520
      %v6522 = vpop.f32.mrb[0].mxu0
      %6523 = vmatprep.mubr.bf16.mxu0 0
      %6524 = vmatmul.mubr.bf16.gmra.mrb[0].mxu0 %v6367
      %v6525 = vpop.f32.mrb[0].mxu0
      %v6526 = vadd.f32 %v6401, %v6525
      %v6527 = vpop.f32.mrb[0].mxu0
      %v6528 = vpop.f32.mrb[0].mxu0
      %v6529 = vadd.f32 %v6401, %v6528
      %v6530 = vpop.f32.mrb[0].mxu0
      %6531 = vmatprep.mubr.bf16.mxu0 0
      %6532 = vmatmul.mubr.bf16.gmra.mrb[0].mxu0 %v6368
      %v6533 = vpop.f32.mrb[0].mxu0
      %v6534 = vadd.f32 %v6401, %v6533
      %v6535 = vpop.f32.mrb[0].mxu0
      %v6536 = vpop.f32.mrb[0].mxu0
      %v6537 = vadd.f32 %v6401, %v6536
      %v6538 = vpop.f32.mrb[0].mxu0
      %6539 = vmatprep.mubr.bf16.mxu0 0
      %6540 = vmatmul.mubr.bf16.gmra.mrb[0].mxu0 %v6369
      %v6541 = vpop.f32.mrb[0].mxu0
      %v6542 = vadd.f32 %v6401, %v6541
      %v6543 = vpop.f32.mrb[0].mxu0
      %v6544 = vpop.f32.mrb[0].mxu0
      %v6545 = vadd.f32 %v6401, %v6544
      %v6546 = vpop.f32.mrb[0].mxu0
      %6547 = vmatprep.mubr.bf16.mxu0 0
      %6548 = vmatmul.mubr.bf16.gmra.mrb[0].mxu0 %v6370
      %v6549 = vpop.f32.mrb[0].mxu0
      %v6550 = vadd.f32 %v6401, %v6549
      %v6551 = vpop.f32.mrb[0].mxu0
      %v6552 = vpop.f32.mrb[0].mxu0
      %v6553 = vadd.f32 %v6401, %v6552
      %v6554 = vpop.f32.mrb[0].mxu0
      %6555 = vmatprep.mubr.bf16.mxu0 0
      %6556 = vmatmul.mubr.bf16.gmra.mrb[0].mxu0 %v6371
      %v6557 = vpop.f32.mrb[0].mxu0
      %v6558 = vadd.f32 %v6401, %v6557
      %v6559 = vpop.f32.mrb[0].mxu0
      %v6560 = vpop.f32.mrb[0].mxu0
      %v6561 = vadd.f32 %v6401, %v6560
      %v6562 = vpop.f32.mrb[0].mxu0
      %6563 = vmatprep.mubr.bf16.mxu0 0
      %6564 = vmatmul.mubr.bf16.gmra.mrb[0].mxu0 %v6372
      %v6565 = vpop.f32.mrb[0].mxu0
      %v6566 = vadd.f32 %v6401, %v6565
      %v6567 = vpop.f32.mrb[0].mxu0
      %v6568 = vpop.f32.mrb[0].mxu0
      %v6569 = vadd.f32 %v6401, %v6568
      %v6570 = vpop.f32.mrb[0].mxu0
      %6571 = vmatprep.mubr.bf16.mxu0 0
      %6572 = vmatmul.mubr.bf16.gmra.mrb[0].mxu0 %v6373
      %v6573 = vpop.f32.mrb[0].mxu0
      %v6574 = vadd.f32 %v6401, %v6573
      %v6575 = vpop.f32.mrb[0].mxu0
      %v6576 = vpop.f32.mrb[0].mxu0
      %v6577 = vadd.f32 %v6401, %v6576
      %v6578 = vpop.f32.mrb[0].mxu0
      %6579 = vmatprep.mubr.bf16.mxu0 0
      %6580 = vmatmul.mubr.bf16.gmra.mrb[0].mxu0 %v6374
      %v6581 = vpop.f32.mrb[0].mxu0
      %v6582 = vadd.f32 %v6401, %v6581
      %v6583 = vpop.f32.mrb[0].mxu0
      %v6584 = vpop.f32.mrb[0].mxu0
      %v6585 = vadd.f32 %v6401, %v6584
      %v6586 = vpop.f32.mrb[0].mxu0
      %6587 = vmatprep.mubr.bf16.mxu0 0
      %6588 = vmatmul.mubr.bf16.gmra.mrb[0].mxu0 %v6375
      %v6589 = vpop.f32.mrb[0].mxu0
      %v6590 = vadd.f32 %v6401, %v6589
      %v6591 = vpop.f32.mrb[0].mxu0
      %v6592 = vpop.f32.mrb[0].mxu0
      %v6593 = vadd.f32 %v6401, %v6592
      %v6594 = vpop.f32.mrb[0].mxu0
      %6595 = vmatprep.mubr.bf16.mxu0 0
      %6596 = vmatmul.mubr.bf16.gmra.mrb[0].mxu0 %v6376
      %v6597 = vpop.f32.mrb[0].mxu0
      %v6598 = vadd.f32 %v6401, %v6597
      %v6599 = vpop.f32.mrb[0].mxu0
      %v6600 = vpop.f32.mrb[0].mxu0
      %v6601 = vadd.f32 %v6401, %v6600
      %v6602 = vpop.f32.mrb[0].mxu0
      %6603 = vmatprep.mubr.bf16.mxu0 0
      %6604 = vmatmul.mubr.bf16.gmra.mrb[0].mxu0 %v6377
      %v6605 = vpop.f32.mrb[0].mxu0
      %v6606 = vadd.f32 %v6401, %v6605
      %v6607 = vpop.f32.mrb[0].mxu0
      %v6608 = vpop.f32.mrb[0].mxu0
      %v6609 = vadd.f32 %v6401, %v6608
      %v6610 = vpop.f32.mrb[0].mxu0
      %6611 = vdwg.mxu0
      %s6612 = scalar_lea.vmem %s10, 2
      %v6613 = vld [vmem:[%s6612] sm:$0x1]
      %v6615 = vlaneseq
      %v6616 = vshrl.u32 %v6615, 7
      %v6617 = vsub.s32 0, %v6616
      %v6618 = vrot.slane %v6613, %v6617
      %v6620 = vmul.f32 %v6486, %v6618
      %v6621 = vmul.f32 %v6489, %v6618
      %v6622 = vmul.f32 %v6494, %v6618
      %v6623 = vmul.f32 %v6497, %v6618
      %v6624 = vmul.f32 %v6502, %v6618
      %v6625 = vmul.f32 %v6505, %v6618
      %v6626 = vmul.f32 %v6510, %v6618
      %v6627 = vmul.f32 %v6513, %v6618
      %v6628 = vmul.f32 %v6518, %v6618
      %v6629 = vmul.f32 %v6521, %v6618
      %v6630 = vmul.f32 %v6526, %v6618
      %v6631 = vmul.f32 %v6529, %v6618
      %v6632 = vmul.f32 %v6534, %v6618
      %v6633 = vmul.f32 %v6537, %v6618
      %v6634 = vmul.f32 %v6542, %v6618
      %v6635 = vmul.f32 %v6545, %v6618
      %v6636 = vmul.f32 %v6550, %v6618
      %v6637 = vmul.f32 %v6553, %v6618
      %v6638 = vmul.f32 %v6558, %v6618
      %v6639 = vmul.f32 %v6561, %v6618
      %v6640 = vmul.f32 %v6566, %v6618
      %v6641 = vmul.f32 %v6569, %v6618
      %v6642 = vmul.f32 %v6574, %v6618
      %v6643 = vmul.f32 %v6577, %v6618
      %v6644 = vmul.f32 %v6582, %v6618
      %v6645 = vmul.f32 %v6585, %v6618
      %v6646 = vmul.f32 %v6590, %v6618
      %v6647 = vmul.f32 %v6593, %v6618
      %v6648 = vmul.f32 %v6598, %v6618
      %v6649 = vmul.f32 %v6601, %v6618
      %v6650 = vmul.f32 %v6606, %v6618
      %v6651 = vmul.f32 %v6609, %v6618
      %6652 = vadd.xlane.f32.xlu0 %v6620
      %v6653 = vpop.xlane.xlu0 %6652
      %6654 = vadd.xlane.f32.xlu0 %v6621
      %v6655 = vpop.xlane.xlu0 %6654
      %6656 = vadd.xlane.f32.xlu0 %v6622
      %v6657 = vpop.xlane.xlu0 %6656
      %6658 = vadd.xlane.f32.xlu0 %v6623
      %v6659 = vpop.xlane.xlu0 %6658
      %6660 = vadd.xlane.f32.xlu0 %v6624
      %v6661 = vpop.xlane.xlu0 %6660
      %6662 = vadd.xlane.f32.xlu0 %v6625
      %v6663 = vpop.xlane.xlu0 %6662
      %6664 = vadd.xlane.f32.xlu0 %v6626
      %v6665 = vpop.xlane.xlu0 %6664
      %6666 = vadd.xlane.f32.xlu0 %v6627
      %v6667 = vpop.xlane.xlu0 %6666
      %6668 = vadd.xlane.f32.xlu0 %v6628
      %v6669 = vpop.xlane.xlu0 %6668
      %6670 = vadd.xlane.f32.xlu0 %v6629
      %v6671 = vpop.xlane.xlu0 %6670
      %6672 = vadd.xlane.f32.xlu0 %v6630
      %v6673 = vpop.xlane.xlu0 %6672
      %6674 = vadd.xlane.f32.xlu0 %v6631
      %v6675 = vpop.xlane.xlu0 %6674
      %6676 = vadd.xlane.f32.xlu0 %v6632
      %v6677 = vpop.xlane.xlu0 %6676
      %6678 = vadd.xlane.f32.xlu0 %v6633
      %v6679 = vpop.xlane.xlu0 %6678
      %6680 = vadd.xlane.f32.xlu0 %v6634
      %v6681 = vpop.xlane.xlu0 %6680
      %6682 = vadd.xlane.f32.xlu0 %v6635
      %v6683 = vpop.xlane.xlu0 %6682
      %6684 = vadd.xlane.f32.xlu0 %v6636
      %v6685 = vpop.xlane.xlu0 %6684
      %6686 = vadd.xlane.f32.xlu0 %v6637
      %v6687 = vpop.xlane.xlu0 %6686
      %6688 = vadd.xlane.f32.xlu0 %v6638
      %v6689 = vpop.xlane.xlu0 %6688
      %6690 = vadd.xlane.f32.xlu0 %v6639
      %v6691 = vpop.xlane.xlu0 %6690
      %6692 = vadd.xlane.f32.xlu0 %v6640
      %v6693 = vpop.xlane.xlu0 %6692
      %6694 = vadd.xlane.f32.xlu0 %v6641
      %v6695 = vpop.xlane.xlu0 %6694
      %6696 = vadd.xlane.f32.xlu0 %v6642
      %v6697 = vpop.xlane.xlu0 %6696
      %6698 = vadd.xlane.f32.xlu0 %v6643
      %v6699 = vpop.xlane.xlu0 %6698
      %6700 = vadd.xlane.f32.xlu0 %v6644
      %v6701 = vpop.xlane.xlu0 %6700
      %6702 = vadd.xlane.f32.xlu0 %v6645
      %v6703 = vpop.xlane.xlu0 %6702
      %6704 = vadd.xlane.f32.xlu0 %v6646
      %v6705 = vpop.xlane.xlu0 %6704
      %6706 = vadd.xlane.f32.xlu0 %v6647
      %v6707 = vpop.xlane.xlu0 %6706
      %6708 = vadd.xlane.f32.xlu0 %v6648
      %v6709 = vpop.xlane.xlu0 %6708
      %6710 = vadd.xlane.f32.xlu0 %v6649
      %v6711 = vpop.xlane.xlu0 %6710
      %6712 = vadd.xlane.f32.xlu0 %v6650
      %v6713 = vpop.xlane.xlu0 %6712
      %6714 = vadd.xlane.f32.xlu0 %v6651
      %v6715 = vpop.xlane.xlu0 %6714
      %s6716 = scalar_lea.vmem %s9, 2
      %v6717 = vld [vmem:[%s6716] sm:$0x1]
      %6718 = vmatprep.subr.mxu0 0.0
      %6719 = vmatpush1.xpose.msra.mxu0 %v6486
      %6720 = vmatprep.subr.mxu0 0.0
      %6721 = vmatpush1.xpose.msra.mxu0 %v6489
      %6722 = vmatprep.subr.mxu0 0.0
      %6723 = vmatpush1.xpose.msra.mxu0 %v6494
      %6724 = vmatprep.subr.mxu0 0.0
      %6725 = vmatpush1.xpose.msra.mxu0 %v6497
      %6726 = vmatprep.subr.mxu0 0.0
      %6727 = vmatpush1.xpose.msra.mxu0 %v6502
      %6728 = vmatprep.subr.mxu0 0.0
      %6729 = vmatpush1.xpose.msra.mxu0 %v6505
      %6730 = vmatprep.subr.mxu0 0.0
      %6731 = vmatpush1.xpose.msra.mxu0 %v6510
      %6732 = vmatprep.subr.mxu0 0.0
      %6733 = vmatpush1.xpose.msra.mxu0 %v6513
      %6734 = vmatprep.subr.mxu0 0.0
      %6735 = vmatpush1.xpose.msra.mxu0 %v6518
      %6736 = vmatprep.subr.mxu0 0.0
      %6737 = vmatpush1.xpose.msra.mxu0 %v6521
      %6738 = vmatprep.subr.mxu0 0.0
      %6739 = vmatpush1.xpose.msra.mxu0 %v6526
      %6740 = vmatprep.subr.mxu0 0.0
      %6741 = vmatpush1.xpose.msra.mxu0 %v6529
      %6742 = vmatprep.subr.mxu0 0.0
      %6743 = vmatpush1.xpose.msra.mxu0 %v6534
      %6744 = vmatprep.subr.mxu0 0.0
      %6745 = vmatpush1.xpose.msra.mxu0 %v6537
      %6746 = vmatprep.subr.mxu0 0.0
      %6747 = vmatpush1.xpose.msra.mxu0 %v6542
      %6748 = vmatprep.subr.mxu0 0.0
      %6749 = vmatpush1.xpose.msra.mxu0 %v6545
      %6750 = vmatprep.subr.mxu0 0.0
      %6751 = vmatpush1.xpose.msra.mxu0 %v6550
      %6752 = vmatprep.subr.mxu0 0.0
      %6753 = vmatpush1.xpose.msra.mxu0 %v6553
      %6754 = vmatprep.subr.mxu0 0.0
      %6755 = vmatpush1.xpose.msra.mxu0 %v6558
      %6756 = vmatprep.subr.mxu0 0.0
      %6757 = vmatpush1.xpose.msra.mxu0 %v6561
      %6758 = vmatprep.subr.mxu0 0.0
      %6759 = vmatpush1.xpose.msra.mxu0 %v6566
      %6760 = vmatprep.subr.mxu0 0.0
      %6761 = vmatpush1.xpose.msra.mxu0 %v6569
      %6762 = vmatprep.subr.mxu0 0.0
      %6763 = vmatpush1.xpose.msra.mxu0 %v6574
      %6764 = vmatprep.subr.mxu0 0.0
      %6765 = vmatpush1.xpose.msra.mxu0 %v6577
      %6766 = vmatprep.subr.mxu0 0.0
      %6767 = vmatpush1.xpose.msra.mxu0 %v6582
      %6768 = vmatprep.subr.mxu0 0.0
      %6769 = vmatpush1.xpose.msra.mxu0 %v6585
      %6770 = vmatprep.subr.mxu0 0.0
      %6771 = vmatpush1.xpose.msra.mxu0 %v6590
      %6772 = vmatprep.subr.mxu0 0.0
      %6773 = vmatpush1.xpose.msra.mxu0 %v6593
      %6774 = vmatprep.subr.mxu0 0.0
      %6775 = vmatpush1.xpose.msra.mxu0 %v6598
      %6776 = vmatprep.subr.mxu0 0.0
      %6777 = vmatpush1.xpose.msra.mxu0 %v6601
      %6778 = vmatprep.subr.mxu0 0.0
      %6779 = vmatpush1.xpose.msra.mxu0 %v6606
      %6780 = vmatprep.subr.mxu0 0.0
      %6781 = vmatpush1.xpose.msra.mxu0 %v6609
      %6782 = vmatprep.mubr.f32.mxu0 0.0
      %6783 = vmatmul.mubr.f32.gmra.mrb[0].mxu0 %v6717
      %v6784 = vpop.f32.mrb[0].mxu0
      %v6785 = vadd.f32 0.0, %v6784
      %v6786 = vpop.f32.mrb[0].mxu0
      %v6787 = vadd.f32 0.0, %v6786
      %6788 = vdwg.mxu0
      %v6789 = vlaneseq
      %v6790 = vshrl.u32 %v6789, 7
      %v6791 = vsub.s32 0, %v6790
      %v6792 = vrot.slane %v6785, %v6791
      %v6793 = vlaneseq
      %v6794 = vshrl.u32 %v6793, 7
      %v6795 = vsub.s32 0, %v6794
      %v6796 = vrot.slane %v6787, %v6795
      %v6797 = vadd.f32 %v6653, %v6792
      %v6798 = vadd.f32 %v6653, %v6796
      %v6799 = vadd.f32 %v6655, %v6792
      %v6800 = vadd.f32 %v6655, %v6796
      %v6801 = vadd.f32 %v6657, %v6792
      %v6802 = vadd.f32 %v6657, %v6796
      %v6803 = vadd.f32 %v6659, %v6792
      %v6804 = vadd.f32 %v6659, %v6796
      %v6805 = vadd.f32 %v6661, %v6792
      %v6806 = vadd.f32 %v6661, %v6796
      %v6807 = vadd.f32 %v6663, %v6792
      %v6808 = vadd.f32 %v6663, %v6796
      %v6809 = vadd.f32 %v6665, %v6792
      %v6810 = vadd.f32 %v6665, %v6796
      %v6811 = vadd.f32 %v6667, %v6792
      %v6812 = vadd.f32 %v6667, %v6796
      %v6813 = vadd.f32 %v6669, %v6792
      %v6814 = vadd.f32 %v6669, %v6796
      %v6815 = vadd.f32 %v6671, %v6792
      %v6816 = vadd.f32 %v6671, %v6796
      %v6817 = vadd.f32 %v6673, %v6792
      %v6818 = vadd.f32 %v6673, %v6796
      %v6819 = vadd.f32 %v6675, %v6792
      %v6820 = vadd.f32 %v6675, %v6796
      %v6821 = vadd.f32 %v6677, %v6792
      %v6822 = vadd.f32 %v6677, %v6796
      %v6823 = vadd.f32 %v6679, %v6792
      %v6824 = vadd.f32 %v6679, %v6796
      %v6825 = vadd.f32 %v6681, %v6792
      %v6826 = vadd.f32 %v6681, %v6796
      %v6827 = vadd.f32 %v6683, %v6792
      %v6828 = vadd.f32 %v6683, %v6796
      %v6829 = vadd.f32 %v6685, %v6792
      %v6830 = vadd.f32 %v6685, %v6796
      %v6831 = vadd.f32 %v6687, %v6792
      %v6832 = vadd.f32 %v6687, %v6796
      %v6833 = vadd.f32 %v6689, %v6792
      %v6834 = vadd.f32 %v6689, %v6796
      %v6835 = vadd.f32 %v6691, %v6792
      %v6836 = vadd.f32 %v6691, %v6796
      %v6837 = vadd.f32 %v6693, %v6792
      %v6838 = vadd.f32 %v6693, %v6796
      %v6839 = vadd.f32 %v6695, %v6792
      %v6840 = vadd.f32 %v6695, %v6796
      %v6841 = vadd.f32 %v6697, %v6792
      %v6842 = vadd.f32 %v6697, %v6796
      %v6843 = vadd.f32 %v6699, %v6792
      %v6844 = vadd.f32 %v6699, %v6796
      %v6845 = vadd.f32 %v6701, %v6792
      %v6846 = vadd.f32 %v6701, %v6796
      %v6847 = vadd.f32 %v6703, %v6792
      %v6848 = vadd.f32 %v6703, %v6796
      %v6849 = vadd.f32 %v6705, %v6792
      %v6850 = vadd.f32 %v6705, %v6796
      %v6851 = vadd.f32 %v6707, %v6792
      %v6852 = vadd.f32 %v6707, %v6796
      %v6853 = vadd.f32 %v6709, %v6792
      %v6854 = vadd.f32 %v6709, %v6796
      %v6855 = vadd.f32 %v6711, %v6792
      %v6856 = vadd.f32 %v6711, %v6796
      %v6857 = vadd.f32 %v6713, %v6792
      %v6858 = vadd.f32 %v6713, %v6796
      %v6859 = vadd.f32 %v6715, %v6792
      %v6860 = vadd.f32 %v6715, %v6796
      %vm6861 = vcmp.gt.f32.partialorder %v6797, 0.0
      %vm6862 = vcmp.gt.f32.partialorder %v6798, 0.0
      %vm6863 = vcmp.gt.f32.partialorder %v6799, 0.0
      %vm6864 = vcmp.gt.f32.partialorder %v6800, 0.0
      %vm6865 = vcmp.gt.f32.partialorder %v6801, 0.0
      %vm6866 = vcmp.gt.f32.partialorder %v6802, 0.0
      %vm6867 = vcmp.gt.f32.partialorder %v6803, 0.0
      %vm6868 = vcmp.gt.f32.partialorder %v6804, 0.0
      %vm6869 = vcmp.gt.f32.partialorder %v6805, 0.0
      %vm6870 = vcmp.gt.f32.partialorder %v6806, 0.0
      %vm6871 = vcmp.gt.f32.partialorder %v6807, 0.0
      %vm6872 = vcmp.gt.f32.partialorder %v6808, 0.0
      %vm6873 = vcmp.gt.f32.partialorder %v6809, 0.0
      %vm6874 = vcmp.gt.f32.partialorder %v6810, 0.0
      %vm6875 = vcmp.gt.f32.partialorder %v6811, 0.0
      %vm6876 = vcmp.gt.f32.partialorder %v6812, 0.0
      %vm6877 = vcmp.gt.f32.partialorder %v6813, 0.0
      %vm6878 = vcmp.gt.f32.partialorder %v6814, 0.0
      %vm6879 = vcmp.gt.f32.partialorder %v6815, 0.0
      %vm6880 = vcmp.gt.f32.partialorder %v6816, 0.0
      %vm6881 = vcmp.gt.f32.partialorder %v6817, 0.0
      %vm6882 = vcmp.gt.f32.partialorder %v6818, 0.0
      %vm6883 = vcmp.gt.f32.partialorder %v6819, 0.0
      %vm6884 = vcmp.gt.f32.partialorder %v6820, 0.0
      %vm6885 = vcmp.gt.f32.partialorder %v6821, 0.0
      %vm6886 = vcmp.gt.f32.partialorder %v6822, 0.0
      %vm6887 = vcmp.gt.f32.partialorder %v6823, 0.0
      %vm6888 = vcmp.gt.f32.partialorder %v6824, 0.0
      %vm6889 = vcmp.gt.f32.partialorder %v6825, 0.0
      %vm6890 = vcmp.gt.f32.partialorder %v6826, 0.0
      %vm6891 = vcmp.gt.f32.partialorder %v6827, 0.0
      %vm6892 = vcmp.gt.f32.partialorder %v6828, 0.0
      %vm6893 = vcmp.gt.f32.partialorder %v6829, 0.0
      %vm6894 = vcmp.gt.f32.partialorder %v6830, 0.0
      %vm6895 = vcmp.gt.f32.partialorder %v6831, 0.0
      %vm6896 = vcmp.gt.f32.partialorder %v6832, 0.0
      %vm6897 = vcmp.gt.f32.partialorder %v6833, 0.0
      %vm6898 = vcmp.gt.f32.partialorder %v6834, 0.0
      %vm6899 = vcmp.gt.f32.partialorder %v6835, 0.0
      %vm6900 = vcmp.gt.f32.partialorder %v6836, 0.0
      %vm6901 = vcmp.gt.f32.partialorder %v6837, 0.0
      %vm6902 = vcmp.gt.f32.partialorder %v6838, 0.0
      %vm6903 = vcmp.gt.f32.partialorder %v6839, 0.0
      %vm6904 = vcmp.gt.f32.partialorder %v6840, 0.0
      %vm6905 = vcmp.gt.f32.partialorder %v6841, 0.0
      %vm6906 = vcmp.gt.f32.partialorder %v6842, 0.0
      %vm6907 = vcmp.gt.f32.partialorder %v6843, 0.0
      %vm6908 = vcmp.gt.f32.partialorder %v6844, 0.0
      %vm6909 = vcmp.gt.f32.partialorder %v6845, 0.0
      %vm6910 = vcmp.gt.f32.partialorder %v6846, 0.0
      %vm6911 = vcmp.gt.f32.partialorder %v6847, 0.0
      %vm6912 = vcmp.gt.f32.partialorder %v6848, 0.0
      %vm6913 = vcmp.gt.f32.partialorder %v6849, 0.0
      %vm6914 = vcmp.gt.f32.partialorder %v6850, 0.0
      %vm6915 = vcmp.gt.f32.partialorder %v6851, 0.0
      %vm6916 = vcmp.gt.f32.partialorder %v6852, 0.0
      %vm6917 = vcmp.gt.f32.partialorder %v6853, 0.0
      %vm6918 = vcmp.gt.f32.partialorder %v6854, 0.0
      %vm6919 = vcmp.gt.f32.partialorder %v6855, 0.0
      %vm6920 = vcmp.gt.f32.partialorder %v6856, 0.0
      %vm6921 = vcmp.gt.f32.partialorder %v6857, 0.0
      %vm6922 = vcmp.gt.f32.partialorder %v6858, 0.0
      %vm6923 = vcmp.gt.f32.partialorder %v6859, 0.0
      %vm6924 = vcmp.gt.f32.partialorder %v6860, 0.0
      %v6925 = vmul.f32 %v6797, 0.2
      %v6926 = vmul.f32 %v6798, 0.2
      %v6927 = vmul.f32 %v6799, 0.2
      %v6928 = vmul.f32 %v6800, 0.2
      %v6929 = vmul.f32 %v6801, 0.2
      %v6930 = vmul.f32 %v6802, 0.2
      %v6931 = vmul.f32 %v6803, 0.2
      %v6932 = vmul.f32 %v6804, 0.2
      %v6933 = vmul.f32 %v6805, 0.2
      %v6934 = vmul.f32 %v6806, 0.2
      %v6935 = vmul.f32 %v6807, 0.2
      %v6936 = vmul.f32 %v6808, 0.2
      %v6937 = vmul.f32 %v6809, 0.2
      %v6938 = vmul.f32 %v6810, 0.2
      %v6939 = vmul.f32 %v6811, 0.2
      %v6940 = vmul.f32 %v6812, 0.2
      %v6941 = vmul.f32 %v6813, 0.2
      %v6942 = vmul.f32 %v6814, 0.2
      %v6943 = vmul.f32 %v6815, 0.2
      %v6944 = vmul.f32 %v6816, 0.2
      %v6945 = vmul.f32 %v6817, 0.2
      %v6946 = vmul.f32 %v6818, 0.2
      %v6947 = vmul.f32 %v6819, 0.2
      %v6948 = vmul.f32 %v6820, 0.2
      %v6949 = vmul.f32 %v6821, 0.2
      %v6950 = vmul.f32 %v6822, 0.2
      %v6951 = vmul.f32 %v6823, 0.2
      %v6952 = vmul.f32 %v6824, 0.2
      %v6953 = vmul.f32 %v6825, 0.2
      %v6954 = vmul.f32 %v6826, 0.2
      %v6955 = vmul.f32 %v6827, 0.2
      %v6956 = vmul.f32 %v6828, 0.2
      %v6957 = vmul.f32 %v6829, 0.2
      %v6958 = vmul.f32 %v6830, 0.2
      %v6959 = vmul.f32 %v6831, 0.2
      %v6960 = vmul.f32 %v6832, 0.2
      %v6961 = vmul.f32 %v6833, 0.2
      %v6962 = vmul.f32 %v6834, 0.2
      %v6963 = vmul.f32 %v6835, 0.2
      %v6964 = vmul.f32 %v6836, 0.2
      %v6965 = vmul.f32 %v6837, 0.2
      %v6966 = vmul.f32 %v6838, 0.2
      %v6967 = vmul.f32 %v6839, 0.2
      %v6968 = vmul.f32 %v6840, 0.2
      %v6969 = vmul.f32 %v6841, 0.2
      %v6970 = vmul.f32 %v6842, 0.2
      %v6971 = vmul.f32 %v6843, 0.2
      %v6972 = vmul.f32 %v6844, 0.2
      %v6973 = vmul.f32 %v6845, 0.2
      %v6974 = vmul.f32 %v6846, 0.2
      %v6975 = vmul.f32 %v6847, 0.2
      %v6976 = vmul.f32 %v6848, 0.2
      %v6977 = vmul.f32 %v6849, 0.2
      %v6978 = vmul.f32 %v6850, 0.2
      %v6979 = vmul.f32 %v6851, 0.2
      %v6980 = vmul.f32 %v6852, 0.2
      %v6981 = vmul.f32 %v6853, 0.2
      %v6982 = vmul.f32 %v6854, 0.2
      %v6983 = vmul.f32 %v6855, 0.2
      %v6984 = vmul.f32 %v6856, 0.2
      %v6985 = vmul.f32 %v6857, 0.2
      %v6986 = vmul.f32 %v6858, 0.2
      %v6987 = vmul.f32 %v6859, 0.2
      %v6988 = vmul.f32 %v6860, 0.2
      %v6989 = vsel %vm6861, %v6797, %v6925
      %v6990 = vsel %vm6862, %v6798, %v6926
      %v6991 = vsel %vm6863, %v6799, %v6927
      %v6992 = vsel %vm6864, %v6800, %v6928
      %v6993 = vsel %vm6865, %v6801, %v6929
      %v6994 = vsel %vm6866, %v6802, %v6930
      %v6995 = vsel %vm6867, %v6803, %v6931
      %v6996 = vsel %vm6868, %v6804, %v6932
      %v6997 = vsel %vm6869, %v6805, %v6933
      %v6998 = vsel %vm6870, %v6806, %v6934
      %v6999 = vsel %vm6871, %v6807, %v6935
      %v7000 = vsel %vm6872, %v6808, %v6936
      %v7001 = vsel %vm6873, %v6809, %v6937
      %v7002 = vsel %vm6874, %v6810, %v6938
      %v7003 = vsel %vm6875, %v6811, %v6939
      %v7004 = vsel %vm6876, %v6812, %v6940
      %v7005 = vsel %vm6877, %v6813, %v6941
      %v7006 = vsel %vm6878, %v6814, %v6942
      %v7007 = vsel %vm6879, %v6815, %v6943
      %v7008 = vsel %vm6880, %v6816, %v6944
      %v7009 = vsel %vm6881, %v6817, %v6945
      %v7010 = vsel %vm6882, %v6818, %v6946
      %v7011 = vsel %vm6883, %v6819, %v6947
      %v7012 = vsel %vm6884, %v6820, %v6948
      %v7013 = vsel %vm6885, %v6821, %v6949
      %v7014 = vsel %vm6886, %v6822, %v6950
      %v7015 = vsel %vm6887, %v6823, %v6951
      %v7016 = vsel %vm6888, %v6824, %v6952
      %v7017 = vsel %vm6889, %v6825, %v6953
      %v7018 = vsel %vm6890, %v6826, %v6954
      %v7019 = vsel %vm6891, %v6827, %v6955
      %v7020 = vsel %vm6892, %v6828, %v6956
      %v7021 = vsel %vm6893, %v6829, %v6957
      %v7022 = vsel %vm6894, %v6830, %v6958
      %v7023 = vsel %vm6895, %v6831, %v6959
      %v7024 = vsel %vm6896, %v6832, %v6960
      %v7025 = vsel %vm6897, %v6833, %v6961
      %v7026 = vsel %vm6898, %v6834, %v6962
      %v7027 = vsel %vm6899, %v6835, %v6963
      %v7028 = vsel %vm6900, %v6836, %v6964
      %v7029 = vsel %vm6901, %v6837, %v6965
      %v7030 = vsel %vm6902, %v6838, %v6966
      %v7031 = vsel %vm6903, %v6839, %v6967
      %v7032 = vsel %vm6904, %v6840, %v6968
      %v7033 = vsel %vm6905, %v6841, %v6969
      %v7034 = vsel %vm6906, %v6842, %v6970
      %v7035 = vsel %vm6907, %v6843, %v6971
      %v7036 = vsel %vm6908, %v6844, %v6972
      %v7037 = vsel %vm6909, %v6845, %v6973
      %v7038 = vsel %vm6910, %v6846, %v6974
      %v7039 = vsel %vm6911, %v6847, %v6975
      %v7040 = vsel %vm6912, %v6848, %v6976
      %v7041 = vsel %vm6913, %v6849, %v6977
      %v7042 = vsel %vm6914, %v6850, %v6978
      %v7043 = vsel %vm6915, %v6851, %v6979
      %v7044 = vsel %vm6916, %v6852, %v6980
      %v7045 = vsel %vm6917, %v6853, %v6981
      %v7046 = vsel %vm6918, %v6854, %v6982
      %v7047 = vsel %vm6919, %v6855, %v6983
      %v7048 = vsel %vm6920, %v6856, %v6984
      %v7049 = vsel %vm6921, %v6857, %v6985
      %v7050 = vsel %vm6922, %v6858, %v6986
      %v7051 = vsel %vm6923, %v6859, %v6987
      %v7052 = vsel %vm6924, %v6860, %v6988
      %v7053 = vsel %vm3830, %v6989, -1e+30
      %v7054 = vsel %vm3831, %v6990, -1e+30
      %v7055 = vsel %vm3832, %v6991, -1e+30
      %v7056 = vsel %vm3833, %v6992, -1e+30
      %v7057 = vsel %vm3834, %v6993, -1e+30
      %v7058 = vsel %vm3835, %v6994, -1e+30
      %v7059 = vsel %vm3836, %v6995, -1e+30
      %v7060 = vsel %vm3837, %v6996, -1e+30
      %v7061 = vsel %vm3838, %v6997, -1e+30
      %v7062 = vsel %vm3839, %v6998, -1e+30
      %v7063 = vsel %vm3840, %v6999, -1e+30
      %v7064 = vsel %vm3841, %v7000, -1e+30
      %v7065 = vsel %vm3842, %v7001, -1e+30
      %v7066 = vsel %vm3843, %v7002, -1e+30
      %v7067 = vsel %vm3844, %v7003, -1e+30
      %v7068 = vsel %vm3845, %v7004, -1e+30
      %v7069 = vsel %vm3846, %v7005, -1e+30
      %v7070 = vsel %vm3847, %v7006, -1e+30
      %v7071 = vsel %vm3848, %v7007, -1e+30
      %v7072 = vsel %vm3849, %v7008, -1e+30
      %v7073 = vsel %vm3850, %v7009, -1e+30
      %v7074 = vsel %vm3851, %v7010, -1e+30
      %v7075 = vsel %vm3852, %v7011, -1e+30
      %v7076 = vsel %vm3853, %v7012, -1e+30
      %v7077 = vsel %vm3854, %v7013, -1e+30
      %v7078 = vsel %vm3855, %v7014, -1e+30
      %v7079 = vsel %vm3856, %v7015, -1e+30
      %v7080 = vsel %vm3857, %v7016, -1e+30
      %v7081 = vsel %vm3858, %v7017, -1e+30
      %v7082 = vsel %vm3859, %v7018, -1e+30
      %v7083 = vsel %vm3860, %v7019, -1e+30
      %v7084 = vsel %vm3861, %v7020, -1e+30
      %v7085 = vsel %vm3862, %v7021, -1e+30
      %v7086 = vsel %vm3863, %v7022, -1e+30
      %v7087 = vsel %vm3864, %v7023, -1e+30
      %v7088 = vsel %vm3865, %v7024, -1e+30
      %v7089 = vsel %vm3866, %v7025, -1e+30
      %v7090 = vsel %vm3867, %v7026, -1e+30
      %v7091 = vsel %vm3868, %v7027, -1e+30
      %v7092 = vsel %vm3869, %v7028, -1e+30
      %v7093 = vsel %vm3870, %v7029, -1e+30
      %v7094 = vsel %vm3871, %v7030, -1e+30
      %v7095 = vsel %vm3872, %v7031, -1e+30
      %v7096 = vsel %vm3873, %v7032, -1e+30
      %v7097 = vsel %vm3874, %v7033, -1e+30
      %v7098 = vsel %vm3875, %v7034, -1e+30
      %v7099 = vsel %vm3876, %v7035, -1e+30
      %v7100 = vsel %vm3877, %v7036, -1e+30
      %v7101 = vsel %vm3878, %v7037, -1e+30
      %v7102 = vsel %vm3879, %v7038, -1e+30
      %v7103 = vsel %vm3880, %v7039, -1e+30
      %v7104 = vsel %vm3881, %v7040, -1e+30
      %v7105 = vsel %vm3882, %v7041, -1e+30
      %v7106 = vsel %vm3883, %v7042, -1e+30
      %v7107 = vsel %vm3884, %v7043, -1e+30
      %v7108 = vsel %vm3885, %v7044, -1e+30
      %v7109 = vsel %vm3886, %v7045, -1e+30
      %v7110 = vsel %vm3887, %v7046, -1e+30
      %v7111 = vsel %vm3888, %v7047, -1e+30
      %v7112 = vsel %vm3889, %v7048, -1e+30
      %v7113 = vsel %vm3890, %v7049, -1e+30
      %v7114 = vsel %vm3891, %v7050, -1e+30
      %v7115 = vsel %vm3892, %v7051, -1e+30
      %v7116 = vsel %vm3893, %v7052, -1e+30
      %v7117 = vmax.f32 %v7053, %v7054
      %7118 = vmax.xlane.f32.xlu0 %v7117
      %v7119 = vpop.xlane.xlu0 %7118
      %v7120 = vmax.f32 %v7055, %v7056
      %7121 = vmax.xlane.f32.xlu0 %v7120
      %v7122 = vpop.xlane.xlu0 %7121
      %v7123 = vmax.f32 %v7057, %v7058
      %7124 = vmax.xlane.f32.xlu0 %v7123
      %v7125 = vpop.xlane.xlu0 %7124
      %v7126 = vmax.f32 %v7059, %v7060
      %7127 = vmax.xlane.f32.xlu0 %v7126
      %v7128 = vpop.xlane.xlu0 %7127
      %v7129 = vmax.f32 %v7061, %v7062
      %7130 = vmax.xlane.f32.xlu0 %v7129
      %v7131 = vpop.xlane.xlu0 %7130
      %v7132 = vmax.f32 %v7063, %v7064
      %7133 = vmax.xlane.f32.xlu0 %v7132
      %v7134 = vpop.xlane.xlu0 %7133
      %v7135 = vmax.f32 %v7065, %v7066
      %7136 = vmax.xlane.f32.xlu0 %v7135
      %v7137 = vpop.xlane.xlu0 %7136
      %v7138 = vmax.f32 %v7067, %v7068
      %7139 = vmax.xlane.f32.xlu0 %v7138
      %v7140 = vpop.xlane.xlu0 %7139
      %v7141 = vmax.f32 %v7069, %v7070
      %7142 = vmax.xlane.f32.xlu0 %v7141
      %v7143 = vpop.xlane.xlu0 %7142
      %v7144 = vmax.f32 %v7071, %v7072
      %7145 = vmax.xlane.f32.xlu0 %v7144
      %v7146 = vpop.xlane.xlu0 %7145
      %v7147 = vmax.f32 %v7073, %v7074
      %7148 = vmax.xlane.f32.xlu0 %v7147
      %v7149 = vpop.xlane.xlu0 %7148
      %v7150 = vmax.f32 %v7075, %v7076
      %7151 = vmax.xlane.f32.xlu0 %v7150
      %v7152 = vpop.xlane.xlu0 %7151
      %v7153 = vmax.f32 %v7077, %v7078
      %7154 = vmax.xlane.f32.xlu0 %v7153
      %v7155 = vpop.xlane.xlu0 %7154
      %v7156 = vmax.f32 %v7079, %v7080
      %7157 = vmax.xlane.f32.xlu0 %v7156
      %v7158 = vpop.xlane.xlu0 %7157
      %v7159 = vmax.f32 %v7081, %v7082
      %7160 = vmax.xlane.f32.xlu0 %v7159
      %v7161 = vpop.xlane.xlu0 %7160
      %v7162 = vmax.f32 %v7083, %v7084
      %7163 = vmax.xlane.f32.xlu0 %v7162
      %v7164 = vpop.xlane.xlu0 %7163
      %v7165 = vmax.f32 %v7085, %v7086
      %7166 = vmax.xlane.f32.xlu0 %v7165
      %v7167 = vpop.xlane.xlu0 %7166
      %v7168 = vmax.f32 %v7087, %v7088
      %7169 = vmax.xlane.f32.xlu0 %v7168
      %v7170 = vpop.xlane.xlu0 %7169
      %v7171 = vmax.f32 %v7089, %v7090
      %7172 = vmax.xlane.f32.xlu0 %v7171
      %v7173 = vpop.xlane.xlu0 %7172
      %v7174 = vmax.f32 %v7091, %v7092
      %7175 = vmax.xlane.f32.xlu0 %v7174
      %v7176 = vpop.xlane.xlu0 %7175
      %v7177 = vmax.f32 %v7093, %v7094
      %7178 = vmax.xlane.f32.xlu0 %v7177
      %v7179 = vpop.xlane.xlu0 %7178
      %v7180 = vmax.f32 %v7095, %v7096
      %7181 = vmax.xlane.f32.xlu0 %v7180
      %v7182 = vpop.xlane.xlu0 %7181
      %v7183 = vmax.f32 %v7097, %v7098
      %7184 = vmax.xlane.f32.xlu0 %v7183
      %v7185 = vpop.xlane.xlu0 %7184
      %v7186 = vmax.f32 %v7099, %v7100
      %7187 = vmax.xlane.f32.xlu0 %v7186
      %v7188 = vpop.xlane.xlu0 %7187
      %v7189 = vmax.f32 %v7101, %v7102
      %7190 = vmax.xlane.f32.xlu0 %v7189
      %v7191 = vpop.xlane.xlu0 %7190
      %v7192 = vmax.f32 %v7103, %v7104
      %7193 = vmax.xlane.f32.xlu0 %v7192
      %v7194 = vpop.xlane.xlu0 %7193
      %v7195 = vmax.f32 %v7105, %v7106
      %7196 = vmax.xlane.f32.xlu0 %v7195
      %v7197 = vpop.xlane.xlu0 %7196
      %v7198 = vmax.f32 %v7107, %v7108
      %7199 = vmax.xlane.f32.xlu0 %v7198
      %v7200 = vpop.xlane.xlu0 %7199
      %v7201 = vmax.f32 %v7109, %v7110
      %7202 = vmax.xlane.f32.xlu0 %v7201
      %v7203 = vpop.xlane.xlu0 %7202
      %v7204 = vmax.f32 %v7111, %v7112
      %7205 = vmax.xlane.f32.xlu0 %v7204
      %v7206 = vpop.xlane.xlu0 %7205
      %v7207 = vmax.f32 %v7113, %v7114
      %7208 = vmax.xlane.f32.xlu0 %v7207
      %v7209 = vpop.xlane.xlu0 %7208
      %v7210 = vmax.f32 %v7115, %v7116
      %7211 = vmax.xlane.f32.xlu0 %v7210
      %v7212 = vpop.xlane.xlu0 %7211
      %v7213 = vsub.f32 %v7053, %v7119
      %v7214 = vsub.f32 %v7054, %v7119
      %v7215 = vsub.f32 %v7055, %v7122
      %v7216 = vsub.f32 %v7056, %v7122
      %v7217 = vsub.f32 %v7057, %v7125
      %v7218 = vsub.f32 %v7058, %v7125
      %v7219 = vsub.f32 %v7059, %v7128
      %v7220 = vsub.f32 %v7060, %v7128
      %v7221 = vsub.f32 %v7061, %v7131
      %v7222 = vsub.f32 %v7062, %v7131
      %v7223 = vsub.f32 %v7063, %v7134
      %v7224 = vsub.f32 %v7064, %v7134
      %v7225 = vsub.f32 %v7065, %v7137
      %v7226 = vsub.f32 %v7066, %v7137
      %v7227 = vsub.f32 %v7067, %v7140
      %v7228 = vsub.f32 %v7068, %v7140
      %v7229 = vsub.f32 %v7069, %v7143
      %v7230 = vsub.f32 %v7070, %v7143
      %v7231 = vsub.f32 %v7071, %v7146
      %v7232 = vsub.f32 %v7072, %v7146
      %v7233 = vsub.f32 %v7073, %v7149
      %v7234 = vsub.f32 %v7074, %v7149
      %v7235 = vsub.f32 %v7075, %v7152
      %v7236 = vsub.f32 %v7076, %v7152
      %v7237 = vsub.f32 %v7077, %v7155
      %v7238 = vsub.f32 %v7078, %v7155
      %v7239 = vsub.f32 %v7079, %v7158
      %v7240 = vsub.f32 %v7080, %v7158
      %v7241 = vsub.f32 %v7081, %v7161
      %v7242 = vsub.f32 %v7082, %v7161
      %v7243 = vsub.f32 %v7083, %v7164
      %v7244 = vsub.f32 %v7084, %v7164
      %v7245 = vsub.f32 %v7085, %v7167
      %v7246 = vsub.f32 %v7086, %v7167
      %v7247 = vsub.f32 %v7087, %v7170
      %v7248 = vsub.f32 %v7088, %v7170
      %v7249 = vsub.f32 %v7089, %v7173
      %v7250 = vsub.f32 %v7090, %v7173
      %v7251 = vsub.f32 %v7091, %v7176
      %v7252 = vsub.f32 %v7092, %v7176
      %v7253 = vsub.f32 %v7093, %v7179
      %v7254 = vsub.f32 %v7094, %v7179
      %v7255 = vsub.f32 %v7095, %v7182
      %v7256 = vsub.f32 %v7096, %v7182
      %v7257 = vsub.f32 %v7097, %v7185
      %v7258 = vsub.f32 %v7098, %v7185
      %v7259 = vsub.f32 %v7099, %v7188
      %v7260 = vsub.f32 %v7100, %v7188
      %v7261 = vsub.f32 %v7101, %v7191
      %v7262 = vsub.f32 %v7102, %v7191
      %v7263 = vsub.f32 %v7103, %v7194
      %v7264 = vsub.f32 %v7104, %v7194
      %v7265 = vsub.f32 %v7105, %v7197
      %v7266 = vsub.f32 %v7106, %v7197
      %v7267 = vsub.f32 %v7107, %v7200
      %v7268 = vsub.f32 %v7108, %v7200
      %v7269 = vsub.f32 %v7109, %v7203
      %v7270 = vsub.f32 %v7110, %v7203
      %v7271 = vsub.f32 %v7111, %v7206
      %v7272 = vsub.f32 %v7112, %v7206
      %v7273 = vsub.f32 %v7113, %v7209
      %v7274 = vsub.f32 %v7114, %v7209
      %v7275 = vsub.f32 %v7115, %v7212
      %v7276 = vsub.f32 %v7116, %v7212
      %v7277 = vmul.f32 %v7213, 1.442695
      %v7278 = vpow.pop %v7277
      %v7279 = vmul.f32 %v7214, 1.442695
      %v7280 = vpow.pop %v7279
      %v7281 = vmul.f32 %v7215, 1.442695
      %v7282 = vpow.pop %v7281
      %v7283 = vmul.f32 %v7216, 1.442695
      %v7284 = vpow.pop %v7283
      %v7285 = vmul.f32 %v7217, 1.442695
      %v7286 = vpow.pop %v7285
      %v7287 = vmul.f32 %v7218, 1.442695
      %v7288 = vpow.pop %v7287
      %v7289 = vmul.f32 %v7219, 1.442695
      %v7290 = vpow.pop %v7289
      %v7291 = vmul.f32 %v7220, 1.442695
      %v7292 = vpow.pop %v7291
      %v7293 = vmul.f32 %v7221, 1.442695
      %v7294 = vpow.pop %v7293
      %v7295 = vmul.f32 %v7222, 1.442695
      %v7296 = vpow.pop %v7295
      %v7297 = vmul.f32 %v7223, 1.442695
      %v7298 = vpow.pop %v7297
      %v7299 = vmul.f32 %v7224, 1.442695
      %v7300 = vpow.pop %v7299
      %v7301 = vmul.f32 %v7225, 1.442695
      %v7302 = vpow.pop %v7301
      %v7303 = vmul.f32 %v7226, 1.442695
      %v7304 = vpow.pop %v7303
      %v7305 = vmul.f32 %v7227, 1.442695
      %v7306 = vpow.pop %v7305
      %v7307 = vmul.f32 %v7228, 1.442695
      %v7308 = vpow.pop %v7307
      %v7309 = vmul.f32 %v7229, 1.442695
      %v7310 = vpow.pop %v7309
      %v7311 = vmul.f32 %v7230, 1.442695
      %v7312 = vpow.pop %v7311
      %v7313 = vmul.f32 %v7231, 1.442695
      %v7314 = vpow.pop %v7313
      %v7315 = vmul.f32 %v7232, 1.442695
      %v7316 = vpow.pop %v7315
      %v7317 = vmul.f32 %v7233, 1.442695
      %v7318 = vpow.pop %v7317
      %v7319 = vmul.f32 %v7234, 1.442695
      %v7320 = vpow.pop %v7319
      %v7321 = vmul.f32 %v7235, 1.442695
      %v7322 = vpow.pop %v7321
      %v7323 = vmul.f32 %v7236, 1.442695
      %v7324 = vpow.pop %v7323
      %v7325 = vmul.f32 %v7237, 1.442695
      %v7326 = vpow.pop %v7325
      %v7327 = vmul.f32 %v7238, 1.442695
      %v7328 = vpow.pop %v7327
      %v7329 = vmul.f32 %v7239, 1.442695
      %v7330 = vpow.pop %v7329
      %v7331 = vmul.f32 %v7240, 1.442695
      %v7332 = vpow.pop %v7331
      %v7333 = vmul.f32 %v7241, 1.442695
      %v7334 = vpow.pop %v7333
      %v7335 = vmul.f32 %v7242, 1.442695
      %v7336 = vpow.pop %v7335
      %v7337 = vmul.f32 %v7243, 1.442695
      %v7338 = vpow.pop %v7337
      %v7339 = vmul.f32 %v7244, 1.442695
      %v7340 = vpow.pop %v7339
      %v7341 = vmul.f32 %v7245, 1.442695
      %v7342 = vpow.pop %v7341
      %v7343 = vmul.f32 %v7246, 1.442695
      %v7344 = vpow.pop %v7343
      %v7345 = vmul.f32 %v7247, 1.442695
      %v7346 = vpow.pop %v7345
      %v7347 = vmul.f32 %v7248, 1.442695
      %v7348 = vpow.pop %v7347
      %v7349 = vmul.f32 %v7249, 1.442695
      %v7350 = vpow.pop %v7349
      %v7351 = vmul.f32 %v7250, 1.442695
      %v7352 = vpow.pop %v7351
      %v7353 = vmul.f32 %v7251, 1.442695
      %v7354 = vpow.pop %v7353
      %v7355 = vmul.f32 %v7252, 1.442695
      %v7356 = vpow.pop %v7355
      %v7357 = vmul.f32 %v7253, 1.442695
      %v7358 = vpow.pop %v7357
      %v7359 = vmul.f32 %v7254, 1.442695
      %v7360 = vpow.pop %v7359
      %v7361 = vmul.f32 %v7255, 1.442695
      %v7362 = vpow.pop %v7361
      %v7363 = vmul.f32 %v7256, 1.442695
      %v7364 = vpow.pop %v7363
      %v7365 = vmul.f32 %v7257, 1.442695
      %v7366 = vpow.pop %v7365
      %v7367 = vmul.f32 %v7258, 1.442695
      %v7368 = vpow.pop %v7367
      %v7369 = vmul.f32 %v7259, 1.442695
      %v7370 = vpow.pop %v7369
      %v7371 = vmul.f32 %v7260, 1.442695
      %v7372 = vpow.pop %v7371
      %v7373 = vmul.f32 %v7261, 1.442695
      %v7374 = vpow.pop %v7373
      %v7375 = vmul.f32 %v7262, 1.442695
      %v7376 = vpow.pop %v7375
      %v7377 = vmul.f32 %v7263, 1.442695
      %v7378 = vpow.pop %v7377
      %v7379 = vmul.f32 %v7264, 1.442695
      %v7380 = vpow.pop %v7379
      %v7381 = vmul.f32 %v7265, 1.442695
      %v7382 = vpow.pop %v7381
      %v7383 = vmul.f32 %v7266, 1.442695
      %v7384 = vpow.pop %v7383
      %v7385 = vmul.f32 %v7267, 1.442695
      %v7386 = vpow.pop %v7385
      %v7387 = vmul.f32 %v7268, 1.442695
      %v7388 = vpow.pop %v7387
      %v7389 = vmul.f32 %v7269, 1.442695
      %v7390 = vpow.pop %v7389
      %v7391 = vmul.f32 %v7270, 1.442695
      %v7392 = vpow.pop %v7391
      %v7393 = vmul.f32 %v7271, 1.442695
      %v7394 = vpow.pop %v7393
      %v7395 = vmul.f32 %v7272, 1.442695
      %v7396 = vpow.pop %v7395
      %v7397 = vmul.f32 %v7273, 1.442695
      %v7398 = vpow.pop %v7397
      %v7399 = vmul.f32 %v7274, 1.442695
      %v7400 = vpow.pop %v7399
      %v7401 = vmul.f32 %v7275, 1.442695
      %v7402 = vpow.pop %v7401
      %v7403 = vmul.f32 %v7276, 1.442695
      %v7404 = vpow.pop %v7403
      %v7405 = vmul.f32 %v4054, %v7278
      %v7406 = vmul.f32 %v4055, %v7280
      %v7407 = vmul.f32 %v4056, %v7282
      %v7408 = vmul.f32 %v4057, %v7284
      %v7409 = vmul.f32 %v4058, %v7286
      %v7410 = vmul.f32 %v4059, %v7288
      %v7411 = vmul.f32 %v4060, %v7290
      %v7412 = vmul.f32 %v4061, %v7292
      %v7413 = vmul.f32 %v4062, %v7294
      %v7414 = vmul.f32 %v4063, %v7296
      %v7415 = vmul.f32 %v4064, %v7298
      %v7416 = vmul.f32 %v4065, %v7300
      %v7417 = vmul.f32 %v4066, %v7302
      %v7418 = vmul.f32 %v4067, %v7304
      %v7419 = vmul.f32 %v4068, %v7306
      %v7420 = vmul.f32 %v4069, %v7308
      %v7421 = vmul.f32 %v4070, %v7310
      %v7422 = vmul.f32 %v4071, %v7312
      %v7423 = vmul.f32 %v4072, %v7314
      %v7424 = vmul.f32 %v4073, %v7316
      %v7425 = vmul.f32 %v4074, %v7318
      %v7426 = vmul.f32 %v4075, %v7320
      %v7427 = vmul.f32 %v4076, %v7322
      %v7428 = vmul.f32 %v4077, %v7324
      %v7429 = vmul.f32 %v4078, %v7326
      %v7430 = vmul.f32 %v4079, %v7328
      %v7431 = vmul.f32 %v4080, %v7330
      %v7432 = vmul.f32 %v4081, %v7332
      %v7433 = vmul.f32 %v4082, %v7334
      %v7434 = vmul.f32 %v4083, %v7336
      %v7435 = vmul.f32 %v4084, %v7338
      %v7436 = vmul.f32 %v4085, %v7340
      %v7437 = vmul.f32 %v4086, %v7342
      %v7438 = vmul.f32 %v4087, %v7344
      %v7439 = vmul.f32 %v4088, %v7346
      %v7440 = vmul.f32 %v4089, %v7348
      %v7441 = vmul.f32 %v4090, %v7350
      %v7442 = vmul.f32 %v4091, %v7352
      %v7443 = vmul.f32 %v4092, %v7354
      %v7444 = vmul.f32 %v4093, %v7356
      %v7445 = vmul.f32 %v4094, %v7358
      %v7446 = vmul.f32 %v4095, %v7360
      %v7447 = vmul.f32 %v4096, %v7362
      %v7448 = vmul.f32 %v4097, %v7364
      %v7449 = vmul.f32 %v4098, %v7366
      %v7450 = vmul.f32 %v4099, %v7368
      %v7451 = vmul.f32 %v4100, %v7370
      %v7452 = vmul.f32 %v4101, %v7372
      %v7453 = vmul.f32 %v4102, %v7374
      %v7454 = vmul.f32 %v4103, %v7376
      %v7455 = vmul.f32 %v4104, %v7378
      %v7456 = vmul.f32 %v4105, %v7380
      %v7457 = vmul.f32 %v4106, %v7382
      %v7458 = vmul.f32 %v4107, %v7384
      %v7459 = vmul.f32 %v4108, %v7386
      %v7460 = vmul.f32 %v4109, %v7388
      %v7461 = vmul.f32 %v4110, %v7390
      %v7462 = vmul.f32 %v4111, %v7392
      %v7463 = vmul.f32 %v4112, %v7394
      %v7464 = vmul.f32 %v4113, %v7396
      %v7465 = vmul.f32 %v4114, %v7398
      %v7466 = vmul.f32 %v4115, %v7400
      %v7467 = vmul.f32 %v4116, %v7402
      %v7468 = vmul.f32 %v4117, %v7404
      %v7469 = vadd.f32 %v7405, %v7406
      %7470 = vadd.xlane.f32.xlu0 %v7469
      %v7471 = vpop.xlane.xlu0 %7470
      %v7472 = vadd.f32 %v7407, %v7408
      %7473 = vadd.xlane.f32.xlu0 %v7472
      %v7474 = vpop.xlane.xlu0 %7473
      %v7475 = vadd.f32 %v7409, %v7410
      %7476 = vadd.xlane.f32.xlu0 %v7475
      %v7477 = vpop.xlane.xlu0 %7476
      %v7478 = vadd.f32 %v7411, %v7412
      %7479 = vadd.xlane.f32.xlu0 %v7478
      %v7480 = vpop.xlane.xlu0 %7479
      %v7481 = vadd.f32 %v7413, %v7414
      %7482 = vadd.xlane.f32.xlu0 %v7481
      %v7483 = vpop.xlane.xlu0 %7482
      %v7484 = vadd.f32 %v7415, %v7416
      %7485 = vadd.xlane.f32.xlu0 %v7484
      %v7486 = vpop.xlane.xlu0 %7485
      %v7487 = vadd.f32 %v7417, %v7418
      %7488 = vadd.xlane.f32.xlu0 %v7487
      %v7489 = vpop.xlane.xlu0 %7488
      %v7490 = vadd.f32 %v7419, %v7420
      %7491 = vadd.xlane.f32.xlu0 %v7490
      %v7492 = vpop.xlane.xlu0 %7491
      %v7493 = vadd.f32 %v7421, %v7422
      %7494 = vadd.xlane.f32.xlu0 %v7493
      %v7495 = vpop.xlane.xlu0 %7494
      %v7496 = vadd.f32 %v7423, %v7424
      %7497 = vadd.xlane.f32.xlu0 %v7496
      %v7498 = vpop.xlane.xlu0 %7497
      %v7499 = vadd.f32 %v7425, %v7426
      %7500 = vadd.xlane.f32.xlu0 %v7499
      %v7501 = vpop.xlane.xlu0 %7500
      %v7502 = vadd.f32 %v7427, %v7428
      %7503 = vadd.xlane.f32.xlu0 %v7502
      %v7504 = vpop.xlane.xlu0 %7503
      %v7505 = vadd.f32 %v7429, %v7430
      %7506 = vadd.xlane.f32.xlu0 %v7505
      %v7507 = vpop.xlane.xlu0 %7506
      %v7508 = vadd.f32 %v7431, %v7432
      %7509 = vadd.xlane.f32.xlu0 %v7508
      %v7510 = vpop.xlane.xlu0 %7509
      %v7511 = vadd.f32 %v7433, %v7434
      %7512 = vadd.xlane.f32.xlu0 %v7511
      %v7513 = vpop.xlane.xlu0 %7512
      %v7514 = vadd.f32 %v7435, %v7436
      %7515 = vadd.xlane.f32.xlu0 %v7514
      %v7516 = vpop.xlane.xlu0 %7515
      %v7517 = vadd.f32 %v7437, %v7438
      %7518 = vadd.xlane.f32.xlu0 %v7517
      %v7519 = vpop.xlane.xlu0 %7518
      %v7520 = vadd.f32 %v7439, %v7440
      %7521 = vadd.xlane.f32.xlu0 %v7520
      %v7522 = vpop.xlane.xlu0 %7521
      %v7523 = vadd.f32 %v7441, %v7442
      %7524 = vadd.xlane.f32.xlu0 %v7523
      %v7525 = vpop.xlane.xlu0 %7524
      %v7526 = vadd.f32 %v7443, %v7444
      %7527 = vadd.xlane.f32.xlu0 %v7526
      %v7528 = vpop.xlane.xlu0 %7527
      %v7529 = vadd.f32 %v7445, %v7446
      %7530 = vadd.xlane.f32.xlu0 %v7529
      %v7531 = vpop.xlane.xlu0 %7530
      %v7532 = vadd.f32 %v7447, %v7448
      %7533 = vadd.xlane.f32.xlu0 %v7532
      %v7534 = vpop.xlane.xlu0 %7533
      %v7535 = vadd.f32 %v7449, %v7450
      %7536 = vadd.xlane.f32.xlu0 %v7535
      %v7537 = vpop.xlane.xlu0 %7536
      %v7538 = vadd.f32 %v7451, %v7452
      %7539 = vadd.xlane.f32.xlu0 %v7538
      %v7540 = vpop.xlane.xlu0 %7539
      %v7541 = vadd.f32 %v7453, %v7454
      %7542 = vadd.xlane.f32.xlu0 %v7541
      %v7543 = vpop.xlane.xlu0 %7542
      %v7544 = vadd.f32 %v7455, %v7456
      %7545 = vadd.xlane.f32.xlu0 %v7544
      %v7546 = vpop.xlane.xlu0 %7545
      %v7547 = vadd.f32 %v7457, %v7458
      %7548 = vadd.xlane.f32.xlu0 %v7547
      %v7549 = vpop.xlane.xlu0 %7548
      %v7550 = vadd.f32 %v7459, %v7460
      %7551 = vadd.xlane.f32.xlu0 %v7550
      %v7552 = vpop.xlane.xlu0 %7551
      %v7553 = vadd.f32 %v7461, %v7462
      %7554 = vadd.xlane.f32.xlu0 %v7553
      %v7555 = vpop.xlane.xlu0 %7554
      %v7556 = vadd.f32 %v7463, %v7464
      %7557 = vadd.xlane.f32.xlu0 %v7556
      %v7558 = vpop.xlane.xlu0 %7557
      %v7559 = vadd.f32 %v7465, %v7466
      %7560 = vadd.xlane.f32.xlu0 %v7559
      %v7561 = vpop.xlane.xlu0 %7560
      %v7562 = vadd.f32 %v7467, %v7468
      %7563 = vadd.xlane.f32.xlu0 %v7562
      %v7564 = vpop.xlane.xlu0 %7563
      %v7565 = vrcp.pop %v7471
      %v7566 = vrcp.pop %v7474
      %v7567 = vrcp.pop %v7477
      %v7568 = vrcp.pop %v7480
      %v7569 = vrcp.pop %v7483
      %v7570 = vrcp.pop %v7486
      %v7571 = vrcp.pop %v7489
      %v7572 = vrcp.pop %v7492
      %v7573 = vrcp.pop %v7495
      %v7574 = vrcp.pop %v7498
      %v7575 = vrcp.pop %v7501
      %v7576 = vrcp.pop %v7504
      %v7577 = vrcp.pop %v7507
      %v7578 = vrcp.pop %v7510
      %v7579 = vrcp.pop %v7513
      %v7580 = vrcp.pop %v7516
      %v7581 = vrcp.pop %v7519
      %v7582 = vrcp.pop %v7522
      %v7583 = vrcp.pop %v7525
      %v7584 = vrcp.pop %v7528
      %v7585 = vrcp.pop %v7531
      %v7586 = vrcp.pop %v7534
      %v7587 = vrcp.pop %v7537
      %v7588 = vrcp.pop %v7540
      %v7589 = vrcp.pop %v7543
      %v7590 = vrcp.pop %v7546
      %v7591 = vrcp.pop %v7549
      %v7592 = vrcp.pop %v7552
      %v7593 = vrcp.pop %v7555
      %v7594 = vrcp.pop %v7558
      %v7595 = vrcp.pop %v7561
      %v7596 = vrcp.pop %v7564
      %v7597 = vpack.c.bf16 %v7407, %v7405
      %v7598 = vpack.c.bf16 %v7408, %v7406
      %v7599 = vpack.c.bf16 %v7411, %v7409
      %v7600 = vpack.c.bf16 %v7412, %v7410
      %v7601 = vpack.c.bf16 %v7415, %v7413
      %v7602 = vpack.c.bf16 %v7416, %v7414
      %v7603 = vpack.c.bf16 %v7419, %v7417
      %v7604 = vpack.c.bf16 %v7420, %v7418
      %v7605 = vpack.c.bf16 %v7423, %v7421
      %v7606 = vpack.c.bf16 %v7424, %v7422
      %v7607 = vpack.c.bf16 %v7427, %v7425
      %v7608 = vpack.c.bf16 %v7428, %v7426
      %v7609 = vpack.c.bf16 %v7431, %v7429
      %v7610 = vpack.c.bf16 %v7432, %v7430
      %v7611 = vpack.c.bf16 %v7435, %v7433
      %v7612 = vpack.c.bf16 %v7436, %v7434
      %v7613 = vpack.c.bf16 %v7439, %v7437
      %v7614 = vpack.c.bf16 %v7440, %v7438
      %v7615 = vpack.c.bf16 %v7443, %v7441
      %v7616 = vpack.c.bf16 %v7444, %v7442
      %v7617 = vpack.c.bf16 %v7447, %v7445
      %v7618 = vpack.c.bf16 %v7448, %v7446
      %v7619 = vpack.c.bf16 %v7451, %v7449
      %v7620 = vpack.c.bf16 %v7452, %v7450
      %v7621 = vpack.c.bf16 %v7455, %v7453
      %v7622 = vpack.c.bf16 %v7456, %v7454
      %v7623 = vpack.c.bf16 %v7459, %v7457
      %v7624 = vpack.c.bf16 %v7460, %v7458
      %v7625 = vpack.c.bf16 %v7463, %v7461
      %v7626 = vpack.c.bf16 %v7464, %v7462
      %v7627 = vpack.c.bf16 %v7467, %v7465
      %v7628 = vpack.c.bf16 %v7468, %v7466
      %v7629 = vpack.c.bf16 %v6489, %v6486
      %v7630 = vpack.c.bf16 %v6497, %v6494
      %v7631 = vpack.c.bf16 %v6505, %v6502
      %v7632 = vpack.c.bf16 %v6513, %v6510
      %v7633 = vpack.c.bf16 %v6521, %v6518
      %v7634 = vpack.c.bf16 %v6529, %v6526
      %v7635 = vpack.c.bf16 %v6537, %v6534
      %v7636 = vpack.c.bf16 %v6545, %v6542
      %v7637 = vpack.c.bf16 %v6553, %v6550
      %v7638 = vpack.c.bf16 %v6561, %v6558
      %v7639 = vpack.c.bf16 %v6569, %v6566
      %v7640 = vpack.c.bf16 %v6577, %v6574
      %v7641 = vpack.c.bf16 %v6585, %v6582
      %v7642 = vpack.c.bf16 %v6593, %v6590
      %v7643 = vpack.c.bf16 %v6601, %v6598
      %v7644 = vpack.c.bf16 %v6609, %v6606
      %7645 = vmatprep.subr.bf16.mxu0 0
      %7646 = vmatpush1.bf16.msra.mxu0 %v7629
      %7647 = vmatprep.subr.bf16.mxu0 0
      %7648 = vmatpush1.bf16.msra.mxu0 %v7630
      %7649 = vmatprep.subr.bf16.mxu0 0
      %7650 = vmatpush1.bf16.msra.mxu0 %v7631
      %7651 = vmatprep.subr.bf16.mxu0 0
      %7652 = vmatpush1.bf16.msra.mxu0 %v7632
      %7653 = vmatprep.subr.bf16.mxu0 0
      %7654 = vmatpush1.bf16.msra.mxu0 %v7633
      %7655 = vmatprep.subr.bf16.mxu0 0
      %7656 = vmatpush1.bf16.msra.mxu0 %v7634
      %7657 = vmatprep.subr.bf16.mxu0 0
      %7658 = vmatpush1.bf16.msra.mxu0 %v7635
      %7659 = vmatprep.subr.bf16.mxu0 0
      %7660 = vmatpush1.bf16.msra.mxu0 %v7636
      %7661 = vmatprep.subr.bf16.mxu0 0
      %7662 = vmatpush1.bf16.msra.mxu0 %v7637
      %7663 = vmatprep.subr.bf16.mxu0 0
      %7664 = vmatpush1.bf16.msra.mxu0 %v7638
      %7665 = vmatprep.subr.bf16.mxu0 0
      %7666 = vmatpush1.bf16.msra.mxu0 %v7639
      %7667 = vmatprep.subr.bf16.mxu0 0
      %7668 = vmatpush1.bf16.msra.mxu0 %v7640
      %7669 = vmatprep.subr.bf16.mxu0 0
      %7670 = vmatpush1.bf16.msra.mxu0 %v7641
      %7671 = vmatprep.subr.bf16.mxu0 0
      %7672 = vmatpush1.bf16.msra.mxu0 %v7642
      %7673 = vmatprep.subr.bf16.mxu0 0
      %7674 = vmatpush1.bf16.msra.mxu0 %v7643
      %7675 = vmatprep.subr.bf16.mxu0 0
      %7676 = vmatpush1.bf16.msra.mxu0 %v7644
      %7677 = vmatprep.mubr.bf16.mxu0 %v7598
      %7678 = vmatmul.mubr.bf16.gmra.mrb[0].mxu0 %v7597
      %v7679 = vpop.f32.mrb[0].mxu0
      %v7680 = vadd.f32 0.0, %v7679
      %v7681 = vpop.f32.mrb[0].mxu0
      %v7682 = vpop.f32.mrb[0].mxu0
      %v7683 = vadd.f32 0.0, %v7682
      %v7684 = vpop.f32.mrb[0].mxu0
      %7685 = vmatprep.mubr.bf16.mxu0 %v7600
      %7686 = vmatmul.mubr.bf16.gmra.mrb[0].mxu0 %v7599
      %v7687 = vpop.f32.mrb[0].mxu0
      %v7688 = vadd.f32 0.0, %v7687
      %v7689 = vpop.f32.mrb[0].mxu0
      %v7690 = vpop.f32.mrb[0].mxu0
      %v7691 = vadd.f32 0.0, %v7690
      %v7692 = vpop.f32.mrb[0].mxu0
      %7693 = vmatprep.mubr.bf16.mxu0 %v7602
      %7694 = vmatmul.mubr.bf16.gmra.mrb[0].mxu0 %v7601
      %v7695 = vpop.f32.mrb[0].mxu0
      %v7696 = vadd.f32 0.0, %v7695
      %v7697 = vpop.f32.mrb[0].mxu0
      %v7698 = vpop.f32.mrb[0].mxu0
      %v7699 = vadd.f32 0.0, %v7698
      %v7700 = vpop.f32.mrb[0].mxu0
      %7701 = vmatprep.mubr.bf16.mxu0 %v7604
      %7702 = vmatmul.mubr.bf16.gmra.mrb[0].mxu0 %v7603
      %v7703 = vpop.f32.mrb[0].mxu0
      %v7704 = vadd.f32 0.0, %v7703
      %v7705 = vpop.f32.mrb[0].mxu0
      %v7706 = vpop.f32.mrb[0].mxu0
      %v7707 = vadd.f32 0.0, %v7706
      %v7708 = vpop.f32.mrb[0].mxu0
      %7709 = vmatprep.mubr.bf16.mxu0 %v7606
      %7710 = vmatmul.mubr.bf16.gmra.mrb[0].mxu0 %v7605
      %v7711 = vpop.f32.mrb[0].mxu0
      %v7712 = vadd.f32 0.0, %v7711
      %v7713 = vpop.f32.mrb[0].mxu0
      %v7714 = vpop.f32.mrb[0].mxu0
      %v7715 = vadd.f32 0.0, %v7714
      %v7716 = vpop.f32.mrb[0].mxu0
      %7717 = vmatprep.mubr.bf16.mxu0 %v7608
      %7718 = vmatmul.mubr.bf16.gmra.mrb[0].mxu0 %v7607
      %v7719 = vpop.f32.mrb[0].mxu0
      %v7720 = vadd.f32 0.0, %v7719
      %v7721 = vpop.f32.mrb[0].mxu0
      %v7722 = vpop.f32.mrb[0].mxu0
      %v7723 = vadd.f32 0.0, %v7722
      %v7724 = vpop.f32.mrb[0].mxu0
      %7725 = vmatprep.mubr.bf16.mxu0 %v7610
      %7726 = vmatmul.mubr.bf16.gmra.mrb[0].mxu0 %v7609
      %v7727 = vpop.f32.mrb[0].mxu0
      %v7728 = vadd.f32 0.0, %v7727
      %v7729 = vpop.f32.mrb[0].mxu0
      %v7730 = vpop.f32.mrb[0].mxu0
      %v7731 = vadd.f32 0.0, %v7730
      %v7732 = vpop.f32.mrb[0].mxu0
      %7733 = vmatprep.mubr.bf16.mxu0 %v7612
      %7734 = vmatmul.mubr.bf16.gmra.mrb[0].mxu0 %v7611
      %v7735 = vpop.f32.mrb[0].mxu0
      %v7736 = vadd.f32 0.0, %v7735
      %v7737 = vpop.f32.mrb[0].mxu0
      %v7738 = vpop.f32.mrb[0].mxu0
      %v7739 = vadd.f32 0.0, %v7738
      %v7740 = vpop.f32.mrb[0].mxu0
      %7741 = vmatprep.mubr.bf16.mxu0 %v7614
      %7742 = vmatmul.mubr.bf16.gmra.mrb[0].mxu0 %v7613
      %v7743 = vpop.f32.mrb[0].mxu0
      %v7744 = vadd.f32 0.0, %v7743
      %v7745 = vpop.f32.mrb[0].mxu0
      %v7746 = vpop.f32.mrb[0].mxu0
      %v7747 = vadd.f32 0.0, %v7746
      %v7748 = vpop.f32.mrb[0].mxu0
      %7749 = vmatprep.mubr.bf16.mxu0 %v7616
      %7750 = vmatmul.mubr.bf16.gmra.mrb[0].mxu0 %v7615
      %v7751 = vpop.f32.mrb[0].mxu0
      %v7752 = vadd.f32 0.0, %v7751
      %v7753 = vpop.f32.mrb[0].mxu0
      %v7754 = vpop.f32.mrb[0].mxu0
      %v7755 = vadd.f32 0.0, %v7754
      %v7756 = vpop.f32.mrb[0].mxu0
      %7757 = vmatprep.mubr.bf16.mxu0 %v7618
      %7758 = vmatmul.mubr.bf16.gmra.mrb[0].mxu0 %v7617
      %v7759 = vpop.f32.mrb[0].mxu0
      %v7760 = vadd.f32 0.0, %v7759
      %v7761 = vpop.f32.mrb[0].mxu0
      %v7762 = vpop.f32.mrb[0].mxu0
      %v7763 = vadd.f32 0.0, %v7762
      %v7764 = vpop.f32.mrb[0].mxu0
      %7765 = vmatprep.mubr.bf16.mxu0 %v7620
      %7766 = vmatmul.mubr.bf16.gmra.mrb[0].mxu0 %v7619
      %v7767 = vpop.f32.mrb[0].mxu0
      %v7768 = vadd.f32 0.0, %v7767
      %v7769 = vpop.f32.mrb[0].mxu0
      %v7770 = vpop.f32.mrb[0].mxu0
      %v7771 = vadd.f32 0.0, %v7770
      %v7772 = vpop.f32.mrb[0].mxu0
      %7773 = vmatprep.mubr.bf16.mxu0 %v7622
      %7774 = vmatmul.mubr.bf16.gmra.mrb[0].mxu0 %v7621
      %v7775 = vpop.f32.mrb[0].mxu0
      %v7776 = vadd.f32 0.0, %v7775
      %v7777 = vpop.f32.mrb[0].mxu0
      %v7778 = vpop.f32.mrb[0].mxu0
      %v7779 = vadd.f32 0.0, %v7778
      %v7780 = vpop.f32.mrb[0].mxu0
      %7781 = vmatprep.mubr.bf16.mxu0 %v7624
      %7782 = vmatmul.mubr.bf16.gmra.mrb[0].mxu0 %v7623
      %v7783 = vpop.f32.mrb[0].mxu0
      %v7784 = vadd.f32 0.0, %v7783
      %v7785 = vpop.f32.mrb[0].mxu0
      %v7786 = vpop.f32.mrb[0].mxu0
      %v7787 = vadd.f32 0.0, %v7786
      %v7788 = vpop.f32.mrb[0].mxu0
      %7789 = vmatprep.mubr.bf16.mxu0 %v7626
      %7790 = vmatmul.mubr.bf16.gmra.mrb[0].mxu0 %v7625
      %v7791 = vpop.f32.mrb[0].mxu0
      %v7792 = vadd.f32 0.0, %v7791
      %v7793 = vpop.f32.mrb[0].mxu0
      %v7794 = vpop.f32.mrb[0].mxu0
      %v7795 = vadd.f32 0.0, %v7794
      %v7796 = vpop.f32.mrb[0].mxu0
      %7797 = vmatprep.mubr.bf16.mxu0 %v7628
      %7798 = vmatmul.mubr.bf16.gmra.mrb[0].mxu0 %v7627
      %v7799 = vpop.f32.mrb[0].mxu0
      %v7800 = vadd.f32 0.0, %v7799
      %v7801 = vpop.f32.mrb[0].mxu0
      %v7802 = vpop.f32.mrb[0].mxu0
      %v7803 = vadd.f32 0.0, %v7802
      %v7804 = vpop.f32.mrb[0].mxu0
      %7805 = vdwg.mxu0
      %v7806 = vmul.f32 %v7680, %v7565
      %v7807 = vmul.f32 %v7683, %v7566
      %v7808 = vmul.f32 %v7688, %v7567
      %v7809 = vmul.f32 %v7691, %v7568
      %v7810 = vmul.f32 %v7696, %v7569
      %v7811 = vmul.f32 %v7699, %v7570
      %v7812 = vmul.f32 %v7704, %v7571
      %v7813 = vmul.f32 %v7707, %v7572
      %v7814 = vmul.f32 %v7712, %v7573
      %v7815 = vmul.f32 %v7715, %v7574
      %v7816 = vmul.f32 %v7720, %v7575
      %v7817 = vmul.f32 %v7723, %v7576
      %v7818 = vmul.f32 %v7728, %v7577
      %v7819 = vmul.f32 %v7731, %v7578
      %v7820 = vmul.f32 %v7736, %v7579
      %v7821 = vmul.f32 %v7739, %v7580
      %v7822 = vmul.f32 %v7744, %v7581
      %v7823 = vmul.f32 %v7747, %v7582
      %v7824 = vmul.f32 %v7752, %v7583
      %v7825 = vmul.f32 %v7755, %v7584
      %v7826 = vmul.f32 %v7760, %v7585
      %v7827 = vmul.f32 %v7763, %v7586
      %v7828 = vmul.f32 %v7768, %v7587
      %v7829 = vmul.f32 %v7771, %v7588
      %v7830 = vmul.f32 %v7776, %v7589
      %v7831 = vmul.f32 %v7779, %v7590
      %v7832 = vmul.f32 %v7784, %v7591
      %v7833 = vmul.f32 %v7787, %v7592
      %v7834 = vmul.f32 %v7792, %v7593
      %v7835 = vmul.f32 %v7795, %v7594
      %v7836 = vmul.f32 %v7800, %v7595
      %v7837 = vmul.f32 %v7803, %v7596
      %s7838 = scalar_lea.vmem %s11, 2
      %v7839 = vld [vmem:[%s7838] sm:$0x1]
      %v7841 = vlaneseq
      %v7842 = vshrl.u32 %v7841, 7
      %v7843 = vsub.s32 0, %v7842
      %v7844 = vrot.slane %v7839, %v7843
      %v7846 = vadd.f32 %v7806, %v7844
      %v7847 = vadd.f32 %v7807, %v7844
      %v7848 = vadd.f32 %v7808, %v7844
      %v7849 = vadd.f32 %v7809, %v7844
      %v7850 = vadd.f32 %v7810, %v7844
      %v7851 = vadd.f32 %v7811, %v7844
      %v7852 = vadd.f32 %v7812, %v7844
      %v7853 = vadd.f32 %v7813, %v7844
      %v7854 = vadd.f32 %v7814, %v7844
      %v7855 = vadd.f32 %v7815, %v7844
      %v7856 = vadd.f32 %v7816, %v7844
      %v7857 = vadd.f32 %v7817, %v7844
      %v7858 = vadd.f32 %v7818, %v7844
      %v7859 = vadd.f32 %v7819, %v7844
      %v7860 = vadd.f32 %v7820, %v7844
      %v7861 = vadd.f32 %v7821, %v7844
      %v7862 = vadd.f32 %v7822, %v7844
      %v7863 = vadd.f32 %v7823, %v7844
      %v7864 = vadd.f32 %v7824, %v7844
      %v7865 = vadd.f32 %v7825, %v7844
      %v7866 = vadd.f32 %v7826, %v7844
      %v7867 = vadd.f32 %v7827, %v7844
      %v7868 = vadd.f32 %v7828, %v7844
      %v7869 = vadd.f32 %v7829, %v7844
      %v7870 = vadd.f32 %v7830, %v7844
      %v7871 = vadd.f32 %v7831, %v7844
      %v7872 = vadd.f32 %v7832, %v7844
      %v7873 = vadd.f32 %v7833, %v7844
      %v7874 = vadd.f32 %v7834, %v7844
      %v7875 = vadd.f32 %v7835, %v7844
      %v7876 = vadd.f32 %v7836, %v7844
      %v7877 = vadd.f32 %v7837, %v7844
      %v7878 = vmax.f32 %v7846, 0.0
      %v7879 = vmax.f32 %v7847, 0.0
      %v7880 = vmax.f32 %v7848, 0.0
      %v7881 = vmax.f32 %v7849, 0.0
      %v7882 = vmax.f32 %v7850, 0.0
      %v7883 = vmax.f32 %v7851, 0.0
      %v7884 = vmax.f32 %v7852, 0.0
      %v7885 = vmax.f32 %v7853, 0.0
      %v7886 = vmax.f32 %v7854, 0.0
      %v7887 = vmax.f32 %v7855, 0.0
      %v7888 = vmax.f32 %v7856, 0.0
      %v7889 = vmax.f32 %v7857, 0.0
      %v7890 = vmax.f32 %v7858, 0.0
      %v7891 = vmax.f32 %v7859, 0.0
      %v7892 = vmax.f32 %v7860, 0.0
      %v7893 = vmax.f32 %v7861, 0.0
      %v7894 = vmax.f32 %v7862, 0.0
      %v7895 = vmax.f32 %v7863, 0.0
      %v7896 = vmax.f32 %v7864, 0.0
      %v7897 = vmax.f32 %v7865, 0.0
      %v7898 = vmax.f32 %v7866, 0.0
      %v7899 = vmax.f32 %v7867, 0.0
      %v7900 = vmax.f32 %v7868, 0.0
      %v7901 = vmax.f32 %v7869, 0.0
      %v7902 = vmax.f32 %v7870, 0.0
      %v7903 = vmax.f32 %v7871, 0.0
      %v7904 = vmax.f32 %v7872, 0.0
      %v7905 = vmax.f32 %v7873, 0.0
      %v7906 = vmax.f32 %v7874, 0.0
      %v7907 = vmax.f32 %v7875, 0.0
      %v7908 = vmax.f32 %v7876, 0.0
      %v7909 = vmax.f32 %v7877, 0.0
      %7910 = vst [vmem:[%s455] sm:$0xff] %v7878
      %7911 = vst [vmem:[%s455 + $0x8] sm:$0xff] %v7879
      %7912 = vst [vmem:[%s455 + $0x10] sm:$0xff] %v7880
      %7913 = vst [vmem:[%s455 + $0x18] sm:$0xff] %v7881
      %7914 = vst [vmem:[%s455 + $0x20] sm:$0xff] %v7882
      %7915 = vst [vmem:[%s455 + $0x28] sm:$0xff] %v7883
      %7916 = vst [vmem:[%s455 + $0x30] sm:$0xff] %v7884
      %7917 = vst [vmem:[%s455 + $0x38] sm:$0xff] %v7885
      %7918 = vst [vmem:[%s455 + $0x40] sm:$0xff] %v7886
      %7919 = vst [vmem:[%s455 + $0x48] sm:$0xff] %v7887
      %7920 = vst [vmem:[%s455 + $0x50] sm:$0xff] %v7888
      %7921 = vst [vmem:[%s455 + $0x58] sm:$0xff] %v7889
      %7922 = vst [vmem:[%s455 + $0x60] sm:$0xff] %v7890
      %7923 = vst [vmem:[%s455 + $0x68] sm:$0xff] %v7891
      %7924 = vst [vmem:[%s455 + $0x70] sm:$0xff] %v7892
      %7925 = vst [vmem:[%s455 + $0x78] sm:$0xff] %v7893
      %7926 = vst [vmem:[%s455 + $0x80] sm:$0xff] %v7894
      %7927 = vst [vmem:[%s455 + $0x88] sm:$0xff] %v7895
      %7928 = vst [vmem:[%s455 + $0x90] sm:$0xff] %v7896
      %7929 = vst [vmem:[%s455 + $0x98] sm:$0xff] %v7897
      %7930 = vst [vmem:[%s455 + $0xa0] sm:$0xff] %v7898
      %7931 = vst [vmem:[%s455 + $0xa8] sm:$0xff] %v7899
      %7932 = vst [vmem:[%s455 + $0xb0] sm:$0xff] %v7900
      %7933 = vst [vmem:[%s455 + $0xb8] sm:$0xff] %v7901
      %7934 = vst [vmem:[%s455 + $0xc0] sm:$0xff] %v7902
      %7935 = vst [vmem:[%s455 + $0xc8] sm:$0xff] %v7903
      %7936 = vst [vmem:[%s455 + $0xd0] sm:$0xff] %v7904
      %7937 = vst [vmem:[%s455 + $0xd8] sm:$0xff] %v7905
      %7938 = vst [vmem:[%s455 + $0xe0] sm:$0xff] %v7906
      %7939 = vst [vmem:[%s455 + $0xe8] sm:$0xff] %v7907
      %7940 = vst [vmem:[%s455 + $0xf0] sm:$0xff] %v7908
      %7941 = vst [vmem:[%s455 + $0xf8] sm:$0xff] %v7909
      %s7942 = smul.u32 32, %s23
      %p7943 = scmp.lt.s32.totalorder %s7942, 63
      %s7944 = scalar_select %p7943, %s7942, 63
      %s7945 = smul.addr %s7944, 8
      %s7946 = scalar_lea.vmem %s12, %s7945
      // Predicated region
      $region69: #{gain_forward.1} parent=67 // pred_check
        %p7947 = pneg %p308
      $region70: #{gain_forward.1} parent=67 // pred_check_branch
        %7949 = sbr.rel (%p7947) target = $region72
      $region71: #{gain_forward.1} parent=67 // pred_region
        %s7950 = smul.u32 32, %s23
      $region72: #{gain_forward.1} parent=67 // pred_fallthru
        _
    $region68: #{gain_forward.1} parent=5 // pred_fallthru
      _
    %p7951 = scmp.le.s32.totalorder 2, %s18
    // Predicated region
    $region73: #{gain_forward.1} parent=5 // pred_check
      %p7952 = pneg %p7951
    $region74: #{gain_forward.1} parent=5 // pred_check_branch
      %7954 = sbr.rel (%p7952) target = $region76
    $region75: #{gain_forward.1} parent=5 // pred_region
      %s7955 = ssub.s32 %s18, 2
      // Predicated region
      $region77: #{gain_forward.1} parent=75 // pred_check
        %p7956 = pneg %p314
      $region78: #{gain_forward.1} parent=75 // pred_check_branch
        %7958 = sbr.rel (%p7956) target = $region80
      $region79: #{gain_forward.1} parent=75 // pred_region
        %s7959 = smul.u32 32, %s24
        %p7960 = scmp.lt.s32.totalorder %s7959, 63
        %s7961 = scalar_select %p7960, %s7959, 63
        %s7962 = smul.addr %s7961, 8
        %s7963 = scalar_lea.vmem %s12, %s7962
      $region80: #{gain_forward.1} parent=75 // pred_fallthru
        _
    $region76: #{gain_forward.1} parent=5 // pred_fallthru
      _
  $region6: #{gain_forward.1} parent=0 // loop_footer
    %s22 = sadd.s32 1, %s18
  $region7: #{gain_forward.1} parent=0 // loop_footer_branch
    %17 = sbr.rel target = $region3
  $region8: #{gain_forward.1} parent=0 // loop_exit
    _

</llo_original>
